<compile_context>
chip_gen: v7x
topology: tpu7x:2x2x1
jax: 0.10.0
libtpu: 0.0.40
codegen_flags: <defaults>
</compile_context>

<pallas_src>
import jax
import jax.numpy as jnp
from jax.experimental import pallas as pl
from jax.experimental.pallas import tpu as pltpu


def p2c_kernel(xp_ref, dww_ref, dwb_ref, w1_ref, b1_ref, w2_ref, o_ref):
    # xp_ref : (1, Hp, Wp, C)  zero-padded image, one batch element
    # dww_ref: (K, K, C)       depthwise weights, per-channel taps
    # dwb_ref: (1, C)          depthwise bias
    # w1_ref : (C, C)          1x1 conv #1 weight, already (C_in, C_out)
    # b1_ref : (1, C)          1x1 conv #1 bias
    # w2_ref : (M, C)          1x1 conv #2 weight (no bias), torch (out, in)
    # o_ref  : (1, M, H*W)
    K = dww_ref.shape[0]
    _, Hp, Wp, C = xp_ref.shape
    H = Hp - (K - 1)
    W = Wp - (K - 1)

    xp = xp_ref[0].astype(jnp.float32)          # (Hp, Wp, C)
    dww = dww_ref[...]                          # (K, K, C), already f32

    # Depthwise KxK conv as K*K shifted multiply-adds (pure VPU work).
    acc = jnp.zeros((H, W, C), jnp.float32)
    for kw in range(K):                         # hoist the sublane-shift slice
        xw = xp[:, kw:kw + W, :]                # (Hp, W, C)
        for kh in range(K):
            acc = acc + xw[kh:kh + H] * dww[kh, kw]
    acc = jnp.maximum(acc + dwb_ref[...], 0.0)  # bias + ReLU

    # 1x1 conv #1 + ReLU  (MXU matmul over channels)
    h = acc.reshape(H * W, C)
    h = jnp.dot(h, w1_ref[...], preferred_element_type=jnp.float32) + b1_ref[...]
    h = jnp.maximum(h, 0.0)

    # 1x1 conv #2 (no bias), contracted so the result is (M, H*W) directly
    # -> lane-dense output block, no transpose needed.
    out = jax.lax.dot_general(
        w2_ref[...], h,
        dimension_numbers=(((1,), (1,)), ((), ())),
        preferred_element_type=jnp.float32)     # (M, H*W)

    o_ref[0] = out.astype(o_ref.dtype)


def p2c_conv2d(x, H, W, dw_w, dw_b, w1, b1, w2):
    """P2CConv2d.forward(x, H, W).

    x    : (B, H*W, C)
    dw_w : (C, 1, K, K)   depthwise conv weight (torch layout)
    dw_b : (C,)           depthwise conv bias
    w1   : (C, C, 1, 1)   pointwise conv #1 weight
    b1   : (C,)           pointwise conv #1 bias
    w2   : (M, C, 1, 1)   pointwise conv #2 weight (no bias)
    returns (B, M, H*W)
    """
    B, N, C = x.shape
    assert N == H * W
    K = dw_w.shape[-1]
    pad = (K - 1) // 2
    M = w2.shape[0]
    Hp, Wp = H + 2 * pad, W + 2 * pad

    # Channels-last image with an explicit zero halo (done once, in XLA).
    img = x.reshape(B, H, W, C)
    img = jnp.pad(img, ((0, 0), (pad, pad), (pad, pad), (0, 0)))

    # Re-pack parameters once, in f32, in TPU-friendly layouts.
    dww = jnp.transpose(dw_w[:, 0, :, :], (1, 2, 0)).astype(jnp.float32)  # (K, K, C)
    dwb = dw_b.reshape(1, C).astype(jnp.float32)
    w1m = jnp.transpose(w1[:, :, 0, 0]).astype(jnp.float32)               # (C_in, C_out)
    b1m = b1.reshape(1, C).astype(jnp.float32)
    w2m = w2[:, :, 0, 0].astype(jnp.float32)                              # (M, C)

    out = pl.pallas_call(
        p2c_kernel,
        out_shape=jax.ShapeDtypeStruct((B, M, H * W), x.dtype),
        grid_spec=pltpu.PrefetchScalarGridSpec(
            num_scalar_prefetch=0,
            grid=(B,),
            in_specs=[
                pl.BlockSpec((1, Hp, Wp, C), lambda b: (b, 0, 0, 0)),  # image
                pl.BlockSpec((K, K, C), lambda b: (0, 0, 0)),          # dw weight
                pl.BlockSpec((1, C), lambda b: (0, 0)),                # dw bias
                pl.BlockSpec((C, C), lambda b: (0, 0)),                # 1x1 #1 W
                pl.BlockSpec((1, C), lambda b: (0, 0)),                # 1x1 #1 b
                pl.BlockSpec((M, C), lambda b: (0, 0)),                # 1x1 #2 W
            ],
            out_specs=pl.BlockSpec((1, M, H * W), lambda b: (b, 0, 0)),
        ),
        compiler_params=pltpu.CompilerParams(
            dimension_semantics=("parallel",)),
    )(img, dww, dwb, w1m, b1m, w2m)
    return out


def p2c_ref(x, H, W, dw_w, dw_b, w1, b1, w2):
    """Pure-JAX/XLA reference matching the PyTorch module."""
    B, N, C = x.shape
    K = dw_w.shape[-1]
    pad = (K - 1) // 2
    M = w2.shape[0]

    img = x.reshape(B, H, W, C).astype(jnp.float32)
    hwio = jnp.transpose(dw_w[:, 0, :, :], (1, 2, 0))[:, :, None, :]  # (K, K, 1, C)
    y = jax.lax.conv_general_dilated(
        img, hwio.astype(jnp.float32),
        window_strides=(1, 1),
        padding=((pad, pad), (pad, pad)),
        dimension_numbers=("NHWC", "HWIO", "NHWC"),
        feature_group_count=C,
        precision=jax.lax.Precision.HIGHEST)
    y = jax.nn.relu(y + dw_b.reshape(1, 1, 1, C))

    w1m = w1[:, :, 0, 0]                                   # (C_out, C_in)
    y = jax.nn.relu(jnp.einsum("bhwi,oi->bhwo", y, w1m) + b1)

    w2m = w2[:, :, 0, 0]                                   # (M, C)
    y = jnp.einsum("bhwc,mc->bmhw", y, w2m)
    return y.reshape(B, M, H * W).astype(x.dtype)


if __name__ == "__main__":
    key = jax.random.PRNGKey(0)
    B, dim, H, W = 2, 32, 16, 16
    num_clusters, K = 8, 7
    N = H * W

    kx, k0, k1, k2, k3, k4 = jax.random.split(key, 6)
    x = jax.random.normal(kx, (B, N, dim), dtype=jnp.float32)
    dw_w = 0.1 * jax.random.normal(k0, (dim, 1, K, K), dtype=jnp.float32)
    dw_b = 0.1 * jax.random.normal(k1, (dim,), dtype=jnp.float32)
    w1 = 0.1 * jax.random.normal(k2, (dim, dim, 1, 1), dtype=jnp.float32)
    b1 = 0.1 * jax.random.normal(k3, (dim,), dtype=jnp.float32)
    w2 = 0.1 * jax.random.normal(k4, (num_clusters, dim, 1, 1), dtype=jnp.float32)

    out = p2c_conv2d(x, H, W, dw_w, dw_b, w1, b1, w2)
    out = jax.block_until_ready(out)

    ref = p2c_ref(x, H, W, dw_w, dw_b, w1, b1, w2)
    assert out.shape == (B, num_clusters, N)
    assert jnp.allclose(out, ref, atol=5e-4, rtol=5e-4), (
        "mismatch vs reference: max abs err = "
        f"{float(jnp.max(jnp.abs(out.astype(jnp.float32) - ref.astype(jnp.float32))))}")

    print("KERNEL_OK")
</pallas_src>

<mosaic_0001>
module attributes {stable_mosaic.version = 11 : i64} {
  func.func @p2c_kernel(%arg0: i32, %arg1: memref<1x22x22x32xf32, #tpu.memory_space<vmem>>, %arg2: memref<7x7x32xf32, #tpu.memory_space<vmem>>, %arg3: memref<1x32xf32, #tpu.memory_space<vmem>>, %arg4: memref<32x32xf32, #tpu.memory_space<vmem>>, %arg5: memref<1x32xf32, #tpu.memory_space<vmem>>, %arg6: memref<8x32xf32, #tpu.memory_space<vmem>>, %arg7: memref<1x8x256xf32, #tpu.memory_space<vmem>>) attributes {dimension_semantics = [#tpu.dimension_semantics<parallel>], iteration_bounds = array<i64: 2>, scalar_prefetch = 0 : i64, scratch_operands = 0 : i64, tpu.core_type = #tpu.core_type<tc>, window_params = [{transform_indices = @transform_0, window_bounds = array<i64: 1, 22, 22, 32>}, {pipeline_mode = #tpu.pipeline_mode<synchronous>, transform_indices = @transform_1, window_bounds = array<i64: 7, 7, 32>}, {pipeline_mode = #tpu.pipeline_mode<synchronous>, transform_indices = @transform_2, window_bounds = array<i64: 1, 32>}, {pipeline_mode = #tpu.pipeline_mode<synchronous>, transform_indices = @transform_3, window_bounds = array<i64: 32, 32>}, {pipeline_mode = #tpu.pipeline_mode<synchronous>, transform_indices = @transform_4, window_bounds = array<i64: 1, 32>}, {pipeline_mode = #tpu.pipeline_mode<synchronous>, transform_indices = @transform_5, window_bounds = array<i64: 8, 32>}, {transform_indices = @transform_6, window_bounds = array<i64: 1, 8, 256>}]} {
    %c0 = arith.constant 0 : index
    %c0_0 = arith.constant 0 : index
    %c0_1 = arith.constant 0 : index
    %c0_2 = arith.constant 0 : index
    %0 = vector.load %arg1[%c0, %c0_0, %c0_1, %c0_2] : memref<1x22x22x32xf32, #tpu.memory_space<vmem>>, vector<1x22x22x32xf32>
    %1 = vector.shape_cast %0 : vector<1x22x22x32xf32> to vector<22x22x32xf32>
    %c0_3 = arith.constant 0 : index
    %c0_4 = arith.constant 0 : index
    %c0_5 = arith.constant 0 : index
    %2 = vector.load %arg2[%c0_3, %c0_4, %c0_5] : memref<7x7x32xf32, #tpu.memory_space<vmem>>, vector<7x7x32xf32>
    %cst = arith.constant 0.000000e+00 : f32
    %3 = vector.broadcast %cst : f32 to vector<16x16x32xf32>
    %4 = vector.extract_strided_slice %1 {offsets = [0, 0, 0], sizes = [22, 16, 32], strides = [1, 1, 1]} : vector<22x22x32xf32> to vector<22x16x32xf32>
    %5 = vector.extract_strided_slice %4 {offsets = [0, 0, 0], sizes = [16, 16, 32], strides = [1, 1, 1]} : vector<22x16x32xf32> to vector<16x16x32xf32>
    %6 = vector.extract_strided_slice %2 {offsets = [0, 0, 0], sizes = [1, 1, 32], strides = [1, 1, 1]} : vector<7x7x32xf32> to vector<1x1x32xf32>
    %7 = vector.shape_cast %6 : vector<1x1x32xf32> to vector<32xf32>
    %8 = vector.shape_cast %7 : vector<32xf32> to vector<1x1x32xf32>
    %9 = vector.broadcast %8 : vector<1x1x32xf32> to vector<16x16x32xf32>
    %10 = arith.mulf %5, %9 : vector<16x16x32xf32>
    %11 = arith.addf %3, %10 : vector<16x16x32xf32>
    %12 = vector.extract_strided_slice %4 {offsets = [1, 0, 0], sizes = [16, 16, 32], strides = [1, 1, 1]} : vector<22x16x32xf32> to vector<16x16x32xf32>
    %13 = vector.extract_strided_slice %2 {offsets = [1, 0, 0], sizes = [1, 1, 32], strides = [1, 1, 1]} : vector<7x7x32xf32> to vector<1x1x32xf32>
    %14 = vector.shape_cast %13 : vector<1x1x32xf32> to vector<32xf32>
    %15 = vector.shape_cast %14 : vector<32xf32> to vector<1x1x32xf32>
    %16 = vector.broadcast %15 : vector<1x1x32xf32> to vector<16x16x32xf32>
    %17 = arith.mulf %12, %16 : vector<16x16x32xf32>
    %18 = arith.addf %11, %17 : vector<16x16x32xf32>
    %19 = vector.extract_strided_slice %4 {offsets = [2, 0, 0], sizes = [16, 16, 32], strides = [1, 1, 1]} : vector<22x16x32xf32> to vector<16x16x32xf32>
    %20 = vector.extract_strided_slice %2 {offsets = [2, 0, 0], sizes = [1, 1, 32], strides = [1, 1, 1]} : vector<7x7x32xf32> to vector<1x1x32xf32>
    %21 = vector.shape_cast %20 : vector<1x1x32xf32> to vector<32xf32>
    %22 = vector.shape_cast %21 : vector<32xf32> to vector<1x1x32xf32>
    %23 = vector.broadcast %22 : vector<1x1x32xf32> to vector<16x16x32xf32>
    %24 = arith.mulf %19, %23 : vector<16x16x32xf32>
    %25 = arith.addf %18, %24 : vector<16x16x32xf32>
    %26 = vector.extract_strided_slice %4 {offsets = [3, 0, 0], sizes = [16, 16, 32], strides = [1, 1, 1]} : vector<22x16x32xf32> to vector<16x16x32xf32>
    %27 = vector.extract_strided_slice %2 {offsets = [3, 0, 0], sizes = [1, 1, 32], strides = [1, 1, 1]} : vector<7x7x32xf32> to vector<1x1x32xf32>
    %28 = vector.shape_cast %27 : vector<1x1x32xf32> to vector<32xf32>
    %29 = vector.shape_cast %28 : vector<32xf32> to vector<1x1x32xf32>
    %30 = vector.broadcast %29 : vector<1x1x32xf32> to vector<16x16x32xf32>
    %31 = arith.mulf %26, %30 : vector<16x16x32xf32>
    %32 = arith.addf %25, %31 : vector<16x16x32xf32>
    %33 = vector.extract_strided_slice %4 {offsets = [4, 0, 0], sizes = [16, 16, 32], strides = [1, 1, 1]} : vector<22x16x32xf32> to vector<16x16x32xf32>
    %34 = vector.extract_strided_slice %2 {offsets = [4, 0, 0], sizes = [1, 1, 32], strides = [1, 1, 1]} : vector<7x7x32xf32> to vector<1x1x32xf32>
    %35 = vector.shape_cast %34 : vector<1x1x32xf32> to vector<32xf32>
    %36 = vector.shape_cast %35 : vector<32xf32> to vector<1x1x32xf32>
    %37 = vector.broadcast %36 : vector<1x1x32xf32> to vector<16x16x32xf32>
    %38 = arith.mulf %33, %37 : vector<16x16x32xf32>
    %39 = arith.addf %32, %38 : vector<16x16x32xf32>
    %40 = vector.extract_strided_slice %4 {offsets = [5, 0, 0], sizes = [16, 16, 32], strides = [1, 1, 1]} : vector<22x16x32xf32> to vector<16x16x32xf32>
    %41 = vector.extract_strided_slice %2 {offsets = [5, 0, 0], sizes = [1, 1, 32], strides = [1, 1, 1]} : vector<7x7x32xf32> to vector<1x1x32xf32>
    %42 = vector.shape_cast %41 : vector<1x1x32xf32> to vector<32xf32>
    %43 = vector.shape_cast %42 : vector<32xf32> to vector<1x1x32xf32>
    %44 = vector.broadcast %43 : vector<1x1x32xf32> to vector<16x16x32xf32>
    %45 = arith.mulf %40, %44 : vector<16x16x32xf32>
    %46 = arith.addf %39, %45 : vector<16x16x32xf32>
    %47 = vector.extract_strided_slice %4 {offsets = [6, 0, 0], sizes = [16, 16, 32], strides = [1, 1, 1]} : vector<22x16x32xf32> to vector<16x16x32xf32>
    %48 = vector.extract_strided_slice %2 {offsets = [6, 0, 0], sizes = [1, 1, 32], strides = [1, 1, 1]} : vector<7x7x32xf32> to vector<1x1x32xf32>
    %49 = vector.shape_cast %48 : vector<1x1x32xf32> to vector<32xf32>
    %50 = vector.shape_cast %49 : vector<32xf32> to vector<1x1x32xf32>
    %51 = vector.broadcast %50 : vector<1x1x32xf32> to vector<16x16x32xf32>
    %52 = arith.mulf %47, %51 : vector<16x16x32xf32>
    %53 = arith.addf %46, %52 : vector<16x16x32xf32>
    %54 = vector.extract_strided_slice %1 {offsets = [0, 1, 0], sizes = [22, 16, 32], strides = [1, 1, 1]} : vector<22x22x32xf32> to vector<22x16x32xf32>
    %55 = vector.extract_strided_slice %54 {offsets = [0, 0, 0], sizes = [16, 16, 32], strides = [1, 1, 1]} : vector<22x16x32xf32> to vector<16x16x32xf32>
    %56 = vector.extract_strided_slice %2 {offsets = [0, 1, 0], sizes = [1, 1, 32], strides = [1, 1, 1]} : vector<7x7x32xf32> to vector<1x1x32xf32>
    %57 = vector.shape_cast %56 : vector<1x1x32xf32> to vector<32xf32>
    %58 = vector.shape_cast %57 : vector<32xf32> to vector<1x1x32xf32>
    %59 = vector.broadcast %58 : vector<1x1x32xf32> to vector<16x16x32xf32>
    %60 = arith.mulf %55, %59 : vector<16x16x32xf32>
    %61 = arith.addf %53, %60 : vector<16x16x32xf32>
    %62 = vector.extract_strided_slice %54 {offsets = [1, 0, 0], sizes = [16, 16, 32], strides = [1, 1, 1]} : vector<22x16x32xf32> to vector<16x16x32xf32>
    %63 = vector.extract_strided_slice %2 {offsets = [1, 1, 0], sizes = [1, 1, 32], strides = [1, 1, 1]} : vector<7x7x32xf32> to vector<1x1x32xf32>
    %64 = vector.shape_cast %63 : vector<1x1x32xf32> to vector<32xf32>
    %65 = vector.shape_cast %64 : vector<32xf32> to vector<1x1x32xf32>
    %66 = vector.broadcast %65 : vector<1x1x32xf32> to vector<16x16x32xf32>
    %67 = arith.mulf %62, %66 : vector<16x16x32xf32>
    %68 = arith.addf %61, %67 : vector<16x16x32xf32>
    %69 = vector.extract_strided_slice %54 {offsets = [2, 0, 0], sizes = [16, 16, 32], strides = [1, 1, 1]} : vector<22x16x32xf32> to vector<16x16x32xf32>
    %70 = vector.extract_strided_slice %2 {offsets = [2, 1, 0], sizes = [1, 1, 32], strides = [1, 1, 1]} : vector<7x7x32xf32> to vector<1x1x32xf32>
    %71 = vector.shape_cast %70 : vector<1x1x32xf32> to vector<32xf32>
    %72 = vector.shape_cast %71 : vector<32xf32> to vector<1x1x32xf32>
    %73 = vector.broadcast %72 : vector<1x1x32xf32> to vector<16x16x32xf32>
    %74 = arith.mulf %69, %73 : vector<16x16x32xf32>
    %75 = arith.addf %68, %74 : vector<16x16x32xf32>
    %76 = vector.extract_strided_slice %54 {offsets = [3, 0, 0], sizes = [16, 16, 32], strides = [1, 1, 1]} : vector<22x16x32xf32> to vector<16x16x32xf32>
    %77 = vector.extract_strided_slice %2 {offsets = [3, 1, 0], sizes = [1, 1, 32], strides = [1, 1, 1]} : vector<7x7x32xf32> to vector<1x1x32xf32>
    %78 = vector.shape_cast %77 : vector<1x1x32xf32> to vector<32xf32>
    %79 = vector.shape_cast %78 : vector<32xf32> to vector<1x1x32xf32>
    %80 = vector.broadcast %79 : vector<1x1x32xf32> to vector<16x16x32xf32>
    %81 = arith.mulf %76, %80 : vector<16x16x32xf32>
    %82 = arith.addf %75, %81 : vector<16x16x32xf32>
    %83 = vector.extract_strided_slice %54 {offsets = [4, 0, 0], sizes = [16, 16, 32], strides = [1, 1, 1]} : vector<22x16x32xf32> to vector<16x16x32xf32>
    %84 = vector.extract_strided_slice %2 {offsets = [4, 1, 0], sizes = [1, 1, 32], strides = [1, 1, 1]} : vector<7x7x32xf32> to vector<1x1x32xf32>
    %85 = vector.shape_cast %84 : vector<1x1x32xf32> to vector<32xf32>
    %86 = vector.shape_cast %85 : vector<32xf32> to vector<1x1x32xf32>
    %87 = vector.broadcast %86 : vector<1x1x32xf32> to vector<16x16x32xf32>
    %88 = arith.mulf %83, %87 : vector<16x16x32xf32>
    %89 = arith.addf %82, %88 : vector<16x16x32xf32>
    %90 = vector.extract_strided_slice %54 {offsets = [5, 0, 0], sizes = [16, 16, 32], strides = [1, 1, 1]} : vector<22x16x32xf32> to vector<16x16x32xf32>
    %91 = vector.extract_strided_slice %2 {offsets = [5, 1, 0], sizes = [1, 1, 32], strides = [1, 1, 1]} : vector<7x7x32xf32> to vector<1x1x32xf32>
    %92 = vector.shape_cast %91 : vector<1x1x32xf32> to vector<32xf32>
    %93 = vector.shape_cast %92 : vector<32xf32> to vector<1x1x32xf32>
    %94 = vector.broadcast %93 : vector<1x1x32xf32> to vector<16x16x32xf32>
    %95 = arith.mulf %90, %94 : vector<16x16x32xf32>
    %96 = arith.addf %89, %95 : vector<16x16x32xf32>
    %97 = vector.extract_strided_slice %54 {offsets = [6, 0, 0], sizes = [16, 16, 32], strides = [1, 1, 1]} : vector<22x16x32xf32> to vector<16x16x32xf32>
    %98 = vector.extract_strided_slice %2 {offsets = [6, 1, 0], sizes = [1, 1, 32], strides = [1, 1, 1]} : vector<7x7x32xf32> to vector<1x1x32xf32>
    %99 = vector.shape_cast %98 : vector<1x1x32xf32> to vector<32xf32>
    %100 = vector.shape_cast %99 : vector<32xf32> to vector<1x1x32xf32>
    %101 = vector.broadcast %100 : vector<1x1x32xf32> to vector<16x16x32xf32>
    %102 = arith.mulf %97, %101 : vector<16x16x32xf32>
    %103 = arith.addf %96, %102 : vector<16x16x32xf32>
    %104 = vector.extract_strided_slice %1 {offsets = [0, 2, 0], sizes = [22, 16, 32], strides = [1, 1, 1]} : vector<22x22x32xf32> to vector<22x16x32xf32>
    %105 = vector.extract_strided_slice %104 {offsets = [0, 0, 0], sizes = [16, 16, 32], strides = [1, 1, 1]} : vector<22x16x32xf32> to vector<16x16x32xf32>
    %106 = vector.extract_strided_slice %2 {offsets = [0, 2, 0], sizes = [1, 1, 32], strides = [1, 1, 1]} : vector<7x7x32xf32> to vector<1x1x32xf32>
    %107 = vector.shape_cast %106 : vector<1x1x32xf32> to vector<32xf32>
    %108 = vector.shape_cast %107 : vector<32xf32> to vector<1x1x32xf32>
    %109 = vector.broadcast %108 : vector<1x1x32xf32> to vector<16x16x32xf32>
    %110 = arith.mulf %105, %109 : vector<16x16x32xf32>
    %111 = arith.addf %103, %110 : vector<16x16x32xf32>
    %112 = vector.extract_strided_slice %104 {offsets = [1, 0, 0], sizes = [16, 16, 32], strides = [1, 1, 1]} : vector<22x16x32xf32> to vector<16x16x32xf32>
    %113 = vector.extract_strided_slice %2 {offsets = [1, 2, 0], sizes = [1, 1, 32], strides = [1, 1, 1]} : vector<7x7x32xf32> to vector<1x1x32xf32>
    %114 = vector.shape_cast %113 : vector<1x1x32xf32> to vector<32xf32>
    %115 = vector.shape_cast %114 : vector<32xf32> to vector<1x1x32xf32>
    %116 = vector.broadcast %115 : vector<1x1x32xf32> to vector<16x16x32xf32>
    %117 = arith.mulf %112, %116 : vector<16x16x32xf32>
    %118 = arith.addf %111, %117 : vector<16x16x32xf32>
    %119 = vector.extract_strided_slice %104 {offsets = [2, 0, 0], sizes = [16, 16, 32], strides = [1, 1, 1]} : vector<22x16x32xf32> to vector<16x16x32xf32>
    %120 = vector.extract_strided_slice %2 {offsets = [2, 2, 0], sizes = [1, 1, 32], strides = [1, 1, 1]} : vector<7x7x32xf32> to vector<1x1x32xf32>
    %121 = vector.shape_cast %120 : vector<1x1x32xf32> to vector<32xf32>
    %122 = vector.shape_cast %121 : vector<32xf32> to vector<1x1x32xf32>
    %123 = vector.broadcast %122 : vector<1x1x32xf32> to vector<16x16x32xf32>
    %124 = arith.mulf %119, %123 : vector<16x16x32xf32>
    %125 = arith.addf %118, %124 : vector<16x16x32xf32>
    %126 = vector.extract_strided_slice %104 {offsets = [3, 0, 0], sizes = [16, 16, 32], strides = [1, 1, 1]} : vector<22x16x32xf32> to vector<16x16x32xf32>
    %127 = vector.extract_strided_slice %2 {offsets = [3, 2, 0], sizes = [1, 1, 32], strides = [1, 1, 1]} : vector<7x7x32xf32> to vector<1x1x32xf32>
    %128 = vector.shape_cast %127 : vector<1x1x32xf32> to vector<32xf32>
    %129 = vector.shape_cast %128 : vector<32xf32> to vector<1x1x32xf32>
    %130 = vector.broadcast %129 : vector<1x1x32xf32> to vector<16x16x32xf32>
    %131 = arith.mulf %126, %130 : vector<16x16x32xf32>
    %132 = arith.addf %125, %131 : vector<16x16x32xf32>
    %133 = vector.extract_strided_slice %104 {offsets = [4, 0, 0], sizes = [16, 16, 32], strides = [1, 1, 1]} : vector<22x16x32xf32> to vector<16x16x32xf32>
    %134 = vector.extract_strided_slice %2 {offsets = [4, 2, 0], sizes = [1, 1, 32], strides = [1, 1, 1]} : vector<7x7x32xf32> to vector<1x1x32xf32>
    %135 = vector.shape_cast %134 : vector<1x1x32xf32> to vector<32xf32>
    %136 = vector.shape_cast %135 : vector<32xf32> to vector<1x1x32xf32>
    %137 = vector.broadcast %136 : vector<1x1x32xf32> to vector<16x16x32xf32>
    %138 = arith.mulf %133, %137 : vector<16x16x32xf32>
    %139 = arith.addf %132, %138 : vector<16x16x32xf32>
    %140 = vector.extract_strided_slice %104 {offsets = [5, 0, 0], sizes = [16, 16, 32], strides = [1, 1, 1]} : vector<22x16x32xf32> to vector<16x16x32xf32>
    %141 = vector.extract_strided_slice %2 {offsets = [5, 2, 0], sizes = [1, 1, 32], strides = [1, 1, 1]} : vector<7x7x32xf32> to vector<1x1x32xf32>
    %142 = vector.shape_cast %141 : vector<1x1x32xf32> to vector<32xf32>
    %143 = vector.shape_cast %142 : vector<32xf32> to vector<1x1x32xf32>
    %144 = vector.broadcast %143 : vector<1x1x32xf32> to vector<16x16x32xf32>
    %145 = arith.mulf %140, %144 : vector<16x16x32xf32>
    %146 = arith.addf %139, %145 : vector<16x16x32xf32>
    %147 = vector.extract_strided_slice %104 {offsets = [6, 0, 0], sizes = [16, 16, 32], strides = [1, 1, 1]} : vector<22x16x32xf32> to vector<16x16x32xf32>
    %148 = vector.extract_strided_slice %2 {offsets = [6, 2, 0], sizes = [1, 1, 32], strides = [1, 1, 1]} : vector<7x7x32xf32> to vector<1x1x32xf32>
    %149 = vector.shape_cast %148 : vector<1x1x32xf32> to vector<32xf32>
    %150 = vector.shape_cast %149 : vector<32xf32> to vector<1x1x32xf32>
    %151 = vector.broadcast %150 : vector<1x1x32xf32> to vector<16x16x32xf32>
    %152 = arith.mulf %147, %151 : vector<16x16x32xf32>
    %153 = arith.addf %146, %152 : vector<16x16x32xf32>
    %154 = vector.extract_strided_slice %1 {offsets = [0, 3, 0], sizes = [22, 16, 32], strides = [1, 1, 1]} : vector<22x22x32xf32> to vector<22x16x32xf32>
    %155 = vector.extract_strided_slice %154 {offsets = [0, 0, 0], sizes = [16, 16, 32], strides = [1, 1, 1]} : vector<22x16x32xf32> to vector<16x16x32xf32>
    %156 = vector.extract_strided_slice %2 {offsets = [0, 3, 0], sizes = [1, 1, 32], strides = [1, 1, 1]} : vector<7x7x32xf32> to vector<1x1x32xf32>
    %157 = vector.shape_cast %156 : vector<1x1x32xf32> to vector<32xf32>
    %158 = vector.shape_cast %157 : vector<32xf32> to vector<1x1x32xf32>
    %159 = vector.broadcast %158 : vector<1x1x32xf32> to vector<16x16x32xf32>
    %160 = arith.mulf %155, %159 : vector<16x16x32xf32>
    %161 = arith.addf %153, %160 : vector<16x16x32xf32>
    %162 = vector.extract_strided_slice %154 {offsets = [1, 0, 0], sizes = [16, 16, 32], strides = [1, 1, 1]} : vector<22x16x32xf32> to vector<16x16x32xf32>
    %163 = vector.extract_strided_slice %2 {offsets = [1, 3, 0], sizes = [1, 1, 32], strides = [1, 1, 1]} : vector<7x7x32xf32> to vector<1x1x32xf32>
    %164 = vector.shape_cast %163 : vector<1x1x32xf32> to vector<32xf32>
    %165 = vector.shape_cast %164 : vector<32xf32> to vector<1x1x32xf32>
    %166 = vector.broadcast %165 : vector<1x1x32xf32> to vector<16x16x32xf32>
    %167 = arith.mulf %162, %166 : vector<16x16x32xf32>
    %168 = arith.addf %161, %167 : vector<16x16x32xf32>
    %169 = vector.extract_strided_slice %154 {offsets = [2, 0, 0], sizes = [16, 16, 32], strides = [1, 1, 1]} : vector<22x16x32xf32> to vector<16x16x32xf32>
    %170 = vector.extract_strided_slice %2 {offsets = [2, 3, 0], sizes = [1, 1, 32], strides = [1, 1, 1]} : vector<7x7x32xf32> to vector<1x1x32xf32>
    %171 = vector.shape_cast %170 : vector<1x1x32xf32> to vector<32xf32>
    %172 = vector.shape_cast %171 : vector<32xf32> to vector<1x1x32xf32>
    %173 = vector.broadcast %172 : vector<1x1x32xf32> to vector<16x16x32xf32>
    %174 = arith.mulf %169, %173 : vector<16x16x32xf32>
    %175 = arith.addf %168, %174 : vector<16x16x32xf32>
    %176 = vector.extract_strided_slice %154 {offsets = [3, 0, 0], sizes = [16, 16, 32], strides = [1, 1, 1]} : vector<22x16x32xf32> to vector<16x16x32xf32>
    %177 = vector.extract_strided_slice %2 {offsets = [3, 3, 0], sizes = [1, 1, 32], strides = [1, 1, 1]} : vector<7x7x32xf32> to vector<1x1x32xf32>
    %178 = vector.shape_cast %177 : vector<1x1x32xf32> to vector<32xf32>
    %179 = vector.shape_cast %178 : vector<32xf32> to vector<1x1x32xf32>
    %180 = vector.broadcast %179 : vector<1x1x32xf32> to vector<16x16x32xf32>
    %181 = arith.mulf %176, %180 : vector<16x16x32xf32>
    %182 = arith.addf %175, %181 : vector<16x16x32xf32>
    %183 = vector.extract_strided_slice %154 {offsets = [4, 0, 0], sizes = [16, 16, 32], strides = [1, 1, 1]} : vector<22x16x32xf32> to vector<16x16x32xf32>
    %184 = vector.extract_strided_slice %2 {offsets = [4, 3, 0], sizes = [1, 1, 32], strides = [1, 1, 1]} : vector<7x7x32xf32> to vector<1x1x32xf32>
    %185 = vector.shape_cast %184 : vector<1x1x32xf32> to vector<32xf32>
    %186 = vector.shape_cast %185 : vector<32xf32> to vector<1x1x32xf32>
    %187 = vector.broadcast %186 : vector<1x1x32xf32> to vector<16x16x32xf32>
    %188 = arith.mulf %183, %187 : vector<16x16x32xf32>
    %189 = arith.addf %182, %188 : vector<16x16x32xf32>
    %190 = vector.extract_strided_slice %154 {offsets = [5, 0, 0], sizes = [16, 16, 32], strides = [1, 1, 1]} : vector<22x16x32xf32> to vector<16x16x32xf32>
    %191 = vector.extract_strided_slice %2 {offsets = [5, 3, 0], sizes = [1, 1, 32], strides = [1, 1, 1]} : vector<7x7x32xf32> to vector<1x1x32xf32>
    %192 = vector.shape_cast %191 : vector<1x1x32xf32> to vector<32xf32>
    %193 = vector.shape_cast %192 : vector<32xf32> to vector<1x1x32xf32>
    %194 = vector.broadcast %193 : vector<1x1x32xf32> to vector<16x16x32xf32>
    %195 = arith.mulf %190, %194 : vector<16x16x32xf32>
    %196 = arith.addf %189, %195 : vector<16x16x32xf32>
    %197 = vector.extract_strided_slice %154 {offsets = [6, 0, 0], sizes = [16, 16, 32], strides = [1, 1, 1]} : vector<22x16x32xf32> to vector<16x16x32xf32>
    %198 = vector.extract_strided_slice %2 {offsets = [6, 3, 0], sizes = [1, 1, 32], strides = [1, 1, 1]} : vector<7x7x32xf32> to vector<1x1x32xf32>
    %199 = vector.shape_cast %198 : vector<1x1x32xf32> to vector<32xf32>
    %200 = vector.shape_cast %199 : vector<32xf32> to vector<1x1x32xf32>
    %201 = vector.broadcast %200 : vector<1x1x32xf32> to vector<16x16x32xf32>
    %202 = arith.mulf %197, %201 : vector<16x16x32xf32>
    %203 = arith.addf %196, %202 : vector<16x16x32xf32>
    %204 = vector.extract_strided_slice %1 {offsets = [0, 4, 0], sizes = [22, 16, 32], strides = [1, 1, 1]} : vector<22x22x32xf32> to vector<22x16x32xf32>
    %205 = vector.extract_strided_slice %204 {offsets = [0, 0, 0], sizes = [16, 16, 32], strides = [1, 1, 1]} : vector<22x16x32xf32> to vector<16x16x32xf32>
    %206 = vector.extract_strided_slice %2 {offsets = [0, 4, 0], sizes = [1, 1, 32], strides = [1, 1, 1]} : vector<7x7x32xf32> to vector<1x1x32xf32>
    %207 = vector.shape_cast %206 : vector<1x1x32xf32> to vector<32xf32>
    %208 = vector.shape_cast %207 : vector<32xf32> to vector<1x1x32xf32>
    %209 = vector.broadcast %208 : vector<1x1x32xf32> to vector<16x16x32xf32>
    %210 = arith.mulf %205, %209 : vector<16x16x32xf32>
    %211 = arith.addf %203, %210 : vector<16x16x32xf32>
    %212 = vector.extract_strided_slice %204 {offsets = [1, 0, 0], sizes = [16, 16, 32], strides = [1, 1, 1]} : vector<22x16x32xf32> to vector<16x16x32xf32>
    %213 = vector.extract_strided_slice %2 {offsets = [1, 4, 0], sizes = [1, 1, 32], strides = [1, 1, 1]} : vector<7x7x32xf32> to vector<1x1x32xf32>
    %214 = vector.shape_cast %213 : vector<1x1x32xf32> to vector<32xf32>
    %215 = vector.shape_cast %214 : vector<32xf32> to vector<1x1x32xf32>
    %216 = vector.broadcast %215 : vector<1x1x32xf32> to vector<16x16x32xf32>
    %217 = arith.mulf %212, %216 : vector<16x16x32xf32>
    %218 = arith.addf %211, %217 : vector<16x16x32xf32>
    %219 = vector.extract_strided_slice %204 {offsets = [2, 0, 0], sizes = [16, 16, 32], strides = [1, 1, 1]} : vector<22x16x32xf32> to vector<16x16x32xf32>
    %220 = vector.extract_strided_slice %2 {offsets = [2, 4, 0], sizes = [1, 1, 32], strides = [1, 1, 1]} : vector<7x7x32xf32> to vector<1x1x32xf32>
    %221 = vector.shape_cast %220 : vector<1x1x32xf32> to vector<32xf32>
    %222 = vector.shape_cast %221 : vector<32xf32> to vector<1x1x32xf32>
    %223 = vector.broadcast %222 : vector<1x1x32xf32> to vector<16x16x32xf32>
    %224 = arith.mulf %219, %223 : vector<16x16x32xf32>
    %225 = arith.addf %218, %224 : vector<16x16x32xf32>
    %226 = vector.extract_strided_slice %204 {offsets = [3, 0, 0], sizes = [16, 16, 32], strides = [1, 1, 1]} : vector<22x16x32xf32> to vector<16x16x32xf32>
    %227 = vector.extract_strided_slice %2 {offsets = [3, 4, 0], sizes = [1, 1, 32], strides = [1, 1, 1]} : vector<7x7x32xf32> to vector<1x1x32xf32>
    %228 = vector.shape_cast %227 : vector<1x1x32xf32> to vector<32xf32>
    %229 = vector.shape_cast %228 : vector<32xf32> to vector<1x1x32xf32>
    %230 = vector.broadcast %229 : vector<1x1x32xf32> to vector<16x16x32xf32>
    %231 = arith.mulf %226, %230 : vector<16x16x32xf32>
    %232 = arith.addf %225, %231 : vector<16x16x32xf32>
    %233 = vector.extract_strided_slice %204 {offsets = [4, 0, 0], sizes = [16, 16, 32], strides = [1, 1, 1]} : vector<22x16x32xf32> to vector<16x16x32xf32>
    %234 = vector.extract_strided_slice %2 {offsets = [4, 4, 0], sizes = [1, 1, 32], strides = [1, 1, 1]} : vector<7x7x32xf32> to vector<1x1x32xf32>
    %235 = vector.shape_cast %234 : vector<1x1x32xf32> to vector<32xf32>
    %236 = vector.shape_cast %235 : vector<32xf32> to vector<1x1x32xf32>
    %237 = vector.broadcast %236 : vector<1x1x32xf32> to vector<16x16x32xf32>
    %238 = arith.mulf %233, %237 : vector<16x16x32xf32>
    %239 = arith.addf %232, %238 : vector<16x16x32xf32>
    %240 = vector.extract_strided_slice %204 {offsets = [5, 0, 0], sizes = [16, 16, 32], strides = [1, 1, 1]} : vector<22x16x32xf32> to vector<16x16x32xf32>
    %241 = vector.extract_strided_slice %2 {offsets = [5, 4, 0], sizes = [1, 1, 32], strides = [1, 1, 1]} : vector<7x7x32xf32> to vector<1x1x32xf32>
    %242 = vector.shape_cast %241 : vector<1x1x32xf32> to vector<32xf32>
    %243 = vector.shape_cast %242 : vector<32xf32> to vector<1x1x32xf32>
    %244 = vector.broadcast %243 : vector<1x1x32xf32> to vector<16x16x32xf32>
    %245 = arith.mulf %240, %244 : vector<16x16x32xf32>
    %246 = arith.addf %239, %245 : vector<16x16x32xf32>
    %247 = vector.extract_strided_slice %204 {offsets = [6, 0, 0], sizes = [16, 16, 32], strides = [1, 1, 1]} : vector<22x16x32xf32> to vector<16x16x32xf32>
    %248 = vector.extract_strided_slice %2 {offsets = [6, 4, 0], sizes = [1, 1, 32], strides = [1, 1, 1]} : vector<7x7x32xf32> to vector<1x1x32xf32>
    %249 = vector.shape_cast %248 : vector<1x1x32xf32> to vector<32xf32>
    %250 = vector.shape_cast %249 : vector<32xf32> to vector<1x1x32xf32>
    %251 = vector.broadcast %250 : vector<1x1x32xf32> to vector<16x16x32xf32>
    %252 = arith.mulf %247, %251 : vector<16x16x32xf32>
    %253 = arith.addf %246, %252 : vector<16x16x32xf32>
    %254 = vector.extract_strided_slice %1 {offsets = [0, 5, 0], sizes = [22, 16, 32], strides = [1, 1, 1]} : vector<22x22x32xf32> to vector<22x16x32xf32>
    %255 = vector.extract_strided_slice %254 {offsets = [0, 0, 0], sizes = [16, 16, 32], strides = [1, 1, 1]} : vector<22x16x32xf32> to vector<16x16x32xf32>
    %256 = vector.extract_strided_slice %2 {offsets = [0, 5, 0], sizes = [1, 1, 32], strides = [1, 1, 1]} : vector<7x7x32xf32> to vector<1x1x32xf32>
    %257 = vector.shape_cast %256 : vector<1x1x32xf32> to vector<32xf32>
    %258 = vector.shape_cast %257 : vector<32xf32> to vector<1x1x32xf32>
    %259 = vector.broadcast %258 : vector<1x1x32xf32> to vector<16x16x32xf32>
    %260 = arith.mulf %255, %259 : vector<16x16x32xf32>
    %261 = arith.addf %253, %260 : vector<16x16x32xf32>
    %262 = vector.extract_strided_slice %254 {offsets = [1, 0, 0], sizes = [16, 16, 32], strides = [1, 1, 1]} : vector<22x16x32xf32> to vector<16x16x32xf32>
    %263 = vector.extract_strided_slice %2 {offsets = [1, 5, 0], sizes = [1, 1, 32], strides = [1, 1, 1]} : vector<7x7x32xf32> to vector<1x1x32xf32>
    %264 = vector.shape_cast %263 : vector<1x1x32xf32> to vector<32xf32>
    %265 = vector.shape_cast %264 : vector<32xf32> to vector<1x1x32xf32>
    %266 = vector.broadcast %265 : vector<1x1x32xf32> to vector<16x16x32xf32>
    %267 = arith.mulf %262, %266 : vector<16x16x32xf32>
    %268 = arith.addf %261, %267 : vector<16x16x32xf32>
    %269 = vector.extract_strided_slice %254 {offsets = [2, 0, 0], sizes = [16, 16, 32], strides = [1, 1, 1]} : vector<22x16x32xf32> to vector<16x16x32xf32>
    %270 = vector.extract_strided_slice %2 {offsets = [2, 5, 0], sizes = [1, 1, 32], strides = [1, 1, 1]} : vector<7x7x32xf32> to vector<1x1x32xf32>
    %271 = vector.shape_cast %270 : vector<1x1x32xf32> to vector<32xf32>
    %272 = vector.shape_cast %271 : vector<32xf32> to vector<1x1x32xf32>
    %273 = vector.broadcast %272 : vector<1x1x32xf32> to vector<16x16x32xf32>
    %274 = arith.mulf %269, %273 : vector<16x16x32xf32>
    %275 = arith.addf %268, %274 : vector<16x16x32xf32>
    %276 = vector.extract_strided_slice %254 {offsets = [3, 0, 0], sizes = [16, 16, 32], strides = [1, 1, 1]} : vector<22x16x32xf32> to vector<16x16x32xf32>
    %277 = vector.extract_strided_slice %2 {offsets = [3, 5, 0], sizes = [1, 1, 32], strides = [1, 1, 1]} : vector<7x7x32xf32> to vector<1x1x32xf32>
    %278 = vector.shape_cast %277 : vector<1x1x32xf32> to vector<32xf32>
    %279 = vector.shape_cast %278 : vector<32xf32> to vector<1x1x32xf32>
    %280 = vector.broadcast %279 : vector<1x1x32xf32> to vector<16x16x32xf32>
    %281 = arith.mulf %276, %280 : vector<16x16x32xf32>
    %282 = arith.addf %275, %281 : vector<16x16x32xf32>
    %283 = vector.extract_strided_slice %254 {offsets = [4, 0, 0], sizes = [16, 16, 32], strides = [1, 1, 1]} : vector<22x16x32xf32> to vector<16x16x32xf32>
    %284 = vector.extract_strided_slice %2 {offsets = [4, 5, 0], sizes = [1, 1, 32], strides = [1, 1, 1]} : vector<7x7x32xf32> to vector<1x1x32xf32>
    %285 = vector.shape_cast %284 : vector<1x1x32xf32> to vector<32xf32>
    %286 = vector.shape_cast %285 : vector<32xf32> to vector<1x1x32xf32>
    %287 = vector.broadcast %286 : vector<1x1x32xf32> to vector<16x16x32xf32>
    %288 = arith.mulf %283, %287 : vector<16x16x32xf32>
    %289 = arith.addf %282, %288 : vector<16x16x32xf32>
    %290 = vector.extract_strided_slice %254 {offsets = [5, 0, 0], sizes = [16, 16, 32], strides = [1, 1, 1]} : vector<22x16x32xf32> to vector<16x16x32xf32>
    %291 = vector.extract_strided_slice %2 {offsets = [5, 5, 0], sizes = [1, 1, 32], strides = [1, 1, 1]} : vector<7x7x32xf32> to vector<1x1x32xf32>
    %292 = vector.shape_cast %291 : vector<1x1x32xf32> to vector<32xf32>
    %293 = vector.shape_cast %292 : vector<32xf32> to vector<1x1x32xf32>
    %294 = vector.broadcast %293 : vector<1x1x32xf32> to vector<16x16x32xf32>
    %295 = arith.mulf %290, %294 : vector<16x16x32xf32>
    %296 = arith.addf %289, %295 : vector<16x16x32xf32>
    %297 = vector.extract_strided_slice %254 {offsets = [6, 0, 0], sizes = [16, 16, 32], strides = [1, 1, 1]} : vector<22x16x32xf32> to vector<16x16x32xf32>
    %298 = vector.extract_strided_slice %2 {offsets = [6, 5, 0], sizes = [1, 1, 32], strides = [1, 1, 1]} : vector<7x7x32xf32> to vector<1x1x32xf32>
    %299 = vector.shape_cast %298 : vector<1x1x32xf32> to vector<32xf32>
    %300 = vector.shape_cast %299 : vector<32xf32> to vector<1x1x32xf32>
    %301 = vector.broadcast %300 : vector<1x1x32xf32> to vector<16x16x32xf32>
    %302 = arith.mulf %297, %301 : vector<16x16x32xf32>
    %303 = arith.addf %296, %302 : vector<16x16x32xf32>
    %304 = vector.extract_strided_slice %1 {offsets = [0, 6, 0], sizes = [22, 16, 32], strides = [1, 1, 1]} : vector<22x22x32xf32> to vector<22x16x32xf32>
    %305 = vector.extract_strided_slice %304 {offsets = [0, 0, 0], sizes = [16, 16, 32], strides = [1, 1, 1]} : vector<22x16x32xf32> to vector<16x16x32xf32>
    %306 = vector.extract_strided_slice %2 {offsets = [0, 6, 0], sizes = [1, 1, 32], strides = [1, 1, 1]} : vector<7x7x32xf32> to vector<1x1x32xf32>
    %307 = vector.shape_cast %306 : vector<1x1x32xf32> to vector<32xf32>
    %308 = vector.shape_cast %307 : vector<32xf32> to vector<1x1x32xf32>
    %309 = vector.broadcast %308 : vector<1x1x32xf32> to vector<16x16x32xf32>
    %310 = arith.mulf %305, %309 : vector<16x16x32xf32>
    %311 = arith.addf %303, %310 : vector<16x16x32xf32>
    %312 = vector.extract_strided_slice %304 {offsets = [1, 0, 0], sizes = [16, 16, 32], strides = [1, 1, 1]} : vector<22x16x32xf32> to vector<16x16x32xf32>
    %313 = vector.extract_strided_slice %2 {offsets = [1, 6, 0], sizes = [1, 1, 32], strides = [1, 1, 1]} : vector<7x7x32xf32> to vector<1x1x32xf32>
    %314 = vector.shape_cast %313 : vector<1x1x32xf32> to vector<32xf32>
    %315 = vector.shape_cast %314 : vector<32xf32> to vector<1x1x32xf32>
    %316 = vector.broadcast %315 : vector<1x1x32xf32> to vector<16x16x32xf32>
    %317 = arith.mulf %312, %316 : vector<16x16x32xf32>
    %318 = arith.addf %311, %317 : vector<16x16x32xf32>
    %319 = vector.extract_strided_slice %304 {offsets = [2, 0, 0], sizes = [16, 16, 32], strides = [1, 1, 1]} : vector<22x16x32xf32> to vector<16x16x32xf32>
    %320 = vector.extract_strided_slice %2 {offsets = [2, 6, 0], sizes = [1, 1, 32], strides = [1, 1, 1]} : vector<7x7x32xf32> to vector<1x1x32xf32>
    %321 = vector.shape_cast %320 : vector<1x1x32xf32> to vector<32xf32>
    %322 = vector.shape_cast %321 : vector<32xf32> to vector<1x1x32xf32>
    %323 = vector.broadcast %322 : vector<1x1x32xf32> to vector<16x16x32xf32>
    %324 = arith.mulf %319, %323 : vector<16x16x32xf32>
    %325 = arith.addf %318, %324 : vector<16x16x32xf32>
    %326 = vector.extract_strided_slice %304 {offsets = [3, 0, 0], sizes = [16, 16, 32], strides = [1, 1, 1]} : vector<22x16x32xf32> to vector<16x16x32xf32>
    %327 = vector.extract_strided_slice %2 {offsets = [3, 6, 0], sizes = [1, 1, 32], strides = [1, 1, 1]} : vector<7x7x32xf32> to vector<1x1x32xf32>
    %328 = vector.shape_cast %327 : vector<1x1x32xf32> to vector<32xf32>
    %329 = vector.shape_cast %328 : vector<32xf32> to vector<1x1x32xf32>
    %330 = vector.broadcast %329 : vector<1x1x32xf32> to vector<16x16x32xf32>
    %331 = arith.mulf %326, %330 : vector<16x16x32xf32>
    %332 = arith.addf %325, %331 : vector<16x16x32xf32>
    %333 = vector.extract_strided_slice %304 {offsets = [4, 0, 0], sizes = [16, 16, 32], strides = [1, 1, 1]} : vector<22x16x32xf32> to vector<16x16x32xf32>
    %334 = vector.extract_strided_slice %2 {offsets = [4, 6, 0], sizes = [1, 1, 32], strides = [1, 1, 1]} : vector<7x7x32xf32> to vector<1x1x32xf32>
    %335 = vector.shape_cast %334 : vector<1x1x32xf32> to vector<32xf32>
    %336 = vector.shape_cast %335 : vector<32xf32> to vector<1x1x32xf32>
    %337 = vector.broadcast %336 : vector<1x1x32xf32> to vector<16x16x32xf32>
    %338 = arith.mulf %333, %337 : vector<16x16x32xf32>
    %339 = arith.addf %332, %338 : vector<16x16x32xf32>
    %340 = vector.extract_strided_slice %304 {offsets = [5, 0, 0], sizes = [16, 16, 32], strides = [1, 1, 1]} : vector<22x16x32xf32> to vector<16x16x32xf32>
    %341 = vector.extract_strided_slice %2 {offsets = [5, 6, 0], sizes = [1, 1, 32], strides = [1, 1, 1]} : vector<7x7x32xf32> to vector<1x1x32xf32>
    %342 = vector.shape_cast %341 : vector<1x1x32xf32> to vector<32xf32>
    %343 = vector.shape_cast %342 : vector<32xf32> to vector<1x1x32xf32>
    %344 = vector.broadcast %343 : vector<1x1x32xf32> to vector<16x16x32xf32>
    %345 = arith.mulf %340, %344 : vector<16x16x32xf32>
    %346 = arith.addf %339, %345 : vector<16x16x32xf32>
    %347 = vector.extract_strided_slice %304 {offsets = [6, 0, 0], sizes = [16, 16, 32], strides = [1, 1, 1]} : vector<22x16x32xf32> to vector<16x16x32xf32>
    %348 = vector.extract_strided_slice %2 {offsets = [6, 6, 0], sizes = [1, 1, 32], strides = [1, 1, 1]} : vector<7x7x32xf32> to vector<1x1x32xf32>
    %349 = vector.shape_cast %348 : vector<1x1x32xf32> to vector<32xf32>
    %350 = vector.shape_cast %349 : vector<32xf32> to vector<1x1x32xf32>
    %351 = vector.broadcast %350 : vector<1x1x32xf32> to vector<16x16x32xf32>
    %352 = arith.mulf %347, %351 : vector<16x16x32xf32>
    %353 = arith.addf %346, %352 : vector<16x16x32xf32>
    %c0_6 = arith.constant 0 : index
    %c0_7 = arith.constant 0 : index
    %354 = vector.load %arg3[%c0_6, %c0_7] : memref<1x32xf32, #tpu.memory_space<vmem>>, vector<1x32xf32>
    %355 = vector.shape_cast %354 : vector<1x32xf32> to vector<1x1x32xf32>
    %356 = vector.broadcast %355 : vector<1x1x32xf32> to vector<16x16x32xf32>
    %357 = arith.addf %353, %356 : vector<16x16x32xf32>
    %cst_8 = arith.constant 0.000000e+00 : f32
    %358 = vector.broadcast %cst_8 : f32 to vector<16x16x32xf32>
    %359 = arith.maximumf %357, %358 : vector<16x16x32xf32>
    %360 = vector.shape_cast %359 : vector<16x16x32xf32> to vector<256x32xf32>
    %c0_9 = arith.constant 0 : index
    %c0_10 = arith.constant 0 : index
    %361 = vector.load %arg4[%c0_9, %c0_10] : memref<32x32xf32, #tpu.memory_space<vmem>>, vector<32x32xf32>
    %cst_11 = arith.constant dense<0.000000e+00> : vector<256x32xf32>
    %362 = tpu.matmul %360, %361, %cst_11 {dimension_numbers = #tpu.dot_dimension_numbers<[1], [0], [0], [1], [0, 0, 1, 1], [], []>} : vector<256x32xf32>, vector<32x32xf32>, vector<256x32xf32> -> vector<256x32xf32>
    %c0_12 = arith.constant 0 : index
    %c0_13 = arith.constant 0 : index
    %363 = vector.load %arg5[%c0_12, %c0_13] : memref<1x32xf32, #tpu.memory_space<vmem>>, vector<1x32xf32>
    %364 = vector.broadcast %363 : vector<1x32xf32> to vector<256x32xf32>
    %365 = arith.addf %362, %364 : vector<256x32xf32>
    %cst_14 = arith.constant 0.000000e+00 : f32
    %366 = vector.broadcast %cst_14 : f32 to vector<256x32xf32>
    %367 = arith.maximumf %365, %366 : vector<256x32xf32>
    %c0_15 = arith.constant 0 : index
    %c0_16 = arith.constant 0 : index
    %368 = vector.load %arg6[%c0_15, %c0_16] : memref<8x32xf32, #tpu.memory_space<vmem>>, vector<8x32xf32>
    %cst_17 = arith.constant dense<0.000000e+00> : vector<8x256xf32>
    %369 = tpu.matmul %368, %367, %cst_17 {dimension_numbers = #tpu.dot_dimension_numbers<[1], [1], [0], [0], [0, 0, 1, 0], [], []>} : vector<8x32xf32>, vector<256x32xf32>, vector<8x256xf32> -> vector<8x256xf32>
    %c0_18 = arith.constant 0 : index
    %c0_19 = arith.constant 0 : index
    %c0_20 = arith.constant 0 : index
    %370 = vector.load %arg7[%c0_18, %c0_19, %c0_20] : memref<1x8x256xf32, #tpu.memory_space<vmem>>, vector<1x8x256xf32>
    %371 = vector.shape_cast %370 : vector<1x8x256xf32> to vector<8x256xf32>
    %372 = vector.shape_cast %369 : vector<8x256xf32> to vector<1x8x256xf32>
    tpu.vector_store %arg7[%c0_18, %c0_19, %c0_20], %372 {strides = array<i32>} : memref<1x8x256xf32, #tpu.memory_space<vmem>>, vector<1x8x256xf32>,
    return
  }
  func.func @transform_0(%arg0: i32) -> (i32, i32, i32, i32) {
    %c0_i32 = arith.constant 0 : i32
    %c0_i32_0 = arith.constant 0 : i32
    %c0_i32_1 = arith.constant 0 : i32
    %c0_i32_2 = arith.constant 0 : i32
    return %arg0, %c0_i32, %c0_i32_0, %c0_i32_1 : i32, i32, i32, i32
  }
  func.func @transform_1(%arg0: i32) -> (i32, i32, i32) {
    %c0_i32 = arith.constant 0 : i32
    %c0_i32_0 = arith.constant 0 : i32
    %c0_i32_1 = arith.constant 0 : i32
    %c0_i32_2 = arith.constant 0 : i32
    return %c0_i32, %c0_i32_0, %c0_i32_1 : i32, i32, i32
  }
  func.func @transform_2(%arg0: i32) -> (i32, i32) {
    %c0_i32 = arith.constant 0 : i32
    %c0_i32_0 = arith.constant 0 : i32
    %c0_i32_1 = arith.constant 0 : i32
    return %c0_i32, %c0_i32_0 : i32, i32
  }
  func.func @transform_3(%arg0: i32) -> (i32, i32) {
    %c0_i32 = arith.constant 0 : i32
    %c0_i32_0 = arith.constant 0 : i32
    %c0_i32_1 = arith.constant 0 : i32
    return %c0_i32, %c0_i32_0 : i32, i32
  }
  func.func @transform_4(%arg0: i32) -> (i32, i32) {
    %c0_i32 = arith.constant 0 : i32
    %c0_i32_0 = arith.constant 0 : i32
    %c0_i32_1 = arith.constant 0 : i32
    return %c0_i32, %c0_i32_0 : i32, i32
  }
  func.func @transform_5(%arg0: i32) -> (i32, i32) {
    %c0_i32 = arith.constant 0 : i32
    %c0_i32_0 = arith.constant 0 : i32
    %c0_i32_1 = arith.constant 0 : i32
    return %c0_i32, %c0_i32_0 : i32, i32
  }
  func.func @transform_6(%arg0: i32) -> (i32, i32, i32) {
    %c0_i32 = arith.constant 0 : i32
    %c0_i32_0 = arith.constant 0 : i32
    %c0_i32_1 = arith.constant 0 : i32
    return %arg0, %c0_i32, %c0_i32_0 : i32, i32, i32
  }
}

</mosaic_0001>

<llo_original>
// kernel: tpu_custom_call.1
$region0: #{tpu_custom_call.1}
  #allocation0 [shape = 'u32[]', space=smem, size = 0x4, offset = 0x4, fixed_abs, tag = 'smem constant byte address 0x4 - core index']
  #allocation1 [shape = 'u32[144,128]{1,0:T(1,128)}', space=vmem, size = 0x12000, scoped, tag = 'internal scratch']
  %s0 = inlined_call_operand.vmem [shape: f32[2,22,22,32], index: 0, kind: input, shape index: {}]
  %s1 = inlined_call_operand.vmem [shape: f32[7,7,32], index: 1, kind: input, shape index: {}]
  %s2 = inlined_call_operand.vmem [shape: f32[1,32], index: 2, kind: input, shape index: {}]
  %s3 = inlined_call_operand.vmem [shape: f32[32,32], index: 3, kind: input, shape index: {}]
  %s4 = inlined_call_operand.vmem [shape: f32[1,32], index: 4, kind: input, shape index: {}]
  %s5 = inlined_call_operand.vmem [shape: f32[8,32], index: 5, kind: input, shape index: {}]
  %s6 = inlined_call_operand.hbm [shape: f32[2,8,256], index: 6, kind: output, shape index: {}]
  %s7 = sld [smem:[#allocation0]]
  $region57: #{tpu_custom_call.1} parent=0
    _
  %s9 = ssub.s32 1, %s7
  %s10 = scalar_select 0, %s9, %s7
  $region1: #{tpu_custom_call.1} parent=0
    #allocation2 [shape = 'u8[16384]{0}', space=vmem, size = 0x4000, scoped, tag = 'output window, operand 0']
    #allocation3 [shape = 's32[2]{0}', space=sflag, size = 0x8, scoped, tag = 'scoped memory for tpu_custom_call.1']
    %11 = vsyncpa [#allocation3], 0
    %s12 = scalar_lea.sflag [#allocation3], 1
    %13 = vsyncpa %s12, 0
    loop: start=0, step=1, limit=4
    $region2: #{tpu_custom_call.1} parent=1 // loop_pre_header
      _
    $region3: #{tpu_custom_call.1} parent=1 // loop_header
      %s15 = sphi 0, %s19
      %p16 = scmp.ge.s32.totalorder %s15, 4
      %s25 = sphi 0, %s27
      %s28 = sphi 0, %s25
      %s29 = sphi 0, %s28
      %s45 = sphi 0, %s29
      %s49 = sphi 0, %s49
      %s51 = sphi 0, %s49
      %s52 = sphi 0, %s51
      %s66 = sphi 0, %s52
      %s70 = sphi 0, %s70
      %s72 = sphi 0, %s70
      %s73 = sphi 0, %s72
      %s87 = sphi 0, %s73
      %s91 = sphi 0, %s91
      %s93 = sphi 0, %s91
      %s94 = sphi 0, %s93
      %s108 = sphi 0, %s94
      %s112 = sphi 0, %s112
      %s114 = sphi 0, %s112
      %s115 = sphi 0, %s114
      %s129 = sphi 0, %s115
      %s133 = sphi 0, %s133
      %s135 = sphi 0, %s133
      %s136 = sphi 0, %s135
      %s150 = sphi 0, %s136
      %s156 = sphi 0, %s158
      %s159 = sphi 0, %s156
      %s160 = sphi 0, %s159
      %s176 = sphi 0, %s160
    $region4: #{tpu_custom_call.1} parent=1 // loop_header_branch
      %18 = sbr.rel (%p16) target = $region8
    $region5: #{tpu_custom_call.1} parent=1 // loop_body
      %s20 = ssub.s32 %s15, 1
      %s21 = ssub.s32 %s15, 2
      %s22 = sadd.s32 %s15, 1
      %s23 = ssub.s32 %s15, %s22
      %p24 = scmp.eq.s32.totalorder %s23, 0
      %s26 = sadd.s32 %s25, 1
      %s27 = scalar_select %p24, %s25, %s26
      %p30 = pneg %p24
      %p31 = scmp.eq.s32.totalorder %s15, 1
      %p32 = por %p30, %p31
      %p33 = scmp.ne.s32.totalorder %s25, %s28
      %p34 = scmp.eq.s32.totalorder %s15, 0
      %p35 = por %p33, %p34
      %p36 = scmp.ne.s32.totalorder %s25, %s28
      %p37 = scmp.eq.s32.totalorder %s20, 1
      %p38 = por %p36, %p37
      %p39 = scmp.ne.s32.totalorder %s28, %s29
      %p40 = scmp.eq.s32.totalorder %s20, 0
      %p41 = por %p39, %p40
      %p42 = scmp.ne.s32.totalorder %s28, %s29
      %p43 = scmp.eq.s32.totalorder %s21, 1
      %p44 = por %p42, %p43
      %p46 = scmp.ne.s32.totalorder %s29, %s45
      %p47 = scmp.eq.s32.totalorder %s21, 0
      %p48 = por %p46, %p47
      %s50 = sadd.s32 %s49, 1
      %p53 = scmp.eq.s32.totalorder %s15, 1
      %p54 = scmp.ne.s32.totalorder %s49, %s51
      %p55 = scmp.eq.s32.totalorder %s15, 0
      %p56 = por %p54, %p55
      %p57 = scmp.ne.s32.totalorder %s49, %s51
      %p58 = scmp.eq.s32.totalorder %s20, 1
      %p59 = por %p57, %p58
      %p60 = scmp.ne.s32.totalorder %s51, %s52
      %p61 = scmp.eq.s32.totalorder %s20, 0
      %p62 = por %p60, %p61
      %p63 = scmp.ne.s32.totalorder %s51, %s52
      %p64 = scmp.eq.s32.totalorder %s21, 1
      %p65 = por %p63, %p64
      %p67 = scmp.ne.s32.totalorder %s52, %s66
      %p68 = scmp.eq.s32.totalorder %s21, 0
      %p69 = por %p67, %p68
      %s71 = sadd.s32 %s70, 1
      %p74 = scmp.eq.s32.totalorder %s15, 1
      %p75 = scmp.ne.s32.totalorder %s70, %s72
      %p76 = scmp.eq.s32.totalorder %s15, 0
      %p77 = por %p75, %p76
      %p78 = scmp.ne.s32.totalorder %s70, %s72
      %p79 = scmp.eq.s32.totalorder %s20, 1
      %p80 = por %p78, %p79
      %p81 = scmp.ne.s32.totalorder %s72, %s73
      %p82 = scmp.eq.s32.totalorder %s20, 0
      %p83 = por %p81, %p82
      %p84 = scmp.ne.s32.totalorder %s72, %s73
      %p85 = scmp.eq.s32.totalorder %s21, 1
      %p86 = por %p84, %p85
      %p88 = scmp.ne.s32.totalorder %s73, %s87
      %p89 = scmp.eq.s32.totalorder %s21, 0
      %p90 = por %p88, %p89
      %s92 = sadd.s32 %s91, 1
      %p95 = scmp.eq.s32.totalorder %s15, 1
      %p96 = scmp.ne.s32.totalorder %s91, %s93
      %p97 = scmp.eq.s32.totalorder %s15, 0
      %p98 = por %p96, %p97
      %p99 = scmp.ne.s32.totalorder %s91, %s93
      %p100 = scmp.eq.s32.totalorder %s20, 1
      %p101 = por %p99, %p100
      %p102 = scmp.ne.s32.totalorder %s93, %s94
      %p103 = scmp.eq.s32.totalorder %s20, 0
      %p104 = por %p102, %p103
      %p105 = scmp.ne.s32.totalorder %s93, %s94
      %p106 = scmp.eq.s32.totalorder %s21, 1
      %p107 = por %p105, %p106
      %p109 = scmp.ne.s32.totalorder %s94, %s108
      %p110 = scmp.eq.s32.totalorder %s21, 0
      %p111 = por %p109, %p110
      %s113 = sadd.s32 %s112, 1
      %p116 = scmp.eq.s32.totalorder %s15, 1
      %p117 = scmp.ne.s32.totalorder %s112, %s114
      %p118 = scmp.eq.s32.totalorder %s15, 0
      %p119 = por %p117, %p118
      %p120 = scmp.ne.s32.totalorder %s112, %s114
      %p121 = scmp.eq.s32.totalorder %s20, 1
      %p122 = por %p120, %p121
      %p123 = scmp.ne.s32.totalorder %s114, %s115
      %p124 = scmp.eq.s32.totalorder %s20, 0
      %p125 = por %p123, %p124
      %p126 = scmp.ne.s32.totalorder %s114, %s115
      %p127 = scmp.eq.s32.totalorder %s21, 1
      %p128 = por %p126, %p127
      %p130 = scmp.ne.s32.totalorder %s115, %s129
      %p131 = scmp.eq.s32.totalorder %s21, 0
      %p132 = por %p130, %p131
      %s134 = sadd.s32 %s133, 1
      %p137 = scmp.eq.s32.totalorder %s15, 1
      %p138 = scmp.ne.s32.totalorder %s133, %s135
      %p139 = scmp.eq.s32.totalorder %s15, 0
      %p140 = por %p138, %p139
      %p141 = scmp.ne.s32.totalorder %s133, %s135
      %p142 = scmp.eq.s32.totalorder %s20, 1
      %p143 = por %p141, %p142
      %p144 = scmp.ne.s32.totalorder %s135, %s136
      %p145 = scmp.eq.s32.totalorder %s20, 0
      %p146 = por %p144, %p145
      %p147 = scmp.ne.s32.totalorder %s135, %s136
      %p148 = scmp.eq.s32.totalorder %s21, 1
      %p149 = por %p147, %p148
      %p151 = scmp.ne.s32.totalorder %s136, %s150
      %p152 = scmp.eq.s32.totalorder %s21, 0
      %p153 = por %p151, %p152
      %s154 = ssub.s32 %s15, %s22
      %p155 = scmp.eq.s32.totalorder %s154, 0
      %s157 = sadd.s32 %s156, 1
      %s158 = scalar_select %p155, %s156, %s157
      %p161 = pneg %p155
      %p162 = scmp.eq.s32.totalorder %s15, 1
      %p163 = por %p161, %p162
      %p164 = scmp.ne.s32.totalorder %s156, %s159
      %p165 = scmp.eq.s32.totalorder %s15, 0
      %p166 = por %p164, %p165
      %p167 = scmp.ne.s32.totalorder %s156, %s159
      %p168 = scmp.eq.s32.totalorder %s20, 1
      %p169 = por %p167, %p168
      %p170 = scmp.ne.s32.totalorder %s159, %s160
      %p171 = scmp.eq.s32.totalorder %s20, 0
      %p172 = por %p170, %p171
      %p173 = scmp.ne.s32.totalorder %s159, %s160
      %p174 = scmp.eq.s32.totalorder %s21, 1
      %p175 = por %p173, %p174
      %p177 = scmp.ne.s32.totalorder %s160, %s176
      %p178 = scmp.eq.s32.totalorder %s21, 0
      %p179 = por %p177, %p178
      %p180 = scmp.le.s32.totalorder 1, %s15
      %p181 = scmp.lt.s32.totalorder %s15, 3
      %p182 = pnand %p180, %p181
      %p183 = pneg %p182
      // Predicated region
      $region9: #{tpu_custom_call.1} parent=5 // pred_check
        _
      $region10: #{tpu_custom_call.1} parent=5 // pred_check_branch
        %185 = sbr.rel (%p182) target = $region12
      $region11: #{tpu_custom_call.1} parent=5 // pred_region
        %s186 = ssub.s32 %s15, 1
        // Predicated region
        $region13: #{tpu_custom_call.1} parent=11 // pred_check
          %p187 = pneg %p62
        $region14: #{tpu_custom_call.1} parent=11 // pred_check_branch
          %189 = sbr.rel (%p187) target = $region16
        $region15: #{tpu_custom_call.1} parent=11 // pred_region
          _
        $region16: #{tpu_custom_call.1} parent=11 // pred_fallthru
          _
        // Predicated region
        $region17: #{tpu_custom_call.1} parent=11 // pred_check
          %p190 = pneg %p83
        $region18: #{tpu_custom_call.1} parent=11 // pred_check_branch
          %192 = sbr.rel (%p190) target = $region20
        $region19: #{tpu_custom_call.1} parent=11 // pred_region
          _
        $region20: #{tpu_custom_call.1} parent=11 // pred_fallthru
          _
        // Predicated region
        $region21: #{tpu_custom_call.1} parent=11 // pred_check
          %p193 = pneg %p104
        $region22: #{tpu_custom_call.1} parent=11 // pred_check_branch
          %195 = sbr.rel (%p193) target = $region24
        $region23: #{tpu_custom_call.1} parent=11 // pred_region
          _
        $region24: #{tpu_custom_call.1} parent=11 // pred_fallthru
          _
        // Predicated region
        $region25: #{tpu_custom_call.1} parent=11 // pred_check
          %p196 = pneg %p125
        $region26: #{tpu_custom_call.1} parent=11 // pred_check_branch
          %198 = sbr.rel (%p196) target = $region28
        $region27: #{tpu_custom_call.1} parent=11 // pred_region
          _
        $region28: #{tpu_custom_call.1} parent=11 // pred_fallthru
          _
        // Predicated region
        $region29: #{tpu_custom_call.1} parent=11 // pred_check
          %p199 = pneg %p146
        $region30: #{tpu_custom_call.1} parent=11 // pred_check_branch
          %201 = sbr.rel (%p199) target = $region32
        $region31: #{tpu_custom_call.1} parent=11 // pred_region
          _
        $region32: #{tpu_custom_call.1} parent=11 // pred_fallthru
          _
      $region12: #{tpu_custom_call.1} parent=5 // pred_fallthru
        _
      %p202 = scmp.lt.s32.totalorder %s15, 2
      // Predicated region
      $region33: #{tpu_custom_call.1} parent=5 // pred_check
        %p203 = pneg %p202
      $region34: #{tpu_custom_call.1} parent=5 // pred_check_branch
        %205 = sbr.rel (%p203) target = $region36
      $region35: #{tpu_custom_call.1} parent=5 // pred_region
        // Predicated region
        $region37: #{tpu_custom_call.1} parent=35 // pred_check
          %p206 = pneg %p35
        $region38: #{tpu_custom_call.1} parent=35 // pred_check_branch
          %208 = sbr.rel (%p206) target = $region40
        $region39: #{tpu_custom_call.1} parent=35 // pred_region
          %p209 = scmp.lt.s32.totalorder %s15, 1
          %s210 = scalar_select %p209, %s15, 1
          %s211 = smul.addr %s210, 66
          %s212 = smul.addr %s211, 8
          %s213 = scalar_lea.vmem %s0, %s212
        $region40: #{tpu_custom_call.1} parent=35 // pred_fallthru
          _
      $region36: #{tpu_custom_call.1} parent=5 // pred_fallthru
        _
      %p214 = scmp.le.s32.totalorder 1, %s15
      %p215 = scmp.lt.s32.totalorder %s15, 3
      %p216 = pnand %p214, %p215
      %p217 = pneg %p216
      // Predicated region
      $region41: #{tpu_custom_call.1} parent=5 // pred_check
        _
      $region42: #{tpu_custom_call.1} parent=5 // pred_check_branch
        %219 = sbr.rel (%p216) target = $region44
      $region43: #{tpu_custom_call.1} parent=5 // pred_region
        %s220 = ssub.s32 %s15, 1
        %p221 = scmp.lt.s32.totalorder %s20, 1
        %s222 = scalar_select %p221, %s20, 1
        %s223 = smul.addr %s222, 66
        %s224 = smul.addr %s223, 8
        %s225 = scalar_lea.vmem %s0, %s224
        %p226 = pneg %p41
        %p227 = pneg %p38
        %p228 = pneg %p62
        %p229 = pneg %p59
        %p230 = pneg %p83
        %p231 = pneg %p80
        %p232 = pneg %p104
        %p233 = pneg %p101
        %p234 = pneg %p125
        %p235 = pneg %p122
        %p236 = pneg %p146
        %p237 = pneg %p143
        %p238 = pneg %p172
        %p239 = pneg %p169
        %s240 = sand.u32 %s159, 1
        %s241 = scalar_lea.sflag [#allocation3], %s240
        %s242 = sand.u32 %s159, 1
        %s243 = smul.addr %s242, 16
        %s244 = scalar_lea.vmem [#allocation2], %s243
        %p245 = scmp.lt.s32.totalorder %s20, 1
        %s246 = scalar_select %p245, %s20, 1
        %s247 = smul.addr %s246, 66
        %s248 = smul.addr %s247, 8
        %s249 = scalar_lea.vmem %s0, %s248
        %v250 = vld [vmem:[%s249] sm:$0xff]
        %v251 = vld [vmem:[%s249 + $0x8] sm:$0xff]
        %v252 = vld [vmem:[%s249 + $0x10] sm:$0x3f]
        %v253 = vld [vmem:[%s249 + $0x18] sm:$0xff]
        %v254 = vld [vmem:[%s249 + $0x20] sm:$0xff]
        %v255 = vld [vmem:[%s249 + $0x28] sm:$0x3f]
        %v256 = vld [vmem:[%s249 + $0x30] sm:$0xff]
        %v257 = vld [vmem:[%s249 + $0x38] sm:$0xff]
        %v258 = vld [vmem:[%s249 + $0x40] sm:$0x3f]
        %v259 = vld [vmem:[%s249 + $0x48] sm:$0xff]
        %v260 = vld [vmem:[%s249 + $0x50] sm:$0xff]
        %v261 = vld [vmem:[%s249 + $0x58] sm:$0x3f]
        %v262 = vld [vmem:[%s249 + $0x60] sm:$0xff]
        %v263 = vld [vmem:[%s249 + $0x68] sm:$0xff]
        %v264 = vld [vmem:[%s249 + $0x70] sm:$0x3f]
        %v265 = vld [vmem:[%s249 + $0x78] sm:$0xff]
        %v266 = vld [vmem:[%s249 + $0x80] sm:$0xff]
        %v267 = vld [vmem:[%s249 + $0x88] sm:$0x3f]
        %v268 = vld [vmem:[%s249 + $0x90] sm:$0xff]
        %v269 = vld [vmem:[%s249 + $0x98] sm:$0xff]
        %v270 = vld [vmem:[%s249 + $0xa0] sm:$0x3f]
        %v271 = vld [vmem:[%s249 + $0xa8] sm:$0xff]
        %v272 = vld [vmem:[%s249 + $0xb0] sm:$0xff]
        %v273 = vld [vmem:[%s249 + $0xb8] sm:$0x3f]
        %v274 = vld [vmem:[%s249 + $0xc0] sm:$0xff]
        %v275 = vld [vmem:[%s249 + $0xc8] sm:$0xff]
        %v276 = vld [vmem:[%s249 + $0xd0] sm:$0x3f]
        %v277 = vld [vmem:[%s249 + $0xd8] sm:$0xff]
        %v278 = vld [vmem:[%s249 + $0xe0] sm:$0xff]
        %v279 = vld [vmem:[%s249 + $0xe8] sm:$0x3f]
        %v280 = vld [vmem:[%s249 + $0xf0] sm:$0xff]
        %v281 = vld [vmem:[%s249 + $0xf8] sm:$0xff]
        %v282 = vld [vmem:[%s249 + $0x100] sm:$0x3f]
        %v283 = vld [vmem:[%s249 + $0x108] sm:$0xff]
        %v284 = vld [vmem:[%s249 + $0x110] sm:$0xff]
        %v285 = vld [vmem:[%s249 + $0x118] sm:$0x3f]
        %v286 = vld [vmem:[%s249 + $0x120] sm:$0xff]
        %v287 = vld [vmem:[%s249 + $0x128] sm:$0xff]
        %v288 = vld [vmem:[%s249 + $0x130] sm:$0x3f]
        %v289 = vld [vmem:[%s249 + $0x138] sm:$0xff]
        %v290 = vld [vmem:[%s249 + $0x140] sm:$0xff]
        %v291 = vld [vmem:[%s249 + $0x148] sm:$0x3f]
        %v292 = vld [vmem:[%s249 + $0x150] sm:$0xff]
        %v293 = vld [vmem:[%s249 + $0x158] sm:$0xff]
        %v294 = vld [vmem:[%s249 + $0x160] sm:$0x3f]
        %v295 = vld [vmem:[%s249 + $0x168] sm:$0xff]
        %v296 = vld [vmem:[%s249 + $0x170] sm:$0xff]
        %v297 = vld [vmem:[%s249 + $0x178] sm:$0x3f]
        %v298 = vld [vmem:[%s249 + $0x180] sm:$0xff]
        %v299 = vld [vmem:[%s249 + $0x188] sm:$0xff]
        %v300 = vld [vmem:[%s249 + $0x190] sm:$0x3f]
        %v301 = vld [vmem:[%s249 + $0x198] sm:$0xff]
        %v302 = vld [vmem:[%s249 + $0x1a0] sm:$0xff]
        %v303 = vld [vmem:[%s249 + $0x1a8] sm:$0x3f]
        %v304 = vld [vmem:[%s249 + $0x1b0] sm:$0xff]
        %v305 = vld [vmem:[%s249 + $0x1b8] sm:$0xff]
        %v306 = vld [vmem:[%s249 + $0x1c0] sm:$0x3f]
        %v307 = vld [vmem:[%s249 + $0x1c8] sm:$0xff]
        %v308 = vld [vmem:[%s249 + $0x1d0] sm:$0xff]
        %v309 = vld [vmem:[%s249 + $0x1d8] sm:$0x3f]
        %v310 = vld [vmem:[%s249 + $0x1e0] sm:$0xff]
        %v311 = vld [vmem:[%s249 + $0x1e8] sm:$0xff]
        %v312 = vld [vmem:[%s249 + $0x1f0] sm:$0x3f]
        %v313 = vld [vmem:[%s249 + $0x1f8] sm:$0xff]
        %v314 = vld [vmem:[%s249 + $0x200] sm:$0xff]
        %v315 = vld [vmem:[%s249 + $0x208] sm:$0x3f]
        %v316 = vld [vmem:[%s1] sm:$0x7f]
        %v317 = vld [vmem:[%s1 + $0x8] sm:$0x7f]
        %v318 = vld [vmem:[%s1 + $0x10] sm:$0x7f]
        %v319 = vld [vmem:[%s1 + $0x18] sm:$0x7f]
        %v320 = vld [vmem:[%s1 + $0x20] sm:$0x7f]
        %v321 = vld [vmem:[%s1 + $0x28] sm:$0x7f]
        %v322 = vld [vmem:[%s1 + $0x30] sm:$0x7f]
        %v323 = vlaneseq
        %v324 = vshrl.u32 %v323, 7
        %v325 = vsub.s32 0, %v324
        %v326 = vrot.slane %v316, %v325
        %v327 = vmul.f32 %v250, %v326
        %v328 = vmul.f32 %v251, %v326
        %v329 = vmul.f32 %v253, %v326
        %v330 = vmul.f32 %v254, %v326
        %v331 = vmul.f32 %v256, %v326
        %v332 = vmul.f32 %v257, %v326
        %v333 = vmul.f32 %v259, %v326
        %v334 = vmul.f32 %v260, %v326
        %v335 = vmul.f32 %v262, %v326
        %v336 = vmul.f32 %v263, %v326
        %v337 = vmul.f32 %v265, %v326
        %v338 = vmul.f32 %v266, %v326
        %v339 = vmul.f32 %v268, %v326
        %v340 = vmul.f32 %v269, %v326
        %v341 = vmul.f32 %v271, %v326
        %v342 = vmul.f32 %v272, %v326
        %v343 = vmul.f32 %v274, %v326
        %v344 = vmul.f32 %v275, %v326
        %v345 = vmul.f32 %v277, %v326
        %v346 = vmul.f32 %v278, %v326
        %v347 = vmul.f32 %v280, %v326
        %v348 = vmul.f32 %v281, %v326
        %v349 = vmul.f32 %v283, %v326
        %v350 = vmul.f32 %v284, %v326
        %v351 = vmul.f32 %v286, %v326
        %v352 = vmul.f32 %v287, %v326
        %v353 = vmul.f32 %v289, %v326
        %v354 = vmul.f32 %v290, %v326
        %v355 = vmul.f32 %v292, %v326
        %v356 = vmul.f32 %v293, %v326
        %v357 = vmul.f32 %v295, %v326
        %v358 = vmul.f32 %v296, %v326
        %v359 = vadd.f32 %v327, 0.0
        %v360 = vadd.f32 %v328, 0.0
        %v361 = vadd.f32 %v329, 0.0
        %v362 = vadd.f32 %v330, 0.0
        %v363 = vadd.f32 %v331, 0.0
        %v364 = vadd.f32 %v332, 0.0
        %v365 = vadd.f32 %v333, 0.0
        %v366 = vadd.f32 %v334, 0.0
        %v367 = vadd.f32 %v335, 0.0
        %v368 = vadd.f32 %v336, 0.0
        %v369 = vadd.f32 %v337, 0.0
        %v370 = vadd.f32 %v338, 0.0
        %v371 = vadd.f32 %v339, 0.0
        %v372 = vadd.f32 %v340, 0.0
        %v373 = vadd.f32 %v341, 0.0
        %v374 = vadd.f32 %v342, 0.0
        %v375 = vadd.f32 %v343, 0.0
        %v376 = vadd.f32 %v344, 0.0
        %v377 = vadd.f32 %v345, 0.0
        %v378 = vadd.f32 %v346, 0.0
        %v379 = vadd.f32 %v347, 0.0
        %v380 = vadd.f32 %v348, 0.0
        %v381 = vadd.f32 %v349, 0.0
        %v382 = vadd.f32 %v350, 0.0
        %v383 = vadd.f32 %v351, 0.0
        %v384 = vadd.f32 %v352, 0.0
        %v385 = vadd.f32 %v353, 0.0
        %v386 = vadd.f32 %v354, 0.0
        %v387 = vadd.f32 %v355, 0.0
        %v388 = vadd.f32 %v356, 0.0
        %v389 = vadd.f32 %v357, 0.0
        %v390 = vadd.f32 %v358, 0.0
        %v391 = vlaneseq
        %v392 = vshrl.u32 %v391, 7
        %v393 = vsub.s32 0, %v392
        %v394 = vrot.slane %v317, %v393
        %v395 = vmul.f32 %v253, %v394
        %v396 = vmul.f32 %v254, %v394
        %v397 = vmul.f32 %v256, %v394
        %v398 = vmul.f32 %v257, %v394
        %v399 = vmul.f32 %v259, %v394
        %v400 = vmul.f32 %v260, %v394
        %v401 = vmul.f32 %v262, %v394
        %v402 = vmul.f32 %v263, %v394
        %v403 = vmul.f32 %v265, %v394
        %v404 = vmul.f32 %v266, %v394
        %v405 = vmul.f32 %v268, %v394
        %v406 = vmul.f32 %v269, %v394
        %v407 = vmul.f32 %v271, %v394
        %v408 = vmul.f32 %v272, %v394
        %v409 = vmul.f32 %v274, %v394
        %v410 = vmul.f32 %v275, %v394
        %v411 = vmul.f32 %v277, %v394
        %v412 = vmul.f32 %v278, %v394
        %v413 = vmul.f32 %v280, %v394
        %v414 = vmul.f32 %v281, %v394
        %v415 = vmul.f32 %v283, %v394
        %v416 = vmul.f32 %v284, %v394
        %v417 = vmul.f32 %v286, %v394
        %v418 = vmul.f32 %v287, %v394
        %v419 = vmul.f32 %v289, %v394
        %v420 = vmul.f32 %v290, %v394
        %v421 = vmul.f32 %v292, %v394
        %v422 = vmul.f32 %v293, %v394
        %v423 = vmul.f32 %v295, %v394
        %v424 = vmul.f32 %v296, %v394
        %v425 = vmul.f32 %v298, %v394
        %v426 = vmul.f32 %v299, %v394
        %v427 = vadd.f32 %v359, %v395
        %v428 = vadd.f32 %v360, %v396
        %v429 = vadd.f32 %v361, %v397
        %v430 = vadd.f32 %v362, %v398
        %v431 = vadd.f32 %v363, %v399
        %v432 = vadd.f32 %v364, %v400
        %v433 = vadd.f32 %v365, %v401
        %v434 = vadd.f32 %v366, %v402
        %v435 = vadd.f32 %v367, %v403
        %v436 = vadd.f32 %v368, %v404
        %v437 = vadd.f32 %v369, %v405
        %v438 = vadd.f32 %v370, %v406
        %v439 = vadd.f32 %v371, %v407
        %v440 = vadd.f32 %v372, %v408
        %v441 = vadd.f32 %v373, %v409
        %v442 = vadd.f32 %v374, %v410
        %v443 = vadd.f32 %v375, %v411
        %v444 = vadd.f32 %v376, %v412
        %v445 = vadd.f32 %v377, %v413
        %v446 = vadd.f32 %v378, %v414
        %v447 = vadd.f32 %v379, %v415
        %v448 = vadd.f32 %v380, %v416
        %v449 = vadd.f32 %v381, %v417
        %v450 = vadd.f32 %v382, %v418
        %v451 = vadd.f32 %v383, %v419
        %v452 = vadd.f32 %v384, %v420
        %v453 = vadd.f32 %v385, %v421
        %v454 = vadd.f32 %v386, %v422
        %v455 = vadd.f32 %v387, %v423
        %v456 = vadd.f32 %v388, %v424
        %v457 = vadd.f32 %v389, %v425
        %v458 = vadd.f32 %v390, %v426
        %v459 = vlaneseq
        %v460 = vshrl.u32 %v459, 7
        %v461 = vsub.s32 0, %v460
        %v462 = vrot.slane %v318, %v461
        %v463 = vmul.f32 %v256, %v462
        %v464 = vmul.f32 %v257, %v462
        %v465 = vmul.f32 %v259, %v462
        %v466 = vmul.f32 %v260, %v462
        %v467 = vmul.f32 %v262, %v462
        %v468 = vmul.f32 %v263, %v462
        %v469 = vmul.f32 %v265, %v462
        %v470 = vmul.f32 %v266, %v462
        %v471 = vmul.f32 %v268, %v462
        %v472 = vmul.f32 %v269, %v462
        %v473 = vmul.f32 %v271, %v462
        %v474 = vmul.f32 %v272, %v462
        %v475 = vmul.f32 %v274, %v462
        %v476 = vmul.f32 %v275, %v462
        %v477 = vmul.f32 %v277, %v462
        %v478 = vmul.f32 %v278, %v462
        %v479 = vmul.f32 %v280, %v462
        %v480 = vmul.f32 %v281, %v462
        %v481 = vmul.f32 %v283, %v462
        %v482 = vmul.f32 %v284, %v462
        %v483 = vmul.f32 %v286, %v462
        %v484 = vmul.f32 %v287, %v462
        %v485 = vmul.f32 %v289, %v462
        %v486 = vmul.f32 %v290, %v462
        %v487 = vmul.f32 %v292, %v462
        %v488 = vmul.f32 %v293, %v462
        %v489 = vmul.f32 %v295, %v462
        %v490 = vmul.f32 %v296, %v462
        %v491 = vmul.f32 %v298, %v462
        %v492 = vmul.f32 %v299, %v462
        %v493 = vmul.f32 %v301, %v462
        %v494 = vmul.f32 %v302, %v462
        %v495 = vadd.f32 %v427, %v463
        %v496 = vadd.f32 %v428, %v464
        %v497 = vadd.f32 %v429, %v465
        %v498 = vadd.f32 %v430, %v466
        %v499 = vadd.f32 %v431, %v467
        %v500 = vadd.f32 %v432, %v468
        %v501 = vadd.f32 %v433, %v469
        %v502 = vadd.f32 %v434, %v470
        %v503 = vadd.f32 %v435, %v471
        %v504 = vadd.f32 %v436, %v472
        %v505 = vadd.f32 %v437, %v473
        %v506 = vadd.f32 %v438, %v474
        %v507 = vadd.f32 %v439, %v475
        %v508 = vadd.f32 %v440, %v476
        %v509 = vadd.f32 %v441, %v477
        %v510 = vadd.f32 %v442, %v478
        %v511 = vadd.f32 %v443, %v479
        %v512 = vadd.f32 %v444, %v480
        %v513 = vadd.f32 %v445, %v481
        %v514 = vadd.f32 %v446, %v482
        %v515 = vadd.f32 %v447, %v483
        %v516 = vadd.f32 %v448, %v484
        %v517 = vadd.f32 %v449, %v485
        %v518 = vadd.f32 %v450, %v486
        %v519 = vadd.f32 %v451, %v487
        %v520 = vadd.f32 %v452, %v488
        %v521 = vadd.f32 %v453, %v489
        %v522 = vadd.f32 %v454, %v490
        %v523 = vadd.f32 %v455, %v491
        %v524 = vadd.f32 %v456, %v492
        %v525 = vadd.f32 %v457, %v493
        %v526 = vadd.f32 %v458, %v494
        %v527 = vlaneseq
        %v528 = vshrl.u32 %v527, 7
        %v529 = vsub.s32 0, %v528
        %v530 = vrot.slane %v319, %v529
        %v531 = vmul.f32 %v259, %v530
        %v532 = vmul.f32 %v260, %v530
        %v533 = vmul.f32 %v262, %v530
        %v534 = vmul.f32 %v263, %v530
        %v535 = vmul.f32 %v265, %v530
        %v536 = vmul.f32 %v266, %v530
        %v537 = vmul.f32 %v268, %v530
        %v538 = vmul.f32 %v269, %v530
        %v539 = vmul.f32 %v271, %v530
        %v540 = vmul.f32 %v272, %v530
        %v541 = vmul.f32 %v274, %v530
        %v542 = vmul.f32 %v275, %v530
        %v543 = vmul.f32 %v277, %v530
        %v544 = vmul.f32 %v278, %v530
        %v545 = vmul.f32 %v280, %v530
        %v546 = vmul.f32 %v281, %v530
        %v547 = vmul.f32 %v283, %v530
        %v548 = vmul.f32 %v284, %v530
        %v549 = vmul.f32 %v286, %v530
        %v550 = vmul.f32 %v287, %v530
        %v551 = vmul.f32 %v289, %v530
        %v552 = vmul.f32 %v290, %v530
        %v553 = vmul.f32 %v292, %v530
        %v554 = vmul.f32 %v293, %v530
        %v555 = vmul.f32 %v295, %v530
        %v556 = vmul.f32 %v296, %v530
        %v557 = vmul.f32 %v298, %v530
        %v558 = vmul.f32 %v299, %v530
        %v559 = vmul.f32 %v301, %v530
        %v560 = vmul.f32 %v302, %v530
        %v561 = vmul.f32 %v304, %v530
        %v562 = vmul.f32 %v305, %v530
        %v563 = vadd.f32 %v495, %v531
        %v564 = vadd.f32 %v496, %v532
        %v565 = vadd.f32 %v497, %v533
        %v566 = vadd.f32 %v498, %v534
        %v567 = vadd.f32 %v499, %v535
        %v568 = vadd.f32 %v500, %v536
        %v569 = vadd.f32 %v501, %v537
        %v570 = vadd.f32 %v502, %v538
        %v571 = vadd.f32 %v503, %v539
        %v572 = vadd.f32 %v504, %v540
        %v573 = vadd.f32 %v505, %v541
        %v574 = vadd.f32 %v506, %v542
        %v575 = vadd.f32 %v507, %v543
        %v576 = vadd.f32 %v508, %v544
        %v577 = vadd.f32 %v509, %v545
        %v578 = vadd.f32 %v510, %v546
        %v579 = vadd.f32 %v511, %v547
        %v580 = vadd.f32 %v512, %v548
        %v581 = vadd.f32 %v513, %v549
        %v582 = vadd.f32 %v514, %v550
        %v583 = vadd.f32 %v515, %v551
        %v584 = vadd.f32 %v516, %v552
        %v585 = vadd.f32 %v517, %v553
        %v586 = vadd.f32 %v518, %v554
        %v587 = vadd.f32 %v519, %v555
        %v588 = vadd.f32 %v520, %v556
        %v589 = vadd.f32 %v521, %v557
        %v590 = vadd.f32 %v522, %v558
        %v591 = vadd.f32 %v523, %v559
        %v592 = vadd.f32 %v524, %v560
        %v593 = vadd.f32 %v525, %v561
        %v594 = vadd.f32 %v526, %v562
        %v595 = vlaneseq
        %v596 = vshrl.u32 %v595, 7
        %v597 = vsub.s32 0, %v596
        %v598 = vrot.slane %v320, %v597
        %v599 = vmul.f32 %v262, %v598
        %v600 = vmul.f32 %v263, %v598
        %v601 = vmul.f32 %v265, %v598
        %v602 = vmul.f32 %v266, %v598
        %v603 = vmul.f32 %v268, %v598
        %v604 = vmul.f32 %v269, %v598
        %v605 = vmul.f32 %v271, %v598
        %v606 = vmul.f32 %v272, %v598
        %v607 = vmul.f32 %v274, %v598
        %v608 = vmul.f32 %v275, %v598
        %v609 = vmul.f32 %v277, %v598
        %v610 = vmul.f32 %v278, %v598
        %v611 = vmul.f32 %v280, %v598
        %v612 = vmul.f32 %v281, %v598
        %v613 = vmul.f32 %v283, %v598
        %v614 = vmul.f32 %v284, %v598
        %v615 = vmul.f32 %v286, %v598
        %v616 = vmul.f32 %v287, %v598
        %v617 = vmul.f32 %v289, %v598
        %v618 = vmul.f32 %v290, %v598
        %v619 = vmul.f32 %v292, %v598
        %v620 = vmul.f32 %v293, %v598
        %v621 = vmul.f32 %v295, %v598
        %v622 = vmul.f32 %v296, %v598
        %v623 = vmul.f32 %v298, %v598
        %v624 = vmul.f32 %v299, %v598
        %v625 = vmul.f32 %v301, %v598
        %v626 = vmul.f32 %v302, %v598
        %v627 = vmul.f32 %v304, %v598
        %v628 = vmul.f32 %v305, %v598
        %v629 = vmul.f32 %v307, %v598
        %v630 = vmul.f32 %v308, %v598
        %v631 = vadd.f32 %v563, %v599
        %v632 = vadd.f32 %v564, %v600
        %v633 = vadd.f32 %v565, %v601
        %v634 = vadd.f32 %v566, %v602
        %v635 = vadd.f32 %v567, %v603
        %v636 = vadd.f32 %v568, %v604
        %v637 = vadd.f32 %v569, %v605
        %v638 = vadd.f32 %v570, %v606
        %v639 = vadd.f32 %v571, %v607
        %v640 = vadd.f32 %v572, %v608
        %v641 = vadd.f32 %v573, %v609
        %v642 = vadd.f32 %v574, %v610
        %v643 = vadd.f32 %v575, %v611
        %v644 = vadd.f32 %v576, %v612
        %v645 = vadd.f32 %v577, %v613
        %v646 = vadd.f32 %v578, %v614
        %v647 = vadd.f32 %v579, %v615
        %v648 = vadd.f32 %v580, %v616
        %v649 = vadd.f32 %v581, %v617
        %v650 = vadd.f32 %v582, %v618
        %v651 = vadd.f32 %v583, %v619
        %v652 = vadd.f32 %v584, %v620
        %v653 = vadd.f32 %v585, %v621
        %v654 = vadd.f32 %v586, %v622
        %v655 = vadd.f32 %v587, %v623
        %v656 = vadd.f32 %v588, %v624
        %v657 = vadd.f32 %v589, %v625
        %v658 = vadd.f32 %v590, %v626
        %v659 = vadd.f32 %v591, %v627
        %v660 = vadd.f32 %v592, %v628
        %v661 = vadd.f32 %v593, %v629
        %v662 = vadd.f32 %v594, %v630
        %v663 = vlaneseq
        %v664 = vshrl.u32 %v663, 7
        %v665 = vsub.s32 0, %v664
        %v666 = vrot.slane %v321, %v665
        %v667 = vmul.f32 %v265, %v666
        %v668 = vmul.f32 %v266, %v666
        %v669 = vmul.f32 %v268, %v666
        %v670 = vmul.f32 %v269, %v666
        %v671 = vmul.f32 %v271, %v666
        %v672 = vmul.f32 %v272, %v666
        %v673 = vmul.f32 %v274, %v666
        %v674 = vmul.f32 %v275, %v666
        %v675 = vmul.f32 %v277, %v666
        %v676 = vmul.f32 %v278, %v666
        %v677 = vmul.f32 %v280, %v666
        %v678 = vmul.f32 %v281, %v666
        %v679 = vmul.f32 %v283, %v666
        %v680 = vmul.f32 %v284, %v666
        %v681 = vmul.f32 %v286, %v666
        %v682 = vmul.f32 %v287, %v666
        %v683 = vmul.f32 %v289, %v666
        %v684 = vmul.f32 %v290, %v666
        %v685 = vmul.f32 %v292, %v666
        %v686 = vmul.f32 %v293, %v666
        %v687 = vmul.f32 %v295, %v666
        %v688 = vmul.f32 %v296, %v666
        %v689 = vmul.f32 %v298, %v666
        %v690 = vmul.f32 %v299, %v666
        %v691 = vmul.f32 %v301, %v666
        %v692 = vmul.f32 %v302, %v666
        %v693 = vmul.f32 %v304, %v666
        %v694 = vmul.f32 %v305, %v666
        %v695 = vmul.f32 %v307, %v666
        %v696 = vmul.f32 %v308, %v666
        %v697 = vmul.f32 %v310, %v666
        %v698 = vmul.f32 %v311, %v666
        %v699 = vadd.f32 %v631, %v667
        %v700 = vadd.f32 %v632, %v668
        %v701 = vadd.f32 %v633, %v669
        %v702 = vadd.f32 %v634, %v670
        %v703 = vadd.f32 %v635, %v671
        %v704 = vadd.f32 %v636, %v672
        %v705 = vadd.f32 %v637, %v673
        %v706 = vadd.f32 %v638, %v674
        %v707 = vadd.f32 %v639, %v675
        %v708 = vadd.f32 %v640, %v676
        %v709 = vadd.f32 %v641, %v677
        %v710 = vadd.f32 %v642, %v678
        %v711 = vadd.f32 %v643, %v679
        %v712 = vadd.f32 %v644, %v680
        %v713 = vadd.f32 %v645, %v681
        %v714 = vadd.f32 %v646, %v682
        %v715 = vadd.f32 %v647, %v683
        %v716 = vadd.f32 %v648, %v684
        %v717 = vadd.f32 %v649, %v685
        %v718 = vadd.f32 %v650, %v686
        %v719 = vadd.f32 %v651, %v687
        %v720 = vadd.f32 %v652, %v688
        %v721 = vadd.f32 %v653, %v689
        %v722 = vadd.f32 %v654, %v690
        %v723 = vadd.f32 %v655, %v691
        %v724 = vadd.f32 %v656, %v692
        %v725 = vadd.f32 %v657, %v693
        %v726 = vadd.f32 %v658, %v694
        %v727 = vadd.f32 %v659, %v695
        %v728 = vadd.f32 %v660, %v696
        %v729 = vadd.f32 %v661, %v697
        %v730 = vadd.f32 %v662, %v698
        %v731 = vlaneseq
        %v732 = vshrl.u32 %v731, 7
        %v733 = vsub.s32 0, %v732
        %v734 = vrot.slane %v322, %v733
        %v735 = vmul.f32 %v268, %v734
        %v736 = vmul.f32 %v269, %v734
        %v737 = vmul.f32 %v271, %v734
        %v738 = vmul.f32 %v272, %v734
        %v739 = vmul.f32 %v274, %v734
        %v740 = vmul.f32 %v275, %v734
        %v741 = vmul.f32 %v277, %v734
        %v742 = vmul.f32 %v278, %v734
        %v743 = vmul.f32 %v280, %v734
        %v744 = vmul.f32 %v281, %v734
        %v745 = vmul.f32 %v283, %v734
        %v746 = vmul.f32 %v284, %v734
        %v747 = vmul.f32 %v286, %v734
        %v748 = vmul.f32 %v287, %v734
        %v749 = vmul.f32 %v289, %v734
        %v750 = vmul.f32 %v290, %v734
        %v751 = vmul.f32 %v292, %v734
        %v752 = vmul.f32 %v293, %v734
        %v753 = vmul.f32 %v295, %v734
        %v754 = vmul.f32 %v296, %v734
        %v755 = vmul.f32 %v298, %v734
        %v756 = vmul.f32 %v299, %v734
        %v757 = vmul.f32 %v301, %v734
        %v758 = vmul.f32 %v302, %v734
        %v759 = vmul.f32 %v304, %v734
        %v760 = vmul.f32 %v305, %v734
        %v761 = vmul.f32 %v307, %v734
        %v762 = vmul.f32 %v308, %v734
        %v763 = vmul.f32 %v310, %v734
        %v764 = vmul.f32 %v311, %v734
        %v765 = vmul.f32 %v313, %v734
        %v766 = vmul.f32 %v314, %v734
        %v767 = vadd.f32 %v699, %v735
        %v768 = vadd.f32 %v700, %v736
        %v769 = vadd.f32 %v701, %v737
        %v770 = vadd.f32 %v702, %v738
        %v771 = vadd.f32 %v703, %v739
        %v772 = vadd.f32 %v704, %v740
        %v773 = vadd.f32 %v705, %v741
        %v774 = vadd.f32 %v706, %v742
        %v775 = vadd.f32 %v707, %v743
        %v776 = vadd.f32 %v708, %v744
        %v777 = vadd.f32 %v709, %v745
        %v778 = vadd.f32 %v710, %v746
        %v779 = vadd.f32 %v711, %v747
        %v780 = vadd.f32 %v712, %v748
        %v781 = vadd.f32 %v713, %v749
        %v782 = vadd.f32 %v714, %v750
        %v783 = vadd.f32 %v715, %v751
        %v784 = vadd.f32 %v716, %v752
        %v785 = vadd.f32 %v717, %v753
        %v786 = vadd.f32 %v718, %v754
        %v787 = vadd.f32 %v719, %v755
        %v788 = vadd.f32 %v720, %v756
        %v789 = vadd.f32 %v721, %v757
        %v790 = vadd.f32 %v722, %v758
        %v791 = vadd.f32 %v723, %v759
        %v792 = vadd.f32 %v724, %v760
        %v793 = vadd.f32 %v725, %v761
        %v794 = vadd.f32 %v726, %v762
        %v795 = vadd.f32 %v727, %v763
        %v796 = vadd.f32 %v728, %v764
        %v797 = vadd.f32 %v729, %v765
        %v798 = vadd.f32 %v730, %v766
        %v799 = vlaneseq
        %v800 = vshrl.u32 %v799, 7
        %v801 = vsub.s32 1, %v800
        %v802 = vrot.slane %v316, %v801
        %v803 = vmul.f32 %v250, %v802
        %v804 = vmul.f32 %v251, %v802
        %v805 = vmul.f32 %v252, %v802
        %v806 = vmul.f32 %v253, %v802
        %v807 = vmul.f32 %v254, %v802
        %v808 = vmul.f32 %v255, %v802
        %v809 = vmul.f32 %v256, %v802
        %v810 = vmul.f32 %v257, %v802
        %v811 = vmul.f32 %v258, %v802
        %v812 = vmul.f32 %v259, %v802
        %v813 = vmul.f32 %v260, %v802
        %v814 = vmul.f32 %v261, %v802
        %v815 = vmul.f32 %v262, %v802
        %v816 = vmul.f32 %v263, %v802
        %v817 = vmul.f32 %v264, %v802
        %v818 = vmul.f32 %v265, %v802
        %v819 = vmul.f32 %v266, %v802
        %v820 = vmul.f32 %v267, %v802
        %v821 = vmul.f32 %v268, %v802
        %v822 = vmul.f32 %v269, %v802
        %v823 = vmul.f32 %v270, %v802
        %v824 = vmul.f32 %v271, %v802
        %v825 = vmul.f32 %v272, %v802
        %v826 = vmul.f32 %v273, %v802
        %v827 = vmul.f32 %v274, %v802
        %v828 = vmul.f32 %v275, %v802
        %v829 = vmul.f32 %v276, %v802
        %v830 = vmul.f32 %v277, %v802
        %v831 = vmul.f32 %v278, %v802
        %v832 = vmul.f32 %v279, %v802
        %v833 = vmul.f32 %v280, %v802
        %v834 = vmul.f32 %v281, %v802
        %v835 = vmul.f32 %v282, %v802
        %v836 = vmul.f32 %v283, %v802
        %v837 = vmul.f32 %v284, %v802
        %v838 = vmul.f32 %v285, %v802
        %v839 = vmul.f32 %v286, %v802
        %v840 = vmul.f32 %v287, %v802
        %v841 = vmul.f32 %v288, %v802
        %v842 = vmul.f32 %v289, %v802
        %v843 = vmul.f32 %v290, %v802
        %v844 = vmul.f32 %v291, %v802
        %v845 = vmul.f32 %v292, %v802
        %v846 = vmul.f32 %v293, %v802
        %v847 = vmul.f32 %v294, %v802
        %v848 = vmul.f32 %v295, %v802
        %v849 = vmul.f32 %v296, %v802
        %v850 = vmul.f32 %v297, %v802
        %vm899 = vcmask 1046528
        %v900 = vrot.slane %v803, 1
        %v901 = vrot.slane %v804, 1
        %v902 = vsel %vm899, %v900, %v901
        %v903 = vrot.slane %v805, 1
        %v904 = vsel %vm899, %v901, %v903
        %v905 = vrot.slane %v806, 1
        %v906 = vrot.slane %v807, 1
        %v907 = vsel %vm899, %v905, %v906
        %v908 = vrot.slane %v808, 1
        %v909 = vsel %vm899, %v906, %v908
        %v910 = vrot.slane %v809, 1
        %v911 = vrot.slane %v810, 1
        %v912 = vsel %vm899, %v910, %v911
        %v913 = vrot.slane %v811, 1
        %v914 = vsel %vm899, %v911, %v913
        %v915 = vrot.slane %v812, 1
        %v916 = vrot.slane %v813, 1
        %v917 = vsel %vm899, %v915, %v916
        %v918 = vrot.slane %v814, 1
        %v919 = vsel %vm899, %v916, %v918
        %v920 = vrot.slane %v815, 1
        %v921 = vrot.slane %v816, 1
        %v922 = vsel %vm899, %v920, %v921
        %v923 = vrot.slane %v817, 1
        %v924 = vsel %vm899, %v921, %v923
        %v925 = vrot.slane %v818, 1
        %v926 = vrot.slane %v819, 1
        %v927 = vsel %vm899, %v925, %v926
        %v928 = vrot.slane %v820, 1
        %v929 = vsel %vm899, %v926, %v928
        %v930 = vrot.slane %v821, 1
        %v931 = vrot.slane %v822, 1
        %v932 = vsel %vm899, %v930, %v931
        %v933 = vrot.slane %v823, 1
        %v934 = vsel %vm899, %v931, %v933
        %v935 = vrot.slane %v824, 1
        %v936 = vrot.slane %v825, 1
        %v937 = vsel %vm899, %v935, %v936
        %v938 = vrot.slane %v826, 1
        %v939 = vsel %vm899, %v936, %v938
        %v940 = vrot.slane %v827, 1
        %v941 = vrot.slane %v828, 1
        %v942 = vsel %vm899, %v940, %v941
        %v943 = vrot.slane %v829, 1
        %v944 = vsel %vm899, %v941, %v943
        %v945 = vrot.slane %v830, 1
        %v946 = vrot.slane %v831, 1
        %v947 = vsel %vm899, %v945, %v946
        %v948 = vrot.slane %v832, 1
        %v949 = vsel %vm899, %v946, %v948
        %v950 = vrot.slane %v833, 1
        %v951 = vrot.slane %v834, 1
        %v952 = vsel %vm899, %v950, %v951
        %v953 = vrot.slane %v835, 1
        %v954 = vsel %vm899, %v951, %v953
        %v955 = vrot.slane %v836, 1
        %v956 = vrot.slane %v837, 1
        %v957 = vsel %vm899, %v955, %v956
        %v958 = vrot.slane %v838, 1
        %v959 = vsel %vm899, %v956, %v958
        %v960 = vrot.slane %v839, 1
        %v961 = vrot.slane %v840, 1
        %v962 = vsel %vm899, %v960, %v961
        %v963 = vrot.slane %v841, 1
        %v964 = vsel %vm899, %v961, %v963
        %v965 = vrot.slane %v842, 1
        %v966 = vrot.slane %v843, 1
        %v967 = vsel %vm899, %v965, %v966
        %v968 = vrot.slane %v844, 1
        %v969 = vsel %vm899, %v966, %v968
        %v970 = vrot.slane %v845, 1
        %v971 = vrot.slane %v846, 1
        %v972 = vsel %vm899, %v970, %v971
        %v973 = vrot.slane %v847, 1
        %v974 = vsel %vm899, %v971, %v973
        %v975 = vrot.slane %v848, 1
        %v976 = vrot.slane %v849, 1
        %v977 = vsel %vm899, %v975, %v976
        %v978 = vrot.slane %v850, 1
        %v979 = vsel %vm899, %v976, %v978
        %v1012 = vadd.f32 %v767, %v902
        %v1013 = vadd.f32 %v768, %v904
        %v1014 = vadd.f32 %v769, %v907
        %v1015 = vadd.f32 %v770, %v909
        %v1016 = vadd.f32 %v771, %v912
        %v1017 = vadd.f32 %v772, %v914
        %v1018 = vadd.f32 %v773, %v917
        %v1019 = vadd.f32 %v774, %v919
        %v1020 = vadd.f32 %v775, %v922
        %v1021 = vadd.f32 %v776, %v924
        %v1022 = vadd.f32 %v777, %v927
        %v1023 = vadd.f32 %v778, %v929
        %v1024 = vadd.f32 %v779, %v932
        %v1025 = vadd.f32 %v780, %v934
        %v1026 = vadd.f32 %v781, %v937
        %v1027 = vadd.f32 %v782, %v939
        %v1028 = vadd.f32 %v783, %v942
        %v1029 = vadd.f32 %v784, %v944
        %v1030 = vadd.f32 %v785, %v947
        %v1031 = vadd.f32 %v786, %v949
        %v1032 = vadd.f32 %v787, %v952
        %v1033 = vadd.f32 %v788, %v954
        %v1034 = vadd.f32 %v789, %v957
        %v1035 = vadd.f32 %v790, %v959
        %v1036 = vadd.f32 %v791, %v962
        %v1037 = vadd.f32 %v792, %v964
        %v1038 = vadd.f32 %v793, %v967
        %v1039 = vadd.f32 %v794, %v969
        %v1040 = vadd.f32 %v795, %v972
        %v1041 = vadd.f32 %v796, %v974
        %v1042 = vadd.f32 %v797, %v977
        %v1043 = vadd.f32 %v798, %v979
        %v1044 = vlaneseq
        %v1045 = vshrl.u32 %v1044, 7
        %v1046 = vsub.s32 1, %v1045
        %v1047 = vrot.slane %v317, %v1046
        %v1048 = vmul.f32 %v253, %v1047
        %v1049 = vmul.f32 %v254, %v1047
        %v1050 = vmul.f32 %v255, %v1047
        %v1051 = vmul.f32 %v256, %v1047
        %v1052 = vmul.f32 %v257, %v1047
        %v1053 = vmul.f32 %v258, %v1047
        %v1054 = vmul.f32 %v259, %v1047
        %v1055 = vmul.f32 %v260, %v1047
        %v1056 = vmul.f32 %v261, %v1047
        %v1057 = vmul.f32 %v262, %v1047
        %v1058 = vmul.f32 %v263, %v1047
        %v1059 = vmul.f32 %v264, %v1047
        %v1060 = vmul.f32 %v265, %v1047
        %v1061 = vmul.f32 %v266, %v1047
        %v1062 = vmul.f32 %v267, %v1047
        %v1063 = vmul.f32 %v268, %v1047
        %v1064 = vmul.f32 %v269, %v1047
        %v1065 = vmul.f32 %v270, %v1047
        %v1066 = vmul.f32 %v271, %v1047
        %v1067 = vmul.f32 %v272, %v1047
        %v1068 = vmul.f32 %v273, %v1047
        %v1069 = vmul.f32 %v274, %v1047
        %v1070 = vmul.f32 %v275, %v1047
        %v1071 = vmul.f32 %v276, %v1047
        %v1072 = vmul.f32 %v277, %v1047
        %v1073 = vmul.f32 %v278, %v1047
        %v1074 = vmul.f32 %v279, %v1047
        %v1075 = vmul.f32 %v280, %v1047
        %v1076 = vmul.f32 %v281, %v1047
        %v1077 = vmul.f32 %v282, %v1047
        %v1078 = vmul.f32 %v283, %v1047
        %v1079 = vmul.f32 %v284, %v1047
        %v1080 = vmul.f32 %v285, %v1047
        %v1081 = vmul.f32 %v286, %v1047
        %v1082 = vmul.f32 %v287, %v1047
        %v1083 = vmul.f32 %v288, %v1047
        %v1084 = vmul.f32 %v289, %v1047
        %v1085 = vmul.f32 %v290, %v1047
        %v1086 = vmul.f32 %v291, %v1047
        %v1087 = vmul.f32 %v292, %v1047
        %v1088 = vmul.f32 %v293, %v1047
        %v1089 = vmul.f32 %v294, %v1047
        %v1090 = vmul.f32 %v295, %v1047
        %v1091 = vmul.f32 %v296, %v1047
        %v1092 = vmul.f32 %v297, %v1047
        %v1093 = vmul.f32 %v298, %v1047
        %v1094 = vmul.f32 %v299, %v1047
        %v1095 = vmul.f32 %v300, %v1047
        %v1144 = vrot.slane %v1048, 1
        %v1145 = vrot.slane %v1049, 1
        %v1146 = vsel %vm899, %v1144, %v1145
        %v1147 = vrot.slane %v1050, 1
        %v1148 = vsel %vm899, %v1145, %v1147
        %v1149 = vrot.slane %v1051, 1
        %v1150 = vrot.slane %v1052, 1
        %v1151 = vsel %vm899, %v1149, %v1150
        %v1152 = vrot.slane %v1053, 1
        %v1153 = vsel %vm899, %v1150, %v1152
        %v1154 = vrot.slane %v1054, 1
        %v1155 = vrot.slane %v1055, 1
        %v1156 = vsel %vm899, %v1154, %v1155
        %v1157 = vrot.slane %v1056, 1
        %v1158 = vsel %vm899, %v1155, %v1157
        %v1159 = vrot.slane %v1057, 1
        %v1160 = vrot.slane %v1058, 1
        %v1161 = vsel %vm899, %v1159, %v1160
        %v1162 = vrot.slane %v1059, 1
        %v1163 = vsel %vm899, %v1160, %v1162
        %v1164 = vrot.slane %v1060, 1
        %v1165 = vrot.slane %v1061, 1
        %v1166 = vsel %vm899, %v1164, %v1165
        %v1167 = vrot.slane %v1062, 1
        %v1168 = vsel %vm899, %v1165, %v1167
        %v1169 = vrot.slane %v1063, 1
        %v1170 = vrot.slane %v1064, 1
        %v1171 = vsel %vm899, %v1169, %v1170
        %v1172 = vrot.slane %v1065, 1
        %v1173 = vsel %vm899, %v1170, %v1172
        %v1174 = vrot.slane %v1066, 1
        %v1175 = vrot.slane %v1067, 1
        %v1176 = vsel %vm899, %v1174, %v1175
        %v1177 = vrot.slane %v1068, 1
        %v1178 = vsel %vm899, %v1175, %v1177
        %v1179 = vrot.slane %v1069, 1
        %v1180 = vrot.slane %v1070, 1
        %v1181 = vsel %vm899, %v1179, %v1180
        %v1182 = vrot.slane %v1071, 1
        %v1183 = vsel %vm899, %v1180, %v1182
        %v1184 = vrot.slane %v1072, 1
        %v1185 = vrot.slane %v1073, 1
        %v1186 = vsel %vm899, %v1184, %v1185
        %v1187 = vrot.slane %v1074, 1
        %v1188 = vsel %vm899, %v1185, %v1187
        %v1189 = vrot.slane %v1075, 1
        %v1190 = vrot.slane %v1076, 1
        %v1191 = vsel %vm899, %v1189, %v1190
        %v1192 = vrot.slane %v1077, 1
        %v1193 = vsel %vm899, %v1190, %v1192
        %v1194 = vrot.slane %v1078, 1
        %v1195 = vrot.slane %v1079, 1
        %v1196 = vsel %vm899, %v1194, %v1195
        %v1197 = vrot.slane %v1080, 1
        %v1198 = vsel %vm899, %v1195, %v1197
        %v1199 = vrot.slane %v1081, 1
        %v1200 = vrot.slane %v1082, 1
        %v1201 = vsel %vm899, %v1199, %v1200
        %v1202 = vrot.slane %v1083, 1
        %v1203 = vsel %vm899, %v1200, %v1202
        %v1204 = vrot.slane %v1084, 1
        %v1205 = vrot.slane %v1085, 1
        %v1206 = vsel %vm899, %v1204, %v1205
        %v1207 = vrot.slane %v1086, 1
        %v1208 = vsel %vm899, %v1205, %v1207
        %v1209 = vrot.slane %v1087, 1
        %v1210 = vrot.slane %v1088, 1
        %v1211 = vsel %vm899, %v1209, %v1210
        %v1212 = vrot.slane %v1089, 1
        %v1213 = vsel %vm899, %v1210, %v1212
        %v1214 = vrot.slane %v1090, 1
        %v1215 = vrot.slane %v1091, 1
        %v1216 = vsel %vm899, %v1214, %v1215
        %v1217 = vrot.slane %v1092, 1
        %v1218 = vsel %vm899, %v1215, %v1217
        %v1219 = vrot.slane %v1093, 1
        %v1220 = vrot.slane %v1094, 1
        %v1221 = vsel %vm899, %v1219, %v1220
        %v1222 = vrot.slane %v1095, 1
        %v1223 = vsel %vm899, %v1220, %v1222
        %v1256 = vadd.f32 %v1012, %v1146
        %v1257 = vadd.f32 %v1013, %v1148
        %v1258 = vadd.f32 %v1014, %v1151
        %v1259 = vadd.f32 %v1015, %v1153
        %v1260 = vadd.f32 %v1016, %v1156
        %v1261 = vadd.f32 %v1017, %v1158
        %v1262 = vadd.f32 %v1018, %v1161
        %v1263 = vadd.f32 %v1019, %v1163
        %v1264 = vadd.f32 %v1020, %v1166
        %v1265 = vadd.f32 %v1021, %v1168
        %v1266 = vadd.f32 %v1022, %v1171
        %v1267 = vadd.f32 %v1023, %v1173
        %v1268 = vadd.f32 %v1024, %v1176
        %v1269 = vadd.f32 %v1025, %v1178
        %v1270 = vadd.f32 %v1026, %v1181
        %v1271 = vadd.f32 %v1027, %v1183
        %v1272 = vadd.f32 %v1028, %v1186
        %v1273 = vadd.f32 %v1029, %v1188
        %v1274 = vadd.f32 %v1030, %v1191
        %v1275 = vadd.f32 %v1031, %v1193
        %v1276 = vadd.f32 %v1032, %v1196
        %v1277 = vadd.f32 %v1033, %v1198
        %v1278 = vadd.f32 %v1034, %v1201
        %v1279 = vadd.f32 %v1035, %v1203
        %v1280 = vadd.f32 %v1036, %v1206
        %v1281 = vadd.f32 %v1037, %v1208
        %v1282 = vadd.f32 %v1038, %v1211
        %v1283 = vadd.f32 %v1039, %v1213
        %v1284 = vadd.f32 %v1040, %v1216
        %v1285 = vadd.f32 %v1041, %v1218
        %v1286 = vadd.f32 %v1042, %v1221
        %v1287 = vadd.f32 %v1043, %v1223
        %v1288 = vlaneseq
        %v1289 = vshrl.u32 %v1288, 7
        %v1290 = vsub.s32 1, %v1289
        %v1291 = vrot.slane %v318, %v1290
        %v1292 = vmul.f32 %v256, %v1291
        %v1293 = vmul.f32 %v257, %v1291
        %v1294 = vmul.f32 %v258, %v1291
        %v1295 = vmul.f32 %v259, %v1291
        %v1296 = vmul.f32 %v260, %v1291
        %v1297 = vmul.f32 %v261, %v1291
        %v1298 = vmul.f32 %v262, %v1291
        %v1299 = vmul.f32 %v263, %v1291
        %v1300 = vmul.f32 %v264, %v1291
        %v1301 = vmul.f32 %v265, %v1291
        %v1302 = vmul.f32 %v266, %v1291
        %v1303 = vmul.f32 %v267, %v1291
        %v1304 = vmul.f32 %v268, %v1291
        %v1305 = vmul.f32 %v269, %v1291
        %v1306 = vmul.f32 %v270, %v1291
        %v1307 = vmul.f32 %v271, %v1291
        %v1308 = vmul.f32 %v272, %v1291
        %v1309 = vmul.f32 %v273, %v1291
        %v1310 = vmul.f32 %v274, %v1291
        %v1311 = vmul.f32 %v275, %v1291
        %v1312 = vmul.f32 %v276, %v1291
        %v1313 = vmul.f32 %v277, %v1291
        %v1314 = vmul.f32 %v278, %v1291
        %v1315 = vmul.f32 %v279, %v1291
        %v1316 = vmul.f32 %v280, %v1291
        %v1317 = vmul.f32 %v281, %v1291
        %v1318 = vmul.f32 %v282, %v1291
        %v1319 = vmul.f32 %v283, %v1291
        %v1320 = vmul.f32 %v284, %v1291
        %v1321 = vmul.f32 %v285, %v1291
        %v1322 = vmul.f32 %v286, %v1291
        %v1323 = vmul.f32 %v287, %v1291
        %v1324 = vmul.f32 %v288, %v1291
        %v1325 = vmul.f32 %v289, %v1291
        %v1326 = vmul.f32 %v290, %v1291
        %v1327 = vmul.f32 %v291, %v1291
        %v1328 = vmul.f32 %v292, %v1291
        %v1329 = vmul.f32 %v293, %v1291
        %v1330 = vmul.f32 %v294, %v1291
        %v1331 = vmul.f32 %v295, %v1291
        %v1332 = vmul.f32 %v296, %v1291
        %v1333 = vmul.f32 %v297, %v1291
        %v1334 = vmul.f32 %v298, %v1291
        %v1335 = vmul.f32 %v299, %v1291
        %v1336 = vmul.f32 %v300, %v1291
        %v1337 = vmul.f32 %v301, %v1291
        %v1338 = vmul.f32 %v302, %v1291
        %v1339 = vmul.f32 %v303, %v1291
        %v1388 = vrot.slane %v1292, 1
        %v1389 = vrot.slane %v1293, 1
        %v1390 = vsel %vm899, %v1388, %v1389
        %v1391 = vrot.slane %v1294, 1
        %v1392 = vsel %vm899, %v1389, %v1391
        %v1393 = vrot.slane %v1295, 1
        %v1394 = vrot.slane %v1296, 1
        %v1395 = vsel %vm899, %v1393, %v1394
        %v1396 = vrot.slane %v1297, 1
        %v1397 = vsel %vm899, %v1394, %v1396
        %v1398 = vrot.slane %v1298, 1
        %v1399 = vrot.slane %v1299, 1
        %v1400 = vsel %vm899, %v1398, %v1399
        %v1401 = vrot.slane %v1300, 1
        %v1402 = vsel %vm899, %v1399, %v1401
        %v1403 = vrot.slane %v1301, 1
        %v1404 = vrot.slane %v1302, 1
        %v1405 = vsel %vm899, %v1403, %v1404
        %v1406 = vrot.slane %v1303, 1
        %v1407 = vsel %vm899, %v1404, %v1406
        %v1408 = vrot.slane %v1304, 1
        %v1409 = vrot.slane %v1305, 1
        %v1410 = vsel %vm899, %v1408, %v1409
        %v1411 = vrot.slane %v1306, 1
        %v1412 = vsel %vm899, %v1409, %v1411
        %v1413 = vrot.slane %v1307, 1
        %v1414 = vrot.slane %v1308, 1
        %v1415 = vsel %vm899, %v1413, %v1414
        %v1416 = vrot.slane %v1309, 1
        %v1417 = vsel %vm899, %v1414, %v1416
        %v1418 = vrot.slane %v1310, 1
        %v1419 = vrot.slane %v1311, 1
        %v1420 = vsel %vm899, %v1418, %v1419
        %v1421 = vrot.slane %v1312, 1
        %v1422 = vsel %vm899, %v1419, %v1421
        %v1423 = vrot.slane %v1313, 1
        %v1424 = vrot.slane %v1314, 1
        %v1425 = vsel %vm899, %v1423, %v1424
        %v1426 = vrot.slane %v1315, 1
        %v1427 = vsel %vm899, %v1424, %v1426
        %v1428 = vrot.slane %v1316, 1
        %v1429 = vrot.slane %v1317, 1
        %v1430 = vsel %vm899, %v1428, %v1429
        %v1431 = vrot.slane %v1318, 1
        %v1432 = vsel %vm899, %v1429, %v1431
        %v1433 = vrot.slane %v1319, 1
        %v1434 = vrot.slane %v1320, 1
        %v1435 = vsel %vm899, %v1433, %v1434
        %v1436 = vrot.slane %v1321, 1
        %v1437 = vsel %vm899, %v1434, %v1436
        %v1438 = vrot.slane %v1322, 1
        %v1439 = vrot.slane %v1323, 1
        %v1440 = vsel %vm899, %v1438, %v1439
        %v1441 = vrot.slane %v1324, 1
        %v1442 = vsel %vm899, %v1439, %v1441
        %v1443 = vrot.slane %v1325, 1
        %v1444 = vrot.slane %v1326, 1
        %v1445 = vsel %vm899, %v1443, %v1444
        %v1446 = vrot.slane %v1327, 1
        %v1447 = vsel %vm899, %v1444, %v1446
        %v1448 = vrot.slane %v1328, 1
        %v1449 = vrot.slane %v1329, 1
        %v1450 = vsel %vm899, %v1448, %v1449
        %v1451 = vrot.slane %v1330, 1
        %v1452 = vsel %vm899, %v1449, %v1451
        %v1453 = vrot.slane %v1331, 1
        %v1454 = vrot.slane %v1332, 1
        %v1455 = vsel %vm899, %v1453, %v1454
        %v1456 = vrot.slane %v1333, 1
        %v1457 = vsel %vm899, %v1454, %v1456
        %v1458 = vrot.slane %v1334, 1
        %v1459 = vrot.slane %v1335, 1
        %v1460 = vsel %vm899, %v1458, %v1459
        %v1461 = vrot.slane %v1336, 1
        %v1462 = vsel %vm899, %v1459, %v1461
        %v1463 = vrot.slane %v1337, 1
        %v1464 = vrot.slane %v1338, 1
        %v1465 = vsel %vm899, %v1463, %v1464
        %v1466 = vrot.slane %v1339, 1
        %v1467 = vsel %vm899, %v1464, %v1466
        %v1500 = vadd.f32 %v1256, %v1390
        %v1501 = vadd.f32 %v1257, %v1392
        %v1502 = vadd.f32 %v1258, %v1395
        %v1503 = vadd.f32 %v1259, %v1397
        %v1504 = vadd.f32 %v1260, %v1400
        %v1505 = vadd.f32 %v1261, %v1402
        %v1506 = vadd.f32 %v1262, %v1405
        %v1507 = vadd.f32 %v1263, %v1407
        %v1508 = vadd.f32 %v1264, %v1410
        %v1509 = vadd.f32 %v1265, %v1412
        %v1510 = vadd.f32 %v1266, %v1415
        %v1511 = vadd.f32 %v1267, %v1417
        %v1512 = vadd.f32 %v1268, %v1420
        %v1513 = vadd.f32 %v1269, %v1422
        %v1514 = vadd.f32 %v1270, %v1425
        %v1515 = vadd.f32 %v1271, %v1427
        %v1516 = vadd.f32 %v1272, %v1430
        %v1517 = vadd.f32 %v1273, %v1432
        %v1518 = vadd.f32 %v1274, %v1435
        %v1519 = vadd.f32 %v1275, %v1437
        %v1520 = vadd.f32 %v1276, %v1440
        %v1521 = vadd.f32 %v1277, %v1442
        %v1522 = vadd.f32 %v1278, %v1445
        %v1523 = vadd.f32 %v1279, %v1447
        %v1524 = vadd.f32 %v1280, %v1450
        %v1525 = vadd.f32 %v1281, %v1452
        %v1526 = vadd.f32 %v1282, %v1455
        %v1527 = vadd.f32 %v1283, %v1457
        %v1528 = vadd.f32 %v1284, %v1460
        %v1529 = vadd.f32 %v1285, %v1462
        %v1530 = vadd.f32 %v1286, %v1465
        %v1531 = vadd.f32 %v1287, %v1467
        %v1532 = vlaneseq
        %v1533 = vshrl.u32 %v1532, 7
        %v1534 = vsub.s32 1, %v1533
        %v1535 = vrot.slane %v319, %v1534
        %v1536 = vmul.f32 %v259, %v1535
        %v1537 = vmul.f32 %v260, %v1535
        %v1538 = vmul.f32 %v261, %v1535
        %v1539 = vmul.f32 %v262, %v1535
        %v1540 = vmul.f32 %v263, %v1535
        %v1541 = vmul.f32 %v264, %v1535
        %v1542 = vmul.f32 %v265, %v1535
        %v1543 = vmul.f32 %v266, %v1535
        %v1544 = vmul.f32 %v267, %v1535
        %v1545 = vmul.f32 %v268, %v1535
        %v1546 = vmul.f32 %v269, %v1535
        %v1547 = vmul.f32 %v270, %v1535
        %v1548 = vmul.f32 %v271, %v1535
        %v1549 = vmul.f32 %v272, %v1535
        %v1550 = vmul.f32 %v273, %v1535
        %v1551 = vmul.f32 %v274, %v1535
        %v1552 = vmul.f32 %v275, %v1535
        %v1553 = vmul.f32 %v276, %v1535
        %v1554 = vmul.f32 %v277, %v1535
        %v1555 = vmul.f32 %v278, %v1535
        %v1556 = vmul.f32 %v279, %v1535
        %v1557 = vmul.f32 %v280, %v1535
        %v1558 = vmul.f32 %v281, %v1535
        %v1559 = vmul.f32 %v282, %v1535
        %v1560 = vmul.f32 %v283, %v1535
        %v1561 = vmul.f32 %v284, %v1535
        %v1562 = vmul.f32 %v285, %v1535
        %v1563 = vmul.f32 %v286, %v1535
        %v1564 = vmul.f32 %v287, %v1535
        %v1565 = vmul.f32 %v288, %v1535
        %v1566 = vmul.f32 %v289, %v1535
        %v1567 = vmul.f32 %v290, %v1535
        %v1568 = vmul.f32 %v291, %v1535
        %v1569 = vmul.f32 %v292, %v1535
        %v1570 = vmul.f32 %v293, %v1535
        %v1571 = vmul.f32 %v294, %v1535
        %v1572 = vmul.f32 %v295, %v1535
        %v1573 = vmul.f32 %v296, %v1535
        %v1574 = vmul.f32 %v297, %v1535
        %v1575 = vmul.f32 %v298, %v1535
        %v1576 = vmul.f32 %v299, %v1535
        %v1577 = vmul.f32 %v300, %v1535
        %v1578 = vmul.f32 %v301, %v1535
        %v1579 = vmul.f32 %v302, %v1535
        %v1580 = vmul.f32 %v303, %v1535
        %v1581 = vmul.f32 %v304, %v1535
        %v1582 = vmul.f32 %v305, %v1535
        %v1583 = vmul.f32 %v306, %v1535
        %v1632 = vrot.slane %v1536, 1
        %v1633 = vrot.slane %v1537, 1
        %v1634 = vsel %vm899, %v1632, %v1633
        %v1635 = vrot.slane %v1538, 1
        %v1636 = vsel %vm899, %v1633, %v1635
        %v1637 = vrot.slane %v1539, 1
        %v1638 = vrot.slane %v1540, 1
        %v1639 = vsel %vm899, %v1637, %v1638
        %v1640 = vrot.slane %v1541, 1
        %v1641 = vsel %vm899, %v1638, %v1640
        %v1642 = vrot.slane %v1542, 1
        %v1643 = vrot.slane %v1543, 1
        %v1644 = vsel %vm899, %v1642, %v1643
        %v1645 = vrot.slane %v1544, 1
        %v1646 = vsel %vm899, %v1643, %v1645
        %v1647 = vrot.slane %v1545, 1
        %v1648 = vrot.slane %v1546, 1
        %v1649 = vsel %vm899, %v1647, %v1648
        %v1650 = vrot.slane %v1547, 1
        %v1651 = vsel %vm899, %v1648, %v1650
        %v1652 = vrot.slane %v1548, 1
        %v1653 = vrot.slane %v1549, 1
        %v1654 = vsel %vm899, %v1652, %v1653
        %v1655 = vrot.slane %v1550, 1
        %v1656 = vsel %vm899, %v1653, %v1655
        %v1657 = vrot.slane %v1551, 1
        %v1658 = vrot.slane %v1552, 1
        %v1659 = vsel %vm899, %v1657, %v1658
        %v1660 = vrot.slane %v1553, 1
        %v1661 = vsel %vm899, %v1658, %v1660
        %v1662 = vrot.slane %v1554, 1
        %v1663 = vrot.slane %v1555, 1
        %v1664 = vsel %vm899, %v1662, %v1663
        %v1665 = vrot.slane %v1556, 1
        %v1666 = vsel %vm899, %v1663, %v1665
        %v1667 = vrot.slane %v1557, 1
        %v1668 = vrot.slane %v1558, 1
        %v1669 = vsel %vm899, %v1667, %v1668
        %v1670 = vrot.slane %v1559, 1
        %v1671 = vsel %vm899, %v1668, %v1670
        %v1672 = vrot.slane %v1560, 1
        %v1673 = vrot.slane %v1561, 1
        %v1674 = vsel %vm899, %v1672, %v1673
        %v1675 = vrot.slane %v1562, 1
        %v1676 = vsel %vm899, %v1673, %v1675
        %v1677 = vrot.slane %v1563, 1
        %v1678 = vrot.slane %v1564, 1
        %v1679 = vsel %vm899, %v1677, %v1678
        %v1680 = vrot.slane %v1565, 1
        %v1681 = vsel %vm899, %v1678, %v1680
        %v1682 = vrot.slane %v1566, 1
        %v1683 = vrot.slane %v1567, 1
        %v1684 = vsel %vm899, %v1682, %v1683
        %v1685 = vrot.slane %v1568, 1
        %v1686 = vsel %vm899, %v1683, %v1685
        %v1687 = vrot.slane %v1569, 1
        %v1688 = vrot.slane %v1570, 1
        %v1689 = vsel %vm899, %v1687, %v1688
        %v1690 = vrot.slane %v1571, 1
        %v1691 = vsel %vm899, %v1688, %v1690
        %v1692 = vrot.slane %v1572, 1
        %v1693 = vrot.slane %v1573, 1
        %v1694 = vsel %vm899, %v1692, %v1693
        %v1695 = vrot.slane %v1574, 1
        %v1696 = vsel %vm899, %v1693, %v1695
        %v1697 = vrot.slane %v1575, 1
        %v1698 = vrot.slane %v1576, 1
        %v1699 = vsel %vm899, %v1697, %v1698
        %v1700 = vrot.slane %v1577, 1
        %v1701 = vsel %vm899, %v1698, %v1700
        %v1702 = vrot.slane %v1578, 1
        %v1703 = vrot.slane %v1579, 1
        %v1704 = vsel %vm899, %v1702, %v1703
        %v1705 = vrot.slane %v1580, 1
        %v1706 = vsel %vm899, %v1703, %v1705
        %v1707 = vrot.slane %v1581, 1
        %v1708 = vrot.slane %v1582, 1
        %v1709 = vsel %vm899, %v1707, %v1708
        %v1710 = vrot.slane %v1583, 1
        %v1711 = vsel %vm899, %v1708, %v1710
        %v1744 = vadd.f32 %v1500, %v1634
        %v1745 = vadd.f32 %v1501, %v1636
        %v1746 = vadd.f32 %v1502, %v1639
        %v1747 = vadd.f32 %v1503, %v1641
        %v1748 = vadd.f32 %v1504, %v1644
        %v1749 = vadd.f32 %v1505, %v1646
        %v1750 = vadd.f32 %v1506, %v1649
        %v1751 = vadd.f32 %v1507, %v1651
        %v1752 = vadd.f32 %v1508, %v1654
        %v1753 = vadd.f32 %v1509, %v1656
        %v1754 = vadd.f32 %v1510, %v1659
        %v1755 = vadd.f32 %v1511, %v1661
        %v1756 = vadd.f32 %v1512, %v1664
        %v1757 = vadd.f32 %v1513, %v1666
        %v1758 = vadd.f32 %v1514, %v1669
        %v1759 = vadd.f32 %v1515, %v1671
        %v1760 = vadd.f32 %v1516, %v1674
        %v1761 = vadd.f32 %v1517, %v1676
        %v1762 = vadd.f32 %v1518, %v1679
        %v1763 = vadd.f32 %v1519, %v1681
        %v1764 = vadd.f32 %v1520, %v1684
        %v1765 = vadd.f32 %v1521, %v1686
        %v1766 = vadd.f32 %v1522, %v1689
        %v1767 = vadd.f32 %v1523, %v1691
        %v1768 = vadd.f32 %v1524, %v1694
        %v1769 = vadd.f32 %v1525, %v1696
        %v1770 = vadd.f32 %v1526, %v1699
        %v1771 = vadd.f32 %v1527, %v1701
        %v1772 = vadd.f32 %v1528, %v1704
        %v1773 = vadd.f32 %v1529, %v1706
        %v1774 = vadd.f32 %v1530, %v1709
        %v1775 = vadd.f32 %v1531, %v1711
        %v1776 = vlaneseq
        %v1777 = vshrl.u32 %v1776, 7
        %v1778 = vsub.s32 1, %v1777
        %v1779 = vrot.slane %v320, %v1778
        %v1780 = vmul.f32 %v262, %v1779
        %v1781 = vmul.f32 %v263, %v1779
        %v1782 = vmul.f32 %v264, %v1779
        %v1783 = vmul.f32 %v265, %v1779
        %v1784 = vmul.f32 %v266, %v1779
        %v1785 = vmul.f32 %v267, %v1779
        %v1786 = vmul.f32 %v268, %v1779
        %v1787 = vmul.f32 %v269, %v1779
        %v1788 = vmul.f32 %v270, %v1779
        %v1789 = vmul.f32 %v271, %v1779
        %v1790 = vmul.f32 %v272, %v1779
        %v1791 = vmul.f32 %v273, %v1779
        %v1792 = vmul.f32 %v274, %v1779
        %v1793 = vmul.f32 %v275, %v1779
        %v1794 = vmul.f32 %v276, %v1779
        %v1795 = vmul.f32 %v277, %v1779
        %v1796 = vmul.f32 %v278, %v1779
        %v1797 = vmul.f32 %v279, %v1779
        %v1798 = vmul.f32 %v280, %v1779
        %v1799 = vmul.f32 %v281, %v1779
        %v1800 = vmul.f32 %v282, %v1779
        %v1801 = vmul.f32 %v283, %v1779
        %v1802 = vmul.f32 %v284, %v1779
        %v1803 = vmul.f32 %v285, %v1779
        %v1804 = vmul.f32 %v286, %v1779
        %v1805 = vmul.f32 %v287, %v1779
        %v1806 = vmul.f32 %v288, %v1779
        %v1807 = vmul.f32 %v289, %v1779
        %v1808 = vmul.f32 %v290, %v1779
        %v1809 = vmul.f32 %v291, %v1779
        %v1810 = vmul.f32 %v292, %v1779
        %v1811 = vmul.f32 %v293, %v1779
        %v1812 = vmul.f32 %v294, %v1779
        %v1813 = vmul.f32 %v295, %v1779
        %v1814 = vmul.f32 %v296, %v1779
        %v1815 = vmul.f32 %v297, %v1779
        %v1816 = vmul.f32 %v298, %v1779
        %v1817 = vmul.f32 %v299, %v1779
        %v1818 = vmul.f32 %v300, %v1779
        %v1819 = vmul.f32 %v301, %v1779
        %v1820 = vmul.f32 %v302, %v1779
        %v1821 = vmul.f32 %v303, %v1779
        %v1822 = vmul.f32 %v304, %v1779
        %v1823 = vmul.f32 %v305, %v1779
        %v1824 = vmul.f32 %v306, %v1779
        %v1825 = vmul.f32 %v307, %v1779
        %v1826 = vmul.f32 %v308, %v1779
        %v1827 = vmul.f32 %v309, %v1779
        %v1876 = vrot.slane %v1780, 1
        %v1877 = vrot.slane %v1781, 1
        %v1878 = vsel %vm899, %v1876, %v1877
        %v1879 = vrot.slane %v1782, 1
        %v1880 = vsel %vm899, %v1877, %v1879
        %v1881 = vrot.slane %v1783, 1
        %v1882 = vrot.slane %v1784, 1
        %v1883 = vsel %vm899, %v1881, %v1882
        %v1884 = vrot.slane %v1785, 1
        %v1885 = vsel %vm899, %v1882, %v1884
        %v1886 = vrot.slane %v1786, 1
        %v1887 = vrot.slane %v1787, 1
        %v1888 = vsel %vm899, %v1886, %v1887
        %v1889 = vrot.slane %v1788, 1
        %v1890 = vsel %vm899, %v1887, %v1889
        %v1891 = vrot.slane %v1789, 1
        %v1892 = vrot.slane %v1790, 1
        %v1893 = vsel %vm899, %v1891, %v1892
        %v1894 = vrot.slane %v1791, 1
        %v1895 = vsel %vm899, %v1892, %v1894
        %v1896 = vrot.slane %v1792, 1
        %v1897 = vrot.slane %v1793, 1
        %v1898 = vsel %vm899, %v1896, %v1897
        %v1899 = vrot.slane %v1794, 1
        %v1900 = vsel %vm899, %v1897, %v1899
        %v1901 = vrot.slane %v1795, 1
        %v1902 = vrot.slane %v1796, 1
        %v1903 = vsel %vm899, %v1901, %v1902
        %v1904 = vrot.slane %v1797, 1
        %v1905 = vsel %vm899, %v1902, %v1904
        %v1906 = vrot.slane %v1798, 1
        %v1907 = vrot.slane %v1799, 1
        %v1908 = vsel %vm899, %v1906, %v1907
        %v1909 = vrot.slane %v1800, 1
        %v1910 = vsel %vm899, %v1907, %v1909
        %v1911 = vrot.slane %v1801, 1
        %v1912 = vrot.slane %v1802, 1
        %v1913 = vsel %vm899, %v1911, %v1912
        %v1914 = vrot.slane %v1803, 1
        %v1915 = vsel %vm899, %v1912, %v1914
        %v1916 = vrot.slane %v1804, 1
        %v1917 = vrot.slane %v1805, 1
        %v1918 = vsel %vm899, %v1916, %v1917
        %v1919 = vrot.slane %v1806, 1
        %v1920 = vsel %vm899, %v1917, %v1919
        %v1921 = vrot.slane %v1807, 1
        %v1922 = vrot.slane %v1808, 1
        %v1923 = vsel %vm899, %v1921, %v1922
        %v1924 = vrot.slane %v1809, 1
        %v1925 = vsel %vm899, %v1922, %v1924
        %v1926 = vrot.slane %v1810, 1
        %v1927 = vrot.slane %v1811, 1
        %v1928 = vsel %vm899, %v1926, %v1927
        %v1929 = vrot.slane %v1812, 1
        %v1930 = vsel %vm899, %v1927, %v1929
        %v1931 = vrot.slane %v1813, 1
        %v1932 = vrot.slane %v1814, 1
        %v1933 = vsel %vm899, %v1931, %v1932
        %v1934 = vrot.slane %v1815, 1
        %v1935 = vsel %vm899, %v1932, %v1934
        %v1936 = vrot.slane %v1816, 1
        %v1937 = vrot.slane %v1817, 1
        %v1938 = vsel %vm899, %v1936, %v1937
        %v1939 = vrot.slane %v1818, 1
        %v1940 = vsel %vm899, %v1937, %v1939
        %v1941 = vrot.slane %v1819, 1
        %v1942 = vrot.slane %v1820, 1
        %v1943 = vsel %vm899, %v1941, %v1942
        %v1944 = vrot.slane %v1821, 1
        %v1945 = vsel %vm899, %v1942, %v1944
        %v1946 = vrot.slane %v1822, 1
        %v1947 = vrot.slane %v1823, 1
        %v1948 = vsel %vm899, %v1946, %v1947
        %v1949 = vrot.slane %v1824, 1
        %v1950 = vsel %vm899, %v1947, %v1949
        %v1951 = vrot.slane %v1825, 1
        %v1952 = vrot.slane %v1826, 1
        %v1953 = vsel %vm899, %v1951, %v1952
        %v1954 = vrot.slane %v1827, 1
        %v1955 = vsel %vm899, %v1952, %v1954
        %v1988 = vadd.f32 %v1744, %v1878
        %v1989 = vadd.f32 %v1745, %v1880
        %v1990 = vadd.f32 %v1746, %v1883
        %v1991 = vadd.f32 %v1747, %v1885
        %v1992 = vadd.f32 %v1748, %v1888
        %v1993 = vadd.f32 %v1749, %v1890
        %v1994 = vadd.f32 %v1750, %v1893
        %v1995 = vadd.f32 %v1751, %v1895
        %v1996 = vadd.f32 %v1752, %v1898
        %v1997 = vadd.f32 %v1753, %v1900
        %v1998 = vadd.f32 %v1754, %v1903
        %v1999 = vadd.f32 %v1755, %v1905
        %v2000 = vadd.f32 %v1756, %v1908
        %v2001 = vadd.f32 %v1757, %v1910
        %v2002 = vadd.f32 %v1758, %v1913
        %v2003 = vadd.f32 %v1759, %v1915
        %v2004 = vadd.f32 %v1760, %v1918
        %v2005 = vadd.f32 %v1761, %v1920
        %v2006 = vadd.f32 %v1762, %v1923
        %v2007 = vadd.f32 %v1763, %v1925
        %v2008 = vadd.f32 %v1764, %v1928
        %v2009 = vadd.f32 %v1765, %v1930
        %v2010 = vadd.f32 %v1766, %v1933
        %v2011 = vadd.f32 %v1767, %v1935
        %v2012 = vadd.f32 %v1768, %v1938
        %v2013 = vadd.f32 %v1769, %v1940
        %v2014 = vadd.f32 %v1770, %v1943
        %v2015 = vadd.f32 %v1771, %v1945
        %v2016 = vadd.f32 %v1772, %v1948
        %v2017 = vadd.f32 %v1773, %v1950
        %v2018 = vadd.f32 %v1774, %v1953
        %v2019 = vadd.f32 %v1775, %v1955
        %v2020 = vlaneseq
        %v2021 = vshrl.u32 %v2020, 7
        %v2022 = vsub.s32 1, %v2021
        %v2023 = vrot.slane %v321, %v2022
        %v2024 = vmul.f32 %v265, %v2023
        %v2025 = vmul.f32 %v266, %v2023
        %v2026 = vmul.f32 %v267, %v2023
        %v2027 = vmul.f32 %v268, %v2023
        %v2028 = vmul.f32 %v269, %v2023
        %v2029 = vmul.f32 %v270, %v2023
        %v2030 = vmul.f32 %v271, %v2023
        %v2031 = vmul.f32 %v272, %v2023
        %v2032 = vmul.f32 %v273, %v2023
        %v2033 = vmul.f32 %v274, %v2023
        %v2034 = vmul.f32 %v275, %v2023
        %v2035 = vmul.f32 %v276, %v2023
        %v2036 = vmul.f32 %v277, %v2023
        %v2037 = vmul.f32 %v278, %v2023
        %v2038 = vmul.f32 %v279, %v2023
        %v2039 = vmul.f32 %v280, %v2023
        %v2040 = vmul.f32 %v281, %v2023
        %v2041 = vmul.f32 %v282, %v2023
        %v2042 = vmul.f32 %v283, %v2023
        %v2043 = vmul.f32 %v284, %v2023
        %v2044 = vmul.f32 %v285, %v2023
        %v2045 = vmul.f32 %v286, %v2023
        %v2046 = vmul.f32 %v287, %v2023
        %v2047 = vmul.f32 %v288, %v2023
        %v2048 = vmul.f32 %v289, %v2023
        %v2049 = vmul.f32 %v290, %v2023
        %v2050 = vmul.f32 %v291, %v2023
        %v2051 = vmul.f32 %v292, %v2023
        %v2052 = vmul.f32 %v293, %v2023
        %v2053 = vmul.f32 %v294, %v2023
        %v2054 = vmul.f32 %v295, %v2023
        %v2055 = vmul.f32 %v296, %v2023
        %v2056 = vmul.f32 %v297, %v2023
        %v2057 = vmul.f32 %v298, %v2023
        %v2058 = vmul.f32 %v299, %v2023
        %v2059 = vmul.f32 %v300, %v2023
        %v2060 = vmul.f32 %v301, %v2023
        %v2061 = vmul.f32 %v302, %v2023
        %v2062 = vmul.f32 %v303, %v2023
        %v2063 = vmul.f32 %v304, %v2023
        %v2064 = vmul.f32 %v305, %v2023
        %v2065 = vmul.f32 %v306, %v2023
        %v2066 = vmul.f32 %v307, %v2023
        %v2067 = vmul.f32 %v308, %v2023
        %v2068 = vmul.f32 %v309, %v2023
        %v2069 = vmul.f32 %v310, %v2023
        %v2070 = vmul.f32 %v311, %v2023
        %v2071 = vmul.f32 %v312, %v2023
        %v2120 = vrot.slane %v2024, 1
        %v2121 = vrot.slane %v2025, 1
        %v2122 = vsel %vm899, %v2120, %v2121
        %v2123 = vrot.slane %v2026, 1
        %v2124 = vsel %vm899, %v2121, %v2123
        %v2125 = vrot.slane %v2027, 1
        %v2126 = vrot.slane %v2028, 1
        %v2127 = vsel %vm899, %v2125, %v2126
        %v2128 = vrot.slane %v2029, 1
        %v2129 = vsel %vm899, %v2126, %v2128
        %v2130 = vrot.slane %v2030, 1
        %v2131 = vrot.slane %v2031, 1
        %v2132 = vsel %vm899, %v2130, %v2131
        %v2133 = vrot.slane %v2032, 1
        %v2134 = vsel %vm899, %v2131, %v2133
        %v2135 = vrot.slane %v2033, 1
        %v2136 = vrot.slane %v2034, 1
        %v2137 = vsel %vm899, %v2135, %v2136
        %v2138 = vrot.slane %v2035, 1
        %v2139 = vsel %vm899, %v2136, %v2138
        %v2140 = vrot.slane %v2036, 1
        %v2141 = vrot.slane %v2037, 1
        %v2142 = vsel %vm899, %v2140, %v2141
        %v2143 = vrot.slane %v2038, 1
        %v2144 = vsel %vm899, %v2141, %v2143
        %v2145 = vrot.slane %v2039, 1
        %v2146 = vrot.slane %v2040, 1
        %v2147 = vsel %vm899, %v2145, %v2146
        %v2148 = vrot.slane %v2041, 1
        %v2149 = vsel %vm899, %v2146, %v2148
        %v2150 = vrot.slane %v2042, 1
        %v2151 = vrot.slane %v2043, 1
        %v2152 = vsel %vm899, %v2150, %v2151
        %v2153 = vrot.slane %v2044, 1
        %v2154 = vsel %vm899, %v2151, %v2153
        %v2155 = vrot.slane %v2045, 1
        %v2156 = vrot.slane %v2046, 1
        %v2157 = vsel %vm899, %v2155, %v2156
        %v2158 = vrot.slane %v2047, 1
        %v2159 = vsel %vm899, %v2156, %v2158
        %v2160 = vrot.slane %v2048, 1
        %v2161 = vrot.slane %v2049, 1
        %v2162 = vsel %vm899, %v2160, %v2161
        %v2163 = vrot.slane %v2050, 1
        %v2164 = vsel %vm899, %v2161, %v2163
        %v2165 = vrot.slane %v2051, 1
        %v2166 = vrot.slane %v2052, 1
        %v2167 = vsel %vm899, %v2165, %v2166
        %v2168 = vrot.slane %v2053, 1
        %v2169 = vsel %vm899, %v2166, %v2168
        %v2170 = vrot.slane %v2054, 1
        %v2171 = vrot.slane %v2055, 1
        %v2172 = vsel %vm899, %v2170, %v2171
        %v2173 = vrot.slane %v2056, 1
        %v2174 = vsel %vm899, %v2171, %v2173
        %v2175 = vrot.slane %v2057, 1
        %v2176 = vrot.slane %v2058, 1
        %v2177 = vsel %vm899, %v2175, %v2176
        %v2178 = vrot.slane %v2059, 1
        %v2179 = vsel %vm899, %v2176, %v2178
        %v2180 = vrot.slane %v2060, 1
        %v2181 = vrot.slane %v2061, 1
        %v2182 = vsel %vm899, %v2180, %v2181
        %v2183 = vrot.slane %v2062, 1
        %v2184 = vsel %vm899, %v2181, %v2183
        %v2185 = vrot.slane %v2063, 1
        %v2186 = vrot.slane %v2064, 1
        %v2187 = vsel %vm899, %v2185, %v2186
        %v2188 = vrot.slane %v2065, 1
        %v2189 = vsel %vm899, %v2186, %v2188
        %v2190 = vrot.slane %v2066, 1
        %v2191 = vrot.slane %v2067, 1
        %v2192 = vsel %vm899, %v2190, %v2191
        %v2193 = vrot.slane %v2068, 1
        %v2194 = vsel %vm899, %v2191, %v2193
        %v2195 = vrot.slane %v2069, 1
        %v2196 = vrot.slane %v2070, 1
        %v2197 = vsel %vm899, %v2195, %v2196
        %v2198 = vrot.slane %v2071, 1
        %v2199 = vsel %vm899, %v2196, %v2198
        %v2232 = vadd.f32 %v1988, %v2122
        %v2233 = vadd.f32 %v1989, %v2124
        %v2234 = vadd.f32 %v1990, %v2127
        %v2235 = vadd.f32 %v1991, %v2129
        %v2236 = vadd.f32 %v1992, %v2132
        %v2237 = vadd.f32 %v1993, %v2134
        %v2238 = vadd.f32 %v1994, %v2137
        %v2239 = vadd.f32 %v1995, %v2139
        %v2240 = vadd.f32 %v1996, %v2142
        %v2241 = vadd.f32 %v1997, %v2144
        %v2242 = vadd.f32 %v1998, %v2147
        %v2243 = vadd.f32 %v1999, %v2149
        %v2244 = vadd.f32 %v2000, %v2152
        %v2245 = vadd.f32 %v2001, %v2154
        %v2246 = vadd.f32 %v2002, %v2157
        %v2247 = vadd.f32 %v2003, %v2159
        %v2248 = vadd.f32 %v2004, %v2162
        %v2249 = vadd.f32 %v2005, %v2164
        %v2250 = vadd.f32 %v2006, %v2167
        %v2251 = vadd.f32 %v2007, %v2169
        %v2252 = vadd.f32 %v2008, %v2172
        %v2253 = vadd.f32 %v2009, %v2174
        %v2254 = vadd.f32 %v2010, %v2177
        %v2255 = vadd.f32 %v2011, %v2179
        %v2256 = vadd.f32 %v2012, %v2182
        %v2257 = vadd.f32 %v2013, %v2184
        %v2258 = vadd.f32 %v2014, %v2187
        %v2259 = vadd.f32 %v2015, %v2189
        %v2260 = vadd.f32 %v2016, %v2192
        %v2261 = vadd.f32 %v2017, %v2194
        %v2262 = vadd.f32 %v2018, %v2197
        %v2263 = vadd.f32 %v2019, %v2199
        %v2264 = vlaneseq
        %v2265 = vshrl.u32 %v2264, 7
        %v2266 = vsub.s32 1, %v2265
        %v2267 = vrot.slane %v322, %v2266
        %v2268 = vmul.f32 %v268, %v2267
        %v2269 = vmul.f32 %v269, %v2267
        %v2270 = vmul.f32 %v270, %v2267
        %v2271 = vmul.f32 %v271, %v2267
        %v2272 = vmul.f32 %v272, %v2267
        %v2273 = vmul.f32 %v273, %v2267
        %v2274 = vmul.f32 %v274, %v2267
        %v2275 = vmul.f32 %v275, %v2267
        %v2276 = vmul.f32 %v276, %v2267
        %v2277 = vmul.f32 %v277, %v2267
        %v2278 = vmul.f32 %v278, %v2267
        %v2279 = vmul.f32 %v279, %v2267
        %v2280 = vmul.f32 %v280, %v2267
        %v2281 = vmul.f32 %v281, %v2267
        %v2282 = vmul.f32 %v282, %v2267
        %v2283 = vmul.f32 %v283, %v2267
        %v2284 = vmul.f32 %v284, %v2267
        %v2285 = vmul.f32 %v285, %v2267
        %v2286 = vmul.f32 %v286, %v2267
        %v2287 = vmul.f32 %v287, %v2267
        %v2288 = vmul.f32 %v288, %v2267
        %v2289 = vmul.f32 %v289, %v2267
        %v2290 = vmul.f32 %v290, %v2267
        %v2291 = vmul.f32 %v291, %v2267
        %v2292 = vmul.f32 %v292, %v2267
        %v2293 = vmul.f32 %v293, %v2267
        %v2294 = vmul.f32 %v294, %v2267
        %v2295 = vmul.f32 %v295, %v2267
        %v2296 = vmul.f32 %v296, %v2267
        %v2297 = vmul.f32 %v297, %v2267
        %v2298 = vmul.f32 %v298, %v2267
        %v2299 = vmul.f32 %v299, %v2267
        %v2300 = vmul.f32 %v300, %v2267
        %v2301 = vmul.f32 %v301, %v2267
        %v2302 = vmul.f32 %v302, %v2267
        %v2303 = vmul.f32 %v303, %v2267
        %v2304 = vmul.f32 %v304, %v2267
        %v2305 = vmul.f32 %v305, %v2267
        %v2306 = vmul.f32 %v306, %v2267
        %v2307 = vmul.f32 %v307, %v2267
        %v2308 = vmul.f32 %v308, %v2267
        %v2309 = vmul.f32 %v309, %v2267
        %v2310 = vmul.f32 %v310, %v2267
        %v2311 = vmul.f32 %v311, %v2267
        %v2312 = vmul.f32 %v312, %v2267
        %v2313 = vmul.f32 %v313, %v2267
        %v2314 = vmul.f32 %v314, %v2267
        %v2315 = vmul.f32 %v315, %v2267
        %v2364 = vrot.slane %v2268, 1
        %v2365 = vrot.slane %v2269, 1
        %v2366 = vsel %vm899, %v2364, %v2365
        %v2367 = vrot.slane %v2270, 1
        %v2368 = vsel %vm899, %v2365, %v2367
        %v2369 = vrot.slane %v2271, 1
        %v2370 = vrot.slane %v2272, 1
        %v2371 = vsel %vm899, %v2369, %v2370
        %v2372 = vrot.slane %v2273, 1
        %v2373 = vsel %vm899, %v2370, %v2372
        %v2374 = vrot.slane %v2274, 1
        %v2375 = vrot.slane %v2275, 1
        %v2376 = vsel %vm899, %v2374, %v2375
        %v2377 = vrot.slane %v2276, 1
        %v2378 = vsel %vm899, %v2375, %v2377
        %v2379 = vrot.slane %v2277, 1
        %v2380 = vrot.slane %v2278, 1
        %v2381 = vsel %vm899, %v2379, %v2380
        %v2382 = vrot.slane %v2279, 1
        %v2383 = vsel %vm899, %v2380, %v2382
        %v2384 = vrot.slane %v2280, 1
        %v2385 = vrot.slane %v2281, 1
        %v2386 = vsel %vm899, %v2384, %v2385
        %v2387 = vrot.slane %v2282, 1
        %v2388 = vsel %vm899, %v2385, %v2387
        %v2389 = vrot.slane %v2283, 1
        %v2390 = vrot.slane %v2284, 1
        %v2391 = vsel %vm899, %v2389, %v2390
        %v2392 = vrot.slane %v2285, 1
        %v2393 = vsel %vm899, %v2390, %v2392
        %v2394 = vrot.slane %v2286, 1
        %v2395 = vrot.slane %v2287, 1
        %v2396 = vsel %vm899, %v2394, %v2395
        %v2397 = vrot.slane %v2288, 1
        %v2398 = vsel %vm899, %v2395, %v2397
        %v2399 = vrot.slane %v2289, 1
        %v2400 = vrot.slane %v2290, 1
        %v2401 = vsel %vm899, %v2399, %v2400
        %v2402 = vrot.slane %v2291, 1
        %v2403 = vsel %vm899, %v2400, %v2402
        %v2404 = vrot.slane %v2292, 1
        %v2405 = vrot.slane %v2293, 1
        %v2406 = vsel %vm899, %v2404, %v2405
        %v2407 = vrot.slane %v2294, 1
        %v2408 = vsel %vm899, %v2405, %v2407
        %v2409 = vrot.slane %v2295, 1
        %v2410 = vrot.slane %v2296, 1
        %v2411 = vsel %vm899, %v2409, %v2410
        %v2412 = vrot.slane %v2297, 1
        %v2413 = vsel %vm899, %v2410, %v2412
        %v2414 = vrot.slane %v2298, 1
        %v2415 = vrot.slane %v2299, 1
        %v2416 = vsel %vm899, %v2414, %v2415
        %v2417 = vrot.slane %v2300, 1
        %v2418 = vsel %vm899, %v2415, %v2417
        %v2419 = vrot.slane %v2301, 1
        %v2420 = vrot.slane %v2302, 1
        %v2421 = vsel %vm899, %v2419, %v2420
        %v2422 = vrot.slane %v2303, 1
        %v2423 = vsel %vm899, %v2420, %v2422
        %v2424 = vrot.slane %v2304, 1
        %v2425 = vrot.slane %v2305, 1
        %v2426 = vsel %vm899, %v2424, %v2425
        %v2427 = vrot.slane %v2306, 1
        %v2428 = vsel %vm899, %v2425, %v2427
        %v2429 = vrot.slane %v2307, 1
        %v2430 = vrot.slane %v2308, 1
        %v2431 = vsel %vm899, %v2429, %v2430
        %v2432 = vrot.slane %v2309, 1
        %v2433 = vsel %vm899, %v2430, %v2432
        %v2434 = vrot.slane %v2310, 1
        %v2435 = vrot.slane %v2311, 1
        %v2436 = vsel %vm899, %v2434, %v2435
        %v2437 = vrot.slane %v2312, 1
        %v2438 = vsel %vm899, %v2435, %v2437
        %v2439 = vrot.slane %v2313, 1
        %v2440 = vrot.slane %v2314, 1
        %v2441 = vsel %vm899, %v2439, %v2440
        %v2442 = vrot.slane %v2315, 1
        %v2443 = vsel %vm899, %v2440, %v2442
        %v2476 = vadd.f32 %v2232, %v2366
        %v2477 = vadd.f32 %v2233, %v2368
        %v2478 = vadd.f32 %v2234, %v2371
        %v2479 = vadd.f32 %v2235, %v2373
        %v2480 = vadd.f32 %v2236, %v2376
        %v2481 = vadd.f32 %v2237, %v2378
        %v2482 = vadd.f32 %v2238, %v2381
        %v2483 = vadd.f32 %v2239, %v2383
        %v2484 = vadd.f32 %v2240, %v2386
        %v2485 = vadd.f32 %v2241, %v2388
        %v2486 = vadd.f32 %v2242, %v2391
        %v2487 = vadd.f32 %v2243, %v2393
        %v2488 = vadd.f32 %v2244, %v2396
        %v2489 = vadd.f32 %v2245, %v2398
        %v2490 = vadd.f32 %v2246, %v2401
        %v2491 = vadd.f32 %v2247, %v2403
        %v2492 = vadd.f32 %v2248, %v2406
        %v2493 = vadd.f32 %v2249, %v2408
        %v2494 = vadd.f32 %v2250, %v2411
        %v2495 = vadd.f32 %v2251, %v2413
        %v2496 = vadd.f32 %v2252, %v2416
        %v2497 = vadd.f32 %v2253, %v2418
        %v2498 = vadd.f32 %v2254, %v2421
        %v2499 = vadd.f32 %v2255, %v2423
        %v2500 = vadd.f32 %v2256, %v2426
        %v2501 = vadd.f32 %v2257, %v2428
        %v2502 = vadd.f32 %v2258, %v2431
        %v2503 = vadd.f32 %v2259, %v2433
        %v2504 = vadd.f32 %v2260, %v2436
        %v2505 = vadd.f32 %v2261, %v2438
        %v2506 = vadd.f32 %v2262, %v2441
        %v2507 = vadd.f32 %v2263, %v2443
        %v2508 = vlaneseq
        %v2509 = vshrl.u32 %v2508, 7
        %v2510 = vsub.s32 2, %v2509
        %v2511 = vrot.slane %v316, %v2510
        %v2512 = vmul.f32 %v250, %v2511
        %v2513 = vmul.f32 %v251, %v2511
        %v2514 = vmul.f32 %v252, %v2511
        %v2515 = vmul.f32 %v253, %v2511
        %v2516 = vmul.f32 %v254, %v2511
        %v2517 = vmul.f32 %v255, %v2511
        %v2518 = vmul.f32 %v256, %v2511
        %v2519 = vmul.f32 %v257, %v2511
        %v2520 = vmul.f32 %v258, %v2511
        %v2521 = vmul.f32 %v259, %v2511
        %v2522 = vmul.f32 %v260, %v2511
        %v2523 = vmul.f32 %v261, %v2511
        %v2524 = vmul.f32 %v262, %v2511
        %v2525 = vmul.f32 %v263, %v2511
        %v2526 = vmul.f32 %v264, %v2511
        %v2527 = vmul.f32 %v265, %v2511
        %v2528 = vmul.f32 %v266, %v2511
        %v2529 = vmul.f32 %v267, %v2511
        %v2530 = vmul.f32 %v268, %v2511
        %v2531 = vmul.f32 %v269, %v2511
        %v2532 = vmul.f32 %v270, %v2511
        %v2533 = vmul.f32 %v271, %v2511
        %v2534 = vmul.f32 %v272, %v2511
        %v2535 = vmul.f32 %v273, %v2511
        %v2536 = vmul.f32 %v274, %v2511
        %v2537 = vmul.f32 %v275, %v2511
        %v2538 = vmul.f32 %v276, %v2511
        %v2539 = vmul.f32 %v277, %v2511
        %v2540 = vmul.f32 %v278, %v2511
        %v2541 = vmul.f32 %v279, %v2511
        %v2542 = vmul.f32 %v280, %v2511
        %v2543 = vmul.f32 %v281, %v2511
        %v2544 = vmul.f32 %v282, %v2511
        %v2545 = vmul.f32 %v283, %v2511
        %v2546 = vmul.f32 %v284, %v2511
        %v2547 = vmul.f32 %v285, %v2511
        %v2548 = vmul.f32 %v286, %v2511
        %v2549 = vmul.f32 %v287, %v2511
        %v2550 = vmul.f32 %v288, %v2511
        %v2551 = vmul.f32 %v289, %v2511
        %v2552 = vmul.f32 %v290, %v2511
        %v2553 = vmul.f32 %v291, %v2511
        %v2554 = vmul.f32 %v292, %v2511
        %v2555 = vmul.f32 %v293, %v2511
        %v2556 = vmul.f32 %v294, %v2511
        %v2557 = vmul.f32 %v295, %v2511
        %v2558 = vmul.f32 %v296, %v2511
        %v2559 = vmul.f32 %v297, %v2511
        %vm2608 = vcmask 1045504
        %v2609 = vrot.slane %v2512, 2
        %v2610 = vrot.slane %v2513, 2
        %v2611 = vsel %vm2608, %v2609, %v2610
        %v2612 = vrot.slane %v2514, 2
        %v2613 = vsel %vm2608, %v2610, %v2612
        %v2614 = vrot.slane %v2515, 2
        %v2615 = vrot.slane %v2516, 2
        %v2616 = vsel %vm2608, %v2614, %v2615
        %v2617 = vrot.slane %v2517, 2
        %v2618 = vsel %vm2608, %v2615, %v2617
        %v2619 = vrot.slane %v2518, 2
        %v2620 = vrot.slane %v2519, 2
        %v2621 = vsel %vm2608, %v2619, %v2620
        %v2622 = vrot.slane %v2520, 2
        %v2623 = vsel %vm2608, %v2620, %v2622
        %v2624 = vrot.slane %v2521, 2
        %v2625 = vrot.slane %v2522, 2
        %v2626 = vsel %vm2608, %v2624, %v2625
        %v2627 = vrot.slane %v2523, 2
        %v2628 = vsel %vm2608, %v2625, %v2627
        %v2629 = vrot.slane %v2524, 2
        %v2630 = vrot.slane %v2525, 2
        %v2631 = vsel %vm2608, %v2629, %v2630
        %v2632 = vrot.slane %v2526, 2
        %v2633 = vsel %vm2608, %v2630, %v2632
        %v2634 = vrot.slane %v2527, 2
        %v2635 = vrot.slane %v2528, 2
        %v2636 = vsel %vm2608, %v2634, %v2635
        %v2637 = vrot.slane %v2529, 2
        %v2638 = vsel %vm2608, %v2635, %v2637
        %v2639 = vrot.slane %v2530, 2
        %v2640 = vrot.slane %v2531, 2
        %v2641 = vsel %vm2608, %v2639, %v2640
        %v2642 = vrot.slane %v2532, 2
        %v2643 = vsel %vm2608, %v2640, %v2642
        %v2644 = vrot.slane %v2533, 2
        %v2645 = vrot.slane %v2534, 2
        %v2646 = vsel %vm2608, %v2644, %v2645
        %v2647 = vrot.slane %v2535, 2
        %v2648 = vsel %vm2608, %v2645, %v2647
        %v2649 = vrot.slane %v2536, 2
        %v2650 = vrot.slane %v2537, 2
        %v2651 = vsel %vm2608, %v2649, %v2650
        %v2652 = vrot.slane %v2538, 2
        %v2653 = vsel %vm2608, %v2650, %v2652
        %v2654 = vrot.slane %v2539, 2
        %v2655 = vrot.slane %v2540, 2
        %v2656 = vsel %vm2608, %v2654, %v2655
        %v2657 = vrot.slane %v2541, 2
        %v2658 = vsel %vm2608, %v2655, %v2657
        %v2659 = vrot.slane %v2542, 2
        %v2660 = vrot.slane %v2543, 2
        %v2661 = vsel %vm2608, %v2659, %v2660
        %v2662 = vrot.slane %v2544, 2
        %v2663 = vsel %vm2608, %v2660, %v2662
        %v2664 = vrot.slane %v2545, 2
        %v2665 = vrot.slane %v2546, 2
        %v2666 = vsel %vm2608, %v2664, %v2665
        %v2667 = vrot.slane %v2547, 2
        %v2668 = vsel %vm2608, %v2665, %v2667
        %v2669 = vrot.slane %v2548, 2
        %v2670 = vrot.slane %v2549, 2
        %v2671 = vsel %vm2608, %v2669, %v2670
        %v2672 = vrot.slane %v2550, 2
        %v2673 = vsel %vm2608, %v2670, %v2672
        %v2674 = vrot.slane %v2551, 2
        %v2675 = vrot.slane %v2552, 2
        %v2676 = vsel %vm2608, %v2674, %v2675
        %v2677 = vrot.slane %v2553, 2
        %v2678 = vsel %vm2608, %v2675, %v2677
        %v2679 = vrot.slane %v2554, 2
        %v2680 = vrot.slane %v2555, 2
        %v2681 = vsel %vm2608, %v2679, %v2680
        %v2682 = vrot.slane %v2556, 2
        %v2683 = vsel %vm2608, %v2680, %v2682
        %v2684 = vrot.slane %v2557, 2
        %v2685 = vrot.slane %v2558, 2
        %v2686 = vsel %vm2608, %v2684, %v2685
        %v2687 = vrot.slane %v2559, 2
        %v2688 = vsel %vm2608, %v2685, %v2687
        %v2721 = vadd.f32 %v2476, %v2611
        %v2722 = vadd.f32 %v2477, %v2613
        %v2723 = vadd.f32 %v2478, %v2616
        %v2724 = vadd.f32 %v2479, %v2618
        %v2725 = vadd.f32 %v2480, %v2621
        %v2726 = vadd.f32 %v2481, %v2623
        %v2727 = vadd.f32 %v2482, %v2626
        %v2728 = vadd.f32 %v2483, %v2628
        %v2729 = vadd.f32 %v2484, %v2631
        %v2730 = vadd.f32 %v2485, %v2633
        %v2731 = vadd.f32 %v2486, %v2636
        %v2732 = vadd.f32 %v2487, %v2638
        %v2733 = vadd.f32 %v2488, %v2641
        %v2734 = vadd.f32 %v2489, %v2643
        %v2735 = vadd.f32 %v2490, %v2646
        %v2736 = vadd.f32 %v2491, %v2648
        %v2737 = vadd.f32 %v2492, %v2651
        %v2738 = vadd.f32 %v2493, %v2653
        %v2739 = vadd.f32 %v2494, %v2656
        %v2740 = vadd.f32 %v2495, %v2658
        %v2741 = vadd.f32 %v2496, %v2661
        %v2742 = vadd.f32 %v2497, %v2663
        %v2743 = vadd.f32 %v2498, %v2666
        %v2744 = vadd.f32 %v2499, %v2668
        %v2745 = vadd.f32 %v2500, %v2671
        %v2746 = vadd.f32 %v2501, %v2673
        %v2747 = vadd.f32 %v2502, %v2676
        %v2748 = vadd.f32 %v2503, %v2678
        %v2749 = vadd.f32 %v2504, %v2681
        %v2750 = vadd.f32 %v2505, %v2683
        %v2751 = vadd.f32 %v2506, %v2686
        %v2752 = vadd.f32 %v2507, %v2688
        %v2753 = vlaneseq
        %v2754 = vshrl.u32 %v2753, 7
        %v2755 = vsub.s32 2, %v2754
        %v2756 = vrot.slane %v317, %v2755
        %v2757 = vmul.f32 %v253, %v2756
        %v2758 = vmul.f32 %v254, %v2756
        %v2759 = vmul.f32 %v255, %v2756
        %v2760 = vmul.f32 %v256, %v2756
        %v2761 = vmul.f32 %v257, %v2756
        %v2762 = vmul.f32 %v258, %v2756
        %v2763 = vmul.f32 %v259, %v2756
        %v2764 = vmul.f32 %v260, %v2756
        %v2765 = vmul.f32 %v261, %v2756
        %v2766 = vmul.f32 %v262, %v2756
        %v2767 = vmul.f32 %v263, %v2756
        %v2768 = vmul.f32 %v264, %v2756
        %v2769 = vmul.f32 %v265, %v2756
        %v2770 = vmul.f32 %v266, %v2756
        %v2771 = vmul.f32 %v267, %v2756
        %v2772 = vmul.f32 %v268, %v2756
        %v2773 = vmul.f32 %v269, %v2756
        %v2774 = vmul.f32 %v270, %v2756
        %v2775 = vmul.f32 %v271, %v2756
        %v2776 = vmul.f32 %v272, %v2756
        %v2777 = vmul.f32 %v273, %v2756
        %v2778 = vmul.f32 %v274, %v2756
        %v2779 = vmul.f32 %v275, %v2756
        %v2780 = vmul.f32 %v276, %v2756
        %v2781 = vmul.f32 %v277, %v2756
        %v2782 = vmul.f32 %v278, %v2756
        %v2783 = vmul.f32 %v279, %v2756
        %v2784 = vmul.f32 %v280, %v2756
        %v2785 = vmul.f32 %v281, %v2756
        %v2786 = vmul.f32 %v282, %v2756
        %v2787 = vmul.f32 %v283, %v2756
        %v2788 = vmul.f32 %v284, %v2756
        %v2789 = vmul.f32 %v285, %v2756
        %v2790 = vmul.f32 %v286, %v2756
        %v2791 = vmul.f32 %v287, %v2756
        %v2792 = vmul.f32 %v288, %v2756
        %v2793 = vmul.f32 %v289, %v2756
        %v2794 = vmul.f32 %v290, %v2756
        %v2795 = vmul.f32 %v291, %v2756
        %v2796 = vmul.f32 %v292, %v2756
        %v2797 = vmul.f32 %v293, %v2756
        %v2798 = vmul.f32 %v294, %v2756
        %v2799 = vmul.f32 %v295, %v2756
        %v2800 = vmul.f32 %v296, %v2756
        %v2801 = vmul.f32 %v297, %v2756
        %v2802 = vmul.f32 %v298, %v2756
        %v2803 = vmul.f32 %v299, %v2756
        %v2804 = vmul.f32 %v300, %v2756
        %v2853 = vrot.slane %v2757, 2
        %v2854 = vrot.slane %v2758, 2
        %v2855 = vsel %vm2608, %v2853, %v2854
        %v2856 = vrot.slane %v2759, 2
        %v2857 = vsel %vm2608, %v2854, %v2856
        %v2858 = vrot.slane %v2760, 2
        %v2859 = vrot.slane %v2761, 2
        %v2860 = vsel %vm2608, %v2858, %v2859
        %v2861 = vrot.slane %v2762, 2
        %v2862 = vsel %vm2608, %v2859, %v2861
        %v2863 = vrot.slane %v2763, 2
        %v2864 = vrot.slane %v2764, 2
        %v2865 = vsel %vm2608, %v2863, %v2864
        %v2866 = vrot.slane %v2765, 2
        %v2867 = vsel %vm2608, %v2864, %v2866
        %v2868 = vrot.slane %v2766, 2
        %v2869 = vrot.slane %v2767, 2
        %v2870 = vsel %vm2608, %v2868, %v2869
        %v2871 = vrot.slane %v2768, 2
        %v2872 = vsel %vm2608, %v2869, %v2871
        %v2873 = vrot.slane %v2769, 2
        %v2874 = vrot.slane %v2770, 2
        %v2875 = vsel %vm2608, %v2873, %v2874
        %v2876 = vrot.slane %v2771, 2
        %v2877 = vsel %vm2608, %v2874, %v2876
        %v2878 = vrot.slane %v2772, 2
        %v2879 = vrot.slane %v2773, 2
        %v2880 = vsel %vm2608, %v2878, %v2879
        %v2881 = vrot.slane %v2774, 2
        %v2882 = vsel %vm2608, %v2879, %v2881
        %v2883 = vrot.slane %v2775, 2
        %v2884 = vrot.slane %v2776, 2
        %v2885 = vsel %vm2608, %v2883, %v2884
        %v2886 = vrot.slane %v2777, 2
        %v2887 = vsel %vm2608, %v2884, %v2886
        %v2888 = vrot.slane %v2778, 2
        %v2889 = vrot.slane %v2779, 2
        %v2890 = vsel %vm2608, %v2888, %v2889
        %v2891 = vrot.slane %v2780, 2
        %v2892 = vsel %vm2608, %v2889, %v2891
        %v2893 = vrot.slane %v2781, 2
        %v2894 = vrot.slane %v2782, 2
        %v2895 = vsel %vm2608, %v2893, %v2894
        %v2896 = vrot.slane %v2783, 2
        %v2897 = vsel %vm2608, %v2894, %v2896
        %v2898 = vrot.slane %v2784, 2
        %v2899 = vrot.slane %v2785, 2
        %v2900 = vsel %vm2608, %v2898, %v2899
        %v2901 = vrot.slane %v2786, 2
        %v2902 = vsel %vm2608, %v2899, %v2901
        %v2903 = vrot.slane %v2787, 2
        %v2904 = vrot.slane %v2788, 2
        %v2905 = vsel %vm2608, %v2903, %v2904
        %v2906 = vrot.slane %v2789, 2
        %v2907 = vsel %vm2608, %v2904, %v2906
        %v2908 = vrot.slane %v2790, 2
        %v2909 = vrot.slane %v2791, 2
        %v2910 = vsel %vm2608, %v2908, %v2909
        %v2911 = vrot.slane %v2792, 2
        %v2912 = vsel %vm2608, %v2909, %v2911
        %v2913 = vrot.slane %v2793, 2
        %v2914 = vrot.slane %v2794, 2
        %v2915 = vsel %vm2608, %v2913, %v2914
        %v2916 = vrot.slane %v2795, 2
        %v2917 = vsel %vm2608, %v2914, %v2916
        %v2918 = vrot.slane %v2796, 2
        %v2919 = vrot.slane %v2797, 2
        %v2920 = vsel %vm2608, %v2918, %v2919
        %v2921 = vrot.slane %v2798, 2
        %v2922 = vsel %vm2608, %v2919, %v2921
        %v2923 = vrot.slane %v2799, 2
        %v2924 = vrot.slane %v2800, 2
        %v2925 = vsel %vm2608, %v2923, %v2924
        %v2926 = vrot.slane %v2801, 2
        %v2927 = vsel %vm2608, %v2924, %v2926
        %v2928 = vrot.slane %v2802, 2
        %v2929 = vrot.slane %v2803, 2
        %v2930 = vsel %vm2608, %v2928, %v2929
        %v2931 = vrot.slane %v2804, 2
        %v2932 = vsel %vm2608, %v2929, %v2931
        %v2965 = vadd.f32 %v2721, %v2855
        %v2966 = vadd.f32 %v2722, %v2857
        %v2967 = vadd.f32 %v2723, %v2860
        %v2968 = vadd.f32 %v2724, %v2862
        %v2969 = vadd.f32 %v2725, %v2865
        %v2970 = vadd.f32 %v2726, %v2867
        %v2971 = vadd.f32 %v2727, %v2870
        %v2972 = vadd.f32 %v2728, %v2872
        %v2973 = vadd.f32 %v2729, %v2875
        %v2974 = vadd.f32 %v2730, %v2877
        %v2975 = vadd.f32 %v2731, %v2880
        %v2976 = vadd.f32 %v2732, %v2882
        %v2977 = vadd.f32 %v2733, %v2885
        %v2978 = vadd.f32 %v2734, %v2887
        %v2979 = vadd.f32 %v2735, %v2890
        %v2980 = vadd.f32 %v2736, %v2892
        %v2981 = vadd.f32 %v2737, %v2895
        %v2982 = vadd.f32 %v2738, %v2897
        %v2983 = vadd.f32 %v2739, %v2900
        %v2984 = vadd.f32 %v2740, %v2902
        %v2985 = vadd.f32 %v2741, %v2905
        %v2986 = vadd.f32 %v2742, %v2907
        %v2987 = vadd.f32 %v2743, %v2910
        %v2988 = vadd.f32 %v2744, %v2912
        %v2989 = vadd.f32 %v2745, %v2915
        %v2990 = vadd.f32 %v2746, %v2917
        %v2991 = vadd.f32 %v2747, %v2920
        %v2992 = vadd.f32 %v2748, %v2922
        %v2993 = vadd.f32 %v2749, %v2925
        %v2994 = vadd.f32 %v2750, %v2927
        %v2995 = vadd.f32 %v2751, %v2930
        %v2996 = vadd.f32 %v2752, %v2932
        %v2997 = vlaneseq
        %v2998 = vshrl.u32 %v2997, 7
        %v2999 = vsub.s32 2, %v2998
        %v3000 = vrot.slane %v318, %v2999
        %v3001 = vmul.f32 %v256, %v3000
        %v3002 = vmul.f32 %v257, %v3000
        %v3003 = vmul.f32 %v258, %v3000
        %v3004 = vmul.f32 %v259, %v3000
        %v3005 = vmul.f32 %v260, %v3000
        %v3006 = vmul.f32 %v261, %v3000
        %v3007 = vmul.f32 %v262, %v3000
        %v3008 = vmul.f32 %v263, %v3000
        %v3009 = vmul.f32 %v264, %v3000
        %v3010 = vmul.f32 %v265, %v3000
        %v3011 = vmul.f32 %v266, %v3000
        %v3012 = vmul.f32 %v267, %v3000
        %v3013 = vmul.f32 %v268, %v3000
        %v3014 = vmul.f32 %v269, %v3000
        %v3015 = vmul.f32 %v270, %v3000
        %v3016 = vmul.f32 %v271, %v3000
        %v3017 = vmul.f32 %v272, %v3000
        %v3018 = vmul.f32 %v273, %v3000
        %v3019 = vmul.f32 %v274, %v3000
        %v3020 = vmul.f32 %v275, %v3000
        %v3021 = vmul.f32 %v276, %v3000
        %v3022 = vmul.f32 %v277, %v3000
        %v3023 = vmul.f32 %v278, %v3000
        %v3024 = vmul.f32 %v279, %v3000
        %v3025 = vmul.f32 %v280, %v3000
        %v3026 = vmul.f32 %v281, %v3000
        %v3027 = vmul.f32 %v282, %v3000
        %v3028 = vmul.f32 %v283, %v3000
        %v3029 = vmul.f32 %v284, %v3000
        %v3030 = vmul.f32 %v285, %v3000
        %v3031 = vmul.f32 %v286, %v3000
        %v3032 = vmul.f32 %v287, %v3000
        %v3033 = vmul.f32 %v288, %v3000
        %v3034 = vmul.f32 %v289, %v3000
        %v3035 = vmul.f32 %v290, %v3000
        %v3036 = vmul.f32 %v291, %v3000
        %v3037 = vmul.f32 %v292, %v3000
        %v3038 = vmul.f32 %v293, %v3000
        %v3039 = vmul.f32 %v294, %v3000
        %v3040 = vmul.f32 %v295, %v3000
        %v3041 = vmul.f32 %v296, %v3000
        %v3042 = vmul.f32 %v297, %v3000
        %v3043 = vmul.f32 %v298, %v3000
        %v3044 = vmul.f32 %v299, %v3000
        %v3045 = vmul.f32 %v300, %v3000
        %v3046 = vmul.f32 %v301, %v3000
        %v3047 = vmul.f32 %v302, %v3000
        %v3048 = vmul.f32 %v303, %v3000
        %v3097 = vrot.slane %v3001, 2
        %v3098 = vrot.slane %v3002, 2
        %v3099 = vsel %vm2608, %v3097, %v3098
        %v3100 = vrot.slane %v3003, 2
        %v3101 = vsel %vm2608, %v3098, %v3100
        %v3102 = vrot.slane %v3004, 2
        %v3103 = vrot.slane %v3005, 2
        %v3104 = vsel %vm2608, %v3102, %v3103
        %v3105 = vrot.slane %v3006, 2
        %v3106 = vsel %vm2608, %v3103, %v3105
        %v3107 = vrot.slane %v3007, 2
        %v3108 = vrot.slane %v3008, 2
        %v3109 = vsel %vm2608, %v3107, %v3108
        %v3110 = vrot.slane %v3009, 2
        %v3111 = vsel %vm2608, %v3108, %v3110
        %v3112 = vrot.slane %v3010, 2
        %v3113 = vrot.slane %v3011, 2
        %v3114 = vsel %vm2608, %v3112, %v3113
        %v3115 = vrot.slane %v3012, 2
        %v3116 = vsel %vm2608, %v3113, %v3115
        %v3117 = vrot.slane %v3013, 2
        %v3118 = vrot.slane %v3014, 2
        %v3119 = vsel %vm2608, %v3117, %v3118
        %v3120 = vrot.slane %v3015, 2
        %v3121 = vsel %vm2608, %v3118, %v3120
        %v3122 = vrot.slane %v3016, 2
        %v3123 = vrot.slane %v3017, 2
        %v3124 = vsel %vm2608, %v3122, %v3123
        %v3125 = vrot.slane %v3018, 2
        %v3126 = vsel %vm2608, %v3123, %v3125
        %v3127 = vrot.slane %v3019, 2
        %v3128 = vrot.slane %v3020, 2
        %v3129 = vsel %vm2608, %v3127, %v3128
        %v3130 = vrot.slane %v3021, 2
        %v3131 = vsel %vm2608, %v3128, %v3130
        %v3132 = vrot.slane %v3022, 2
        %v3133 = vrot.slane %v3023, 2
        %v3134 = vsel %vm2608, %v3132, %v3133
        %v3135 = vrot.slane %v3024, 2
        %v3136 = vsel %vm2608, %v3133, %v3135
        %v3137 = vrot.slane %v3025, 2
        %v3138 = vrot.slane %v3026, 2
        %v3139 = vsel %vm2608, %v3137, %v3138
        %v3140 = vrot.slane %v3027, 2
        %v3141 = vsel %vm2608, %v3138, %v3140
        %v3142 = vrot.slane %v3028, 2
        %v3143 = vrot.slane %v3029, 2
        %v3144 = vsel %vm2608, %v3142, %v3143
        %v3145 = vrot.slane %v3030, 2
        %v3146 = vsel %vm2608, %v3143, %v3145
        %v3147 = vrot.slane %v3031, 2
        %v3148 = vrot.slane %v3032, 2
        %v3149 = vsel %vm2608, %v3147, %v3148
        %v3150 = vrot.slane %v3033, 2
        %v3151 = vsel %vm2608, %v3148, %v3150
        %v3152 = vrot.slane %v3034, 2
        %v3153 = vrot.slane %v3035, 2
        %v3154 = vsel %vm2608, %v3152, %v3153
        %v3155 = vrot.slane %v3036, 2
        %v3156 = vsel %vm2608, %v3153, %v3155
        %v3157 = vrot.slane %v3037, 2
        %v3158 = vrot.slane %v3038, 2
        %v3159 = vsel %vm2608, %v3157, %v3158
        %v3160 = vrot.slane %v3039, 2
        %v3161 = vsel %vm2608, %v3158, %v3160
        %v3162 = vrot.slane %v3040, 2
        %v3163 = vrot.slane %v3041, 2
        %v3164 = vsel %vm2608, %v3162, %v3163
        %v3165 = vrot.slane %v3042, 2
        %v3166 = vsel %vm2608, %v3163, %v3165
        %v3167 = vrot.slane %v3043, 2
        %v3168 = vrot.slane %v3044, 2
        %v3169 = vsel %vm2608, %v3167, %v3168
        %v3170 = vrot.slane %v3045, 2
        %v3171 = vsel %vm2608, %v3168, %v3170
        %v3172 = vrot.slane %v3046, 2
        %v3173 = vrot.slane %v3047, 2
        %v3174 = vsel %vm2608, %v3172, %v3173
        %v3175 = vrot.slane %v3048, 2
        %v3176 = vsel %vm2608, %v3173, %v3175
        %v3209 = vadd.f32 %v2965, %v3099
        %v3210 = vadd.f32 %v2966, %v3101
        %v3211 = vadd.f32 %v2967, %v3104
        %v3212 = vadd.f32 %v2968, %v3106
        %v3213 = vadd.f32 %v2969, %v3109
        %v3214 = vadd.f32 %v2970, %v3111
        %v3215 = vadd.f32 %v2971, %v3114
        %v3216 = vadd.f32 %v2972, %v3116
        %v3217 = vadd.f32 %v2973, %v3119
        %v3218 = vadd.f32 %v2974, %v3121
        %v3219 = vadd.f32 %v2975, %v3124
        %v3220 = vadd.f32 %v2976, %v3126
        %v3221 = vadd.f32 %v2977, %v3129
        %v3222 = vadd.f32 %v2978, %v3131
        %v3223 = vadd.f32 %v2979, %v3134
        %v3224 = vadd.f32 %v2980, %v3136
        %v3225 = vadd.f32 %v2981, %v3139
        %v3226 = vadd.f32 %v2982, %v3141
        %v3227 = vadd.f32 %v2983, %v3144
        %v3228 = vadd.f32 %v2984, %v3146
        %v3229 = vadd.f32 %v2985, %v3149
        %v3230 = vadd.f32 %v2986, %v3151
        %v3231 = vadd.f32 %v2987, %v3154
        %v3232 = vadd.f32 %v2988, %v3156
        %v3233 = vadd.f32 %v2989, %v3159
        %v3234 = vadd.f32 %v2990, %v3161
        %v3235 = vadd.f32 %v2991, %v3164
        %v3236 = vadd.f32 %v2992, %v3166
        %v3237 = vadd.f32 %v2993, %v3169
        %v3238 = vadd.f32 %v2994, %v3171
        %v3239 = vadd.f32 %v2995, %v3174
        %v3240 = vadd.f32 %v2996, %v3176
        %v3241 = vlaneseq
        %v3242 = vshrl.u32 %v3241, 7
        %v3243 = vsub.s32 2, %v3242
        %v3244 = vrot.slane %v319, %v3243
        %v3245 = vmul.f32 %v259, %v3244
        %v3246 = vmul.f32 %v260, %v3244
        %v3247 = vmul.f32 %v261, %v3244
        %v3248 = vmul.f32 %v262, %v3244
        %v3249 = vmul.f32 %v263, %v3244
        %v3250 = vmul.f32 %v264, %v3244
        %v3251 = vmul.f32 %v265, %v3244
        %v3252 = vmul.f32 %v266, %v3244
        %v3253 = vmul.f32 %v267, %v3244
        %v3254 = vmul.f32 %v268, %v3244
        %v3255 = vmul.f32 %v269, %v3244
        %v3256 = vmul.f32 %v270, %v3244
        %v3257 = vmul.f32 %v271, %v3244
        %v3258 = vmul.f32 %v272, %v3244
        %v3259 = vmul.f32 %v273, %v3244
        %v3260 = vmul.f32 %v274, %v3244
        %v3261 = vmul.f32 %v275, %v3244
        %v3262 = vmul.f32 %v276, %v3244
        %v3263 = vmul.f32 %v277, %v3244
        %v3264 = vmul.f32 %v278, %v3244
        %v3265 = vmul.f32 %v279, %v3244
        %v3266 = vmul.f32 %v280, %v3244
        %v3267 = vmul.f32 %v281, %v3244
        %v3268 = vmul.f32 %v282, %v3244
        %v3269 = vmul.f32 %v283, %v3244
        %v3270 = vmul.f32 %v284, %v3244
        %v3271 = vmul.f32 %v285, %v3244
        %v3272 = vmul.f32 %v286, %v3244
        %v3273 = vmul.f32 %v287, %v3244
        %v3274 = vmul.f32 %v288, %v3244
        %v3275 = vmul.f32 %v289, %v3244
        %v3276 = vmul.f32 %v290, %v3244
        %v3277 = vmul.f32 %v291, %v3244
        %v3278 = vmul.f32 %v292, %v3244
        %v3279 = vmul.f32 %v293, %v3244
        %v3280 = vmul.f32 %v294, %v3244
        %v3281 = vmul.f32 %v295, %v3244
        %v3282 = vmul.f32 %v296, %v3244
        %v3283 = vmul.f32 %v297, %v3244
        %v3284 = vmul.f32 %v298, %v3244
        %v3285 = vmul.f32 %v299, %v3244
        %v3286 = vmul.f32 %v300, %v3244
        %v3287 = vmul.f32 %v301, %v3244
        %v3288 = vmul.f32 %v302, %v3244
        %v3289 = vmul.f32 %v303, %v3244
        %v3290 = vmul.f32 %v304, %v3244
        %v3291 = vmul.f32 %v305, %v3244
        %v3292 = vmul.f32 %v306, %v3244
        %v3341 = vrot.slane %v3245, 2
        %v3342 = vrot.slane %v3246, 2
        %v3343 = vsel %vm2608, %v3341, %v3342
        %v3344 = vrot.slane %v3247, 2
        %v3345 = vsel %vm2608, %v3342, %v3344
        %v3346 = vrot.slane %v3248, 2
        %v3347 = vrot.slane %v3249, 2
        %v3348 = vsel %vm2608, %v3346, %v3347
        %v3349 = vrot.slane %v3250, 2
        %v3350 = vsel %vm2608, %v3347, %v3349
        %v3351 = vrot.slane %v3251, 2
        %v3352 = vrot.slane %v3252, 2
        %v3353 = vsel %vm2608, %v3351, %v3352
        %v3354 = vrot.slane %v3253, 2
        %v3355 = vsel %vm2608, %v3352, %v3354
        %v3356 = vrot.slane %v3254, 2
        %v3357 = vrot.slane %v3255, 2
        %v3358 = vsel %vm2608, %v3356, %v3357
        %v3359 = vrot.slane %v3256, 2
        %v3360 = vsel %vm2608, %v3357, %v3359
        %v3361 = vrot.slane %v3257, 2
        %v3362 = vrot.slane %v3258, 2
        %v3363 = vsel %vm2608, %v3361, %v3362
        %v3364 = vrot.slane %v3259, 2
        %v3365 = vsel %vm2608, %v3362, %v3364
        %v3366 = vrot.slane %v3260, 2
        %v3367 = vrot.slane %v3261, 2
        %v3368 = vsel %vm2608, %v3366, %v3367
        %v3369 = vrot.slane %v3262, 2
        %v3370 = vsel %vm2608, %v3367, %v3369
        %v3371 = vrot.slane %v3263, 2
        %v3372 = vrot.slane %v3264, 2
        %v3373 = vsel %vm2608, %v3371, %v3372
        %v3374 = vrot.slane %v3265, 2
        %v3375 = vsel %vm2608, %v3372, %v3374
        %v3376 = vrot.slane %v3266, 2
        %v3377 = vrot.slane %v3267, 2
        %v3378 = vsel %vm2608, %v3376, %v3377
        %v3379 = vrot.slane %v3268, 2
        %v3380 = vsel %vm2608, %v3377, %v3379
        %v3381 = vrot.slane %v3269, 2
        %v3382 = vrot.slane %v3270, 2
        %v3383 = vsel %vm2608, %v3381, %v3382
        %v3384 = vrot.slane %v3271, 2
        %v3385 = vsel %vm2608, %v3382, %v3384
        %v3386 = vrot.slane %v3272, 2
        %v3387 = vrot.slane %v3273, 2
        %v3388 = vsel %vm2608, %v3386, %v3387
        %v3389 = vrot.slane %v3274, 2
        %v3390 = vsel %vm2608, %v3387, %v3389
        %v3391 = vrot.slane %v3275, 2
        %v3392 = vrot.slane %v3276, 2
        %v3393 = vsel %vm2608, %v3391, %v3392
        %v3394 = vrot.slane %v3277, 2
        %v3395 = vsel %vm2608, %v3392, %v3394
        %v3396 = vrot.slane %v3278, 2
        %v3397 = vrot.slane %v3279, 2
        %v3398 = vsel %vm2608, %v3396, %v3397
        %v3399 = vrot.slane %v3280, 2
        %v3400 = vsel %vm2608, %v3397, %v3399
        %v3401 = vrot.slane %v3281, 2
        %v3402 = vrot.slane %v3282, 2
        %v3403 = vsel %vm2608, %v3401, %v3402
        %v3404 = vrot.slane %v3283, 2
        %v3405 = vsel %vm2608, %v3402, %v3404
        %v3406 = vrot.slane %v3284, 2
        %v3407 = vrot.slane %v3285, 2
        %v3408 = vsel %vm2608, %v3406, %v3407
        %v3409 = vrot.slane %v3286, 2
        %v3410 = vsel %vm2608, %v3407, %v3409
        %v3411 = vrot.slane %v3287, 2
        %v3412 = vrot.slane %v3288, 2
        %v3413 = vsel %vm2608, %v3411, %v3412
        %v3414 = vrot.slane %v3289, 2
        %v3415 = vsel %vm2608, %v3412, %v3414
        %v3416 = vrot.slane %v3290, 2
        %v3417 = vrot.slane %v3291, 2
        %v3418 = vsel %vm2608, %v3416, %v3417
        %v3419 = vrot.slane %v3292, 2
        %v3420 = vsel %vm2608, %v3417, %v3419
        %v3453 = vadd.f32 %v3209, %v3343
        %v3454 = vadd.f32 %v3210, %v3345
        %v3455 = vadd.f32 %v3211, %v3348
        %v3456 = vadd.f32 %v3212, %v3350
        %v3457 = vadd.f32 %v3213, %v3353
        %v3458 = vadd.f32 %v3214, %v3355
        %v3459 = vadd.f32 %v3215, %v3358
        %v3460 = vadd.f32 %v3216, %v3360
        %v3461 = vadd.f32 %v3217, %v3363
        %v3462 = vadd.f32 %v3218, %v3365
        %v3463 = vadd.f32 %v3219, %v3368
        %v3464 = vadd.f32 %v3220, %v3370
        %v3465 = vadd.f32 %v3221, %v3373
        %v3466 = vadd.f32 %v3222, %v3375
        %v3467 = vadd.f32 %v3223, %v3378
        %v3468 = vadd.f32 %v3224, %v3380
        %v3469 = vadd.f32 %v3225, %v3383
        %v3470 = vadd.f32 %v3226, %v3385
        %v3471 = vadd.f32 %v3227, %v3388
        %v3472 = vadd.f32 %v3228, %v3390
        %v3473 = vadd.f32 %v3229, %v3393
        %v3474 = vadd.f32 %v3230, %v3395
        %v3475 = vadd.f32 %v3231, %v3398
        %v3476 = vadd.f32 %v3232, %v3400
        %v3477 = vadd.f32 %v3233, %v3403
        %v3478 = vadd.f32 %v3234, %v3405
        %v3479 = vadd.f32 %v3235, %v3408
        %v3480 = vadd.f32 %v3236, %v3410
        %v3481 = vadd.f32 %v3237, %v3413
        %v3482 = vadd.f32 %v3238, %v3415
        %v3483 = vadd.f32 %v3239, %v3418
        %v3484 = vadd.f32 %v3240, %v3420
        %v3485 = vlaneseq
        %v3486 = vshrl.u32 %v3485, 7
        %v3487 = vsub.s32 2, %v3486
        %v3488 = vrot.slane %v320, %v3487
        %v3489 = vmul.f32 %v262, %v3488
        %v3490 = vmul.f32 %v263, %v3488
        %v3491 = vmul.f32 %v264, %v3488
        %v3492 = vmul.f32 %v265, %v3488
        %v3493 = vmul.f32 %v266, %v3488
        %v3494 = vmul.f32 %v267, %v3488
        %v3495 = vmul.f32 %v268, %v3488
        %v3496 = vmul.f32 %v269, %v3488
        %v3497 = vmul.f32 %v270, %v3488
        %v3498 = vmul.f32 %v271, %v3488
        %v3499 = vmul.f32 %v272, %v3488
        %v3500 = vmul.f32 %v273, %v3488
        %v3501 = vmul.f32 %v274, %v3488
        %v3502 = vmul.f32 %v275, %v3488
        %v3503 = vmul.f32 %v276, %v3488
        %v3504 = vmul.f32 %v277, %v3488
        %v3505 = vmul.f32 %v278, %v3488
        %v3506 = vmul.f32 %v279, %v3488
        %v3507 = vmul.f32 %v280, %v3488
        %v3508 = vmul.f32 %v281, %v3488
        %v3509 = vmul.f32 %v282, %v3488
        %v3510 = vmul.f32 %v283, %v3488
        %v3511 = vmul.f32 %v284, %v3488
        %v3512 = vmul.f32 %v285, %v3488
        %v3513 = vmul.f32 %v286, %v3488
        %v3514 = vmul.f32 %v287, %v3488
        %v3515 = vmul.f32 %v288, %v3488
        %v3516 = vmul.f32 %v289, %v3488
        %v3517 = vmul.f32 %v290, %v3488
        %v3518 = vmul.f32 %v291, %v3488
        %v3519 = vmul.f32 %v292, %v3488
        %v3520 = vmul.f32 %v293, %v3488
        %v3521 = vmul.f32 %v294, %v3488
        %v3522 = vmul.f32 %v295, %v3488
        %v3523 = vmul.f32 %v296, %v3488
        %v3524 = vmul.f32 %v297, %v3488
        %v3525 = vmul.f32 %v298, %v3488
        %v3526 = vmul.f32 %v299, %v3488
        %v3527 = vmul.f32 %v300, %v3488
        %v3528 = vmul.f32 %v301, %v3488
        %v3529 = vmul.f32 %v302, %v3488
        %v3530 = vmul.f32 %v303, %v3488
        %v3531 = vmul.f32 %v304, %v3488
        %v3532 = vmul.f32 %v305, %v3488
        %v3533 = vmul.f32 %v306, %v3488
        %v3534 = vmul.f32 %v307, %v3488
        %v3535 = vmul.f32 %v308, %v3488
        %v3536 = vmul.f32 %v309, %v3488
        %v3585 = vrot.slane %v3489, 2
        %v3586 = vrot.slane %v3490, 2
        %v3587 = vsel %vm2608, %v3585, %v3586
        %v3588 = vrot.slane %v3491, 2
        %v3589 = vsel %vm2608, %v3586, %v3588
        %v3590 = vrot.slane %v3492, 2
        %v3591 = vrot.slane %v3493, 2
        %v3592 = vsel %vm2608, %v3590, %v3591
        %v3593 = vrot.slane %v3494, 2
        %v3594 = vsel %vm2608, %v3591, %v3593
        %v3595 = vrot.slane %v3495, 2
        %v3596 = vrot.slane %v3496, 2
        %v3597 = vsel %vm2608, %v3595, %v3596
        %v3598 = vrot.slane %v3497, 2
        %v3599 = vsel %vm2608, %v3596, %v3598
        %v3600 = vrot.slane %v3498, 2
        %v3601 = vrot.slane %v3499, 2
        %v3602 = vsel %vm2608, %v3600, %v3601
        %v3603 = vrot.slane %v3500, 2
        %v3604 = vsel %vm2608, %v3601, %v3603
        %v3605 = vrot.slane %v3501, 2
        %v3606 = vrot.slane %v3502, 2
        %v3607 = vsel %vm2608, %v3605, %v3606
        %v3608 = vrot.slane %v3503, 2
        %v3609 = vsel %vm2608, %v3606, %v3608
        %v3610 = vrot.slane %v3504, 2
        %v3611 = vrot.slane %v3505, 2
        %v3612 = vsel %vm2608, %v3610, %v3611
        %v3613 = vrot.slane %v3506, 2
        %v3614 = vsel %vm2608, %v3611, %v3613
        %v3615 = vrot.slane %v3507, 2
        %v3616 = vrot.slane %v3508, 2
        %v3617 = vsel %vm2608, %v3615, %v3616
        %v3618 = vrot.slane %v3509, 2
        %v3619 = vsel %vm2608, %v3616, %v3618
        %v3620 = vrot.slane %v3510, 2
        %v3621 = vrot.slane %v3511, 2
        %v3622 = vsel %vm2608, %v3620, %v3621
        %v3623 = vrot.slane %v3512, 2
        %v3624 = vsel %vm2608, %v3621, %v3623
        %v3625 = vrot.slane %v3513, 2
        %v3626 = vrot.slane %v3514, 2
        %v3627 = vsel %vm2608, %v3625, %v3626
        %v3628 = vrot.slane %v3515, 2
        %v3629 = vsel %vm2608, %v3626, %v3628
        %v3630 = vrot.slane %v3516, 2
        %v3631 = vrot.slane %v3517, 2
        %v3632 = vsel %vm2608, %v3630, %v3631
        %v3633 = vrot.slane %v3518, 2
        %v3634 = vsel %vm2608, %v3631, %v3633
        %v3635 = vrot.slane %v3519, 2
        %v3636 = vrot.slane %v3520, 2
        %v3637 = vsel %vm2608, %v3635, %v3636
        %v3638 = vrot.slane %v3521, 2
        %v3639 = vsel %vm2608, %v3636, %v3638
        %v3640 = vrot.slane %v3522, 2
        %v3641 = vrot.slane %v3523, 2
        %v3642 = vsel %vm2608, %v3640, %v3641
        %v3643 = vrot.slane %v3524, 2
        %v3644 = vsel %vm2608, %v3641, %v3643
        %v3645 = vrot.slane %v3525, 2
        %v3646 = vrot.slane %v3526, 2
        %v3647 = vsel %vm2608, %v3645, %v3646
        %v3648 = vrot.slane %v3527, 2
        %v3649 = vsel %vm2608, %v3646, %v3648
        %v3650 = vrot.slane %v3528, 2
        %v3651 = vrot.slane %v3529, 2
        %v3652 = vsel %vm2608, %v3650, %v3651
        %v3653 = vrot.slane %v3530, 2
        %v3654 = vsel %vm2608, %v3651, %v3653
        %v3655 = vrot.slane %v3531, 2
        %v3656 = vrot.slane %v3532, 2
        %v3657 = vsel %vm2608, %v3655, %v3656
        %v3658 = vrot.slane %v3533, 2
        %v3659 = vsel %vm2608, %v3656, %v3658
        %v3660 = vrot.slane %v3534, 2
        %v3661 = vrot.slane %v3535, 2
        %v3662 = vsel %vm2608, %v3660, %v3661
        %v3663 = vrot.slane %v3536, 2
        %v3664 = vsel %vm2608, %v3661, %v3663
        %v3697 = vadd.f32 %v3453, %v3587
        %v3698 = vadd.f32 %v3454, %v3589
        %v3699 = vadd.f32 %v3455, %v3592
        %v3700 = vadd.f32 %v3456, %v3594
        %v3701 = vadd.f32 %v3457, %v3597
        %v3702 = vadd.f32 %v3458, %v3599
        %v3703 = vadd.f32 %v3459, %v3602
        %v3704 = vadd.f32 %v3460, %v3604
        %v3705 = vadd.f32 %v3461, %v3607
        %v3706 = vadd.f32 %v3462, %v3609
        %v3707 = vadd.f32 %v3463, %v3612
        %v3708 = vadd.f32 %v3464, %v3614
        %v3709 = vadd.f32 %v3465, %v3617
        %v3710 = vadd.f32 %v3466, %v3619
        %v3711 = vadd.f32 %v3467, %v3622
        %v3712 = vadd.f32 %v3468, %v3624
        %v3713 = vadd.f32 %v3469, %v3627
        %v3714 = vadd.f32 %v3470, %v3629
        %v3715 = vadd.f32 %v3471, %v3632
        %v3716 = vadd.f32 %v3472, %v3634
        %v3717 = vadd.f32 %v3473, %v3637
        %v3718 = vadd.f32 %v3474, %v3639
        %v3719 = vadd.f32 %v3475, %v3642
        %v3720 = vadd.f32 %v3476, %v3644
        %v3721 = vadd.f32 %v3477, %v3647
        %v3722 = vadd.f32 %v3478, %v3649
        %v3723 = vadd.f32 %v3479, %v3652
        %v3724 = vadd.f32 %v3480, %v3654
        %v3725 = vadd.f32 %v3481, %v3657
        %v3726 = vadd.f32 %v3482, %v3659
        %v3727 = vadd.f32 %v3483, %v3662
        %v3728 = vadd.f32 %v3484, %v3664
        %v3729 = vlaneseq
        %v3730 = vshrl.u32 %v3729, 7
        %v3731 = vsub.s32 2, %v3730
        %v3732 = vrot.slane %v321, %v3731
        %v3733 = vmul.f32 %v265, %v3732
        %v3734 = vmul.f32 %v266, %v3732
        %v3735 = vmul.f32 %v267, %v3732
        %v3736 = vmul.f32 %v268, %v3732
        %v3737 = vmul.f32 %v269, %v3732
        %v3738 = vmul.f32 %v270, %v3732
        %v3739 = vmul.f32 %v271, %v3732
        %v3740 = vmul.f32 %v272, %v3732
        %v3741 = vmul.f32 %v273, %v3732
        %v3742 = vmul.f32 %v274, %v3732
        %v3743 = vmul.f32 %v275, %v3732
        %v3744 = vmul.f32 %v276, %v3732
        %v3745 = vmul.f32 %v277, %v3732
        %v3746 = vmul.f32 %v278, %v3732
        %v3747 = vmul.f32 %v279, %v3732
        %v3748 = vmul.f32 %v280, %v3732
        %v3749 = vmul.f32 %v281, %v3732
        %v3750 = vmul.f32 %v282, %v3732
        %v3751 = vmul.f32 %v283, %v3732
        %v3752 = vmul.f32 %v284, %v3732
        %v3753 = vmul.f32 %v285, %v3732
        %v3754 = vmul.f32 %v286, %v3732
        %v3755 = vmul.f32 %v287, %v3732
        %v3756 = vmul.f32 %v288, %v3732
        %v3757 = vmul.f32 %v289, %v3732
        %v3758 = vmul.f32 %v290, %v3732
        %v3759 = vmul.f32 %v291, %v3732
        %v3760 = vmul.f32 %v292, %v3732
        %v3761 = vmul.f32 %v293, %v3732
        %v3762 = vmul.f32 %v294, %v3732
        %v3763 = vmul.f32 %v295, %v3732
        %v3764 = vmul.f32 %v296, %v3732
        %v3765 = vmul.f32 %v297, %v3732
        %v3766 = vmul.f32 %v298, %v3732
        %v3767 = vmul.f32 %v299, %v3732
        %v3768 = vmul.f32 %v300, %v3732
        %v3769 = vmul.f32 %v301, %v3732
        %v3770 = vmul.f32 %v302, %v3732
        %v3771 = vmul.f32 %v303, %v3732
        %v3772 = vmul.f32 %v304, %v3732
        %v3773 = vmul.f32 %v305, %v3732
        %v3774 = vmul.f32 %v306, %v3732
        %v3775 = vmul.f32 %v307, %v3732
        %v3776 = vmul.f32 %v308, %v3732
        %v3777 = vmul.f32 %v309, %v3732
        %v3778 = vmul.f32 %v310, %v3732
        %v3779 = vmul.f32 %v311, %v3732
        %v3780 = vmul.f32 %v312, %v3732
        %v3829 = vrot.slane %v3733, 2
        %v3830 = vrot.slane %v3734, 2
        %v3831 = vsel %vm2608, %v3829, %v3830
        %v3832 = vrot.slane %v3735, 2
        %v3833 = vsel %vm2608, %v3830, %v3832
        %v3834 = vrot.slane %v3736, 2
        %v3835 = vrot.slane %v3737, 2
        %v3836 = vsel %vm2608, %v3834, %v3835
        %v3837 = vrot.slane %v3738, 2
        %v3838 = vsel %vm2608, %v3835, %v3837
        %v3839 = vrot.slane %v3739, 2
        %v3840 = vrot.slane %v3740, 2
        %v3841 = vsel %vm2608, %v3839, %v3840
        %v3842 = vrot.slane %v3741, 2
        %v3843 = vsel %vm2608, %v3840, %v3842
        %v3844 = vrot.slane %v3742, 2
        %v3845 = vrot.slane %v3743, 2
        %v3846 = vsel %vm2608, %v3844, %v3845
        %v3847 = vrot.slane %v3744, 2
        %v3848 = vsel %vm2608, %v3845, %v3847
        %v3849 = vrot.slane %v3745, 2
        %v3850 = vrot.slane %v3746, 2
        %v3851 = vsel %vm2608, %v3849, %v3850
        %v3852 = vrot.slane %v3747, 2
        %v3853 = vsel %vm2608, %v3850, %v3852
        %v3854 = vrot.slane %v3748, 2
        %v3855 = vrot.slane %v3749, 2
        %v3856 = vsel %vm2608, %v3854, %v3855
        %v3857 = vrot.slane %v3750, 2
        %v3858 = vsel %vm2608, %v3855, %v3857
        %v3859 = vrot.slane %v3751, 2
        %v3860 = vrot.slane %v3752, 2
        %v3861 = vsel %vm2608, %v3859, %v3860
        %v3862 = vrot.slane %v3753, 2
        %v3863 = vsel %vm2608, %v3860, %v3862
        %v3864 = vrot.slane %v3754, 2
        %v3865 = vrot.slane %v3755, 2
        %v3866 = vsel %vm2608, %v3864, %v3865
        %v3867 = vrot.slane %v3756, 2
        %v3868 = vsel %vm2608, %v3865, %v3867
        %v3869 = vrot.slane %v3757, 2
        %v3870 = vrot.slane %v3758, 2
        %v3871 = vsel %vm2608, %v3869, %v3870
        %v3872 = vrot.slane %v3759, 2
        %v3873 = vsel %vm2608, %v3870, %v3872
        %v3874 = vrot.slane %v3760, 2
        %v3875 = vrot.slane %v3761, 2
        %v3876 = vsel %vm2608, %v3874, %v3875
        %v3877 = vrot.slane %v3762, 2
        %v3878 = vsel %vm2608, %v3875, %v3877
        %v3879 = vrot.slane %v3763, 2
        %v3880 = vrot.slane %v3764, 2
        %v3881 = vsel %vm2608, %v3879, %v3880
        %v3882 = vrot.slane %v3765, 2
        %v3883 = vsel %vm2608, %v3880, %v3882
        %v3884 = vrot.slane %v3766, 2
        %v3885 = vrot.slane %v3767, 2
        %v3886 = vsel %vm2608, %v3884, %v3885
        %v3887 = vrot.slane %v3768, 2
        %v3888 = vsel %vm2608, %v3885, %v3887
        %v3889 = vrot.slane %v3769, 2
        %v3890 = vrot.slane %v3770, 2
        %v3891 = vsel %vm2608, %v3889, %v3890
        %v3892 = vrot.slane %v3771, 2
        %v3893 = vsel %vm2608, %v3890, %v3892
        %v3894 = vrot.slane %v3772, 2
        %v3895 = vrot.slane %v3773, 2
        %v3896 = vsel %vm2608, %v3894, %v3895
        %v3897 = vrot.slane %v3774, 2
        %v3898 = vsel %vm2608, %v3895, %v3897
        %v3899 = vrot.slane %v3775, 2
        %v3900 = vrot.slane %v3776, 2
        %v3901 = vsel %vm2608, %v3899, %v3900
        %v3902 = vrot.slane %v3777, 2
        %v3903 = vsel %vm2608, %v3900, %v3902
        %v3904 = vrot.slane %v3778, 2
        %v3905 = vrot.slane %v3779, 2
        %v3906 = vsel %vm2608, %v3904, %v3905
        %v3907 = vrot.slane %v3780, 2
        %v3908 = vsel %vm2608, %v3905, %v3907
        %v3941 = vadd.f32 %v3697, %v3831
        %v3942 = vadd.f32 %v3698, %v3833
        %v3943 = vadd.f32 %v3699, %v3836
        %v3944 = vadd.f32 %v3700, %v3838
        %v3945 = vadd.f32 %v3701, %v3841
        %v3946 = vadd.f32 %v3702, %v3843
        %v3947 = vadd.f32 %v3703, %v3846
        %v3948 = vadd.f32 %v3704, %v3848
        %v3949 = vadd.f32 %v3705, %v3851
        %v3950 = vadd.f32 %v3706, %v3853
        %v3951 = vadd.f32 %v3707, %v3856
        %v3952 = vadd.f32 %v3708, %v3858
        %v3953 = vadd.f32 %v3709, %v3861
        %v3954 = vadd.f32 %v3710, %v3863
        %v3955 = vadd.f32 %v3711, %v3866
        %v3956 = vadd.f32 %v3712, %v3868
        %v3957 = vadd.f32 %v3713, %v3871
        %v3958 = vadd.f32 %v3714, %v3873
        %v3959 = vadd.f32 %v3715, %v3876
        %v3960 = vadd.f32 %v3716, %v3878
        %v3961 = vadd.f32 %v3717, %v3881
        %v3962 = vadd.f32 %v3718, %v3883
        %v3963 = vadd.f32 %v3719, %v3886
        %v3964 = vadd.f32 %v3720, %v3888
        %v3965 = vadd.f32 %v3721, %v3891
        %v3966 = vadd.f32 %v3722, %v3893
        %v3967 = vadd.f32 %v3723, %v3896
        %v3968 = vadd.f32 %v3724, %v3898
        %v3969 = vadd.f32 %v3725, %v3901
        %v3970 = vadd.f32 %v3726, %v3903
        %v3971 = vadd.f32 %v3727, %v3906
        %v3972 = vadd.f32 %v3728, %v3908
        %v3973 = vlaneseq
        %v3974 = vshrl.u32 %v3973, 7
        %v3975 = vsub.s32 2, %v3974
        %v3976 = vrot.slane %v322, %v3975
        %v3977 = vmul.f32 %v268, %v3976
        %v3978 = vmul.f32 %v269, %v3976
        %v3979 = vmul.f32 %v270, %v3976
        %v3980 = vmul.f32 %v271, %v3976
        %v3981 = vmul.f32 %v272, %v3976
        %v3982 = vmul.f32 %v273, %v3976
        %v3983 = vmul.f32 %v274, %v3976
        %v3984 = vmul.f32 %v275, %v3976
        %v3985 = vmul.f32 %v276, %v3976
        %v3986 = vmul.f32 %v277, %v3976
        %v3987 = vmul.f32 %v278, %v3976
        %v3988 = vmul.f32 %v279, %v3976
        %v3989 = vmul.f32 %v280, %v3976
        %v3990 = vmul.f32 %v281, %v3976
        %v3991 = vmul.f32 %v282, %v3976
        %v3992 = vmul.f32 %v283, %v3976
        %v3993 = vmul.f32 %v284, %v3976
        %v3994 = vmul.f32 %v285, %v3976
        %v3995 = vmul.f32 %v286, %v3976
        %v3996 = vmul.f32 %v287, %v3976
        %v3997 = vmul.f32 %v288, %v3976
        %v3998 = vmul.f32 %v289, %v3976
        %v3999 = vmul.f32 %v290, %v3976
        %v4000 = vmul.f32 %v291, %v3976
        %v4001 = vmul.f32 %v292, %v3976
        %v4002 = vmul.f32 %v293, %v3976
        %v4003 = vmul.f32 %v294, %v3976
        %v4004 = vmul.f32 %v295, %v3976
        %v4005 = vmul.f32 %v296, %v3976
        %v4006 = vmul.f32 %v297, %v3976
        %v4007 = vmul.f32 %v298, %v3976
        %v4008 = vmul.f32 %v299, %v3976
        %v4009 = vmul.f32 %v300, %v3976
        %v4010 = vmul.f32 %v301, %v3976
        %v4011 = vmul.f32 %v302, %v3976
        %v4012 = vmul.f32 %v303, %v3976
        %v4013 = vmul.f32 %v304, %v3976
        %v4014 = vmul.f32 %v305, %v3976
        %v4015 = vmul.f32 %v306, %v3976
        %v4016 = vmul.f32 %v307, %v3976
        %v4017 = vmul.f32 %v308, %v3976
        %v4018 = vmul.f32 %v309, %v3976
        %v4019 = vmul.f32 %v310, %v3976
        %v4020 = vmul.f32 %v311, %v3976
        %v4021 = vmul.f32 %v312, %v3976
        %v4022 = vmul.f32 %v313, %v3976
        %v4023 = vmul.f32 %v314, %v3976
        %v4024 = vmul.f32 %v315, %v3976
        %v4073 = vrot.slane %v3977, 2
        %v4074 = vrot.slane %v3978, 2
        %v4075 = vsel %vm2608, %v4073, %v4074
        %v4076 = vrot.slane %v3979, 2
        %v4077 = vsel %vm2608, %v4074, %v4076
        %v4078 = vrot.slane %v3980, 2
        %v4079 = vrot.slane %v3981, 2
        %v4080 = vsel %vm2608, %v4078, %v4079
        %v4081 = vrot.slane %v3982, 2
        %v4082 = vsel %vm2608, %v4079, %v4081
        %v4083 = vrot.slane %v3983, 2
        %v4084 = vrot.slane %v3984, 2
        %v4085 = vsel %vm2608, %v4083, %v4084
        %v4086 = vrot.slane %v3985, 2
        %v4087 = vsel %vm2608, %v4084, %v4086
        %v4088 = vrot.slane %v3986, 2
        %v4089 = vrot.slane %v3987, 2
        %v4090 = vsel %vm2608, %v4088, %v4089
        %v4091 = vrot.slane %v3988, 2
        %v4092 = vsel %vm2608, %v4089, %v4091
        %v4093 = vrot.slane %v3989, 2
        %v4094 = vrot.slane %v3990, 2
        %v4095 = vsel %vm2608, %v4093, %v4094
        %v4096 = vrot.slane %v3991, 2
        %v4097 = vsel %vm2608, %v4094, %v4096
        %v4098 = vrot.slane %v3992, 2
        %v4099 = vrot.slane %v3993, 2
        %v4100 = vsel %vm2608, %v4098, %v4099
        %v4101 = vrot.slane %v3994, 2
        %v4102 = vsel %vm2608, %v4099, %v4101
        %v4103 = vrot.slane %v3995, 2
        %v4104 = vrot.slane %v3996, 2
        %v4105 = vsel %vm2608, %v4103, %v4104
        %v4106 = vrot.slane %v3997, 2
        %v4107 = vsel %vm2608, %v4104, %v4106
        %v4108 = vrot.slane %v3998, 2
        %v4109 = vrot.slane %v3999, 2
        %v4110 = vsel %vm2608, %v4108, %v4109
        %v4111 = vrot.slane %v4000, 2
        %v4112 = vsel %vm2608, %v4109, %v4111
        %v4113 = vrot.slane %v4001, 2
        %v4114 = vrot.slane %v4002, 2
        %v4115 = vsel %vm2608, %v4113, %v4114
        %v4116 = vrot.slane %v4003, 2
        %v4117 = vsel %vm2608, %v4114, %v4116
        %v4118 = vrot.slane %v4004, 2
        %v4119 = vrot.slane %v4005, 2
        %v4120 = vsel %vm2608, %v4118, %v4119
        %v4121 = vrot.slane %v4006, 2
        %v4122 = vsel %vm2608, %v4119, %v4121
        %v4123 = vrot.slane %v4007, 2
        %v4124 = vrot.slane %v4008, 2
        %v4125 = vsel %vm2608, %v4123, %v4124
        %v4126 = vrot.slane %v4009, 2
        %v4127 = vsel %vm2608, %v4124, %v4126
        %v4128 = vrot.slane %v4010, 2
        %v4129 = vrot.slane %v4011, 2
        %v4130 = vsel %vm2608, %v4128, %v4129
        %v4131 = vrot.slane %v4012, 2
        %v4132 = vsel %vm2608, %v4129, %v4131
        %v4133 = vrot.slane %v4013, 2
        %v4134 = vrot.slane %v4014, 2
        %v4135 = vsel %vm2608, %v4133, %v4134
        %v4136 = vrot.slane %v4015, 2
        %v4137 = vsel %vm2608, %v4134, %v4136
        %v4138 = vrot.slane %v4016, 2
        %v4139 = vrot.slane %v4017, 2
        %v4140 = vsel %vm2608, %v4138, %v4139
        %v4141 = vrot.slane %v4018, 2
        %v4142 = vsel %vm2608, %v4139, %v4141
        %v4143 = vrot.slane %v4019, 2
        %v4144 = vrot.slane %v4020, 2
        %v4145 = vsel %vm2608, %v4143, %v4144
        %v4146 = vrot.slane %v4021, 2
        %v4147 = vsel %vm2608, %v4144, %v4146
        %v4148 = vrot.slane %v4022, 2
        %v4149 = vrot.slane %v4023, 2
        %v4150 = vsel %vm2608, %v4148, %v4149
        %v4151 = vrot.slane %v4024, 2
        %v4152 = vsel %vm2608, %v4149, %v4151
        %v4185 = vadd.f32 %v3941, %v4075
        %v4186 = vadd.f32 %v3942, %v4077
        %v4187 = vadd.f32 %v3943, %v4080
        %v4188 = vadd.f32 %v3944, %v4082
        %v4189 = vadd.f32 %v3945, %v4085
        %v4190 = vadd.f32 %v3946, %v4087
        %v4191 = vadd.f32 %v3947, %v4090
        %v4192 = vadd.f32 %v3948, %v4092
        %v4193 = vadd.f32 %v3949, %v4095
        %v4194 = vadd.f32 %v3950, %v4097
        %v4195 = vadd.f32 %v3951, %v4100
        %v4196 = vadd.f32 %v3952, %v4102
        %v4197 = vadd.f32 %v3953, %v4105
        %v4198 = vadd.f32 %v3954, %v4107
        %v4199 = vadd.f32 %v3955, %v4110
        %v4200 = vadd.f32 %v3956, %v4112
        %v4201 = vadd.f32 %v3957, %v4115
        %v4202 = vadd.f32 %v3958, %v4117
        %v4203 = vadd.f32 %v3959, %v4120
        %v4204 = vadd.f32 %v3960, %v4122
        %v4205 = vadd.f32 %v3961, %v4125
        %v4206 = vadd.f32 %v3962, %v4127
        %v4207 = vadd.f32 %v3963, %v4130
        %v4208 = vadd.f32 %v3964, %v4132
        %v4209 = vadd.f32 %v3965, %v4135
        %v4210 = vadd.f32 %v3966, %v4137
        %v4211 = vadd.f32 %v3967, %v4140
        %v4212 = vadd.f32 %v3968, %v4142
        %v4213 = vadd.f32 %v3969, %v4145
        %v4214 = vadd.f32 %v3970, %v4147
        %v4215 = vadd.f32 %v3971, %v4150
        %v4216 = vadd.f32 %v3972, %v4152
        %v4217 = vlaneseq
        %v4218 = vshrl.u32 %v4217, 7
        %v4219 = vsub.s32 3, %v4218
        %v4220 = vrot.slane %v316, %v4219
        %v4221 = vmul.f32 %v250, %v4220
        %v4222 = vmul.f32 %v251, %v4220
        %v4223 = vmul.f32 %v252, %v4220
        %v4224 = vmul.f32 %v253, %v4220
        %v4225 = vmul.f32 %v254, %v4220
        %v4226 = vmul.f32 %v255, %v4220
        %v4227 = vmul.f32 %v256, %v4220
        %v4228 = vmul.f32 %v257, %v4220
        %v4229 = vmul.f32 %v258, %v4220
        %v4230 = vmul.f32 %v259, %v4220
        %v4231 = vmul.f32 %v260, %v4220
        %v4232 = vmul.f32 %v261, %v4220
        %v4233 = vmul.f32 %v262, %v4220
        %v4234 = vmul.f32 %v263, %v4220
        %v4235 = vmul.f32 %v264, %v4220
        %v4236 = vmul.f32 %v265, %v4220
        %v4237 = vmul.f32 %v266, %v4220
        %v4238 = vmul.f32 %v267, %v4220
        %v4239 = vmul.f32 %v268, %v4220
        %v4240 = vmul.f32 %v269, %v4220
        %v4241 = vmul.f32 %v270, %v4220
        %v4242 = vmul.f32 %v271, %v4220
        %v4243 = vmul.f32 %v272, %v4220
        %v4244 = vmul.f32 %v273, %v4220
        %v4245 = vmul.f32 %v274, %v4220
        %v4246 = vmul.f32 %v275, %v4220
        %v4247 = vmul.f32 %v276, %v4220
        %v4248 = vmul.f32 %v277, %v4220
        %v4249 = vmul.f32 %v278, %v4220
        %v4250 = vmul.f32 %v279, %v4220
        %v4251 = vmul.f32 %v280, %v4220
        %v4252 = vmul.f32 %v281, %v4220
        %v4253 = vmul.f32 %v282, %v4220
        %v4254 = vmul.f32 %v283, %v4220
        %v4255 = vmul.f32 %v284, %v4220
        %v4256 = vmul.f32 %v285, %v4220
        %v4257 = vmul.f32 %v286, %v4220
        %v4258 = vmul.f32 %v287, %v4220
        %v4259 = vmul.f32 %v288, %v4220
        %v4260 = vmul.f32 %v289, %v4220
        %v4261 = vmul.f32 %v290, %v4220
        %v4262 = vmul.f32 %v291, %v4220
        %v4263 = vmul.f32 %v292, %v4220
        %v4264 = vmul.f32 %v293, %v4220
        %v4265 = vmul.f32 %v294, %v4220
        %v4266 = vmul.f32 %v295, %v4220
        %v4267 = vmul.f32 %v296, %v4220
        %v4268 = vmul.f32 %v297, %v4220
        %vm4317 = vcmask 1044480
        %v4318 = vrot.slane %v4221, 3
        %v4319 = vrot.slane %v4222, 3
        %v4320 = vsel %vm4317, %v4318, %v4319
        %v4321 = vrot.slane %v4223, 3
        %v4322 = vsel %vm4317, %v4319, %v4321
        %v4323 = vrot.slane %v4224, 3
        %v4324 = vrot.slane %v4225, 3
        %v4325 = vsel %vm4317, %v4323, %v4324
        %v4326 = vrot.slane %v4226, 3
        %v4327 = vsel %vm4317, %v4324, %v4326
        %v4328 = vrot.slane %v4227, 3
        %v4329 = vrot.slane %v4228, 3
        %v4330 = vsel %vm4317, %v4328, %v4329
        %v4331 = vrot.slane %v4229, 3
        %v4332 = vsel %vm4317, %v4329, %v4331
        %v4333 = vrot.slane %v4230, 3
        %v4334 = vrot.slane %v4231, 3
        %v4335 = vsel %vm4317, %v4333, %v4334
        %v4336 = vrot.slane %v4232, 3
        %v4337 = vsel %vm4317, %v4334, %v4336
        %v4338 = vrot.slane %v4233, 3
        %v4339 = vrot.slane %v4234, 3
        %v4340 = vsel %vm4317, %v4338, %v4339
        %v4341 = vrot.slane %v4235, 3
        %v4342 = vsel %vm4317, %v4339, %v4341
        %v4343 = vrot.slane %v4236, 3
        %v4344 = vrot.slane %v4237, 3
        %v4345 = vsel %vm4317, %v4343, %v4344
        %v4346 = vrot.slane %v4238, 3
        %v4347 = vsel %vm4317, %v4344, %v4346
        %v4348 = vrot.slane %v4239, 3
        %v4349 = vrot.slane %v4240, 3
        %v4350 = vsel %vm4317, %v4348, %v4349
        %v4351 = vrot.slane %v4241, 3
        %v4352 = vsel %vm4317, %v4349, %v4351
        %v4353 = vrot.slane %v4242, 3
        %v4354 = vrot.slane %v4243, 3
        %v4355 = vsel %vm4317, %v4353, %v4354
        %v4356 = vrot.slane %v4244, 3
        %v4357 = vsel %vm4317, %v4354, %v4356
        %v4358 = vrot.slane %v4245, 3
        %v4359 = vrot.slane %v4246, 3
        %v4360 = vsel %vm4317, %v4358, %v4359
        %v4361 = vrot.slane %v4247, 3
        %v4362 = vsel %vm4317, %v4359, %v4361
        %v4363 = vrot.slane %v4248, 3
        %v4364 = vrot.slane %v4249, 3
        %v4365 = vsel %vm4317, %v4363, %v4364
        %v4366 = vrot.slane %v4250, 3
        %v4367 = vsel %vm4317, %v4364, %v4366
        %v4368 = vrot.slane %v4251, 3
        %v4369 = vrot.slane %v4252, 3
        %v4370 = vsel %vm4317, %v4368, %v4369
        %v4371 = vrot.slane %v4253, 3
        %v4372 = vsel %vm4317, %v4369, %v4371
        %v4373 = vrot.slane %v4254, 3
        %v4374 = vrot.slane %v4255, 3
        %v4375 = vsel %vm4317, %v4373, %v4374
        %v4376 = vrot.slane %v4256, 3
        %v4377 = vsel %vm4317, %v4374, %v4376
        %v4378 = vrot.slane %v4257, 3
        %v4379 = vrot.slane %v4258, 3
        %v4380 = vsel %vm4317, %v4378, %v4379
        %v4381 = vrot.slane %v4259, 3
        %v4382 = vsel %vm4317, %v4379, %v4381
        %v4383 = vrot.slane %v4260, 3
        %v4384 = vrot.slane %v4261, 3
        %v4385 = vsel %vm4317, %v4383, %v4384
        %v4386 = vrot.slane %v4262, 3
        %v4387 = vsel %vm4317, %v4384, %v4386
        %v4388 = vrot.slane %v4263, 3
        %v4389 = vrot.slane %v4264, 3
        %v4390 = vsel %vm4317, %v4388, %v4389
        %v4391 = vrot.slane %v4265, 3
        %v4392 = vsel %vm4317, %v4389, %v4391
        %v4393 = vrot.slane %v4266, 3
        %v4394 = vrot.slane %v4267, 3
        %v4395 = vsel %vm4317, %v4393, %v4394
        %v4396 = vrot.slane %v4268, 3
        %v4397 = vsel %vm4317, %v4394, %v4396
        %v4430 = vadd.f32 %v4185, %v4320
        %v4431 = vadd.f32 %v4186, %v4322
        %v4432 = vadd.f32 %v4187, %v4325
        %v4433 = vadd.f32 %v4188, %v4327
        %v4434 = vadd.f32 %v4189, %v4330
        %v4435 = vadd.f32 %v4190, %v4332
        %v4436 = vadd.f32 %v4191, %v4335
        %v4437 = vadd.f32 %v4192, %v4337
        %v4438 = vadd.f32 %v4193, %v4340
        %v4439 = vadd.f32 %v4194, %v4342
        %v4440 = vadd.f32 %v4195, %v4345
        %v4441 = vadd.f32 %v4196, %v4347
        %v4442 = vadd.f32 %v4197, %v4350
        %v4443 = vadd.f32 %v4198, %v4352
        %v4444 = vadd.f32 %v4199, %v4355
        %v4445 = vadd.f32 %v4200, %v4357
        %v4446 = vadd.f32 %v4201, %v4360
        %v4447 = vadd.f32 %v4202, %v4362
        %v4448 = vadd.f32 %v4203, %v4365
        %v4449 = vadd.f32 %v4204, %v4367
        %v4450 = vadd.f32 %v4205, %v4370
        %v4451 = vadd.f32 %v4206, %v4372
        %v4452 = vadd.f32 %v4207, %v4375
        %v4453 = vadd.f32 %v4208, %v4377
        %v4454 = vadd.f32 %v4209, %v4380
        %v4455 = vadd.f32 %v4210, %v4382
        %v4456 = vadd.f32 %v4211, %v4385
        %v4457 = vadd.f32 %v4212, %v4387
        %v4458 = vadd.f32 %v4213, %v4390
        %v4459 = vadd.f32 %v4214, %v4392
        %v4460 = vadd.f32 %v4215, %v4395
        %v4461 = vadd.f32 %v4216, %v4397
        %v4462 = vlaneseq
        %v4463 = vshrl.u32 %v4462, 7
        %v4464 = vsub.s32 3, %v4463
        %v4465 = vrot.slane %v317, %v4464
        %v4466 = vmul.f32 %v253, %v4465
        %v4467 = vmul.f32 %v254, %v4465
        %v4468 = vmul.f32 %v255, %v4465
        %v4469 = vmul.f32 %v256, %v4465
        %v4470 = vmul.f32 %v257, %v4465
        %v4471 = vmul.f32 %v258, %v4465
        %v4472 = vmul.f32 %v259, %v4465
        %v4473 = vmul.f32 %v260, %v4465
        %v4474 = vmul.f32 %v261, %v4465
        %v4475 = vmul.f32 %v262, %v4465
        %v4476 = vmul.f32 %v263, %v4465
        %v4477 = vmul.f32 %v264, %v4465
        %v4478 = vmul.f32 %v265, %v4465
        %v4479 = vmul.f32 %v266, %v4465
        %v4480 = vmul.f32 %v267, %v4465
        %v4481 = vmul.f32 %v268, %v4465
        %v4482 = vmul.f32 %v269, %v4465
        %v4483 = vmul.f32 %v270, %v4465
        %v4484 = vmul.f32 %v271, %v4465
        %v4485 = vmul.f32 %v272, %v4465
        %v4486 = vmul.f32 %v273, %v4465
        %v4487 = vmul.f32 %v274, %v4465
        %v4488 = vmul.f32 %v275, %v4465
        %v4489 = vmul.f32 %v276, %v4465
        %v4490 = vmul.f32 %v277, %v4465
        %v4491 = vmul.f32 %v278, %v4465
        %v4492 = vmul.f32 %v279, %v4465
        %v4493 = vmul.f32 %v280, %v4465
        %v4494 = vmul.f32 %v281, %v4465
        %v4495 = vmul.f32 %v282, %v4465
        %v4496 = vmul.f32 %v283, %v4465
        %v4497 = vmul.f32 %v284, %v4465
        %v4498 = vmul.f32 %v285, %v4465
        %v4499 = vmul.f32 %v286, %v4465
        %v4500 = vmul.f32 %v287, %v4465
        %v4501 = vmul.f32 %v288, %v4465
        %v4502 = vmul.f32 %v289, %v4465
        %v4503 = vmul.f32 %v290, %v4465
        %v4504 = vmul.f32 %v291, %v4465
        %v4505 = vmul.f32 %v292, %v4465
        %v4506 = vmul.f32 %v293, %v4465
        %v4507 = vmul.f32 %v294, %v4465
        %v4508 = vmul.f32 %v295, %v4465
        %v4509 = vmul.f32 %v296, %v4465
        %v4510 = vmul.f32 %v297, %v4465
        %v4511 = vmul.f32 %v298, %v4465
        %v4512 = vmul.f32 %v299, %v4465
        %v4513 = vmul.f32 %v300, %v4465
        %v4562 = vrot.slane %v4466, 3
        %v4563 = vrot.slane %v4467, 3
        %v4564 = vsel %vm4317, %v4562, %v4563
        %v4565 = vrot.slane %v4468, 3
        %v4566 = vsel %vm4317, %v4563, %v4565
        %v4567 = vrot.slane %v4469, 3
        %v4568 = vrot.slane %v4470, 3
        %v4569 = vsel %vm4317, %v4567, %v4568
        %v4570 = vrot.slane %v4471, 3
        %v4571 = vsel %vm4317, %v4568, %v4570
        %v4572 = vrot.slane %v4472, 3
        %v4573 = vrot.slane %v4473, 3
        %v4574 = vsel %vm4317, %v4572, %v4573
        %v4575 = vrot.slane %v4474, 3
        %v4576 = vsel %vm4317, %v4573, %v4575
        %v4577 = vrot.slane %v4475, 3
        %v4578 = vrot.slane %v4476, 3
        %v4579 = vsel %vm4317, %v4577, %v4578
        %v4580 = vrot.slane %v4477, 3
        %v4581 = vsel %vm4317, %v4578, %v4580
        %v4582 = vrot.slane %v4478, 3
        %v4583 = vrot.slane %v4479, 3
        %v4584 = vsel %vm4317, %v4582, %v4583
        %v4585 = vrot.slane %v4480, 3
        %v4586 = vsel %vm4317, %v4583, %v4585
        %v4587 = vrot.slane %v4481, 3
        %v4588 = vrot.slane %v4482, 3
        %v4589 = vsel %vm4317, %v4587, %v4588
        %v4590 = vrot.slane %v4483, 3
        %v4591 = vsel %vm4317, %v4588, %v4590
        %v4592 = vrot.slane %v4484, 3
        %v4593 = vrot.slane %v4485, 3
        %v4594 = vsel %vm4317, %v4592, %v4593
        %v4595 = vrot.slane %v4486, 3
        %v4596 = vsel %vm4317, %v4593, %v4595
        %v4597 = vrot.slane %v4487, 3
        %v4598 = vrot.slane %v4488, 3
        %v4599 = vsel %vm4317, %v4597, %v4598
        %v4600 = vrot.slane %v4489, 3
        %v4601 = vsel %vm4317, %v4598, %v4600
        %v4602 = vrot.slane %v4490, 3
        %v4603 = vrot.slane %v4491, 3
        %v4604 = vsel %vm4317, %v4602, %v4603
        %v4605 = vrot.slane %v4492, 3
        %v4606 = vsel %vm4317, %v4603, %v4605
        %v4607 = vrot.slane %v4493, 3
        %v4608 = vrot.slane %v4494, 3
        %v4609 = vsel %vm4317, %v4607, %v4608
        %v4610 = vrot.slane %v4495, 3
        %v4611 = vsel %vm4317, %v4608, %v4610
        %v4612 = vrot.slane %v4496, 3
        %v4613 = vrot.slane %v4497, 3
        %v4614 = vsel %vm4317, %v4612, %v4613
        %v4615 = vrot.slane %v4498, 3
        %v4616 = vsel %vm4317, %v4613, %v4615
        %v4617 = vrot.slane %v4499, 3
        %v4618 = vrot.slane %v4500, 3
        %v4619 = vsel %vm4317, %v4617, %v4618
        %v4620 = vrot.slane %v4501, 3
        %v4621 = vsel %vm4317, %v4618, %v4620
        %v4622 = vrot.slane %v4502, 3
        %v4623 = vrot.slane %v4503, 3
        %v4624 = vsel %vm4317, %v4622, %v4623
        %v4625 = vrot.slane %v4504, 3
        %v4626 = vsel %vm4317, %v4623, %v4625
        %v4627 = vrot.slane %v4505, 3
        %v4628 = vrot.slane %v4506, 3
        %v4629 = vsel %vm4317, %v4627, %v4628
        %v4630 = vrot.slane %v4507, 3
        %v4631 = vsel %vm4317, %v4628, %v4630
        %v4632 = vrot.slane %v4508, 3
        %v4633 = vrot.slane %v4509, 3
        %v4634 = vsel %vm4317, %v4632, %v4633
        %v4635 = vrot.slane %v4510, 3
        %v4636 = vsel %vm4317, %v4633, %v4635
        %v4637 = vrot.slane %v4511, 3
        %v4638 = vrot.slane %v4512, 3
        %v4639 = vsel %vm4317, %v4637, %v4638
        %v4640 = vrot.slane %v4513, 3
        %v4641 = vsel %vm4317, %v4638, %v4640
        %v4674 = vadd.f32 %v4430, %v4564
        %v4675 = vadd.f32 %v4431, %v4566
        %v4676 = vadd.f32 %v4432, %v4569
        %v4677 = vadd.f32 %v4433, %v4571
        %v4678 = vadd.f32 %v4434, %v4574
        %v4679 = vadd.f32 %v4435, %v4576
        %v4680 = vadd.f32 %v4436, %v4579
        %v4681 = vadd.f32 %v4437, %v4581
        %v4682 = vadd.f32 %v4438, %v4584
        %v4683 = vadd.f32 %v4439, %v4586
        %v4684 = vadd.f32 %v4440, %v4589
        %v4685 = vadd.f32 %v4441, %v4591
        %v4686 = vadd.f32 %v4442, %v4594
        %v4687 = vadd.f32 %v4443, %v4596
        %v4688 = vadd.f32 %v4444, %v4599
        %v4689 = vadd.f32 %v4445, %v4601
        %v4690 = vadd.f32 %v4446, %v4604
        %v4691 = vadd.f32 %v4447, %v4606
        %v4692 = vadd.f32 %v4448, %v4609
        %v4693 = vadd.f32 %v4449, %v4611
        %v4694 = vadd.f32 %v4450, %v4614
        %v4695 = vadd.f32 %v4451, %v4616
        %v4696 = vadd.f32 %v4452, %v4619
        %v4697 = vadd.f32 %v4453, %v4621
        %v4698 = vadd.f32 %v4454, %v4624
        %v4699 = vadd.f32 %v4455, %v4626
        %v4700 = vadd.f32 %v4456, %v4629
        %v4701 = vadd.f32 %v4457, %v4631
        %v4702 = vadd.f32 %v4458, %v4634
        %v4703 = vadd.f32 %v4459, %v4636
        %v4704 = vadd.f32 %v4460, %v4639
        %v4705 = vadd.f32 %v4461, %v4641
        %v4706 = vlaneseq
        %v4707 = vshrl.u32 %v4706, 7
        %v4708 = vsub.s32 3, %v4707
        %v4709 = vrot.slane %v318, %v4708
        %v4710 = vmul.f32 %v256, %v4709
        %v4711 = vmul.f32 %v257, %v4709
        %v4712 = vmul.f32 %v258, %v4709
        %v4713 = vmul.f32 %v259, %v4709
        %v4714 = vmul.f32 %v260, %v4709
        %v4715 = vmul.f32 %v261, %v4709
        %v4716 = vmul.f32 %v262, %v4709
        %v4717 = vmul.f32 %v263, %v4709
        %v4718 = vmul.f32 %v264, %v4709
        %v4719 = vmul.f32 %v265, %v4709
        %v4720 = vmul.f32 %v266, %v4709
        %v4721 = vmul.f32 %v267, %v4709
        %v4722 = vmul.f32 %v268, %v4709
        %v4723 = vmul.f32 %v269, %v4709
        %v4724 = vmul.f32 %v270, %v4709
        %v4725 = vmul.f32 %v271, %v4709
        %v4726 = vmul.f32 %v272, %v4709
        %v4727 = vmul.f32 %v273, %v4709
        %v4728 = vmul.f32 %v274, %v4709
        %v4729 = vmul.f32 %v275, %v4709
        %v4730 = vmul.f32 %v276, %v4709
        %v4731 = vmul.f32 %v277, %v4709
        %v4732 = vmul.f32 %v278, %v4709
        %v4733 = vmul.f32 %v279, %v4709
        %v4734 = vmul.f32 %v280, %v4709
        %v4735 = vmul.f32 %v281, %v4709
        %v4736 = vmul.f32 %v282, %v4709
        %v4737 = vmul.f32 %v283, %v4709
        %v4738 = vmul.f32 %v284, %v4709
        %v4739 = vmul.f32 %v285, %v4709
        %v4740 = vmul.f32 %v286, %v4709
        %v4741 = vmul.f32 %v287, %v4709
        %v4742 = vmul.f32 %v288, %v4709
        %v4743 = vmul.f32 %v289, %v4709
        %v4744 = vmul.f32 %v290, %v4709
        %v4745 = vmul.f32 %v291, %v4709
        %v4746 = vmul.f32 %v292, %v4709
        %v4747 = vmul.f32 %v293, %v4709
        %v4748 = vmul.f32 %v294, %v4709
        %v4749 = vmul.f32 %v295, %v4709
        %v4750 = vmul.f32 %v296, %v4709
        %v4751 = vmul.f32 %v297, %v4709
        %v4752 = vmul.f32 %v298, %v4709
        %v4753 = vmul.f32 %v299, %v4709
        %v4754 = vmul.f32 %v300, %v4709
        %v4755 = vmul.f32 %v301, %v4709
        %v4756 = vmul.f32 %v302, %v4709
        %v4757 = vmul.f32 %v303, %v4709
        %v4806 = vrot.slane %v4710, 3
        %v4807 = vrot.slane %v4711, 3
        %v4808 = vsel %vm4317, %v4806, %v4807
        %v4809 = vrot.slane %v4712, 3
        %v4810 = vsel %vm4317, %v4807, %v4809
        %v4811 = vrot.slane %v4713, 3
        %v4812 = vrot.slane %v4714, 3
        %v4813 = vsel %vm4317, %v4811, %v4812
        %v4814 = vrot.slane %v4715, 3
        %v4815 = vsel %vm4317, %v4812, %v4814
        %v4816 = vrot.slane %v4716, 3
        %v4817 = vrot.slane %v4717, 3
        %v4818 = vsel %vm4317, %v4816, %v4817
        %v4819 = vrot.slane %v4718, 3
        %v4820 = vsel %vm4317, %v4817, %v4819
        %v4821 = vrot.slane %v4719, 3
        %v4822 = vrot.slane %v4720, 3
        %v4823 = vsel %vm4317, %v4821, %v4822
        %v4824 = vrot.slane %v4721, 3
        %v4825 = vsel %vm4317, %v4822, %v4824
        %v4826 = vrot.slane %v4722, 3
        %v4827 = vrot.slane %v4723, 3
        %v4828 = vsel %vm4317, %v4826, %v4827
        %v4829 = vrot.slane %v4724, 3
        %v4830 = vsel %vm4317, %v4827, %v4829
        %v4831 = vrot.slane %v4725, 3
        %v4832 = vrot.slane %v4726, 3
        %v4833 = vsel %vm4317, %v4831, %v4832
        %v4834 = vrot.slane %v4727, 3
        %v4835 = vsel %vm4317, %v4832, %v4834
        %v4836 = vrot.slane %v4728, 3
        %v4837 = vrot.slane %v4729, 3
        %v4838 = vsel %vm4317, %v4836, %v4837
        %v4839 = vrot.slane %v4730, 3
        %v4840 = vsel %vm4317, %v4837, %v4839
        %v4841 = vrot.slane %v4731, 3
        %v4842 = vrot.slane %v4732, 3
        %v4843 = vsel %vm4317, %v4841, %v4842
        %v4844 = vrot.slane %v4733, 3
        %v4845 = vsel %vm4317, %v4842, %v4844
        %v4846 = vrot.slane %v4734, 3
        %v4847 = vrot.slane %v4735, 3
        %v4848 = vsel %vm4317, %v4846, %v4847
        %v4849 = vrot.slane %v4736, 3
        %v4850 = vsel %vm4317, %v4847, %v4849
        %v4851 = vrot.slane %v4737, 3
        %v4852 = vrot.slane %v4738, 3
        %v4853 = vsel %vm4317, %v4851, %v4852
        %v4854 = vrot.slane %v4739, 3
        %v4855 = vsel %vm4317, %v4852, %v4854
        %v4856 = vrot.slane %v4740, 3
        %v4857 = vrot.slane %v4741, 3
        %v4858 = vsel %vm4317, %v4856, %v4857
        %v4859 = vrot.slane %v4742, 3
        %v4860 = vsel %vm4317, %v4857, %v4859
        %v4861 = vrot.slane %v4743, 3
        %v4862 = vrot.slane %v4744, 3
        %v4863 = vsel %vm4317, %v4861, %v4862
        %v4864 = vrot.slane %v4745, 3
        %v4865 = vsel %vm4317, %v4862, %v4864
        %v4866 = vrot.slane %v4746, 3
        %v4867 = vrot.slane %v4747, 3
        %v4868 = vsel %vm4317, %v4866, %v4867
        %v4869 = vrot.slane %v4748, 3
        %v4870 = vsel %vm4317, %v4867, %v4869
        %v4871 = vrot.slane %v4749, 3
        %v4872 = vrot.slane %v4750, 3
        %v4873 = vsel %vm4317, %v4871, %v4872
        %v4874 = vrot.slane %v4751, 3
        %v4875 = vsel %vm4317, %v4872, %v4874
        %v4876 = vrot.slane %v4752, 3
        %v4877 = vrot.slane %v4753, 3
        %v4878 = vsel %vm4317, %v4876, %v4877
        %v4879 = vrot.slane %v4754, 3
        %v4880 = vsel %vm4317, %v4877, %v4879
        %v4881 = vrot.slane %v4755, 3
        %v4882 = vrot.slane %v4756, 3
        %v4883 = vsel %vm4317, %v4881, %v4882
        %v4884 = vrot.slane %v4757, 3
        %v4885 = vsel %vm4317, %v4882, %v4884
        %v4918 = vadd.f32 %v4674, %v4808
        %v4919 = vadd.f32 %v4675, %v4810
        %v4920 = vadd.f32 %v4676, %v4813
        %v4921 = vadd.f32 %v4677, %v4815
        %v4922 = vadd.f32 %v4678, %v4818
        %v4923 = vadd.f32 %v4679, %v4820
        %v4924 = vadd.f32 %v4680, %v4823
        %v4925 = vadd.f32 %v4681, %v4825
        %v4926 = vadd.f32 %v4682, %v4828
        %v4927 = vadd.f32 %v4683, %v4830
        %v4928 = vadd.f32 %v4684, %v4833
        %v4929 = vadd.f32 %v4685, %v4835
        %v4930 = vadd.f32 %v4686, %v4838
        %v4931 = vadd.f32 %v4687, %v4840
        %v4932 = vadd.f32 %v4688, %v4843
        %v4933 = vadd.f32 %v4689, %v4845
        %v4934 = vadd.f32 %v4690, %v4848
        %v4935 = vadd.f32 %v4691, %v4850
        %v4936 = vadd.f32 %v4692, %v4853
        %v4937 = vadd.f32 %v4693, %v4855
        %v4938 = vadd.f32 %v4694, %v4858
        %v4939 = vadd.f32 %v4695, %v4860
        %v4940 = vadd.f32 %v4696, %v4863
        %v4941 = vadd.f32 %v4697, %v4865
        %v4942 = vadd.f32 %v4698, %v4868
        %v4943 = vadd.f32 %v4699, %v4870
        %v4944 = vadd.f32 %v4700, %v4873
        %v4945 = vadd.f32 %v4701, %v4875
        %v4946 = vadd.f32 %v4702, %v4878
        %v4947 = vadd.f32 %v4703, %v4880
        %v4948 = vadd.f32 %v4704, %v4883
        %v4949 = vadd.f32 %v4705, %v4885
        %v4950 = vlaneseq
        %v4951 = vshrl.u32 %v4950, 7
        %v4952 = vsub.s32 3, %v4951
        %v4953 = vrot.slane %v319, %v4952
        %v4954 = vmul.f32 %v259, %v4953
        %v4955 = vmul.f32 %v260, %v4953
        %v4956 = vmul.f32 %v261, %v4953
        %v4957 = vmul.f32 %v262, %v4953
        %v4958 = vmul.f32 %v263, %v4953
        %v4959 = vmul.f32 %v264, %v4953
        %v4960 = vmul.f32 %v265, %v4953
        %v4961 = vmul.f32 %v266, %v4953
        %v4962 = vmul.f32 %v267, %v4953
        %v4963 = vmul.f32 %v268, %v4953
        %v4964 = vmul.f32 %v269, %v4953
        %v4965 = vmul.f32 %v270, %v4953
        %v4966 = vmul.f32 %v271, %v4953
        %v4967 = vmul.f32 %v272, %v4953
        %v4968 = vmul.f32 %v273, %v4953
        %v4969 = vmul.f32 %v274, %v4953
        %v4970 = vmul.f32 %v275, %v4953
        %v4971 = vmul.f32 %v276, %v4953
        %v4972 = vmul.f32 %v277, %v4953
        %v4973 = vmul.f32 %v278, %v4953
        %v4974 = vmul.f32 %v279, %v4953
        %v4975 = vmul.f32 %v280, %v4953
        %v4976 = vmul.f32 %v281, %v4953
        %v4977 = vmul.f32 %v282, %v4953
        %v4978 = vmul.f32 %v283, %v4953
        %v4979 = vmul.f32 %v284, %v4953
        %v4980 = vmul.f32 %v285, %v4953
        %v4981 = vmul.f32 %v286, %v4953
        %v4982 = vmul.f32 %v287, %v4953
        %v4983 = vmul.f32 %v288, %v4953
        %v4984 = vmul.f32 %v289, %v4953
        %v4985 = vmul.f32 %v290, %v4953
        %v4986 = vmul.f32 %v291, %v4953
        %v4987 = vmul.f32 %v292, %v4953
        %v4988 = vmul.f32 %v293, %v4953
        %v4989 = vmul.f32 %v294, %v4953
        %v4990 = vmul.f32 %v295, %v4953
        %v4991 = vmul.f32 %v296, %v4953
        %v4992 = vmul.f32 %v297, %v4953
        %v4993 = vmul.f32 %v298, %v4953
        %v4994 = vmul.f32 %v299, %v4953
        %v4995 = vmul.f32 %v300, %v4953
        %v4996 = vmul.f32 %v301, %v4953
        %v4997 = vmul.f32 %v302, %v4953
        %v4998 = vmul.f32 %v303, %v4953
        %v4999 = vmul.f32 %v304, %v4953
        %v5000 = vmul.f32 %v305, %v4953
        %v5001 = vmul.f32 %v306, %v4953
        %v5050 = vrot.slane %v4954, 3
        %v5051 = vrot.slane %v4955, 3
        %v5052 = vsel %vm4317, %v5050, %v5051
        %v5053 = vrot.slane %v4956, 3
        %v5054 = vsel %vm4317, %v5051, %v5053
        %v5055 = vrot.slane %v4957, 3
        %v5056 = vrot.slane %v4958, 3
        %v5057 = vsel %vm4317, %v5055, %v5056
        %v5058 = vrot.slane %v4959, 3
        %v5059 = vsel %vm4317, %v5056, %v5058
        %v5060 = vrot.slane %v4960, 3
        %v5061 = vrot.slane %v4961, 3
        %v5062 = vsel %vm4317, %v5060, %v5061
        %v5063 = vrot.slane %v4962, 3
        %v5064 = vsel %vm4317, %v5061, %v5063
        %v5065 = vrot.slane %v4963, 3
        %v5066 = vrot.slane %v4964, 3
        %v5067 = vsel %vm4317, %v5065, %v5066
        %v5068 = vrot.slane %v4965, 3
        %v5069 = vsel %vm4317, %v5066, %v5068
        %v5070 = vrot.slane %v4966, 3
        %v5071 = vrot.slane %v4967, 3
        %v5072 = vsel %vm4317, %v5070, %v5071
        %v5073 = vrot.slane %v4968, 3
        %v5074 = vsel %vm4317, %v5071, %v5073
        %v5075 = vrot.slane %v4969, 3
        %v5076 = vrot.slane %v4970, 3
        %v5077 = vsel %vm4317, %v5075, %v5076
        %v5078 = vrot.slane %v4971, 3
        %v5079 = vsel %vm4317, %v5076, %v5078
        %v5080 = vrot.slane %v4972, 3
        %v5081 = vrot.slane %v4973, 3
        %v5082 = vsel %vm4317, %v5080, %v5081
        %v5083 = vrot.slane %v4974, 3
        %v5084 = vsel %vm4317, %v5081, %v5083
        %v5085 = vrot.slane %v4975, 3
        %v5086 = vrot.slane %v4976, 3
        %v5087 = vsel %vm4317, %v5085, %v5086
        %v5088 = vrot.slane %v4977, 3
        %v5089 = vsel %vm4317, %v5086, %v5088
        %v5090 = vrot.slane %v4978, 3
        %v5091 = vrot.slane %v4979, 3
        %v5092 = vsel %vm4317, %v5090, %v5091
        %v5093 = vrot.slane %v4980, 3
        %v5094 = vsel %vm4317, %v5091, %v5093
        %v5095 = vrot.slane %v4981, 3
        %v5096 = vrot.slane %v4982, 3
        %v5097 = vsel %vm4317, %v5095, %v5096
        %v5098 = vrot.slane %v4983, 3
        %v5099 = vsel %vm4317, %v5096, %v5098
        %v5100 = vrot.slane %v4984, 3
        %v5101 = vrot.slane %v4985, 3
        %v5102 = vsel %vm4317, %v5100, %v5101
        %v5103 = vrot.slane %v4986, 3
        %v5104 = vsel %vm4317, %v5101, %v5103
        %v5105 = vrot.slane %v4987, 3
        %v5106 = vrot.slane %v4988, 3
        %v5107 = vsel %vm4317, %v5105, %v5106
        %v5108 = vrot.slane %v4989, 3
        %v5109 = vsel %vm4317, %v5106, %v5108
        %v5110 = vrot.slane %v4990, 3
        %v5111 = vrot.slane %v4991, 3
        %v5112 = vsel %vm4317, %v5110, %v5111
        %v5113 = vrot.slane %v4992, 3
        %v5114 = vsel %vm4317, %v5111, %v5113
        %v5115 = vrot.slane %v4993, 3
        %v5116 = vrot.slane %v4994, 3
        %v5117 = vsel %vm4317, %v5115, %v5116
        %v5118 = vrot.slane %v4995, 3
        %v5119 = vsel %vm4317, %v5116, %v5118
        %v5120 = vrot.slane %v4996, 3
        %v5121 = vrot.slane %v4997, 3
        %v5122 = vsel %vm4317, %v5120, %v5121
        %v5123 = vrot.slane %v4998, 3
        %v5124 = vsel %vm4317, %v5121, %v5123
        %v5125 = vrot.slane %v4999, 3
        %v5126 = vrot.slane %v5000, 3
        %v5127 = vsel %vm4317, %v5125, %v5126
        %v5128 = vrot.slane %v5001, 3
        %v5129 = vsel %vm4317, %v5126, %v5128
        %v5162 = vadd.f32 %v4918, %v5052
        %v5163 = vadd.f32 %v4919, %v5054
        %v5164 = vadd.f32 %v4920, %v5057
        %v5165 = vadd.f32 %v4921, %v5059
        %v5166 = vadd.f32 %v4922, %v5062
        %v5167 = vadd.f32 %v4923, %v5064
        %v5168 = vadd.f32 %v4924, %v5067
        %v5169 = vadd.f32 %v4925, %v5069
        %v5170 = vadd.f32 %v4926, %v5072
        %v5171 = vadd.f32 %v4927, %v5074
        %v5172 = vadd.f32 %v4928, %v5077
        %v5173 = vadd.f32 %v4929, %v5079
        %v5174 = vadd.f32 %v4930, %v5082
        %v5175 = vadd.f32 %v4931, %v5084
        %v5176 = vadd.f32 %v4932, %v5087
        %v5177 = vadd.f32 %v4933, %v5089
        %v5178 = vadd.f32 %v4934, %v5092
        %v5179 = vadd.f32 %v4935, %v5094
        %v5180 = vadd.f32 %v4936, %v5097
        %v5181 = vadd.f32 %v4937, %v5099
        %v5182 = vadd.f32 %v4938, %v5102
        %v5183 = vadd.f32 %v4939, %v5104
        %v5184 = vadd.f32 %v4940, %v5107
        %v5185 = vadd.f32 %v4941, %v5109
        %v5186 = vadd.f32 %v4942, %v5112
        %v5187 = vadd.f32 %v4943, %v5114
        %v5188 = vadd.f32 %v4944, %v5117
        %v5189 = vadd.f32 %v4945, %v5119
        %v5190 = vadd.f32 %v4946, %v5122
        %v5191 = vadd.f32 %v4947, %v5124
        %v5192 = vadd.f32 %v4948, %v5127
        %v5193 = vadd.f32 %v4949, %v5129
        %v5194 = vlaneseq
        %v5195 = vshrl.u32 %v5194, 7
        %v5196 = vsub.s32 3, %v5195
        %v5197 = vrot.slane %v320, %v5196
        %v5198 = vmul.f32 %v262, %v5197
        %v5199 = vmul.f32 %v263, %v5197
        %v5200 = vmul.f32 %v264, %v5197
        %v5201 = vmul.f32 %v265, %v5197
        %v5202 = vmul.f32 %v266, %v5197
        %v5203 = vmul.f32 %v267, %v5197
        %v5204 = vmul.f32 %v268, %v5197
        %v5205 = vmul.f32 %v269, %v5197
        %v5206 = vmul.f32 %v270, %v5197
        %v5207 = vmul.f32 %v271, %v5197
        %v5208 = vmul.f32 %v272, %v5197
        %v5209 = vmul.f32 %v273, %v5197
        %v5210 = vmul.f32 %v274, %v5197
        %v5211 = vmul.f32 %v275, %v5197
        %v5212 = vmul.f32 %v276, %v5197
        %v5213 = vmul.f32 %v277, %v5197
        %v5214 = vmul.f32 %v278, %v5197
        %v5215 = vmul.f32 %v279, %v5197
        %v5216 = vmul.f32 %v280, %v5197
        %v5217 = vmul.f32 %v281, %v5197
        %v5218 = vmul.f32 %v282, %v5197
        %v5219 = vmul.f32 %v283, %v5197
        %v5220 = vmul.f32 %v284, %v5197
        %v5221 = vmul.f32 %v285, %v5197
        %v5222 = vmul.f32 %v286, %v5197
        %v5223 = vmul.f32 %v287, %v5197
        %v5224 = vmul.f32 %v288, %v5197
        %v5225 = vmul.f32 %v289, %v5197
        %v5226 = vmul.f32 %v290, %v5197
        %v5227 = vmul.f32 %v291, %v5197
        %v5228 = vmul.f32 %v292, %v5197
        %v5229 = vmul.f32 %v293, %v5197
        %v5230 = vmul.f32 %v294, %v5197
        %v5231 = vmul.f32 %v295, %v5197
        %v5232 = vmul.f32 %v296, %v5197
        %v5233 = vmul.f32 %v297, %v5197
        %v5234 = vmul.f32 %v298, %v5197
        %v5235 = vmul.f32 %v299, %v5197
        %v5236 = vmul.f32 %v300, %v5197
        %v5237 = vmul.f32 %v301, %v5197
        %v5238 = vmul.f32 %v302, %v5197
        %v5239 = vmul.f32 %v303, %v5197
        %v5240 = vmul.f32 %v304, %v5197
        %v5241 = vmul.f32 %v305, %v5197
        %v5242 = vmul.f32 %v306, %v5197
        %v5243 = vmul.f32 %v307, %v5197
        %v5244 = vmul.f32 %v308, %v5197
        %v5245 = vmul.f32 %v309, %v5197
        %v5294 = vrot.slane %v5198, 3
        %v5295 = vrot.slane %v5199, 3
        %v5296 = vsel %vm4317, %v5294, %v5295
        %v5297 = vrot.slane %v5200, 3
        %v5298 = vsel %vm4317, %v5295, %v5297
        %v5299 = vrot.slane %v5201, 3
        %v5300 = vrot.slane %v5202, 3
        %v5301 = vsel %vm4317, %v5299, %v5300
        %v5302 = vrot.slane %v5203, 3
        %v5303 = vsel %vm4317, %v5300, %v5302
        %v5304 = vrot.slane %v5204, 3
        %v5305 = vrot.slane %v5205, 3
        %v5306 = vsel %vm4317, %v5304, %v5305
        %v5307 = vrot.slane %v5206, 3
        %v5308 = vsel %vm4317, %v5305, %v5307
        %v5309 = vrot.slane %v5207, 3
        %v5310 = vrot.slane %v5208, 3
        %v5311 = vsel %vm4317, %v5309, %v5310
        %v5312 = vrot.slane %v5209, 3
        %v5313 = vsel %vm4317, %v5310, %v5312
        %v5314 = vrot.slane %v5210, 3
        %v5315 = vrot.slane %v5211, 3
        %v5316 = vsel %vm4317, %v5314, %v5315
        %v5317 = vrot.slane %v5212, 3
        %v5318 = vsel %vm4317, %v5315, %v5317
        %v5319 = vrot.slane %v5213, 3
        %v5320 = vrot.slane %v5214, 3
        %v5321 = vsel %vm4317, %v5319, %v5320
        %v5322 = vrot.slane %v5215, 3
        %v5323 = vsel %vm4317, %v5320, %v5322
        %v5324 = vrot.slane %v5216, 3
        %v5325 = vrot.slane %v5217, 3
        %v5326 = vsel %vm4317, %v5324, %v5325
        %v5327 = vrot.slane %v5218, 3
        %v5328 = vsel %vm4317, %v5325, %v5327
        %v5329 = vrot.slane %v5219, 3
        %v5330 = vrot.slane %v5220, 3
        %v5331 = vsel %vm4317, %v5329, %v5330
        %v5332 = vrot.slane %v5221, 3
        %v5333 = vsel %vm4317, %v5330, %v5332
        %v5334 = vrot.slane %v5222, 3
        %v5335 = vrot.slane %v5223, 3
        %v5336 = vsel %vm4317, %v5334, %v5335
        %v5337 = vrot.slane %v5224, 3
        %v5338 = vsel %vm4317, %v5335, %v5337
        %v5339 = vrot.slane %v5225, 3
        %v5340 = vrot.slane %v5226, 3
        %v5341 = vsel %vm4317, %v5339, %v5340
        %v5342 = vrot.slane %v5227, 3
        %v5343 = vsel %vm4317, %v5340, %v5342
        %v5344 = vrot.slane %v5228, 3
        %v5345 = vrot.slane %v5229, 3
        %v5346 = vsel %vm4317, %v5344, %v5345
        %v5347 = vrot.slane %v5230, 3
        %v5348 = vsel %vm4317, %v5345, %v5347
        %v5349 = vrot.slane %v5231, 3
        %v5350 = vrot.slane %v5232, 3
        %v5351 = vsel %vm4317, %v5349, %v5350
        %v5352 = vrot.slane %v5233, 3
        %v5353 = vsel %vm4317, %v5350, %v5352
        %v5354 = vrot.slane %v5234, 3
        %v5355 = vrot.slane %v5235, 3
        %v5356 = vsel %vm4317, %v5354, %v5355
        %v5357 = vrot.slane %v5236, 3
        %v5358 = vsel %vm4317, %v5355, %v5357
        %v5359 = vrot.slane %v5237, 3
        %v5360 = vrot.slane %v5238, 3
        %v5361 = vsel %vm4317, %v5359, %v5360
        %v5362 = vrot.slane %v5239, 3
        %v5363 = vsel %vm4317, %v5360, %v5362
        %v5364 = vrot.slane %v5240, 3
        %v5365 = vrot.slane %v5241, 3
        %v5366 = vsel %vm4317, %v5364, %v5365
        %v5367 = vrot.slane %v5242, 3
        %v5368 = vsel %vm4317, %v5365, %v5367
        %v5369 = vrot.slane %v5243, 3
        %v5370 = vrot.slane %v5244, 3
        %v5371 = vsel %vm4317, %v5369, %v5370
        %v5372 = vrot.slane %v5245, 3
        %v5373 = vsel %vm4317, %v5370, %v5372
        %v5406 = vadd.f32 %v5162, %v5296
        %v5407 = vadd.f32 %v5163, %v5298
        %v5408 = vadd.f32 %v5164, %v5301
        %v5409 = vadd.f32 %v5165, %v5303
        %v5410 = vadd.f32 %v5166, %v5306
        %v5411 = vadd.f32 %v5167, %v5308
        %v5412 = vadd.f32 %v5168, %v5311
        %v5413 = vadd.f32 %v5169, %v5313
        %v5414 = vadd.f32 %v5170, %v5316
        %v5415 = vadd.f32 %v5171, %v5318
        %v5416 = vadd.f32 %v5172, %v5321
        %v5417 = vadd.f32 %v5173, %v5323
        %v5418 = vadd.f32 %v5174, %v5326
        %v5419 = vadd.f32 %v5175, %v5328
        %v5420 = vadd.f32 %v5176, %v5331
        %v5421 = vadd.f32 %v5177, %v5333
        %v5422 = vadd.f32 %v5178, %v5336
        %v5423 = vadd.f32 %v5179, %v5338
        %v5424 = vadd.f32 %v5180, %v5341
        %v5425 = vadd.f32 %v5181, %v5343
        %v5426 = vadd.f32 %v5182, %v5346
        %v5427 = vadd.f32 %v5183, %v5348
        %v5428 = vadd.f32 %v5184, %v5351
        %v5429 = vadd.f32 %v5185, %v5353
        %v5430 = vadd.f32 %v5186, %v5356
        %v5431 = vadd.f32 %v5187, %v5358
        %v5432 = vadd.f32 %v5188, %v5361
        %v5433 = vadd.f32 %v5189, %v5363
        %v5434 = vadd.f32 %v5190, %v5366
        %v5435 = vadd.f32 %v5191, %v5368
        %v5436 = vadd.f32 %v5192, %v5371
        %v5437 = vadd.f32 %v5193, %v5373
        %v5438 = vlaneseq
        %v5439 = vshrl.u32 %v5438, 7
        %v5440 = vsub.s32 3, %v5439
        %v5441 = vrot.slane %v321, %v5440
        %v5442 = vmul.f32 %v265, %v5441
        %v5443 = vmul.f32 %v266, %v5441
        %v5444 = vmul.f32 %v267, %v5441
        %v5445 = vmul.f32 %v268, %v5441
        %v5446 = vmul.f32 %v269, %v5441
        %v5447 = vmul.f32 %v270, %v5441
        %v5448 = vmul.f32 %v271, %v5441
        %v5449 = vmul.f32 %v272, %v5441
        %v5450 = vmul.f32 %v273, %v5441
        %v5451 = vmul.f32 %v274, %v5441
        %v5452 = vmul.f32 %v275, %v5441
        %v5453 = vmul.f32 %v276, %v5441
        %v5454 = vmul.f32 %v277, %v5441
        %v5455 = vmul.f32 %v278, %v5441
        %v5456 = vmul.f32 %v279, %v5441
        %v5457 = vmul.f32 %v280, %v5441
        %v5458 = vmul.f32 %v281, %v5441
        %v5459 = vmul.f32 %v282, %v5441
        %v5460 = vmul.f32 %v283, %v5441
        %v5461 = vmul.f32 %v284, %v5441
        %v5462 = vmul.f32 %v285, %v5441
        %v5463 = vmul.f32 %v286, %v5441
        %v5464 = vmul.f32 %v287, %v5441
        %v5465 = vmul.f32 %v288, %v5441
        %v5466 = vmul.f32 %v289, %v5441
        %v5467 = vmul.f32 %v290, %v5441
        %v5468 = vmul.f32 %v291, %v5441
        %v5469 = vmul.f32 %v292, %v5441
        %v5470 = vmul.f32 %v293, %v5441
        %v5471 = vmul.f32 %v294, %v5441
        %v5472 = vmul.f32 %v295, %v5441
        %v5473 = vmul.f32 %v296, %v5441
        %v5474 = vmul.f32 %v297, %v5441
        %v5475 = vmul.f32 %v298, %v5441
        %v5476 = vmul.f32 %v299, %v5441
        %v5477 = vmul.f32 %v300, %v5441
        %v5478 = vmul.f32 %v301, %v5441
        %v5479 = vmul.f32 %v302, %v5441
        %v5480 = vmul.f32 %v303, %v5441
        %v5481 = vmul.f32 %v304, %v5441
        %v5482 = vmul.f32 %v305, %v5441
        %v5483 = vmul.f32 %v306, %v5441
        %v5484 = vmul.f32 %v307, %v5441
        %v5485 = vmul.f32 %v308, %v5441
        %v5486 = vmul.f32 %v309, %v5441
        %v5487 = vmul.f32 %v310, %v5441
        %v5488 = vmul.f32 %v311, %v5441
        %v5489 = vmul.f32 %v312, %v5441
        %v5538 = vrot.slane %v5442, 3
        %v5539 = vrot.slane %v5443, 3
        %v5540 = vsel %vm4317, %v5538, %v5539
        %v5541 = vrot.slane %v5444, 3
        %v5542 = vsel %vm4317, %v5539, %v5541
        %v5543 = vrot.slane %v5445, 3
        %v5544 = vrot.slane %v5446, 3
        %v5545 = vsel %vm4317, %v5543, %v5544
        %v5546 = vrot.slane %v5447, 3
        %v5547 = vsel %vm4317, %v5544, %v5546
        %v5548 = vrot.slane %v5448, 3
        %v5549 = vrot.slane %v5449, 3
        %v5550 = vsel %vm4317, %v5548, %v5549
        %v5551 = vrot.slane %v5450, 3
        %v5552 = vsel %vm4317, %v5549, %v5551
        %v5553 = vrot.slane %v5451, 3
        %v5554 = vrot.slane %v5452, 3
        %v5555 = vsel %vm4317, %v5553, %v5554
        %v5556 = vrot.slane %v5453, 3
        %v5557 = vsel %vm4317, %v5554, %v5556
        %v5558 = vrot.slane %v5454, 3
        %v5559 = vrot.slane %v5455, 3
        %v5560 = vsel %vm4317, %v5558, %v5559
        %v5561 = vrot.slane %v5456, 3
        %v5562 = vsel %vm4317, %v5559, %v5561
        %v5563 = vrot.slane %v5457, 3
        %v5564 = vrot.slane %v5458, 3
        %v5565 = vsel %vm4317, %v5563, %v5564
        %v5566 = vrot.slane %v5459, 3
        %v5567 = vsel %vm4317, %v5564, %v5566
        %v5568 = vrot.slane %v5460, 3
        %v5569 = vrot.slane %v5461, 3
        %v5570 = vsel %vm4317, %v5568, %v5569
        %v5571 = vrot.slane %v5462, 3
        %v5572 = vsel %vm4317, %v5569, %v5571
        %v5573 = vrot.slane %v5463, 3
        %v5574 = vrot.slane %v5464, 3
        %v5575 = vsel %vm4317, %v5573, %v5574
        %v5576 = vrot.slane %v5465, 3
        %v5577 = vsel %vm4317, %v5574, %v5576
        %v5578 = vrot.slane %v5466, 3
        %v5579 = vrot.slane %v5467, 3
        %v5580 = vsel %vm4317, %v5578, %v5579
        %v5581 = vrot.slane %v5468, 3
        %v5582 = vsel %vm4317, %v5579, %v5581
        %v5583 = vrot.slane %v5469, 3
        %v5584 = vrot.slane %v5470, 3
        %v5585 = vsel %vm4317, %v5583, %v5584
        %v5586 = vrot.slane %v5471, 3
        %v5587 = vsel %vm4317, %v5584, %v5586
        %v5588 = vrot.slane %v5472, 3
        %v5589 = vrot.slane %v5473, 3
        %v5590 = vsel %vm4317, %v5588, %v5589
        %v5591 = vrot.slane %v5474, 3
        %v5592 = vsel %vm4317, %v5589, %v5591
        %v5593 = vrot.slane %v5475, 3
        %v5594 = vrot.slane %v5476, 3
        %v5595 = vsel %vm4317, %v5593, %v5594
        %v5596 = vrot.slane %v5477, 3
        %v5597 = vsel %vm4317, %v5594, %v5596
        %v5598 = vrot.slane %v5478, 3
        %v5599 = vrot.slane %v5479, 3
        %v5600 = vsel %vm4317, %v5598, %v5599
        %v5601 = vrot.slane %v5480, 3
        %v5602 = vsel %vm4317, %v5599, %v5601
        %v5603 = vrot.slane %v5481, 3
        %v5604 = vrot.slane %v5482, 3
        %v5605 = vsel %vm4317, %v5603, %v5604
        %v5606 = vrot.slane %v5483, 3
        %v5607 = vsel %vm4317, %v5604, %v5606
        %v5608 = vrot.slane %v5484, 3
        %v5609 = vrot.slane %v5485, 3
        %v5610 = vsel %vm4317, %v5608, %v5609
        %v5611 = vrot.slane %v5486, 3
        %v5612 = vsel %vm4317, %v5609, %v5611
        %v5613 = vrot.slane %v5487, 3
        %v5614 = vrot.slane %v5488, 3
        %v5615 = vsel %vm4317, %v5613, %v5614
        %v5616 = vrot.slane %v5489, 3
        %v5617 = vsel %vm4317, %v5614, %v5616
        %v5650 = vadd.f32 %v5406, %v5540
        %v5651 = vadd.f32 %v5407, %v5542
        %v5652 = vadd.f32 %v5408, %v5545
        %v5653 = vadd.f32 %v5409, %v5547
        %v5654 = vadd.f32 %v5410, %v5550
        %v5655 = vadd.f32 %v5411, %v5552
        %v5656 = vadd.f32 %v5412, %v5555
        %v5657 = vadd.f32 %v5413, %v5557
        %v5658 = vadd.f32 %v5414, %v5560
        %v5659 = vadd.f32 %v5415, %v5562
        %v5660 = vadd.f32 %v5416, %v5565
        %v5661 = vadd.f32 %v5417, %v5567
        %v5662 = vadd.f32 %v5418, %v5570
        %v5663 = vadd.f32 %v5419, %v5572
        %v5664 = vadd.f32 %v5420, %v5575
        %v5665 = vadd.f32 %v5421, %v5577
        %v5666 = vadd.f32 %v5422, %v5580
        %v5667 = vadd.f32 %v5423, %v5582
        %v5668 = vadd.f32 %v5424, %v5585
        %v5669 = vadd.f32 %v5425, %v5587
        %v5670 = vadd.f32 %v5426, %v5590
        %v5671 = vadd.f32 %v5427, %v5592
        %v5672 = vadd.f32 %v5428, %v5595
        %v5673 = vadd.f32 %v5429, %v5597
        %v5674 = vadd.f32 %v5430, %v5600
        %v5675 = vadd.f32 %v5431, %v5602
        %v5676 = vadd.f32 %v5432, %v5605
        %v5677 = vadd.f32 %v5433, %v5607
        %v5678 = vadd.f32 %v5434, %v5610
        %v5679 = vadd.f32 %v5435, %v5612
        %v5680 = vadd.f32 %v5436, %v5615
        %v5681 = vadd.f32 %v5437, %v5617
        %v5682 = vlaneseq
        %v5683 = vshrl.u32 %v5682, 7
        %v5684 = vsub.s32 3, %v5683
        %v5685 = vrot.slane %v322, %v5684
        %v5686 = vmul.f32 %v268, %v5685
        %v5687 = vmul.f32 %v269, %v5685
        %v5688 = vmul.f32 %v270, %v5685
        %v5689 = vmul.f32 %v271, %v5685
        %v5690 = vmul.f32 %v272, %v5685
        %v5691 = vmul.f32 %v273, %v5685
        %v5692 = vmul.f32 %v274, %v5685
        %v5693 = vmul.f32 %v275, %v5685
        %v5694 = vmul.f32 %v276, %v5685
        %v5695 = vmul.f32 %v277, %v5685
        %v5696 = vmul.f32 %v278, %v5685
        %v5697 = vmul.f32 %v279, %v5685
        %v5698 = vmul.f32 %v280, %v5685
        %v5699 = vmul.f32 %v281, %v5685
        %v5700 = vmul.f32 %v282, %v5685
        %v5701 = vmul.f32 %v283, %v5685
        %v5702 = vmul.f32 %v284, %v5685
        %v5703 = vmul.f32 %v285, %v5685
        %v5704 = vmul.f32 %v286, %v5685
        %v5705 = vmul.f32 %v287, %v5685
        %v5706 = vmul.f32 %v288, %v5685
        %v5707 = vmul.f32 %v289, %v5685
        %v5708 = vmul.f32 %v290, %v5685
        %v5709 = vmul.f32 %v291, %v5685
        %v5710 = vmul.f32 %v292, %v5685
        %v5711 = vmul.f32 %v293, %v5685
        %v5712 = vmul.f32 %v294, %v5685
        %v5713 = vmul.f32 %v295, %v5685
        %v5714 = vmul.f32 %v296, %v5685
        %v5715 = vmul.f32 %v297, %v5685
        %v5716 = vmul.f32 %v298, %v5685
        %v5717 = vmul.f32 %v299, %v5685
        %v5718 = vmul.f32 %v300, %v5685
        %v5719 = vmul.f32 %v301, %v5685
        %v5720 = vmul.f32 %v302, %v5685
        %v5721 = vmul.f32 %v303, %v5685
        %v5722 = vmul.f32 %v304, %v5685
        %v5723 = vmul.f32 %v305, %v5685
        %v5724 = vmul.f32 %v306, %v5685
        %v5725 = vmul.f32 %v307, %v5685
        %v5726 = vmul.f32 %v308, %v5685
        %v5727 = vmul.f32 %v309, %v5685
        %v5728 = vmul.f32 %v310, %v5685
        %v5729 = vmul.f32 %v311, %v5685
        %v5730 = vmul.f32 %v312, %v5685
        %v5731 = vmul.f32 %v313, %v5685
        %v5732 = vmul.f32 %v314, %v5685
        %v5733 = vmul.f32 %v315, %v5685
        %v5782 = vrot.slane %v5686, 3
        %v5783 = vrot.slane %v5687, 3
        %v5784 = vsel %vm4317, %v5782, %v5783
        %v5785 = vrot.slane %v5688, 3
        %v5786 = vsel %vm4317, %v5783, %v5785
        %v5787 = vrot.slane %v5689, 3
        %v5788 = vrot.slane %v5690, 3
        %v5789 = vsel %vm4317, %v5787, %v5788
        %v5790 = vrot.slane %v5691, 3
        %v5791 = vsel %vm4317, %v5788, %v5790
        %v5792 = vrot.slane %v5692, 3
        %v5793 = vrot.slane %v5693, 3
        %v5794 = vsel %vm4317, %v5792, %v5793
        %v5795 = vrot.slane %v5694, 3
        %v5796 = vsel %vm4317, %v5793, %v5795
        %v5797 = vrot.slane %v5695, 3
        %v5798 = vrot.slane %v5696, 3
        %v5799 = vsel %vm4317, %v5797, %v5798
        %v5800 = vrot.slane %v5697, 3
        %v5801 = vsel %vm4317, %v5798, %v5800
        %v5802 = vrot.slane %v5698, 3
        %v5803 = vrot.slane %v5699, 3
        %v5804 = vsel %vm4317, %v5802, %v5803
        %v5805 = vrot.slane %v5700, 3
        %v5806 = vsel %vm4317, %v5803, %v5805
        %v5807 = vrot.slane %v5701, 3
        %v5808 = vrot.slane %v5702, 3
        %v5809 = vsel %vm4317, %v5807, %v5808
        %v5810 = vrot.slane %v5703, 3
        %v5811 = vsel %vm4317, %v5808, %v5810
        %v5812 = vrot.slane %v5704, 3
        %v5813 = vrot.slane %v5705, 3
        %v5814 = vsel %vm4317, %v5812, %v5813
        %v5815 = vrot.slane %v5706, 3
        %v5816 = vsel %vm4317, %v5813, %v5815
        %v5817 = vrot.slane %v5707, 3
        %v5818 = vrot.slane %v5708, 3
        %v5819 = vsel %vm4317, %v5817, %v5818
        %v5820 = vrot.slane %v5709, 3
        %v5821 = vsel %vm4317, %v5818, %v5820
        %v5822 = vrot.slane %v5710, 3
        %v5823 = vrot.slane %v5711, 3
        %v5824 = vsel %vm4317, %v5822, %v5823
        %v5825 = vrot.slane %v5712, 3
        %v5826 = vsel %vm4317, %v5823, %v5825
        %v5827 = vrot.slane %v5713, 3
        %v5828 = vrot.slane %v5714, 3
        %v5829 = vsel %vm4317, %v5827, %v5828
        %v5830 = vrot.slane %v5715, 3
        %v5831 = vsel %vm4317, %v5828, %v5830
        %v5832 = vrot.slane %v5716, 3
        %v5833 = vrot.slane %v5717, 3
        %v5834 = vsel %vm4317, %v5832, %v5833
        %v5835 = vrot.slane %v5718, 3
        %v5836 = vsel %vm4317, %v5833, %v5835
        %v5837 = vrot.slane %v5719, 3
        %v5838 = vrot.slane %v5720, 3
        %v5839 = vsel %vm4317, %v5837, %v5838
        %v5840 = vrot.slane %v5721, 3
        %v5841 = vsel %vm4317, %v5838, %v5840
        %v5842 = vrot.slane %v5722, 3
        %v5843 = vrot.slane %v5723, 3
        %v5844 = vsel %vm4317, %v5842, %v5843
        %v5845 = vrot.slane %v5724, 3
        %v5846 = vsel %vm4317, %v5843, %v5845
        %v5847 = vrot.slane %v5725, 3
        %v5848 = vrot.slane %v5726, 3
        %v5849 = vsel %vm4317, %v5847, %v5848
        %v5850 = vrot.slane %v5727, 3
        %v5851 = vsel %vm4317, %v5848, %v5850
        %v5852 = vrot.slane %v5728, 3
        %v5853 = vrot.slane %v5729, 3
        %v5854 = vsel %vm4317, %v5852, %v5853
        %v5855 = vrot.slane %v5730, 3
        %v5856 = vsel %vm4317, %v5853, %v5855
        %v5857 = vrot.slane %v5731, 3
        %v5858 = vrot.slane %v5732, 3
        %v5859 = vsel %vm4317, %v5857, %v5858
        %v5860 = vrot.slane %v5733, 3
        %v5861 = vsel %vm4317, %v5858, %v5860
        %v5894 = vadd.f32 %v5650, %v5784
        %v5895 = vadd.f32 %v5651, %v5786
        %v5896 = vadd.f32 %v5652, %v5789
        %v5897 = vadd.f32 %v5653, %v5791
        %v5898 = vadd.f32 %v5654, %v5794
        %v5899 = vadd.f32 %v5655, %v5796
        %v5900 = vadd.f32 %v5656, %v5799
        %v5901 = vadd.f32 %v5657, %v5801
        %v5902 = vadd.f32 %v5658, %v5804
        %v5903 = vadd.f32 %v5659, %v5806
        %v5904 = vadd.f32 %v5660, %v5809
        %v5905 = vadd.f32 %v5661, %v5811
        %v5906 = vadd.f32 %v5662, %v5814
        %v5907 = vadd.f32 %v5663, %v5816
        %v5908 = vadd.f32 %v5664, %v5819
        %v5909 = vadd.f32 %v5665, %v5821
        %v5910 = vadd.f32 %v5666, %v5824
        %v5911 = vadd.f32 %v5667, %v5826
        %v5912 = vadd.f32 %v5668, %v5829
        %v5913 = vadd.f32 %v5669, %v5831
        %v5914 = vadd.f32 %v5670, %v5834
        %v5915 = vadd.f32 %v5671, %v5836
        %v5916 = vadd.f32 %v5672, %v5839
        %v5917 = vadd.f32 %v5673, %v5841
        %v5918 = vadd.f32 %v5674, %v5844
        %v5919 = vadd.f32 %v5675, %v5846
        %v5920 = vadd.f32 %v5676, %v5849
        %v5921 = vadd.f32 %v5677, %v5851
        %v5922 = vadd.f32 %v5678, %v5854
        %v5923 = vadd.f32 %v5679, %v5856
        %v5924 = vadd.f32 %v5680, %v5859
        %v5925 = vadd.f32 %v5681, %v5861
        %v5926 = vlaneseq
        %v5927 = vshrl.u32 %v5926, 7
        %v5928 = vsub.s32 4, %v5927
        %v5929 = vrot.slane %v316, %v5928
        %v5930 = vmul.f32 %v250, %v5929
        %v5931 = vmul.f32 %v251, %v5929
        %v5932 = vmul.f32 %v252, %v5929
        %v5933 = vmul.f32 %v253, %v5929
        %v5934 = vmul.f32 %v254, %v5929
        %v5935 = vmul.f32 %v255, %v5929
        %v5936 = vmul.f32 %v256, %v5929
        %v5937 = vmul.f32 %v257, %v5929
        %v5938 = vmul.f32 %v258, %v5929
        %v5939 = vmul.f32 %v259, %v5929
        %v5940 = vmul.f32 %v260, %v5929
        %v5941 = vmul.f32 %v261, %v5929
        %v5942 = vmul.f32 %v262, %v5929
        %v5943 = vmul.f32 %v263, %v5929
        %v5944 = vmul.f32 %v264, %v5929
        %v5945 = vmul.f32 %v265, %v5929
        %v5946 = vmul.f32 %v266, %v5929
        %v5947 = vmul.f32 %v267, %v5929
        %v5948 = vmul.f32 %v268, %v5929
        %v5949 = vmul.f32 %v269, %v5929
        %v5950 = vmul.f32 %v270, %v5929
        %v5951 = vmul.f32 %v271, %v5929
        %v5952 = vmul.f32 %v272, %v5929
        %v5953 = vmul.f32 %v273, %v5929
        %v5954 = vmul.f32 %v274, %v5929
        %v5955 = vmul.f32 %v275, %v5929
        %v5956 = vmul.f32 %v276, %v5929
        %v5957 = vmul.f32 %v277, %v5929
        %v5958 = vmul.f32 %v278, %v5929
        %v5959 = vmul.f32 %v279, %v5929
        %v5960 = vmul.f32 %v280, %v5929
        %v5961 = vmul.f32 %v281, %v5929
        %v5962 = vmul.f32 %v282, %v5929
        %v5963 = vmul.f32 %v283, %v5929
        %v5964 = vmul.f32 %v284, %v5929
        %v5965 = vmul.f32 %v285, %v5929
        %v5966 = vmul.f32 %v286, %v5929
        %v5967 = vmul.f32 %v287, %v5929
        %v5968 = vmul.f32 %v288, %v5929
        %v5969 = vmul.f32 %v289, %v5929
        %v5970 = vmul.f32 %v290, %v5929
        %v5971 = vmul.f32 %v291, %v5929
        %v5972 = vmul.f32 %v292, %v5929
        %v5973 = vmul.f32 %v293, %v5929
        %v5974 = vmul.f32 %v294, %v5929
        %v5975 = vmul.f32 %v295, %v5929
        %v5976 = vmul.f32 %v296, %v5929
        %v5977 = vmul.f32 %v297, %v5929
        %vm6026 = vcmask 1043456
        %v6027 = vrot.slane %v5930, 4
        %v6028 = vrot.slane %v5931, 4
        %v6029 = vsel %vm6026, %v6027, %v6028
        %v6030 = vrot.slane %v5932, 4
        %v6031 = vsel %vm6026, %v6028, %v6030
        %v6032 = vrot.slane %v5933, 4
        %v6033 = vrot.slane %v5934, 4
        %v6034 = vsel %vm6026, %v6032, %v6033
        %v6035 = vrot.slane %v5935, 4
        %v6036 = vsel %vm6026, %v6033, %v6035
        %v6037 = vrot.slane %v5936, 4
        %v6038 = vrot.slane %v5937, 4
        %v6039 = vsel %vm6026, %v6037, %v6038
        %v6040 = vrot.slane %v5938, 4
        %v6041 = vsel %vm6026, %v6038, %v6040
        %v6042 = vrot.slane %v5939, 4
        %v6043 = vrot.slane %v5940, 4
        %v6044 = vsel %vm6026, %v6042, %v6043
        %v6045 = vrot.slane %v5941, 4
        %v6046 = vsel %vm6026, %v6043, %v6045
        %v6047 = vrot.slane %v5942, 4
        %v6048 = vrot.slane %v5943, 4
        %v6049 = vsel %vm6026, %v6047, %v6048
        %v6050 = vrot.slane %v5944, 4
        %v6051 = vsel %vm6026, %v6048, %v6050
        %v6052 = vrot.slane %v5945, 4
        %v6053 = vrot.slane %v5946, 4
        %v6054 = vsel %vm6026, %v6052, %v6053
        %v6055 = vrot.slane %v5947, 4
        %v6056 = vsel %vm6026, %v6053, %v6055
        %v6057 = vrot.slane %v5948, 4
        %v6058 = vrot.slane %v5949, 4
        %v6059 = vsel %vm6026, %v6057, %v6058
        %v6060 = vrot.slane %v5950, 4
        %v6061 = vsel %vm6026, %v6058, %v6060
        %v6062 = vrot.slane %v5951, 4
        %v6063 = vrot.slane %v5952, 4
        %v6064 = vsel %vm6026, %v6062, %v6063
        %v6065 = vrot.slane %v5953, 4
        %v6066 = vsel %vm6026, %v6063, %v6065
        %v6067 = vrot.slane %v5954, 4
        %v6068 = vrot.slane %v5955, 4
        %v6069 = vsel %vm6026, %v6067, %v6068
        %v6070 = vrot.slane %v5956, 4
        %v6071 = vsel %vm6026, %v6068, %v6070
        %v6072 = vrot.slane %v5957, 4
        %v6073 = vrot.slane %v5958, 4
        %v6074 = vsel %vm6026, %v6072, %v6073
        %v6075 = vrot.slane %v5959, 4
        %v6076 = vsel %vm6026, %v6073, %v6075
        %v6077 = vrot.slane %v5960, 4
        %v6078 = vrot.slane %v5961, 4
        %v6079 = vsel %vm6026, %v6077, %v6078
        %v6080 = vrot.slane %v5962, 4
        %v6081 = vsel %vm6026, %v6078, %v6080
        %v6082 = vrot.slane %v5963, 4
        %v6083 = vrot.slane %v5964, 4
        %v6084 = vsel %vm6026, %v6082, %v6083
        %v6085 = vrot.slane %v5965, 4
        %v6086 = vsel %vm6026, %v6083, %v6085
        %v6087 = vrot.slane %v5966, 4
        %v6088 = vrot.slane %v5967, 4
        %v6089 = vsel %vm6026, %v6087, %v6088
        %v6090 = vrot.slane %v5968, 4
        %v6091 = vsel %vm6026, %v6088, %v6090
        %v6092 = vrot.slane %v5969, 4
        %v6093 = vrot.slane %v5970, 4
        %v6094 = vsel %vm6026, %v6092, %v6093
        %v6095 = vrot.slane %v5971, 4
        %v6096 = vsel %vm6026, %v6093, %v6095
        %v6097 = vrot.slane %v5972, 4
        %v6098 = vrot.slane %v5973, 4
        %v6099 = vsel %vm6026, %v6097, %v6098
        %v6100 = vrot.slane %v5974, 4
        %v6101 = vsel %vm6026, %v6098, %v6100
        %v6102 = vrot.slane %v5975, 4
        %v6103 = vrot.slane %v5976, 4
        %v6104 = vsel %vm6026, %v6102, %v6103
        %v6105 = vrot.slane %v5977, 4
        %v6106 = vsel %vm6026, %v6103, %v6105
        %v6139 = vadd.f32 %v5894, %v6029
        %v6140 = vadd.f32 %v5895, %v6031
        %v6141 = vadd.f32 %v5896, %v6034
        %v6142 = vadd.f32 %v5897, %v6036
        %v6143 = vadd.f32 %v5898, %v6039
        %v6144 = vadd.f32 %v5899, %v6041
        %v6145 = vadd.f32 %v5900, %v6044
        %v6146 = vadd.f32 %v5901, %v6046
        %v6147 = vadd.f32 %v5902, %v6049
        %v6148 = vadd.f32 %v5903, %v6051
        %v6149 = vadd.f32 %v5904, %v6054
        %v6150 = vadd.f32 %v5905, %v6056
        %v6151 = vadd.f32 %v5906, %v6059
        %v6152 = vadd.f32 %v5907, %v6061
        %v6153 = vadd.f32 %v5908, %v6064
        %v6154 = vadd.f32 %v5909, %v6066
        %v6155 = vadd.f32 %v5910, %v6069
        %v6156 = vadd.f32 %v5911, %v6071
        %v6157 = vadd.f32 %v5912, %v6074
        %v6158 = vadd.f32 %v5913, %v6076
        %v6159 = vadd.f32 %v5914, %v6079
        %v6160 = vadd.f32 %v5915, %v6081
        %v6161 = vadd.f32 %v5916, %v6084
        %v6162 = vadd.f32 %v5917, %v6086
        %v6163 = vadd.f32 %v5918, %v6089
        %v6164 = vadd.f32 %v5919, %v6091
        %v6165 = vadd.f32 %v5920, %v6094
        %v6166 = vadd.f32 %v5921, %v6096
        %v6167 = vadd.f32 %v5922, %v6099
        %v6168 = vadd.f32 %v5923, %v6101
        %v6169 = vadd.f32 %v5924, %v6104
        %v6170 = vadd.f32 %v5925, %v6106
        %v6171 = vlaneseq
        %v6172 = vshrl.u32 %v6171, 7
        %v6173 = vsub.s32 4, %v6172
        %v6174 = vrot.slane %v317, %v6173
        %v6175 = vmul.f32 %v253, %v6174
        %v6176 = vmul.f32 %v254, %v6174
        %v6177 = vmul.f32 %v255, %v6174
        %v6178 = vmul.f32 %v256, %v6174
        %v6179 = vmul.f32 %v257, %v6174
        %v6180 = vmul.f32 %v258, %v6174
        %v6181 = vmul.f32 %v259, %v6174
        %v6182 = vmul.f32 %v260, %v6174
        %v6183 = vmul.f32 %v261, %v6174
        %v6184 = vmul.f32 %v262, %v6174
        %v6185 = vmul.f32 %v263, %v6174
        %v6186 = vmul.f32 %v264, %v6174
        %v6187 = vmul.f32 %v265, %v6174
        %v6188 = vmul.f32 %v266, %v6174
        %v6189 = vmul.f32 %v267, %v6174
        %v6190 = vmul.f32 %v268, %v6174
        %v6191 = vmul.f32 %v269, %v6174
        %v6192 = vmul.f32 %v270, %v6174
        %v6193 = vmul.f32 %v271, %v6174
        %v6194 = vmul.f32 %v272, %v6174
        %v6195 = vmul.f32 %v273, %v6174
        %v6196 = vmul.f32 %v274, %v6174
        %v6197 = vmul.f32 %v275, %v6174
        %v6198 = vmul.f32 %v276, %v6174
        %v6199 = vmul.f32 %v277, %v6174
        %v6200 = vmul.f32 %v278, %v6174
        %v6201 = vmul.f32 %v279, %v6174
        %v6202 = vmul.f32 %v280, %v6174
        %v6203 = vmul.f32 %v281, %v6174
        %v6204 = vmul.f32 %v282, %v6174
        %v6205 = vmul.f32 %v283, %v6174
        %v6206 = vmul.f32 %v284, %v6174
        %v6207 = vmul.f32 %v285, %v6174
        %v6208 = vmul.f32 %v286, %v6174
        %v6209 = vmul.f32 %v287, %v6174
        %v6210 = vmul.f32 %v288, %v6174
        %v6211 = vmul.f32 %v289, %v6174
        %v6212 = vmul.f32 %v290, %v6174
        %v6213 = vmul.f32 %v291, %v6174
        %v6214 = vmul.f32 %v292, %v6174
        %v6215 = vmul.f32 %v293, %v6174
        %v6216 = vmul.f32 %v294, %v6174
        %v6217 = vmul.f32 %v295, %v6174
        %v6218 = vmul.f32 %v296, %v6174
        %v6219 = vmul.f32 %v297, %v6174
        %v6220 = vmul.f32 %v298, %v6174
        %v6221 = vmul.f32 %v299, %v6174
        %v6222 = vmul.f32 %v300, %v6174
        %v6271 = vrot.slane %v6175, 4
        %v6272 = vrot.slane %v6176, 4
        %v6273 = vsel %vm6026, %v6271, %v6272
        %v6274 = vrot.slane %v6177, 4
        %v6275 = vsel %vm6026, %v6272, %v6274
        %v6276 = vrot.slane %v6178, 4
        %v6277 = vrot.slane %v6179, 4
        %v6278 = vsel %vm6026, %v6276, %v6277
        %v6279 = vrot.slane %v6180, 4
        %v6280 = vsel %vm6026, %v6277, %v6279
        %v6281 = vrot.slane %v6181, 4
        %v6282 = vrot.slane %v6182, 4
        %v6283 = vsel %vm6026, %v6281, %v6282
        %v6284 = vrot.slane %v6183, 4
        %v6285 = vsel %vm6026, %v6282, %v6284
        %v6286 = vrot.slane %v6184, 4
        %v6287 = vrot.slane %v6185, 4
        %v6288 = vsel %vm6026, %v6286, %v6287
        %v6289 = vrot.slane %v6186, 4
        %v6290 = vsel %vm6026, %v6287, %v6289
        %v6291 = vrot.slane %v6187, 4
        %v6292 = vrot.slane %v6188, 4
        %v6293 = vsel %vm6026, %v6291, %v6292
        %v6294 = vrot.slane %v6189, 4
        %v6295 = vsel %vm6026, %v6292, %v6294
        %v6296 = vrot.slane %v6190, 4
        %v6297 = vrot.slane %v6191, 4
        %v6298 = vsel %vm6026, %v6296, %v6297
        %v6299 = vrot.slane %v6192, 4
        %v6300 = vsel %vm6026, %v6297, %v6299
        %v6301 = vrot.slane %v6193, 4
        %v6302 = vrot.slane %v6194, 4
        %v6303 = vsel %vm6026, %v6301, %v6302
        %v6304 = vrot.slane %v6195, 4
        %v6305 = vsel %vm6026, %v6302, %v6304
        %v6306 = vrot.slane %v6196, 4
        %v6307 = vrot.slane %v6197, 4
        %v6308 = vsel %vm6026, %v6306, %v6307
        %v6309 = vrot.slane %v6198, 4
        %v6310 = vsel %vm6026, %v6307, %v6309
        %v6311 = vrot.slane %v6199, 4
        %v6312 = vrot.slane %v6200, 4
        %v6313 = vsel %vm6026, %v6311, %v6312
        %v6314 = vrot.slane %v6201, 4
        %v6315 = vsel %vm6026, %v6312, %v6314
        %v6316 = vrot.slane %v6202, 4
        %v6317 = vrot.slane %v6203, 4
        %v6318 = vsel %vm6026, %v6316, %v6317
        %v6319 = vrot.slane %v6204, 4
        %v6320 = vsel %vm6026, %v6317, %v6319
        %v6321 = vrot.slane %v6205, 4
        %v6322 = vrot.slane %v6206, 4
        %v6323 = vsel %vm6026, %v6321, %v6322
        %v6324 = vrot.slane %v6207, 4
        %v6325 = vsel %vm6026, %v6322, %v6324
        %v6326 = vrot.slane %v6208, 4
        %v6327 = vrot.slane %v6209, 4
        %v6328 = vsel %vm6026, %v6326, %v6327
        %v6329 = vrot.slane %v6210, 4
        %v6330 = vsel %vm6026, %v6327, %v6329
        %v6331 = vrot.slane %v6211, 4
        %v6332 = vrot.slane %v6212, 4
        %v6333 = vsel %vm6026, %v6331, %v6332
        %v6334 = vrot.slane %v6213, 4
        %v6335 = vsel %vm6026, %v6332, %v6334
        %v6336 = vrot.slane %v6214, 4
        %v6337 = vrot.slane %v6215, 4
        %v6338 = vsel %vm6026, %v6336, %v6337
        %v6339 = vrot.slane %v6216, 4
        %v6340 = vsel %vm6026, %v6337, %v6339
        %v6341 = vrot.slane %v6217, 4
        %v6342 = vrot.slane %v6218, 4
        %v6343 = vsel %vm6026, %v6341, %v6342
        %v6344 = vrot.slane %v6219, 4
        %v6345 = vsel %vm6026, %v6342, %v6344
        %v6346 = vrot.slane %v6220, 4
        %v6347 = vrot.slane %v6221, 4
        %v6348 = vsel %vm6026, %v6346, %v6347
        %v6349 = vrot.slane %v6222, 4
        %v6350 = vsel %vm6026, %v6347, %v6349
        %v6383 = vadd.f32 %v6139, %v6273
        %v6384 = vadd.f32 %v6140, %v6275
        %v6385 = vadd.f32 %v6141, %v6278
        %v6386 = vadd.f32 %v6142, %v6280
        %v6387 = vadd.f32 %v6143, %v6283
        %v6388 = vadd.f32 %v6144, %v6285
        %v6389 = vadd.f32 %v6145, %v6288
        %v6390 = vadd.f32 %v6146, %v6290
        %v6391 = vadd.f32 %v6147, %v6293
        %v6392 = vadd.f32 %v6148, %v6295
        %v6393 = vadd.f32 %v6149, %v6298
        %v6394 = vadd.f32 %v6150, %v6300
        %v6395 = vadd.f32 %v6151, %v6303
        %v6396 = vadd.f32 %v6152, %v6305
        %v6397 = vadd.f32 %v6153, %v6308
        %v6398 = vadd.f32 %v6154, %v6310
        %v6399 = vadd.f32 %v6155, %v6313
        %v6400 = vadd.f32 %v6156, %v6315
        %v6401 = vadd.f32 %v6157, %v6318
        %v6402 = vadd.f32 %v6158, %v6320
        %v6403 = vadd.f32 %v6159, %v6323
        %v6404 = vadd.f32 %v6160, %v6325
        %v6405 = vadd.f32 %v6161, %v6328
        %v6406 = vadd.f32 %v6162, %v6330
        %v6407 = vadd.f32 %v6163, %v6333
        %v6408 = vadd.f32 %v6164, %v6335
        %v6409 = vadd.f32 %v6165, %v6338
        %v6410 = vadd.f32 %v6166, %v6340
        %v6411 = vadd.f32 %v6167, %v6343
        %v6412 = vadd.f32 %v6168, %v6345
        %v6413 = vadd.f32 %v6169, %v6348
        %v6414 = vadd.f32 %v6170, %v6350
        %v6415 = vlaneseq
        %v6416 = vshrl.u32 %v6415, 7
        %v6417 = vsub.s32 4, %v6416
        %v6418 = vrot.slane %v318, %v6417
        %v6419 = vmul.f32 %v256, %v6418
        %v6420 = vmul.f32 %v257, %v6418
        %v6421 = vmul.f32 %v258, %v6418
        %v6422 = vmul.f32 %v259, %v6418
        %v6423 = vmul.f32 %v260, %v6418
        %v6424 = vmul.f32 %v261, %v6418
        %v6425 = vmul.f32 %v262, %v6418
        %v6426 = vmul.f32 %v263, %v6418
        %v6427 = vmul.f32 %v264, %v6418
        %v6428 = vmul.f32 %v265, %v6418
        %v6429 = vmul.f32 %v266, %v6418
        %v6430 = vmul.f32 %v267, %v6418
        %v6431 = vmul.f32 %v268, %v6418
        %v6432 = vmul.f32 %v269, %v6418
        %v6433 = vmul.f32 %v270, %v6418
        %v6434 = vmul.f32 %v271, %v6418
        %v6435 = vmul.f32 %v272, %v6418
        %v6436 = vmul.f32 %v273, %v6418
        %v6437 = vmul.f32 %v274, %v6418
        %v6438 = vmul.f32 %v275, %v6418
        %v6439 = vmul.f32 %v276, %v6418
        %v6440 = vmul.f32 %v277, %v6418
        %v6441 = vmul.f32 %v278, %v6418
        %v6442 = vmul.f32 %v279, %v6418
        %v6443 = vmul.f32 %v280, %v6418
        %v6444 = vmul.f32 %v281, %v6418
        %v6445 = vmul.f32 %v282, %v6418
        %v6446 = vmul.f32 %v283, %v6418
        %v6447 = vmul.f32 %v284, %v6418
        %v6448 = vmul.f32 %v285, %v6418
        %v6449 = vmul.f32 %v286, %v6418
        %v6450 = vmul.f32 %v287, %v6418
        %v6451 = vmul.f32 %v288, %v6418
        %v6452 = vmul.f32 %v289, %v6418
        %v6453 = vmul.f32 %v290, %v6418
        %v6454 = vmul.f32 %v291, %v6418
        %v6455 = vmul.f32 %v292, %v6418
        %v6456 = vmul.f32 %v293, %v6418
        %v6457 = vmul.f32 %v294, %v6418
        %v6458 = vmul.f32 %v295, %v6418
        %v6459 = vmul.f32 %v296, %v6418
        %v6460 = vmul.f32 %v297, %v6418
        %v6461 = vmul.f32 %v298, %v6418
        %v6462 = vmul.f32 %v299, %v6418
        %v6463 = vmul.f32 %v300, %v6418
        %v6464 = vmul.f32 %v301, %v6418
        %v6465 = vmul.f32 %v302, %v6418
        %v6466 = vmul.f32 %v303, %v6418
        %v6515 = vrot.slane %v6419, 4
        %v6516 = vrot.slane %v6420, 4
        %v6517 = vsel %vm6026, %v6515, %v6516
        %v6518 = vrot.slane %v6421, 4
        %v6519 = vsel %vm6026, %v6516, %v6518
        %v6520 = vrot.slane %v6422, 4
        %v6521 = vrot.slane %v6423, 4
        %v6522 = vsel %vm6026, %v6520, %v6521
        %v6523 = vrot.slane %v6424, 4
        %v6524 = vsel %vm6026, %v6521, %v6523
        %v6525 = vrot.slane %v6425, 4
        %v6526 = vrot.slane %v6426, 4
        %v6527 = vsel %vm6026, %v6525, %v6526
        %v6528 = vrot.slane %v6427, 4
        %v6529 = vsel %vm6026, %v6526, %v6528
        %v6530 = vrot.slane %v6428, 4
        %v6531 = vrot.slane %v6429, 4
        %v6532 = vsel %vm6026, %v6530, %v6531
        %v6533 = vrot.slane %v6430, 4
        %v6534 = vsel %vm6026, %v6531, %v6533
        %v6535 = vrot.slane %v6431, 4
        %v6536 = vrot.slane %v6432, 4
        %v6537 = vsel %vm6026, %v6535, %v6536
        %v6538 = vrot.slane %v6433, 4
        %v6539 = vsel %vm6026, %v6536, %v6538
        %v6540 = vrot.slane %v6434, 4
        %v6541 = vrot.slane %v6435, 4
        %v6542 = vsel %vm6026, %v6540, %v6541
        %v6543 = vrot.slane %v6436, 4
        %v6544 = vsel %vm6026, %v6541, %v6543
        %v6545 = vrot.slane %v6437, 4
        %v6546 = vrot.slane %v6438, 4
        %v6547 = vsel %vm6026, %v6545, %v6546
        %v6548 = vrot.slane %v6439, 4
        %v6549 = vsel %vm6026, %v6546, %v6548
        %v6550 = vrot.slane %v6440, 4
        %v6551 = vrot.slane %v6441, 4
        %v6552 = vsel %vm6026, %v6550, %v6551
        %v6553 = vrot.slane %v6442, 4
        %v6554 = vsel %vm6026, %v6551, %v6553
        %v6555 = vrot.slane %v6443, 4
        %v6556 = vrot.slane %v6444, 4
        %v6557 = vsel %vm6026, %v6555, %v6556
        %v6558 = vrot.slane %v6445, 4
        %v6559 = vsel %vm6026, %v6556, %v6558
        %v6560 = vrot.slane %v6446, 4
        %v6561 = vrot.slane %v6447, 4
        %v6562 = vsel %vm6026, %v6560, %v6561
        %v6563 = vrot.slane %v6448, 4
        %v6564 = vsel %vm6026, %v6561, %v6563
        %v6565 = vrot.slane %v6449, 4
        %v6566 = vrot.slane %v6450, 4
        %v6567 = vsel %vm6026, %v6565, %v6566
        %v6568 = vrot.slane %v6451, 4
        %v6569 = vsel %vm6026, %v6566, %v6568
        %v6570 = vrot.slane %v6452, 4
        %v6571 = vrot.slane %v6453, 4
        %v6572 = vsel %vm6026, %v6570, %v6571
        %v6573 = vrot.slane %v6454, 4
        %v6574 = vsel %vm6026, %v6571, %v6573
        %v6575 = vrot.slane %v6455, 4
        %v6576 = vrot.slane %v6456, 4
        %v6577 = vsel %vm6026, %v6575, %v6576
        %v6578 = vrot.slane %v6457, 4
        %v6579 = vsel %vm6026, %v6576, %v6578
        %v6580 = vrot.slane %v6458, 4
        %v6581 = vrot.slane %v6459, 4
        %v6582 = vsel %vm6026, %v6580, %v6581
        %v6583 = vrot.slane %v6460, 4
        %v6584 = vsel %vm6026, %v6581, %v6583
        %v6585 = vrot.slane %v6461, 4
        %v6586 = vrot.slane %v6462, 4
        %v6587 = vsel %vm6026, %v6585, %v6586
        %v6588 = vrot.slane %v6463, 4
        %v6589 = vsel %vm6026, %v6586, %v6588
        %v6590 = vrot.slane %v6464, 4
        %v6591 = vrot.slane %v6465, 4
        %v6592 = vsel %vm6026, %v6590, %v6591
        %v6593 = vrot.slane %v6466, 4
        %v6594 = vsel %vm6026, %v6591, %v6593
        %v6627 = vadd.f32 %v6383, %v6517
        %v6628 = vadd.f32 %v6384, %v6519
        %v6629 = vadd.f32 %v6385, %v6522
        %v6630 = vadd.f32 %v6386, %v6524
        %v6631 = vadd.f32 %v6387, %v6527
        %v6632 = vadd.f32 %v6388, %v6529
        %v6633 = vadd.f32 %v6389, %v6532
        %v6634 = vadd.f32 %v6390, %v6534
        %v6635 = vadd.f32 %v6391, %v6537
        %v6636 = vadd.f32 %v6392, %v6539
        %v6637 = vadd.f32 %v6393, %v6542
        %v6638 = vadd.f32 %v6394, %v6544
        %v6639 = vadd.f32 %v6395, %v6547
        %v6640 = vadd.f32 %v6396, %v6549
        %v6641 = vadd.f32 %v6397, %v6552
        %v6642 = vadd.f32 %v6398, %v6554
        %v6643 = vadd.f32 %v6399, %v6557
        %v6644 = vadd.f32 %v6400, %v6559
        %v6645 = vadd.f32 %v6401, %v6562
        %v6646 = vadd.f32 %v6402, %v6564
        %v6647 = vadd.f32 %v6403, %v6567
        %v6648 = vadd.f32 %v6404, %v6569
        %v6649 = vadd.f32 %v6405, %v6572
        %v6650 = vadd.f32 %v6406, %v6574
        %v6651 = vadd.f32 %v6407, %v6577
        %v6652 = vadd.f32 %v6408, %v6579
        %v6653 = vadd.f32 %v6409, %v6582
        %v6654 = vadd.f32 %v6410, %v6584
        %v6655 = vadd.f32 %v6411, %v6587
        %v6656 = vadd.f32 %v6412, %v6589
        %v6657 = vadd.f32 %v6413, %v6592
        %v6658 = vadd.f32 %v6414, %v6594
        %v6659 = vlaneseq
        %v6660 = vshrl.u32 %v6659, 7
        %v6661 = vsub.s32 4, %v6660
        %v6662 = vrot.slane %v319, %v6661
        %v6663 = vmul.f32 %v259, %v6662
        %v6664 = vmul.f32 %v260, %v6662
        %v6665 = vmul.f32 %v261, %v6662
        %v6666 = vmul.f32 %v262, %v6662
        %v6667 = vmul.f32 %v263, %v6662
        %v6668 = vmul.f32 %v264, %v6662
        %v6669 = vmul.f32 %v265, %v6662
        %v6670 = vmul.f32 %v266, %v6662
        %v6671 = vmul.f32 %v267, %v6662
        %v6672 = vmul.f32 %v268, %v6662
        %v6673 = vmul.f32 %v269, %v6662
        %v6674 = vmul.f32 %v270, %v6662
        %v6675 = vmul.f32 %v271, %v6662
        %v6676 = vmul.f32 %v272, %v6662
        %v6677 = vmul.f32 %v273, %v6662
        %v6678 = vmul.f32 %v274, %v6662
        %v6679 = vmul.f32 %v275, %v6662
        %v6680 = vmul.f32 %v276, %v6662
        %v6681 = vmul.f32 %v277, %v6662
        %v6682 = vmul.f32 %v278, %v6662
        %v6683 = vmul.f32 %v279, %v6662
        %v6684 = vmul.f32 %v280, %v6662
        %v6685 = vmul.f32 %v281, %v6662
        %v6686 = vmul.f32 %v282, %v6662
        %v6687 = vmul.f32 %v283, %v6662
        %v6688 = vmul.f32 %v284, %v6662
        %v6689 = vmul.f32 %v285, %v6662
        %v6690 = vmul.f32 %v286, %v6662
        %v6691 = vmul.f32 %v287, %v6662
        %v6692 = vmul.f32 %v288, %v6662
        %v6693 = vmul.f32 %v289, %v6662
        %v6694 = vmul.f32 %v290, %v6662
        %v6695 = vmul.f32 %v291, %v6662
        %v6696 = vmul.f32 %v292, %v6662
        %v6697 = vmul.f32 %v293, %v6662
        %v6698 = vmul.f32 %v294, %v6662
        %v6699 = vmul.f32 %v295, %v6662
        %v6700 = vmul.f32 %v296, %v6662
        %v6701 = vmul.f32 %v297, %v6662
        %v6702 = vmul.f32 %v298, %v6662
        %v6703 = vmul.f32 %v299, %v6662
        %v6704 = vmul.f32 %v300, %v6662
        %v6705 = vmul.f32 %v301, %v6662
        %v6706 = vmul.f32 %v302, %v6662
        %v6707 = vmul.f32 %v303, %v6662
        %v6708 = vmul.f32 %v304, %v6662
        %v6709 = vmul.f32 %v305, %v6662
        %v6710 = vmul.f32 %v306, %v6662
        %v6759 = vrot.slane %v6663, 4
        %v6760 = vrot.slane %v6664, 4
        %v6761 = vsel %vm6026, %v6759, %v6760
        %v6762 = vrot.slane %v6665, 4
        %v6763 = vsel %vm6026, %v6760, %v6762
        %v6764 = vrot.slane %v6666, 4
        %v6765 = vrot.slane %v6667, 4
        %v6766 = vsel %vm6026, %v6764, %v6765
        %v6767 = vrot.slane %v6668, 4
        %v6768 = vsel %vm6026, %v6765, %v6767
        %v6769 = vrot.slane %v6669, 4
        %v6770 = vrot.slane %v6670, 4
        %v6771 = vsel %vm6026, %v6769, %v6770
        %v6772 = vrot.slane %v6671, 4
        %v6773 = vsel %vm6026, %v6770, %v6772
        %v6774 = vrot.slane %v6672, 4
        %v6775 = vrot.slane %v6673, 4
        %v6776 = vsel %vm6026, %v6774, %v6775
        %v6777 = vrot.slane %v6674, 4
        %v6778 = vsel %vm6026, %v6775, %v6777
        %v6779 = vrot.slane %v6675, 4
        %v6780 = vrot.slane %v6676, 4
        %v6781 = vsel %vm6026, %v6779, %v6780
        %v6782 = vrot.slane %v6677, 4
        %v6783 = vsel %vm6026, %v6780, %v6782
        %v6784 = vrot.slane %v6678, 4
        %v6785 = vrot.slane %v6679, 4
        %v6786 = vsel %vm6026, %v6784, %v6785
        %v6787 = vrot.slane %v6680, 4
        %v6788 = vsel %vm6026, %v6785, %v6787
        %v6789 = vrot.slane %v6681, 4
        %v6790 = vrot.slane %v6682, 4
        %v6791 = vsel %vm6026, %v6789, %v6790
        %v6792 = vrot.slane %v6683, 4
        %v6793 = vsel %vm6026, %v6790, %v6792
        %v6794 = vrot.slane %v6684, 4
        %v6795 = vrot.slane %v6685, 4
        %v6796 = vsel %vm6026, %v6794, %v6795
        %v6797 = vrot.slane %v6686, 4
        %v6798 = vsel %vm6026, %v6795, %v6797
        %v6799 = vrot.slane %v6687, 4
        %v6800 = vrot.slane %v6688, 4
        %v6801 = vsel %vm6026, %v6799, %v6800
        %v6802 = vrot.slane %v6689, 4
        %v6803 = vsel %vm6026, %v6800, %v6802
        %v6804 = vrot.slane %v6690, 4
        %v6805 = vrot.slane %v6691, 4
        %v6806 = vsel %vm6026, %v6804, %v6805
        %v6807 = vrot.slane %v6692, 4
        %v6808 = vsel %vm6026, %v6805, %v6807
        %v6809 = vrot.slane %v6693, 4
        %v6810 = vrot.slane %v6694, 4
        %v6811 = vsel %vm6026, %v6809, %v6810
        %v6812 = vrot.slane %v6695, 4
        %v6813 = vsel %vm6026, %v6810, %v6812
        %v6814 = vrot.slane %v6696, 4
        %v6815 = vrot.slane %v6697, 4
        %v6816 = vsel %vm6026, %v6814, %v6815
        %v6817 = vrot.slane %v6698, 4
        %v6818 = vsel %vm6026, %v6815, %v6817
        %v6819 = vrot.slane %v6699, 4
        %v6820 = vrot.slane %v6700, 4
        %v6821 = vsel %vm6026, %v6819, %v6820
        %v6822 = vrot.slane %v6701, 4
        %v6823 = vsel %vm6026, %v6820, %v6822
        %v6824 = vrot.slane %v6702, 4
        %v6825 = vrot.slane %v6703, 4
        %v6826 = vsel %vm6026, %v6824, %v6825
        %v6827 = vrot.slane %v6704, 4
        %v6828 = vsel %vm6026, %v6825, %v6827
        %v6829 = vrot.slane %v6705, 4
        %v6830 = vrot.slane %v6706, 4
        %v6831 = vsel %vm6026, %v6829, %v6830
        %v6832 = vrot.slane %v6707, 4
        %v6833 = vsel %vm6026, %v6830, %v6832
        %v6834 = vrot.slane %v6708, 4
        %v6835 = vrot.slane %v6709, 4
        %v6836 = vsel %vm6026, %v6834, %v6835
        %v6837 = vrot.slane %v6710, 4
        %v6838 = vsel %vm6026, %v6835, %v6837
        %v6871 = vadd.f32 %v6627, %v6761
        %v6872 = vadd.f32 %v6628, %v6763
        %v6873 = vadd.f32 %v6629, %v6766
        %v6874 = vadd.f32 %v6630, %v6768
        %v6875 = vadd.f32 %v6631, %v6771
        %v6876 = vadd.f32 %v6632, %v6773
        %v6877 = vadd.f32 %v6633, %v6776
        %v6878 = vadd.f32 %v6634, %v6778
        %v6879 = vadd.f32 %v6635, %v6781
        %v6880 = vadd.f32 %v6636, %v6783
        %v6881 = vadd.f32 %v6637, %v6786
        %v6882 = vadd.f32 %v6638, %v6788
        %v6883 = vadd.f32 %v6639, %v6791
        %v6884 = vadd.f32 %v6640, %v6793
        %v6885 = vadd.f32 %v6641, %v6796
        %v6886 = vadd.f32 %v6642, %v6798
        %v6887 = vadd.f32 %v6643, %v6801
        %v6888 = vadd.f32 %v6644, %v6803
        %v6889 = vadd.f32 %v6645, %v6806
        %v6890 = vadd.f32 %v6646, %v6808
        %v6891 = vadd.f32 %v6647, %v6811
        %v6892 = vadd.f32 %v6648, %v6813
        %v6893 = vadd.f32 %v6649, %v6816
        %v6894 = vadd.f32 %v6650, %v6818
        %v6895 = vadd.f32 %v6651, %v6821
        %v6896 = vadd.f32 %v6652, %v6823
        %v6897 = vadd.f32 %v6653, %v6826
        %v6898 = vadd.f32 %v6654, %v6828
        %v6899 = vadd.f32 %v6655, %v6831
        %v6900 = vadd.f32 %v6656, %v6833
        %v6901 = vadd.f32 %v6657, %v6836
        %v6902 = vadd.f32 %v6658, %v6838
        %v6903 = vlaneseq
        %v6904 = vshrl.u32 %v6903, 7
        %v6905 = vsub.s32 4, %v6904
        %v6906 = vrot.slane %v320, %v6905
        %v6907 = vmul.f32 %v262, %v6906
        %v6908 = vmul.f32 %v263, %v6906
        %v6909 = vmul.f32 %v264, %v6906
        %v6910 = vmul.f32 %v265, %v6906
        %v6911 = vmul.f32 %v266, %v6906
        %v6912 = vmul.f32 %v267, %v6906
        %v6913 = vmul.f32 %v268, %v6906
        %v6914 = vmul.f32 %v269, %v6906
        %v6915 = vmul.f32 %v270, %v6906
        %v6916 = vmul.f32 %v271, %v6906
        %v6917 = vmul.f32 %v272, %v6906
        %v6918 = vmul.f32 %v273, %v6906
        %v6919 = vmul.f32 %v274, %v6906
        %v6920 = vmul.f32 %v275, %v6906
        %v6921 = vmul.f32 %v276, %v6906
        %v6922 = vmul.f32 %v277, %v6906
        %v6923 = vmul.f32 %v278, %v6906
        %v6924 = vmul.f32 %v279, %v6906
        %v6925 = vmul.f32 %v280, %v6906
        %v6926 = vmul.f32 %v281, %v6906
        %v6927 = vmul.f32 %v282, %v6906
        %v6928 = vmul.f32 %v283, %v6906
        %v6929 = vmul.f32 %v284, %v6906
        %v6930 = vmul.f32 %v285, %v6906
        %v6931 = vmul.f32 %v286, %v6906
        %v6932 = vmul.f32 %v287, %v6906
        %v6933 = vmul.f32 %v288, %v6906
        %v6934 = vmul.f32 %v289, %v6906
        %v6935 = vmul.f32 %v290, %v6906
        %v6936 = vmul.f32 %v291, %v6906
        %v6937 = vmul.f32 %v292, %v6906
        %v6938 = vmul.f32 %v293, %v6906
        %v6939 = vmul.f32 %v294, %v6906
        %v6940 = vmul.f32 %v295, %v6906
        %v6941 = vmul.f32 %v296, %v6906
        %v6942 = vmul.f32 %v297, %v6906
        %v6943 = vmul.f32 %v298, %v6906
        %v6944 = vmul.f32 %v299, %v6906
        %v6945 = vmul.f32 %v300, %v6906
        %v6946 = vmul.f32 %v301, %v6906
        %v6947 = vmul.f32 %v302, %v6906
        %v6948 = vmul.f32 %v303, %v6906
        %v6949 = vmul.f32 %v304, %v6906
        %v6950 = vmul.f32 %v305, %v6906
        %v6951 = vmul.f32 %v306, %v6906
        %v6952 = vmul.f32 %v307, %v6906
        %v6953 = vmul.f32 %v308, %v6906
        %v6954 = vmul.f32 %v309, %v6906
        %v7003 = vrot.slane %v6907, 4
        %v7004 = vrot.slane %v6908, 4
        %v7005 = vsel %vm6026, %v7003, %v7004
        %v7006 = vrot.slane %v6909, 4
        %v7007 = vsel %vm6026, %v7004, %v7006
        %v7008 = vrot.slane %v6910, 4
        %v7009 = vrot.slane %v6911, 4
        %v7010 = vsel %vm6026, %v7008, %v7009
        %v7011 = vrot.slane %v6912, 4
        %v7012 = vsel %vm6026, %v7009, %v7011
        %v7013 = vrot.slane %v6913, 4
        %v7014 = vrot.slane %v6914, 4
        %v7015 = vsel %vm6026, %v7013, %v7014
        %v7016 = vrot.slane %v6915, 4
        %v7017 = vsel %vm6026, %v7014, %v7016
        %v7018 = vrot.slane %v6916, 4
        %v7019 = vrot.slane %v6917, 4
        %v7020 = vsel %vm6026, %v7018, %v7019
        %v7021 = vrot.slane %v6918, 4
        %v7022 = vsel %vm6026, %v7019, %v7021
        %v7023 = vrot.slane %v6919, 4
        %v7024 = vrot.slane %v6920, 4
        %v7025 = vsel %vm6026, %v7023, %v7024
        %v7026 = vrot.slane %v6921, 4
        %v7027 = vsel %vm6026, %v7024, %v7026
        %v7028 = vrot.slane %v6922, 4
        %v7029 = vrot.slane %v6923, 4
        %v7030 = vsel %vm6026, %v7028, %v7029
        %v7031 = vrot.slane %v6924, 4
        %v7032 = vsel %vm6026, %v7029, %v7031
        %v7033 = vrot.slane %v6925, 4
        %v7034 = vrot.slane %v6926, 4
        %v7035 = vsel %vm6026, %v7033, %v7034
        %v7036 = vrot.slane %v6927, 4
        %v7037 = vsel %vm6026, %v7034, %v7036
        %v7038 = vrot.slane %v6928, 4
        %v7039 = vrot.slane %v6929, 4
        %v7040 = vsel %vm6026, %v7038, %v7039
        %v7041 = vrot.slane %v6930, 4
        %v7042 = vsel %vm6026, %v7039, %v7041
        %v7043 = vrot.slane %v6931, 4
        %v7044 = vrot.slane %v6932, 4
        %v7045 = vsel %vm6026, %v7043, %v7044
        %v7046 = vrot.slane %v6933, 4
        %v7047 = vsel %vm6026, %v7044, %v7046
        %v7048 = vrot.slane %v6934, 4
        %v7049 = vrot.slane %v6935, 4
        %v7050 = vsel %vm6026, %v7048, %v7049
        %v7051 = vrot.slane %v6936, 4
        %v7052 = vsel %vm6026, %v7049, %v7051
        %v7053 = vrot.slane %v6937, 4
        %v7054 = vrot.slane %v6938, 4
        %v7055 = vsel %vm6026, %v7053, %v7054
        %v7056 = vrot.slane %v6939, 4
        %v7057 = vsel %vm6026, %v7054, %v7056
        %v7058 = vrot.slane %v6940, 4
        %v7059 = vrot.slane %v6941, 4
        %v7060 = vsel %vm6026, %v7058, %v7059
        %v7061 = vrot.slane %v6942, 4
        %v7062 = vsel %vm6026, %v7059, %v7061
        %v7063 = vrot.slane %v6943, 4
        %v7064 = vrot.slane %v6944, 4
        %v7065 = vsel %vm6026, %v7063, %v7064
        %v7066 = vrot.slane %v6945, 4
        %v7067 = vsel %vm6026, %v7064, %v7066
        %v7068 = vrot.slane %v6946, 4
        %v7069 = vrot.slane %v6947, 4
        %v7070 = vsel %vm6026, %v7068, %v7069
        %v7071 = vrot.slane %v6948, 4
        %v7072 = vsel %vm6026, %v7069, %v7071
        %v7073 = vrot.slane %v6949, 4
        %v7074 = vrot.slane %v6950, 4
        %v7075 = vsel %vm6026, %v7073, %v7074
        %v7076 = vrot.slane %v6951, 4
        %v7077 = vsel %vm6026, %v7074, %v7076
        %v7078 = vrot.slane %v6952, 4
        %v7079 = vrot.slane %v6953, 4
        %v7080 = vsel %vm6026, %v7078, %v7079
        %v7081 = vrot.slane %v6954, 4
        %v7082 = vsel %vm6026, %v7079, %v7081
        %v7115 = vadd.f32 %v6871, %v7005
        %v7116 = vadd.f32 %v6872, %v7007
        %v7117 = vadd.f32 %v6873, %v7010
        %v7118 = vadd.f32 %v6874, %v7012
        %v7119 = vadd.f32 %v6875, %v7015
        %v7120 = vadd.f32 %v6876, %v7017
        %v7121 = vadd.f32 %v6877, %v7020
        %v7122 = vadd.f32 %v6878, %v7022
        %v7123 = vadd.f32 %v6879, %v7025
        %v7124 = vadd.f32 %v6880, %v7027
        %v7125 = vadd.f32 %v6881, %v7030
        %v7126 = vadd.f32 %v6882, %v7032
        %v7127 = vadd.f32 %v6883, %v7035
        %v7128 = vadd.f32 %v6884, %v7037
        %v7129 = vadd.f32 %v6885, %v7040
        %v7130 = vadd.f32 %v6886, %v7042
        %v7131 = vadd.f32 %v6887, %v7045
        %v7132 = vadd.f32 %v6888, %v7047
        %v7133 = vadd.f32 %v6889, %v7050
        %v7134 = vadd.f32 %v6890, %v7052
        %v7135 = vadd.f32 %v6891, %v7055
        %v7136 = vadd.f32 %v6892, %v7057
        %v7137 = vadd.f32 %v6893, %v7060
        %v7138 = vadd.f32 %v6894, %v7062
        %v7139 = vadd.f32 %v6895, %v7065
        %v7140 = vadd.f32 %v6896, %v7067
        %v7141 = vadd.f32 %v6897, %v7070
        %v7142 = vadd.f32 %v6898, %v7072
        %v7143 = vadd.f32 %v6899, %v7075
        %v7144 = vadd.f32 %v6900, %v7077
        %v7145 = vadd.f32 %v6901, %v7080
        %v7146 = vadd.f32 %v6902, %v7082
        %v7147 = vlaneseq
        %v7148 = vshrl.u32 %v7147, 7
        %v7149 = vsub.s32 4, %v7148
        %v7150 = vrot.slane %v321, %v7149
        %v7151 = vmul.f32 %v265, %v7150
        %v7152 = vmul.f32 %v266, %v7150
        %v7153 = vmul.f32 %v267, %v7150
        %v7154 = vmul.f32 %v268, %v7150
        %v7155 = vmul.f32 %v269, %v7150
        %v7156 = vmul.f32 %v270, %v7150
        %v7157 = vmul.f32 %v271, %v7150
        %v7158 = vmul.f32 %v272, %v7150
        %v7159 = vmul.f32 %v273, %v7150
        %v7160 = vmul.f32 %v274, %v7150
        %v7161 = vmul.f32 %v275, %v7150
        %v7162 = vmul.f32 %v276, %v7150
        %v7163 = vmul.f32 %v277, %v7150
        %v7164 = vmul.f32 %v278, %v7150
        %v7165 = vmul.f32 %v279, %v7150
        %v7166 = vmul.f32 %v280, %v7150
        %v7167 = vmul.f32 %v281, %v7150
        %v7168 = vmul.f32 %v282, %v7150
        %v7169 = vmul.f32 %v283, %v7150
        %v7170 = vmul.f32 %v284, %v7150
        %v7171 = vmul.f32 %v285, %v7150
        %v7172 = vmul.f32 %v286, %v7150
        %v7173 = vmul.f32 %v287, %v7150
        %v7174 = vmul.f32 %v288, %v7150
        %v7175 = vmul.f32 %v289, %v7150
        %v7176 = vmul.f32 %v290, %v7150
        %v7177 = vmul.f32 %v291, %v7150
        %v7178 = vmul.f32 %v292, %v7150
        %v7179 = vmul.f32 %v293, %v7150
        %v7180 = vmul.f32 %v294, %v7150
        %v7181 = vmul.f32 %v295, %v7150
        %v7182 = vmul.f32 %v296, %v7150
        %v7183 = vmul.f32 %v297, %v7150
        %v7184 = vmul.f32 %v298, %v7150
        %v7185 = vmul.f32 %v299, %v7150
        %v7186 = vmul.f32 %v300, %v7150
        %v7187 = vmul.f32 %v301, %v7150
        %v7188 = vmul.f32 %v302, %v7150
        %v7189 = vmul.f32 %v303, %v7150
        %v7190 = vmul.f32 %v304, %v7150
        %v7191 = vmul.f32 %v305, %v7150
        %v7192 = vmul.f32 %v306, %v7150
        %v7193 = vmul.f32 %v307, %v7150
        %v7194 = vmul.f32 %v308, %v7150
        %v7195 = vmul.f32 %v309, %v7150
        %v7196 = vmul.f32 %v310, %v7150
        %v7197 = vmul.f32 %v311, %v7150
        %v7198 = vmul.f32 %v312, %v7150
        %v7247 = vrot.slane %v7151, 4
        %v7248 = vrot.slane %v7152, 4
        %v7249 = vsel %vm6026, %v7247, %v7248
        %v7250 = vrot.slane %v7153, 4
        %v7251 = vsel %vm6026, %v7248, %v7250
        %v7252 = vrot.slane %v7154, 4
        %v7253 = vrot.slane %v7155, 4
        %v7254 = vsel %vm6026, %v7252, %v7253
        %v7255 = vrot.slane %v7156, 4
        %v7256 = vsel %vm6026, %v7253, %v7255
        %v7257 = vrot.slane %v7157, 4
        %v7258 = vrot.slane %v7158, 4
        %v7259 = vsel %vm6026, %v7257, %v7258
        %v7260 = vrot.slane %v7159, 4
        %v7261 = vsel %vm6026, %v7258, %v7260
        %v7262 = vrot.slane %v7160, 4
        %v7263 = vrot.slane %v7161, 4
        %v7264 = vsel %vm6026, %v7262, %v7263
        %v7265 = vrot.slane %v7162, 4
        %v7266 = vsel %vm6026, %v7263, %v7265
        %v7267 = vrot.slane %v7163, 4
        %v7268 = vrot.slane %v7164, 4
        %v7269 = vsel %vm6026, %v7267, %v7268
        %v7270 = vrot.slane %v7165, 4
        %v7271 = vsel %vm6026, %v7268, %v7270
        %v7272 = vrot.slane %v7166, 4
        %v7273 = vrot.slane %v7167, 4
        %v7274 = vsel %vm6026, %v7272, %v7273
        %v7275 = vrot.slane %v7168, 4
        %v7276 = vsel %vm6026, %v7273, %v7275
        %v7277 = vrot.slane %v7169, 4
        %v7278 = vrot.slane %v7170, 4
        %v7279 = vsel %vm6026, %v7277, %v7278
        %v7280 = vrot.slane %v7171, 4
        %v7281 = vsel %vm6026, %v7278, %v7280
        %v7282 = vrot.slane %v7172, 4
        %v7283 = vrot.slane %v7173, 4
        %v7284 = vsel %vm6026, %v7282, %v7283
        %v7285 = vrot.slane %v7174, 4
        %v7286 = vsel %vm6026, %v7283, %v7285
        %v7287 = vrot.slane %v7175, 4
        %v7288 = vrot.slane %v7176, 4
        %v7289 = vsel %vm6026, %v7287, %v7288
        %v7290 = vrot.slane %v7177, 4
        %v7291 = vsel %vm6026, %v7288, %v7290
        %v7292 = vrot.slane %v7178, 4
        %v7293 = vrot.slane %v7179, 4
        %v7294 = vsel %vm6026, %v7292, %v7293
        %v7295 = vrot.slane %v7180, 4
        %v7296 = vsel %vm6026, %v7293, %v7295
        %v7297 = vrot.slane %v7181, 4
        %v7298 = vrot.slane %v7182, 4
        %v7299 = vsel %vm6026, %v7297, %v7298
        %v7300 = vrot.slane %v7183, 4
        %v7301 = vsel %vm6026, %v7298, %v7300
        %v7302 = vrot.slane %v7184, 4
        %v7303 = vrot.slane %v7185, 4
        %v7304 = vsel %vm6026, %v7302, %v7303
        %v7305 = vrot.slane %v7186, 4
        %v7306 = vsel %vm6026, %v7303, %v7305
        %v7307 = vrot.slane %v7187, 4
        %v7308 = vrot.slane %v7188, 4
        %v7309 = vsel %vm6026, %v7307, %v7308
        %v7310 = vrot.slane %v7189, 4
        %v7311 = vsel %vm6026, %v7308, %v7310
        %v7312 = vrot.slane %v7190, 4
        %v7313 = vrot.slane %v7191, 4
        %v7314 = vsel %vm6026, %v7312, %v7313
        %v7315 = vrot.slane %v7192, 4
        %v7316 = vsel %vm6026, %v7313, %v7315
        %v7317 = vrot.slane %v7193, 4
        %v7318 = vrot.slane %v7194, 4
        %v7319 = vsel %vm6026, %v7317, %v7318
        %v7320 = vrot.slane %v7195, 4
        %v7321 = vsel %vm6026, %v7318, %v7320
        %v7322 = vrot.slane %v7196, 4
        %v7323 = vrot.slane %v7197, 4
        %v7324 = vsel %vm6026, %v7322, %v7323
        %v7325 = vrot.slane %v7198, 4
        %v7326 = vsel %vm6026, %v7323, %v7325
        %v7359 = vadd.f32 %v7115, %v7249
        %v7360 = vadd.f32 %v7116, %v7251
        %v7361 = vadd.f32 %v7117, %v7254
        %v7362 = vadd.f32 %v7118, %v7256
        %v7363 = vadd.f32 %v7119, %v7259
        %v7364 = vadd.f32 %v7120, %v7261
        %v7365 = vadd.f32 %v7121, %v7264
        %v7366 = vadd.f32 %v7122, %v7266
        %v7367 = vadd.f32 %v7123, %v7269
        %v7368 = vadd.f32 %v7124, %v7271
        %v7369 = vadd.f32 %v7125, %v7274
        %v7370 = vadd.f32 %v7126, %v7276
        %v7371 = vadd.f32 %v7127, %v7279
        %v7372 = vadd.f32 %v7128, %v7281
        %v7373 = vadd.f32 %v7129, %v7284
        %v7374 = vadd.f32 %v7130, %v7286
        %v7375 = vadd.f32 %v7131, %v7289
        %v7376 = vadd.f32 %v7132, %v7291
        %v7377 = vadd.f32 %v7133, %v7294
        %v7378 = vadd.f32 %v7134, %v7296
        %v7379 = vadd.f32 %v7135, %v7299
        %v7380 = vadd.f32 %v7136, %v7301
        %v7381 = vadd.f32 %v7137, %v7304
        %v7382 = vadd.f32 %v7138, %v7306
        %v7383 = vadd.f32 %v7139, %v7309
        %v7384 = vadd.f32 %v7140, %v7311
        %v7385 = vadd.f32 %v7141, %v7314
        %v7386 = vadd.f32 %v7142, %v7316
        %v7387 = vadd.f32 %v7143, %v7319
        %v7388 = vadd.f32 %v7144, %v7321
        %v7389 = vadd.f32 %v7145, %v7324
        %v7390 = vadd.f32 %v7146, %v7326
        %v7391 = vlaneseq
        %v7392 = vshrl.u32 %v7391, 7
        %v7393 = vsub.s32 4, %v7392
        %v7394 = vrot.slane %v322, %v7393
        %v7395 = vmul.f32 %v268, %v7394
        %v7396 = vmul.f32 %v269, %v7394
        %v7397 = vmul.f32 %v270, %v7394
        %v7398 = vmul.f32 %v271, %v7394
        %v7399 = vmul.f32 %v272, %v7394
        %v7400 = vmul.f32 %v273, %v7394
        %v7401 = vmul.f32 %v274, %v7394
        %v7402 = vmul.f32 %v275, %v7394
        %v7403 = vmul.f32 %v276, %v7394
        %v7404 = vmul.f32 %v277, %v7394
        %v7405 = vmul.f32 %v278, %v7394
        %v7406 = vmul.f32 %v279, %v7394
        %v7407 = vmul.f32 %v280, %v7394
        %v7408 = vmul.f32 %v281, %v7394
        %v7409 = vmul.f32 %v282, %v7394
        %v7410 = vmul.f32 %v283, %v7394
        %v7411 = vmul.f32 %v284, %v7394
        %v7412 = vmul.f32 %v285, %v7394
        %v7413 = vmul.f32 %v286, %v7394
        %v7414 = vmul.f32 %v287, %v7394
        %v7415 = vmul.f32 %v288, %v7394
        %v7416 = vmul.f32 %v289, %v7394
        %v7417 = vmul.f32 %v290, %v7394
        %v7418 = vmul.f32 %v291, %v7394
        %v7419 = vmul.f32 %v292, %v7394
        %v7420 = vmul.f32 %v293, %v7394
        %v7421 = vmul.f32 %v294, %v7394
        %v7422 = vmul.f32 %v295, %v7394
        %v7423 = vmul.f32 %v296, %v7394
        %v7424 = vmul.f32 %v297, %v7394
        %v7425 = vmul.f32 %v298, %v7394
        %v7426 = vmul.f32 %v299, %v7394
        %v7427 = vmul.f32 %v300, %v7394
        %v7428 = vmul.f32 %v301, %v7394
        %v7429 = vmul.f32 %v302, %v7394
        %v7430 = vmul.f32 %v303, %v7394
        %v7431 = vmul.f32 %v304, %v7394
        %v7432 = vmul.f32 %v305, %v7394
        %v7433 = vmul.f32 %v306, %v7394
        %v7434 = vmul.f32 %v307, %v7394
        %v7435 = vmul.f32 %v308, %v7394
        %v7436 = vmul.f32 %v309, %v7394
        %v7437 = vmul.f32 %v310, %v7394
        %v7438 = vmul.f32 %v311, %v7394
        %v7439 = vmul.f32 %v312, %v7394
        %v7440 = vmul.f32 %v313, %v7394
        %v7441 = vmul.f32 %v314, %v7394
        %v7442 = vmul.f32 %v315, %v7394
        %v7491 = vrot.slane %v7395, 4
        %v7492 = vrot.slane %v7396, 4
        %v7493 = vsel %vm6026, %v7491, %v7492
        %v7494 = vrot.slane %v7397, 4
        %v7495 = vsel %vm6026, %v7492, %v7494
        %v7496 = vrot.slane %v7398, 4
        %v7497 = vrot.slane %v7399, 4
        %v7498 = vsel %vm6026, %v7496, %v7497
        %v7499 = vrot.slane %v7400, 4
        %v7500 = vsel %vm6026, %v7497, %v7499
        %v7501 = vrot.slane %v7401, 4
        %v7502 = vrot.slane %v7402, 4
        %v7503 = vsel %vm6026, %v7501, %v7502
        %v7504 = vrot.slane %v7403, 4
        %v7505 = vsel %vm6026, %v7502, %v7504
        %v7506 = vrot.slane %v7404, 4
        %v7507 = vrot.slane %v7405, 4
        %v7508 = vsel %vm6026, %v7506, %v7507
        %v7509 = vrot.slane %v7406, 4
        %v7510 = vsel %vm6026, %v7507, %v7509
        %v7511 = vrot.slane %v7407, 4
        %v7512 = vrot.slane %v7408, 4
        %v7513 = vsel %vm6026, %v7511, %v7512
        %v7514 = vrot.slane %v7409, 4
        %v7515 = vsel %vm6026, %v7512, %v7514
        %v7516 = vrot.slane %v7410, 4
        %v7517 = vrot.slane %v7411, 4
        %v7518 = vsel %vm6026, %v7516, %v7517
        %v7519 = vrot.slane %v7412, 4
        %v7520 = vsel %vm6026, %v7517, %v7519
        %v7521 = vrot.slane %v7413, 4
        %v7522 = vrot.slane %v7414, 4
        %v7523 = vsel %vm6026, %v7521, %v7522
        %v7524 = vrot.slane %v7415, 4
        %v7525 = vsel %vm6026, %v7522, %v7524
        %v7526 = vrot.slane %v7416, 4
        %v7527 = vrot.slane %v7417, 4
        %v7528 = vsel %vm6026, %v7526, %v7527
        %v7529 = vrot.slane %v7418, 4
        %v7530 = vsel %vm6026, %v7527, %v7529
        %v7531 = vrot.slane %v7419, 4
        %v7532 = vrot.slane %v7420, 4
        %v7533 = vsel %vm6026, %v7531, %v7532
        %v7534 = vrot.slane %v7421, 4
        %v7535 = vsel %vm6026, %v7532, %v7534
        %v7536 = vrot.slane %v7422, 4
        %v7537 = vrot.slane %v7423, 4
        %v7538 = vsel %vm6026, %v7536, %v7537
        %v7539 = vrot.slane %v7424, 4
        %v7540 = vsel %vm6026, %v7537, %v7539
        %v7541 = vrot.slane %v7425, 4
        %v7542 = vrot.slane %v7426, 4
        %v7543 = vsel %vm6026, %v7541, %v7542
        %v7544 = vrot.slane %v7427, 4
        %v7545 = vsel %vm6026, %v7542, %v7544
        %v7546 = vrot.slane %v7428, 4
        %v7547 = vrot.slane %v7429, 4
        %v7548 = vsel %vm6026, %v7546, %v7547
        %v7549 = vrot.slane %v7430, 4
        %v7550 = vsel %vm6026, %v7547, %v7549
        %v7551 = vrot.slane %v7431, 4
        %v7552 = vrot.slane %v7432, 4
        %v7553 = vsel %vm6026, %v7551, %v7552
        %v7554 = vrot.slane %v7433, 4
        %v7555 = vsel %vm6026, %v7552, %v7554
        %v7556 = vrot.slane %v7434, 4
        %v7557 = vrot.slane %v7435, 4
        %v7558 = vsel %vm6026, %v7556, %v7557
        %v7559 = vrot.slane %v7436, 4
        %v7560 = vsel %vm6026, %v7557, %v7559
        %v7561 = vrot.slane %v7437, 4
        %v7562 = vrot.slane %v7438, 4
        %v7563 = vsel %vm6026, %v7561, %v7562
        %v7564 = vrot.slane %v7439, 4
        %v7565 = vsel %vm6026, %v7562, %v7564
        %v7566 = vrot.slane %v7440, 4
        %v7567 = vrot.slane %v7441, 4
        %v7568 = vsel %vm6026, %v7566, %v7567
        %v7569 = vrot.slane %v7442, 4
        %v7570 = vsel %vm6026, %v7567, %v7569
        %v7603 = vadd.f32 %v7359, %v7493
        %v7604 = vadd.f32 %v7360, %v7495
        %v7605 = vadd.f32 %v7361, %v7498
        %v7606 = vadd.f32 %v7362, %v7500
        %v7607 = vadd.f32 %v7363, %v7503
        %v7608 = vadd.f32 %v7364, %v7505
        %v7609 = vadd.f32 %v7365, %v7508
        %v7610 = vadd.f32 %v7366, %v7510
        %v7611 = vadd.f32 %v7367, %v7513
        %v7612 = vadd.f32 %v7368, %v7515
        %v7613 = vadd.f32 %v7369, %v7518
        %v7614 = vadd.f32 %v7370, %v7520
        %v7615 = vadd.f32 %v7371, %v7523
        %v7616 = vadd.f32 %v7372, %v7525
        %v7617 = vadd.f32 %v7373, %v7528
        %v7618 = vadd.f32 %v7374, %v7530
        %v7619 = vadd.f32 %v7375, %v7533
        %v7620 = vadd.f32 %v7376, %v7535
        %v7621 = vadd.f32 %v7377, %v7538
        %v7622 = vadd.f32 %v7378, %v7540
        %v7623 = vadd.f32 %v7379, %v7543
        %v7624 = vadd.f32 %v7380, %v7545
        %v7625 = vadd.f32 %v7381, %v7548
        %v7626 = vadd.f32 %v7382, %v7550
        %v7627 = vadd.f32 %v7383, %v7553
        %v7628 = vadd.f32 %v7384, %v7555
        %v7629 = vadd.f32 %v7385, %v7558
        %v7630 = vadd.f32 %v7386, %v7560
        %v7631 = vadd.f32 %v7387, %v7563
        %v7632 = vadd.f32 %v7388, %v7565
        %v7633 = vadd.f32 %v7389, %v7568
        %v7634 = vadd.f32 %v7390, %v7570
        %v7635 = vlaneseq
        %v7636 = vshrl.u32 %v7635, 7
        %v7637 = vsub.s32 5, %v7636
        %v7638 = vrot.slane %v316, %v7637
        %v7639 = vmul.f32 %v250, %v7638
        %v7640 = vmul.f32 %v251, %v7638
        %v7641 = vmul.f32 %v252, %v7638
        %v7642 = vmul.f32 %v253, %v7638
        %v7643 = vmul.f32 %v254, %v7638
        %v7644 = vmul.f32 %v255, %v7638
        %v7645 = vmul.f32 %v256, %v7638
        %v7646 = vmul.f32 %v257, %v7638
        %v7647 = vmul.f32 %v258, %v7638
        %v7648 = vmul.f32 %v259, %v7638
        %v7649 = vmul.f32 %v260, %v7638
        %v7650 = vmul.f32 %v261, %v7638
        %v7651 = vmul.f32 %v262, %v7638
        %v7652 = vmul.f32 %v263, %v7638
        %v7653 = vmul.f32 %v264, %v7638
        %v7654 = vmul.f32 %v265, %v7638
        %v7655 = vmul.f32 %v266, %v7638
        %v7656 = vmul.f32 %v267, %v7638
        %v7657 = vmul.f32 %v268, %v7638
        %v7658 = vmul.f32 %v269, %v7638
        %v7659 = vmul.f32 %v270, %v7638
        %v7660 = vmul.f32 %v271, %v7638
        %v7661 = vmul.f32 %v272, %v7638
        %v7662 = vmul.f32 %v273, %v7638
        %v7663 = vmul.f32 %v274, %v7638
        %v7664 = vmul.f32 %v275, %v7638
        %v7665 = vmul.f32 %v276, %v7638
        %v7666 = vmul.f32 %v277, %v7638
        %v7667 = vmul.f32 %v278, %v7638
        %v7668 = vmul.f32 %v279, %v7638
        %v7669 = vmul.f32 %v280, %v7638
        %v7670 = vmul.f32 %v281, %v7638
        %v7671 = vmul.f32 %v282, %v7638
        %v7672 = vmul.f32 %v283, %v7638
        %v7673 = vmul.f32 %v284, %v7638
        %v7674 = vmul.f32 %v285, %v7638
        %v7675 = vmul.f32 %v286, %v7638
        %v7676 = vmul.f32 %v287, %v7638
        %v7677 = vmul.f32 %v288, %v7638
        %v7678 = vmul.f32 %v289, %v7638
        %v7679 = vmul.f32 %v290, %v7638
        %v7680 = vmul.f32 %v291, %v7638
        %v7681 = vmul.f32 %v292, %v7638
        %v7682 = vmul.f32 %v293, %v7638
        %v7683 = vmul.f32 %v294, %v7638
        %v7684 = vmul.f32 %v295, %v7638
        %v7685 = vmul.f32 %v296, %v7638
        %v7686 = vmul.f32 %v297, %v7638
        %vm7735 = vcmask 1042432
        %v7736 = vrot.slane %v7639, 5
        %v7737 = vrot.slane %v7640, 5
        %v7738 = vsel %vm7735, %v7736, %v7737
        %v7739 = vrot.slane %v7641, 5
        %v7740 = vsel %vm7735, %v7737, %v7739
        %v7741 = vrot.slane %v7642, 5
        %v7742 = vrot.slane %v7643, 5
        %v7743 = vsel %vm7735, %v7741, %v7742
        %v7744 = vrot.slane %v7644, 5
        %v7745 = vsel %vm7735, %v7742, %v7744
        %v7746 = vrot.slane %v7645, 5
        %v7747 = vrot.slane %v7646, 5
        %v7748 = vsel %vm7735, %v7746, %v7747
        %v7749 = vrot.slane %v7647, 5
        %v7750 = vsel %vm7735, %v7747, %v7749
        %v7751 = vrot.slane %v7648, 5
        %v7752 = vrot.slane %v7649, 5
        %v7753 = vsel %vm7735, %v7751, %v7752
        %v7754 = vrot.slane %v7650, 5
        %v7755 = vsel %vm7735, %v7752, %v7754
        %v7756 = vrot.slane %v7651, 5
        %v7757 = vrot.slane %v7652, 5
        %v7758 = vsel %vm7735, %v7756, %v7757
        %v7759 = vrot.slane %v7653, 5
        %v7760 = vsel %vm7735, %v7757, %v7759
        %v7761 = vrot.slane %v7654, 5
        %v7762 = vrot.slane %v7655, 5
        %v7763 = vsel %vm7735, %v7761, %v7762
        %v7764 = vrot.slane %v7656, 5
        %v7765 = vsel %vm7735, %v7762, %v7764
        %v7766 = vrot.slane %v7657, 5
        %v7767 = vrot.slane %v7658, 5
        %v7768 = vsel %vm7735, %v7766, %v7767
        %v7769 = vrot.slane %v7659, 5
        %v7770 = vsel %vm7735, %v7767, %v7769
        %v7771 = vrot.slane %v7660, 5
        %v7772 = vrot.slane %v7661, 5
        %v7773 = vsel %vm7735, %v7771, %v7772
        %v7774 = vrot.slane %v7662, 5
        %v7775 = vsel %vm7735, %v7772, %v7774
        %v7776 = vrot.slane %v7663, 5
        %v7777 = vrot.slane %v7664, 5
        %v7778 = vsel %vm7735, %v7776, %v7777
        %v7779 = vrot.slane %v7665, 5
        %v7780 = vsel %vm7735, %v7777, %v7779
        %v7781 = vrot.slane %v7666, 5
        %v7782 = vrot.slane %v7667, 5
        %v7783 = vsel %vm7735, %v7781, %v7782
        %v7784 = vrot.slane %v7668, 5
        %v7785 = vsel %vm7735, %v7782, %v7784
        %v7786 = vrot.slane %v7669, 5
        %v7787 = vrot.slane %v7670, 5
        %v7788 = vsel %vm7735, %v7786, %v7787
        %v7789 = vrot.slane %v7671, 5
        %v7790 = vsel %vm7735, %v7787, %v7789
        %v7791 = vrot.slane %v7672, 5
        %v7792 = vrot.slane %v7673, 5
        %v7793 = vsel %vm7735, %v7791, %v7792
        %v7794 = vrot.slane %v7674, 5
        %v7795 = vsel %vm7735, %v7792, %v7794
        %v7796 = vrot.slane %v7675, 5
        %v7797 = vrot.slane %v7676, 5
        %v7798 = vsel %vm7735, %v7796, %v7797
        %v7799 = vrot.slane %v7677, 5
        %v7800 = vsel %vm7735, %v7797, %v7799
        %v7801 = vrot.slane %v7678, 5
        %v7802 = vrot.slane %v7679, 5
        %v7803 = vsel %vm7735, %v7801, %v7802
        %v7804 = vrot.slane %v7680, 5
        %v7805 = vsel %vm7735, %v7802, %v7804
        %v7806 = vrot.slane %v7681, 5
        %v7807 = vrot.slane %v7682, 5
        %v7808 = vsel %vm7735, %v7806, %v7807
        %v7809 = vrot.slane %v7683, 5
        %v7810 = vsel %vm7735, %v7807, %v7809
        %v7811 = vrot.slane %v7684, 5
        %v7812 = vrot.slane %v7685, 5
        %v7813 = vsel %vm7735, %v7811, %v7812
        %v7814 = vrot.slane %v7686, 5
        %v7815 = vsel %vm7735, %v7812, %v7814
        %v7848 = vadd.f32 %v7603, %v7738
        %v7849 = vadd.f32 %v7604, %v7740
        %v7850 = vadd.f32 %v7605, %v7743
        %v7851 = vadd.f32 %v7606, %v7745
        %v7852 = vadd.f32 %v7607, %v7748
        %v7853 = vadd.f32 %v7608, %v7750
        %v7854 = vadd.f32 %v7609, %v7753
        %v7855 = vadd.f32 %v7610, %v7755
        %v7856 = vadd.f32 %v7611, %v7758
        %v7857 = vadd.f32 %v7612, %v7760
        %v7858 = vadd.f32 %v7613, %v7763
        %v7859 = vadd.f32 %v7614, %v7765
        %v7860 = vadd.f32 %v7615, %v7768
        %v7861 = vadd.f32 %v7616, %v7770
        %v7862 = vadd.f32 %v7617, %v7773
        %v7863 = vadd.f32 %v7618, %v7775
        %v7864 = vadd.f32 %v7619, %v7778
        %v7865 = vadd.f32 %v7620, %v7780
        %v7866 = vadd.f32 %v7621, %v7783
        %v7867 = vadd.f32 %v7622, %v7785
        %v7868 = vadd.f32 %v7623, %v7788
        %v7869 = vadd.f32 %v7624, %v7790
        %v7870 = vadd.f32 %v7625, %v7793
        %v7871 = vadd.f32 %v7626, %v7795
        %v7872 = vadd.f32 %v7627, %v7798
        %v7873 = vadd.f32 %v7628, %v7800
        %v7874 = vadd.f32 %v7629, %v7803
        %v7875 = vadd.f32 %v7630, %v7805
        %v7876 = vadd.f32 %v7631, %v7808
        %v7877 = vadd.f32 %v7632, %v7810
        %v7878 = vadd.f32 %v7633, %v7813
        %v7879 = vadd.f32 %v7634, %v7815
        %v7880 = vlaneseq
        %v7881 = vshrl.u32 %v7880, 7
        %v7882 = vsub.s32 5, %v7881
        %v7883 = vrot.slane %v317, %v7882
        %v7884 = vmul.f32 %v253, %v7883
        %v7885 = vmul.f32 %v254, %v7883
        %v7886 = vmul.f32 %v255, %v7883
        %v7887 = vmul.f32 %v256, %v7883
        %v7888 = vmul.f32 %v257, %v7883
        %v7889 = vmul.f32 %v258, %v7883
        %v7890 = vmul.f32 %v259, %v7883
        %v7891 = vmul.f32 %v260, %v7883
        %v7892 = vmul.f32 %v261, %v7883
        %v7893 = vmul.f32 %v262, %v7883
        %v7894 = vmul.f32 %v263, %v7883
        %v7895 = vmul.f32 %v264, %v7883
        %v7896 = vmul.f32 %v265, %v7883
        %v7897 = vmul.f32 %v266, %v7883
        %v7898 = vmul.f32 %v267, %v7883
        %v7899 = vmul.f32 %v268, %v7883
        %v7900 = vmul.f32 %v269, %v7883
        %v7901 = vmul.f32 %v270, %v7883
        %v7902 = vmul.f32 %v271, %v7883
        %v7903 = vmul.f32 %v272, %v7883
        %v7904 = vmul.f32 %v273, %v7883
        %v7905 = vmul.f32 %v274, %v7883
        %v7906 = vmul.f32 %v275, %v7883
        %v7907 = vmul.f32 %v276, %v7883
        %v7908 = vmul.f32 %v277, %v7883
        %v7909 = vmul.f32 %v278, %v7883
        %v7910 = vmul.f32 %v279, %v7883
        %v7911 = vmul.f32 %v280, %v7883
        %v7912 = vmul.f32 %v281, %v7883
        %v7913 = vmul.f32 %v282, %v7883
        %v7914 = vmul.f32 %v283, %v7883
        %v7915 = vmul.f32 %v284, %v7883
        %v7916 = vmul.f32 %v285, %v7883
        %v7917 = vmul.f32 %v286, %v7883
        %v7918 = vmul.f32 %v287, %v7883
        %v7919 = vmul.f32 %v288, %v7883
        %v7920 = vmul.f32 %v289, %v7883
        %v7921 = vmul.f32 %v290, %v7883
        %v7922 = vmul.f32 %v291, %v7883
        %v7923 = vmul.f32 %v292, %v7883
        %v7924 = vmul.f32 %v293, %v7883
        %v7925 = vmul.f32 %v294, %v7883
        %v7926 = vmul.f32 %v295, %v7883
        %v7927 = vmul.f32 %v296, %v7883
        %v7928 = vmul.f32 %v297, %v7883
        %v7929 = vmul.f32 %v298, %v7883
        %v7930 = vmul.f32 %v299, %v7883
        %v7931 = vmul.f32 %v300, %v7883
        %v7980 = vrot.slane %v7884, 5
        %v7981 = vrot.slane %v7885, 5
        %v7982 = vsel %vm7735, %v7980, %v7981
        %v7983 = vrot.slane %v7886, 5
        %v7984 = vsel %vm7735, %v7981, %v7983
        %v7985 = vrot.slane %v7887, 5
        %v7986 = vrot.slane %v7888, 5
        %v7987 = vsel %vm7735, %v7985, %v7986
        %v7988 = vrot.slane %v7889, 5
        %v7989 = vsel %vm7735, %v7986, %v7988
        %v7990 = vrot.slane %v7890, 5
        %v7991 = vrot.slane %v7891, 5
        %v7992 = vsel %vm7735, %v7990, %v7991
        %v7993 = vrot.slane %v7892, 5
        %v7994 = vsel %vm7735, %v7991, %v7993
        %v7995 = vrot.slane %v7893, 5
        %v7996 = vrot.slane %v7894, 5
        %v7997 = vsel %vm7735, %v7995, %v7996
        %v7998 = vrot.slane %v7895, 5
        %v7999 = vsel %vm7735, %v7996, %v7998
        %v8000 = vrot.slane %v7896, 5
        %v8001 = vrot.slane %v7897, 5
        %v8002 = vsel %vm7735, %v8000, %v8001
        %v8003 = vrot.slane %v7898, 5
        %v8004 = vsel %vm7735, %v8001, %v8003
        %v8005 = vrot.slane %v7899, 5
        %v8006 = vrot.slane %v7900, 5
        %v8007 = vsel %vm7735, %v8005, %v8006
        %v8008 = vrot.slane %v7901, 5
        %v8009 = vsel %vm7735, %v8006, %v8008
        %v8010 = vrot.slane %v7902, 5
        %v8011 = vrot.slane %v7903, 5
        %v8012 = vsel %vm7735, %v8010, %v8011
        %v8013 = vrot.slane %v7904, 5
        %v8014 = vsel %vm7735, %v8011, %v8013
        %v8015 = vrot.slane %v7905, 5
        %v8016 = vrot.slane %v7906, 5
        %v8017 = vsel %vm7735, %v8015, %v8016
        %v8018 = vrot.slane %v7907, 5
        %v8019 = vsel %vm7735, %v8016, %v8018
        %v8020 = vrot.slane %v7908, 5
        %v8021 = vrot.slane %v7909, 5
        %v8022 = vsel %vm7735, %v8020, %v8021
        %v8023 = vrot.slane %v7910, 5
        %v8024 = vsel %vm7735, %v8021, %v8023
        %v8025 = vrot.slane %v7911, 5
        %v8026 = vrot.slane %v7912, 5
        %v8027 = vsel %vm7735, %v8025, %v8026
        %v8028 = vrot.slane %v7913, 5
        %v8029 = vsel %vm7735, %v8026, %v8028
        %v8030 = vrot.slane %v7914, 5
        %v8031 = vrot.slane %v7915, 5
        %v8032 = vsel %vm7735, %v8030, %v8031
        %v8033 = vrot.slane %v7916, 5
        %v8034 = vsel %vm7735, %v8031, %v8033
        %v8035 = vrot.slane %v7917, 5
        %v8036 = vrot.slane %v7918, 5
        %v8037 = vsel %vm7735, %v8035, %v8036
        %v8038 = vrot.slane %v7919, 5
        %v8039 = vsel %vm7735, %v8036, %v8038
        %v8040 = vrot.slane %v7920, 5
        %v8041 = vrot.slane %v7921, 5
        %v8042 = vsel %vm7735, %v8040, %v8041
        %v8043 = vrot.slane %v7922, 5
        %v8044 = vsel %vm7735, %v8041, %v8043
        %v8045 = vrot.slane %v7923, 5
        %v8046 = vrot.slane %v7924, 5
        %v8047 = vsel %vm7735, %v8045, %v8046
        %v8048 = vrot.slane %v7925, 5
        %v8049 = vsel %vm7735, %v8046, %v8048
        %v8050 = vrot.slane %v7926, 5
        %v8051 = vrot.slane %v7927, 5
        %v8052 = vsel %vm7735, %v8050, %v8051
        %v8053 = vrot.slane %v7928, 5
        %v8054 = vsel %vm7735, %v8051, %v8053
        %v8055 = vrot.slane %v7929, 5
        %v8056 = vrot.slane %v7930, 5
        %v8057 = vsel %vm7735, %v8055, %v8056
        %v8058 = vrot.slane %v7931, 5
        %v8059 = vsel %vm7735, %v8056, %v8058
        %v8092 = vadd.f32 %v7848, %v7982
        %v8093 = vadd.f32 %v7849, %v7984
        %v8094 = vadd.f32 %v7850, %v7987
        %v8095 = vadd.f32 %v7851, %v7989
        %v8096 = vadd.f32 %v7852, %v7992
        %v8097 = vadd.f32 %v7853, %v7994
        %v8098 = vadd.f32 %v7854, %v7997
        %v8099 = vadd.f32 %v7855, %v7999
        %v8100 = vadd.f32 %v7856, %v8002
        %v8101 = vadd.f32 %v7857, %v8004
        %v8102 = vadd.f32 %v7858, %v8007
        %v8103 = vadd.f32 %v7859, %v8009
        %v8104 = vadd.f32 %v7860, %v8012
        %v8105 = vadd.f32 %v7861, %v8014
        %v8106 = vadd.f32 %v7862, %v8017
        %v8107 = vadd.f32 %v7863, %v8019
        %v8108 = vadd.f32 %v7864, %v8022
        %v8109 = vadd.f32 %v7865, %v8024
        %v8110 = vadd.f32 %v7866, %v8027
        %v8111 = vadd.f32 %v7867, %v8029
        %v8112 = vadd.f32 %v7868, %v8032
        %v8113 = vadd.f32 %v7869, %v8034
        %v8114 = vadd.f32 %v7870, %v8037
        %v8115 = vadd.f32 %v7871, %v8039
        %v8116 = vadd.f32 %v7872, %v8042
        %v8117 = vadd.f32 %v7873, %v8044
        %v8118 = vadd.f32 %v7874, %v8047
        %v8119 = vadd.f32 %v7875, %v8049
        %v8120 = vadd.f32 %v7876, %v8052
        %v8121 = vadd.f32 %v7877, %v8054
        %v8122 = vadd.f32 %v7878, %v8057
        %v8123 = vadd.f32 %v7879, %v8059
        %v8124 = vlaneseq
        %v8125 = vshrl.u32 %v8124, 7
        %v8126 = vsub.s32 5, %v8125
        %v8127 = vrot.slane %v318, %v8126
        %v8128 = vmul.f32 %v256, %v8127
        %v8129 = vmul.f32 %v257, %v8127
        %v8130 = vmul.f32 %v258, %v8127
        %v8131 = vmul.f32 %v259, %v8127
        %v8132 = vmul.f32 %v260, %v8127
        %v8133 = vmul.f32 %v261, %v8127
        %v8134 = vmul.f32 %v262, %v8127
        %v8135 = vmul.f32 %v263, %v8127
        %v8136 = vmul.f32 %v264, %v8127
        %v8137 = vmul.f32 %v265, %v8127
        %v8138 = vmul.f32 %v266, %v8127
        %v8139 = vmul.f32 %v267, %v8127
        %v8140 = vmul.f32 %v268, %v8127
        %v8141 = vmul.f32 %v269, %v8127
        %v8142 = vmul.f32 %v270, %v8127
        %v8143 = vmul.f32 %v271, %v8127
        %v8144 = vmul.f32 %v272, %v8127
        %v8145 = vmul.f32 %v273, %v8127
        %v8146 = vmul.f32 %v274, %v8127
        %v8147 = vmul.f32 %v275, %v8127
        %v8148 = vmul.f32 %v276, %v8127
        %v8149 = vmul.f32 %v277, %v8127
        %v8150 = vmul.f32 %v278, %v8127
        %v8151 = vmul.f32 %v279, %v8127
        %v8152 = vmul.f32 %v280, %v8127
        %v8153 = vmul.f32 %v281, %v8127
        %v8154 = vmul.f32 %v282, %v8127
        %v8155 = vmul.f32 %v283, %v8127
        %v8156 = vmul.f32 %v284, %v8127
        %v8157 = vmul.f32 %v285, %v8127
        %v8158 = vmul.f32 %v286, %v8127
        %v8159 = vmul.f32 %v287, %v8127
        %v8160 = vmul.f32 %v288, %v8127
        %v8161 = vmul.f32 %v289, %v8127
        %v8162 = vmul.f32 %v290, %v8127
        %v8163 = vmul.f32 %v291, %v8127
        %v8164 = vmul.f32 %v292, %v8127
        %v8165 = vmul.f32 %v293, %v8127
        %v8166 = vmul.f32 %v294, %v8127
        %v8167 = vmul.f32 %v295, %v8127
        %v8168 = vmul.f32 %v296, %v8127
        %v8169 = vmul.f32 %v297, %v8127
        %v8170 = vmul.f32 %v298, %v8127
        %v8171 = vmul.f32 %v299, %v8127
        %v8172 = vmul.f32 %v300, %v8127
        %v8173 = vmul.f32 %v301, %v8127
        %v8174 = vmul.f32 %v302, %v8127
        %v8175 = vmul.f32 %v303, %v8127
        %v8224 = vrot.slane %v8128, 5
        %v8225 = vrot.slane %v8129, 5
        %v8226 = vsel %vm7735, %v8224, %v8225
        %v8227 = vrot.slane %v8130, 5
        %v8228 = vsel %vm7735, %v8225, %v8227
        %v8229 = vrot.slane %v8131, 5
        %v8230 = vrot.slane %v8132, 5
        %v8231 = vsel %vm7735, %v8229, %v8230
        %v8232 = vrot.slane %v8133, 5
        %v8233 = vsel %vm7735, %v8230, %v8232
        %v8234 = vrot.slane %v8134, 5
        %v8235 = vrot.slane %v8135, 5
        %v8236 = vsel %vm7735, %v8234, %v8235
        %v8237 = vrot.slane %v8136, 5
        %v8238 = vsel %vm7735, %v8235, %v8237
        %v8239 = vrot.slane %v8137, 5
        %v8240 = vrot.slane %v8138, 5
        %v8241 = vsel %vm7735, %v8239, %v8240
        %v8242 = vrot.slane %v8139, 5
        %v8243 = vsel %vm7735, %v8240, %v8242
        %v8244 = vrot.slane %v8140, 5
        %v8245 = vrot.slane %v8141, 5
        %v8246 = vsel %vm7735, %v8244, %v8245
        %v8247 = vrot.slane %v8142, 5
        %v8248 = vsel %vm7735, %v8245, %v8247
        %v8249 = vrot.slane %v8143, 5
        %v8250 = vrot.slane %v8144, 5
        %v8251 = vsel %vm7735, %v8249, %v8250
        %v8252 = vrot.slane %v8145, 5
        %v8253 = vsel %vm7735, %v8250, %v8252
        %v8254 = vrot.slane %v8146, 5
        %v8255 = vrot.slane %v8147, 5
        %v8256 = vsel %vm7735, %v8254, %v8255
        %v8257 = vrot.slane %v8148, 5
        %v8258 = vsel %vm7735, %v8255, %v8257
        %v8259 = vrot.slane %v8149, 5
        %v8260 = vrot.slane %v8150, 5
        %v8261 = vsel %vm7735, %v8259, %v8260
        %v8262 = vrot.slane %v8151, 5
        %v8263 = vsel %vm7735, %v8260, %v8262
        %v8264 = vrot.slane %v8152, 5
        %v8265 = vrot.slane %v8153, 5
        %v8266 = vsel %vm7735, %v8264, %v8265
        %v8267 = vrot.slane %v8154, 5
        %v8268 = vsel %vm7735, %v8265, %v8267
        %v8269 = vrot.slane %v8155, 5
        %v8270 = vrot.slane %v8156, 5
        %v8271 = vsel %vm7735, %v8269, %v8270
        %v8272 = vrot.slane %v8157, 5
        %v8273 = vsel %vm7735, %v8270, %v8272
        %v8274 = vrot.slane %v8158, 5
        %v8275 = vrot.slane %v8159, 5
        %v8276 = vsel %vm7735, %v8274, %v8275
        %v8277 = vrot.slane %v8160, 5
        %v8278 = vsel %vm7735, %v8275, %v8277
        %v8279 = vrot.slane %v8161, 5
        %v8280 = vrot.slane %v8162, 5
        %v8281 = vsel %vm7735, %v8279, %v8280
        %v8282 = vrot.slane %v8163, 5
        %v8283 = vsel %vm7735, %v8280, %v8282
        %v8284 = vrot.slane %v8164, 5
        %v8285 = vrot.slane %v8165, 5
        %v8286 = vsel %vm7735, %v8284, %v8285
        %v8287 = vrot.slane %v8166, 5
        %v8288 = vsel %vm7735, %v8285, %v8287
        %v8289 = vrot.slane %v8167, 5
        %v8290 = vrot.slane %v8168, 5
        %v8291 = vsel %vm7735, %v8289, %v8290
        %v8292 = vrot.slane %v8169, 5
        %v8293 = vsel %vm7735, %v8290, %v8292
        %v8294 = vrot.slane %v8170, 5
        %v8295 = vrot.slane %v8171, 5
        %v8296 = vsel %vm7735, %v8294, %v8295
        %v8297 = vrot.slane %v8172, 5
        %v8298 = vsel %vm7735, %v8295, %v8297
        %v8299 = vrot.slane %v8173, 5
        %v8300 = vrot.slane %v8174, 5
        %v8301 = vsel %vm7735, %v8299, %v8300
        %v8302 = vrot.slane %v8175, 5
        %v8303 = vsel %vm7735, %v8300, %v8302
        %v8336 = vadd.f32 %v8092, %v8226
        %v8337 = vadd.f32 %v8093, %v8228
        %v8338 = vadd.f32 %v8094, %v8231
        %v8339 = vadd.f32 %v8095, %v8233
        %v8340 = vadd.f32 %v8096, %v8236
        %v8341 = vadd.f32 %v8097, %v8238
        %v8342 = vadd.f32 %v8098, %v8241
        %v8343 = vadd.f32 %v8099, %v8243
        %v8344 = vadd.f32 %v8100, %v8246
        %v8345 = vadd.f32 %v8101, %v8248
        %v8346 = vadd.f32 %v8102, %v8251
        %v8347 = vadd.f32 %v8103, %v8253
        %v8348 = vadd.f32 %v8104, %v8256
        %v8349 = vadd.f32 %v8105, %v8258
        %v8350 = vadd.f32 %v8106, %v8261
        %v8351 = vadd.f32 %v8107, %v8263
        %v8352 = vadd.f32 %v8108, %v8266
        %v8353 = vadd.f32 %v8109, %v8268
        %v8354 = vadd.f32 %v8110, %v8271
        %v8355 = vadd.f32 %v8111, %v8273
        %v8356 = vadd.f32 %v8112, %v8276
        %v8357 = vadd.f32 %v8113, %v8278
        %v8358 = vadd.f32 %v8114, %v8281
        %v8359 = vadd.f32 %v8115, %v8283
        %v8360 = vadd.f32 %v8116, %v8286
        %v8361 = vadd.f32 %v8117, %v8288
        %v8362 = vadd.f32 %v8118, %v8291
        %v8363 = vadd.f32 %v8119, %v8293
        %v8364 = vadd.f32 %v8120, %v8296
        %v8365 = vadd.f32 %v8121, %v8298
        %v8366 = vadd.f32 %v8122, %v8301
        %v8367 = vadd.f32 %v8123, %v8303
        %v8368 = vlaneseq
        %v8369 = vshrl.u32 %v8368, 7
        %v8370 = vsub.s32 5, %v8369
        %v8371 = vrot.slane %v319, %v8370
        %v8372 = vmul.f32 %v259, %v8371
        %v8373 = vmul.f32 %v260, %v8371
        %v8374 = vmul.f32 %v261, %v8371
        %v8375 = vmul.f32 %v262, %v8371
        %v8376 = vmul.f32 %v263, %v8371
        %v8377 = vmul.f32 %v264, %v8371
        %v8378 = vmul.f32 %v265, %v8371
        %v8379 = vmul.f32 %v266, %v8371
        %v8380 = vmul.f32 %v267, %v8371
        %v8381 = vmul.f32 %v268, %v8371
        %v8382 = vmul.f32 %v269, %v8371
        %v8383 = vmul.f32 %v270, %v8371
        %v8384 = vmul.f32 %v271, %v8371
        %v8385 = vmul.f32 %v272, %v8371
        %v8386 = vmul.f32 %v273, %v8371
        %v8387 = vmul.f32 %v274, %v8371
        %v8388 = vmul.f32 %v275, %v8371
        %v8389 = vmul.f32 %v276, %v8371
        %v8390 = vmul.f32 %v277, %v8371
        %v8391 = vmul.f32 %v278, %v8371
        %v8392 = vmul.f32 %v279, %v8371
        %v8393 = vmul.f32 %v280, %v8371
        %v8394 = vmul.f32 %v281, %v8371
        %v8395 = vmul.f32 %v282, %v8371
        %v8396 = vmul.f32 %v283, %v8371
        %v8397 = vmul.f32 %v284, %v8371
        %v8398 = vmul.f32 %v285, %v8371
        %v8399 = vmul.f32 %v286, %v8371
        %v8400 = vmul.f32 %v287, %v8371
        %v8401 = vmul.f32 %v288, %v8371
        %v8402 = vmul.f32 %v289, %v8371
        %v8403 = vmul.f32 %v290, %v8371
        %v8404 = vmul.f32 %v291, %v8371
        %v8405 = vmul.f32 %v292, %v8371
        %v8406 = vmul.f32 %v293, %v8371
        %v8407 = vmul.f32 %v294, %v8371
        %v8408 = vmul.f32 %v295, %v8371
        %v8409 = vmul.f32 %v296, %v8371
        %v8410 = vmul.f32 %v297, %v8371
        %v8411 = vmul.f32 %v298, %v8371
        %v8412 = vmul.f32 %v299, %v8371
        %v8413 = vmul.f32 %v300, %v8371
        %v8414 = vmul.f32 %v301, %v8371
        %v8415 = vmul.f32 %v302, %v8371
        %v8416 = vmul.f32 %v303, %v8371
        %v8417 = vmul.f32 %v304, %v8371
        %v8418 = vmul.f32 %v305, %v8371
        %v8419 = vmul.f32 %v306, %v8371
        %v8468 = vrot.slane %v8372, 5
        %v8469 = vrot.slane %v8373, 5
        %v8470 = vsel %vm7735, %v8468, %v8469
        %v8471 = vrot.slane %v8374, 5
        %v8472 = vsel %vm7735, %v8469, %v8471
        %v8473 = vrot.slane %v8375, 5
        %v8474 = vrot.slane %v8376, 5
        %v8475 = vsel %vm7735, %v8473, %v8474
        %v8476 = vrot.slane %v8377, 5
        %v8477 = vsel %vm7735, %v8474, %v8476
        %v8478 = vrot.slane %v8378, 5
        %v8479 = vrot.slane %v8379, 5
        %v8480 = vsel %vm7735, %v8478, %v8479
        %v8481 = vrot.slane %v8380, 5
        %v8482 = vsel %vm7735, %v8479, %v8481
        %v8483 = vrot.slane %v8381, 5
        %v8484 = vrot.slane %v8382, 5
        %v8485 = vsel %vm7735, %v8483, %v8484
        %v8486 = vrot.slane %v8383, 5
        %v8487 = vsel %vm7735, %v8484, %v8486
        %v8488 = vrot.slane %v8384, 5
        %v8489 = vrot.slane %v8385, 5
        %v8490 = vsel %vm7735, %v8488, %v8489
        %v8491 = vrot.slane %v8386, 5
        %v8492 = vsel %vm7735, %v8489, %v8491
        %v8493 = vrot.slane %v8387, 5
        %v8494 = vrot.slane %v8388, 5
        %v8495 = vsel %vm7735, %v8493, %v8494
        %v8496 = vrot.slane %v8389, 5
        %v8497 = vsel %vm7735, %v8494, %v8496
        %v8498 = vrot.slane %v8390, 5
        %v8499 = vrot.slane %v8391, 5
        %v8500 = vsel %vm7735, %v8498, %v8499
        %v8501 = vrot.slane %v8392, 5
        %v8502 = vsel %vm7735, %v8499, %v8501
        %v8503 = vrot.slane %v8393, 5
        %v8504 = vrot.slane %v8394, 5
        %v8505 = vsel %vm7735, %v8503, %v8504
        %v8506 = vrot.slane %v8395, 5
        %v8507 = vsel %vm7735, %v8504, %v8506
        %v8508 = vrot.slane %v8396, 5
        %v8509 = vrot.slane %v8397, 5
        %v8510 = vsel %vm7735, %v8508, %v8509
        %v8511 = vrot.slane %v8398, 5
        %v8512 = vsel %vm7735, %v8509, %v8511
        %v8513 = vrot.slane %v8399, 5
        %v8514 = vrot.slane %v8400, 5
        %v8515 = vsel %vm7735, %v8513, %v8514
        %v8516 = vrot.slane %v8401, 5
        %v8517 = vsel %vm7735, %v8514, %v8516
        %v8518 = vrot.slane %v8402, 5
        %v8519 = vrot.slane %v8403, 5
        %v8520 = vsel %vm7735, %v8518, %v8519
        %v8521 = vrot.slane %v8404, 5
        %v8522 = vsel %vm7735, %v8519, %v8521
        %v8523 = vrot.slane %v8405, 5
        %v8524 = vrot.slane %v8406, 5
        %v8525 = vsel %vm7735, %v8523, %v8524
        %v8526 = vrot.slane %v8407, 5
        %v8527 = vsel %vm7735, %v8524, %v8526
        %v8528 = vrot.slane %v8408, 5
        %v8529 = vrot.slane %v8409, 5
        %v8530 = vsel %vm7735, %v8528, %v8529
        %v8531 = vrot.slane %v8410, 5
        %v8532 = vsel %vm7735, %v8529, %v8531
        %v8533 = vrot.slane %v8411, 5
        %v8534 = vrot.slane %v8412, 5
        %v8535 = vsel %vm7735, %v8533, %v8534
        %v8536 = vrot.slane %v8413, 5
        %v8537 = vsel %vm7735, %v8534, %v8536
        %v8538 = vrot.slane %v8414, 5
        %v8539 = vrot.slane %v8415, 5
        %v8540 = vsel %vm7735, %v8538, %v8539
        %v8541 = vrot.slane %v8416, 5
        %v8542 = vsel %vm7735, %v8539, %v8541
        %v8543 = vrot.slane %v8417, 5
        %v8544 = vrot.slane %v8418, 5
        %v8545 = vsel %vm7735, %v8543, %v8544
        %v8546 = vrot.slane %v8419, 5
        %v8547 = vsel %vm7735, %v8544, %v8546
        %v8580 = vadd.f32 %v8336, %v8470
        %v8581 = vadd.f32 %v8337, %v8472
        %v8582 = vadd.f32 %v8338, %v8475
        %v8583 = vadd.f32 %v8339, %v8477
        %v8584 = vadd.f32 %v8340, %v8480
        %v8585 = vadd.f32 %v8341, %v8482
        %v8586 = vadd.f32 %v8342, %v8485
        %v8587 = vadd.f32 %v8343, %v8487
        %v8588 = vadd.f32 %v8344, %v8490
        %v8589 = vadd.f32 %v8345, %v8492
        %v8590 = vadd.f32 %v8346, %v8495
        %v8591 = vadd.f32 %v8347, %v8497
        %v8592 = vadd.f32 %v8348, %v8500
        %v8593 = vadd.f32 %v8349, %v8502
        %v8594 = vadd.f32 %v8350, %v8505
        %v8595 = vadd.f32 %v8351, %v8507
        %v8596 = vadd.f32 %v8352, %v8510
        %v8597 = vadd.f32 %v8353, %v8512
        %v8598 = vadd.f32 %v8354, %v8515
        %v8599 = vadd.f32 %v8355, %v8517
        %v8600 = vadd.f32 %v8356, %v8520
        %v8601 = vadd.f32 %v8357, %v8522
        %v8602 = vadd.f32 %v8358, %v8525
        %v8603 = vadd.f32 %v8359, %v8527
        %v8604 = vadd.f32 %v8360, %v8530
        %v8605 = vadd.f32 %v8361, %v8532
        %v8606 = vadd.f32 %v8362, %v8535
        %v8607 = vadd.f32 %v8363, %v8537
        %v8608 = vadd.f32 %v8364, %v8540
        %v8609 = vadd.f32 %v8365, %v8542
        %v8610 = vadd.f32 %v8366, %v8545
        %v8611 = vadd.f32 %v8367, %v8547
        %v8612 = vlaneseq
        %v8613 = vshrl.u32 %v8612, 7
        %v8614 = vsub.s32 5, %v8613
        %v8615 = vrot.slane %v320, %v8614
        %v8616 = vmul.f32 %v262, %v8615
        %v8617 = vmul.f32 %v263, %v8615
        %v8618 = vmul.f32 %v264, %v8615
        %v8619 = vmul.f32 %v265, %v8615
        %v8620 = vmul.f32 %v266, %v8615
        %v8621 = vmul.f32 %v267, %v8615
        %v8622 = vmul.f32 %v268, %v8615
        %v8623 = vmul.f32 %v269, %v8615
        %v8624 = vmul.f32 %v270, %v8615
        %v8625 = vmul.f32 %v271, %v8615
        %v8626 = vmul.f32 %v272, %v8615
        %v8627 = vmul.f32 %v273, %v8615
        %v8628 = vmul.f32 %v274, %v8615
        %v8629 = vmul.f32 %v275, %v8615
        %v8630 = vmul.f32 %v276, %v8615
        %v8631 = vmul.f32 %v277, %v8615
        %v8632 = vmul.f32 %v278, %v8615
        %v8633 = vmul.f32 %v279, %v8615
        %v8634 = vmul.f32 %v280, %v8615
        %v8635 = vmul.f32 %v281, %v8615
        %v8636 = vmul.f32 %v282, %v8615
        %v8637 = vmul.f32 %v283, %v8615
        %v8638 = vmul.f32 %v284, %v8615
        %v8639 = vmul.f32 %v285, %v8615
        %v8640 = vmul.f32 %v286, %v8615
        %v8641 = vmul.f32 %v287, %v8615
        %v8642 = vmul.f32 %v288, %v8615
        %v8643 = vmul.f32 %v289, %v8615
        %v8644 = vmul.f32 %v290, %v8615
        %v8645 = vmul.f32 %v291, %v8615
        %v8646 = vmul.f32 %v292, %v8615
        %v8647 = vmul.f32 %v293, %v8615
        %v8648 = vmul.f32 %v294, %v8615
        %v8649 = vmul.f32 %v295, %v8615
        %v8650 = vmul.f32 %v296, %v8615
        %v8651 = vmul.f32 %v297, %v8615
        %v8652 = vmul.f32 %v298, %v8615
        %v8653 = vmul.f32 %v299, %v8615
        %v8654 = vmul.f32 %v300, %v8615
        %v8655 = vmul.f32 %v301, %v8615
        %v8656 = vmul.f32 %v302, %v8615
        %v8657 = vmul.f32 %v303, %v8615
        %v8658 = vmul.f32 %v304, %v8615
        %v8659 = vmul.f32 %v305, %v8615
        %v8660 = vmul.f32 %v306, %v8615
        %v8661 = vmul.f32 %v307, %v8615
        %v8662 = vmul.f32 %v308, %v8615
        %v8663 = vmul.f32 %v309, %v8615
        %v8712 = vrot.slane %v8616, 5
        %v8713 = vrot.slane %v8617, 5
        %v8714 = vsel %vm7735, %v8712, %v8713
        %v8715 = vrot.slane %v8618, 5
        %v8716 = vsel %vm7735, %v8713, %v8715
        %v8717 = vrot.slane %v8619, 5
        %v8718 = vrot.slane %v8620, 5
        %v8719 = vsel %vm7735, %v8717, %v8718
        %v8720 = vrot.slane %v8621, 5
        %v8721 = vsel %vm7735, %v8718, %v8720
        %v8722 = vrot.slane %v8622, 5
        %v8723 = vrot.slane %v8623, 5
        %v8724 = vsel %vm7735, %v8722, %v8723
        %v8725 = vrot.slane %v8624, 5
        %v8726 = vsel %vm7735, %v8723, %v8725
        %v8727 = vrot.slane %v8625, 5
        %v8728 = vrot.slane %v8626, 5
        %v8729 = vsel %vm7735, %v8727, %v8728
        %v8730 = vrot.slane %v8627, 5
        %v8731 = vsel %vm7735, %v8728, %v8730
        %v8732 = vrot.slane %v8628, 5
        %v8733 = vrot.slane %v8629, 5
        %v8734 = vsel %vm7735, %v8732, %v8733
        %v8735 = vrot.slane %v8630, 5
        %v8736 = vsel %vm7735, %v8733, %v8735
        %v8737 = vrot.slane %v8631, 5
        %v8738 = vrot.slane %v8632, 5
        %v8739 = vsel %vm7735, %v8737, %v8738
        %v8740 = vrot.slane %v8633, 5
        %v8741 = vsel %vm7735, %v8738, %v8740
        %v8742 = vrot.slane %v8634, 5
        %v8743 = vrot.slane %v8635, 5
        %v8744 = vsel %vm7735, %v8742, %v8743
        %v8745 = vrot.slane %v8636, 5
        %v8746 = vsel %vm7735, %v8743, %v8745
        %v8747 = vrot.slane %v8637, 5
        %v8748 = vrot.slane %v8638, 5
        %v8749 = vsel %vm7735, %v8747, %v8748
        %v8750 = vrot.slane %v8639, 5
        %v8751 = vsel %vm7735, %v8748, %v8750
        %v8752 = vrot.slane %v8640, 5
        %v8753 = vrot.slane %v8641, 5
        %v8754 = vsel %vm7735, %v8752, %v8753
        %v8755 = vrot.slane %v8642, 5
        %v8756 = vsel %vm7735, %v8753, %v8755
        %v8757 = vrot.slane %v8643, 5
        %v8758 = vrot.slane %v8644, 5
        %v8759 = vsel %vm7735, %v8757, %v8758
        %v8760 = vrot.slane %v8645, 5
        %v8761 = vsel %vm7735, %v8758, %v8760
        %v8762 = vrot.slane %v8646, 5
        %v8763 = vrot.slane %v8647, 5
        %v8764 = vsel %vm7735, %v8762, %v8763
        %v8765 = vrot.slane %v8648, 5
        %v8766 = vsel %vm7735, %v8763, %v8765
        %v8767 = vrot.slane %v8649, 5
        %v8768 = vrot.slane %v8650, 5
        %v8769 = vsel %vm7735, %v8767, %v8768
        %v8770 = vrot.slane %v8651, 5
        %v8771 = vsel %vm7735, %v8768, %v8770
        %v8772 = vrot.slane %v8652, 5
        %v8773 = vrot.slane %v8653, 5
        %v8774 = vsel %vm7735, %v8772, %v8773
        %v8775 = vrot.slane %v8654, 5
        %v8776 = vsel %vm7735, %v8773, %v8775
        %v8777 = vrot.slane %v8655, 5
        %v8778 = vrot.slane %v8656, 5
        %v8779 = vsel %vm7735, %v8777, %v8778
        %v8780 = vrot.slane %v8657, 5
        %v8781 = vsel %vm7735, %v8778, %v8780
        %v8782 = vrot.slane %v8658, 5
        %v8783 = vrot.slane %v8659, 5
        %v8784 = vsel %vm7735, %v8782, %v8783
        %v8785 = vrot.slane %v8660, 5
        %v8786 = vsel %vm7735, %v8783, %v8785
        %v8787 = vrot.slane %v8661, 5
        %v8788 = vrot.slane %v8662, 5
        %v8789 = vsel %vm7735, %v8787, %v8788
        %v8790 = vrot.slane %v8663, 5
        %v8791 = vsel %vm7735, %v8788, %v8790
        %v8824 = vadd.f32 %v8580, %v8714
        %v8825 = vadd.f32 %v8581, %v8716
        %v8826 = vadd.f32 %v8582, %v8719
        %v8827 = vadd.f32 %v8583, %v8721
        %v8828 = vadd.f32 %v8584, %v8724
        %v8829 = vadd.f32 %v8585, %v8726
        %v8830 = vadd.f32 %v8586, %v8729
        %v8831 = vadd.f32 %v8587, %v8731
        %v8832 = vadd.f32 %v8588, %v8734
        %v8833 = vadd.f32 %v8589, %v8736
        %v8834 = vadd.f32 %v8590, %v8739
        %v8835 = vadd.f32 %v8591, %v8741
        %v8836 = vadd.f32 %v8592, %v8744
        %v8837 = vadd.f32 %v8593, %v8746
        %v8838 = vadd.f32 %v8594, %v8749
        %v8839 = vadd.f32 %v8595, %v8751
        %v8840 = vadd.f32 %v8596, %v8754
        %v8841 = vadd.f32 %v8597, %v8756
        %v8842 = vadd.f32 %v8598, %v8759
        %v8843 = vadd.f32 %v8599, %v8761
        %v8844 = vadd.f32 %v8600, %v8764
        %v8845 = vadd.f32 %v8601, %v8766
        %v8846 = vadd.f32 %v8602, %v8769
        %v8847 = vadd.f32 %v8603, %v8771
        %v8848 = vadd.f32 %v8604, %v8774
        %v8849 = vadd.f32 %v8605, %v8776
        %v8850 = vadd.f32 %v8606, %v8779
        %v8851 = vadd.f32 %v8607, %v8781
        %v8852 = vadd.f32 %v8608, %v8784
        %v8853 = vadd.f32 %v8609, %v8786
        %v8854 = vadd.f32 %v8610, %v8789
        %v8855 = vadd.f32 %v8611, %v8791
        %v8856 = vlaneseq
        %v8857 = vshrl.u32 %v8856, 7
        %v8858 = vsub.s32 5, %v8857
        %v8859 = vrot.slane %v321, %v8858
        %v8860 = vmul.f32 %v265, %v8859
        %v8861 = vmul.f32 %v266, %v8859
        %v8862 = vmul.f32 %v267, %v8859
        %v8863 = vmul.f32 %v268, %v8859
        %v8864 = vmul.f32 %v269, %v8859
        %v8865 = vmul.f32 %v270, %v8859
        %v8866 = vmul.f32 %v271, %v8859
        %v8867 = vmul.f32 %v272, %v8859
        %v8868 = vmul.f32 %v273, %v8859
        %v8869 = vmul.f32 %v274, %v8859
        %v8870 = vmul.f32 %v275, %v8859
        %v8871 = vmul.f32 %v276, %v8859
        %v8872 = vmul.f32 %v277, %v8859
        %v8873 = vmul.f32 %v278, %v8859
        %v8874 = vmul.f32 %v279, %v8859
        %v8875 = vmul.f32 %v280, %v8859
        %v8876 = vmul.f32 %v281, %v8859
        %v8877 = vmul.f32 %v282, %v8859
        %v8878 = vmul.f32 %v283, %v8859
        %v8879 = vmul.f32 %v284, %v8859
        %v8880 = vmul.f32 %v285, %v8859
        %v8881 = vmul.f32 %v286, %v8859
        %v8882 = vmul.f32 %v287, %v8859
        %v8883 = vmul.f32 %v288, %v8859
        %v8884 = vmul.f32 %v289, %v8859
        %v8885 = vmul.f32 %v290, %v8859
        %v8886 = vmul.f32 %v291, %v8859
        %v8887 = vmul.f32 %v292, %v8859
        %v8888 = vmul.f32 %v293, %v8859
        %v8889 = vmul.f32 %v294, %v8859
        %v8890 = vmul.f32 %v295, %v8859
        %v8891 = vmul.f32 %v296, %v8859
        %v8892 = vmul.f32 %v297, %v8859
        %v8893 = vmul.f32 %v298, %v8859
        %v8894 = vmul.f32 %v299, %v8859
        %v8895 = vmul.f32 %v300, %v8859
        %v8896 = vmul.f32 %v301, %v8859
        %v8897 = vmul.f32 %v302, %v8859
        %v8898 = vmul.f32 %v303, %v8859
        %v8899 = vmul.f32 %v304, %v8859
        %v8900 = vmul.f32 %v305, %v8859
        %v8901 = vmul.f32 %v306, %v8859
        %v8902 = vmul.f32 %v307, %v8859
        %v8903 = vmul.f32 %v308, %v8859
        %v8904 = vmul.f32 %v309, %v8859
        %v8905 = vmul.f32 %v310, %v8859
        %v8906 = vmul.f32 %v311, %v8859
        %v8907 = vmul.f32 %v312, %v8859
        %v8956 = vrot.slane %v8860, 5
        %v8957 = vrot.slane %v8861, 5
        %v8958 = vsel %vm7735, %v8956, %v8957
        %v8959 = vrot.slane %v8862, 5
        %v8960 = vsel %vm7735, %v8957, %v8959
        %v8961 = vrot.slane %v8863, 5
        %v8962 = vrot.slane %v8864, 5
        %v8963 = vsel %vm7735, %v8961, %v8962
        %v8964 = vrot.slane %v8865, 5
        %v8965 = vsel %vm7735, %v8962, %v8964
        %v8966 = vrot.slane %v8866, 5
        %v8967 = vrot.slane %v8867, 5
        %v8968 = vsel %vm7735, %v8966, %v8967
        %v8969 = vrot.slane %v8868, 5
        %v8970 = vsel %vm7735, %v8967, %v8969
        %v8971 = vrot.slane %v8869, 5
        %v8972 = vrot.slane %v8870, 5
        %v8973 = vsel %vm7735, %v8971, %v8972
        %v8974 = vrot.slane %v8871, 5
        %v8975 = vsel %vm7735, %v8972, %v8974
        %v8976 = vrot.slane %v8872, 5
        %v8977 = vrot.slane %v8873, 5
        %v8978 = vsel %vm7735, %v8976, %v8977
        %v8979 = vrot.slane %v8874, 5
        %v8980 = vsel %vm7735, %v8977, %v8979
        %v8981 = vrot.slane %v8875, 5
        %v8982 = vrot.slane %v8876, 5
        %v8983 = vsel %vm7735, %v8981, %v8982
        %v8984 = vrot.slane %v8877, 5
        %v8985 = vsel %vm7735, %v8982, %v8984
        %v8986 = vrot.slane %v8878, 5
        %v8987 = vrot.slane %v8879, 5
        %v8988 = vsel %vm7735, %v8986, %v8987
        %v8989 = vrot.slane %v8880, 5
        %v8990 = vsel %vm7735, %v8987, %v8989
        %v8991 = vrot.slane %v8881, 5
        %v8992 = vrot.slane %v8882, 5
        %v8993 = vsel %vm7735, %v8991, %v8992
        %v8994 = vrot.slane %v8883, 5
        %v8995 = vsel %vm7735, %v8992, %v8994
        %v8996 = vrot.slane %v8884, 5
        %v8997 = vrot.slane %v8885, 5
        %v8998 = vsel %vm7735, %v8996, %v8997
        %v8999 = vrot.slane %v8886, 5
        %v9000 = vsel %vm7735, %v8997, %v8999
        %v9001 = vrot.slane %v8887, 5
        %v9002 = vrot.slane %v8888, 5
        %v9003 = vsel %vm7735, %v9001, %v9002
        %v9004 = vrot.slane %v8889, 5
        %v9005 = vsel %vm7735, %v9002, %v9004
        %v9006 = vrot.slane %v8890, 5
        %v9007 = vrot.slane %v8891, 5
        %v9008 = vsel %vm7735, %v9006, %v9007
        %v9009 = vrot.slane %v8892, 5
        %v9010 = vsel %vm7735, %v9007, %v9009
        %v9011 = vrot.slane %v8893, 5
        %v9012 = vrot.slane %v8894, 5
        %v9013 = vsel %vm7735, %v9011, %v9012
        %v9014 = vrot.slane %v8895, 5
        %v9015 = vsel %vm7735, %v9012, %v9014
        %v9016 = vrot.slane %v8896, 5
        %v9017 = vrot.slane %v8897, 5
        %v9018 = vsel %vm7735, %v9016, %v9017
        %v9019 = vrot.slane %v8898, 5
        %v9020 = vsel %vm7735, %v9017, %v9019
        %v9021 = vrot.slane %v8899, 5
        %v9022 = vrot.slane %v8900, 5
        %v9023 = vsel %vm7735, %v9021, %v9022
        %v9024 = vrot.slane %v8901, 5
        %v9025 = vsel %vm7735, %v9022, %v9024
        %v9026 = vrot.slane %v8902, 5
        %v9027 = vrot.slane %v8903, 5
        %v9028 = vsel %vm7735, %v9026, %v9027
        %v9029 = vrot.slane %v8904, 5
        %v9030 = vsel %vm7735, %v9027, %v9029
        %v9031 = vrot.slane %v8905, 5
        %v9032 = vrot.slane %v8906, 5
        %v9033 = vsel %vm7735, %v9031, %v9032
        %v9034 = vrot.slane %v8907, 5
        %v9035 = vsel %vm7735, %v9032, %v9034
        %v9068 = vadd.f32 %v8824, %v8958
        %v9069 = vadd.f32 %v8825, %v8960
        %v9070 = vadd.f32 %v8826, %v8963
        %v9071 = vadd.f32 %v8827, %v8965
        %v9072 = vadd.f32 %v8828, %v8968
        %v9073 = vadd.f32 %v8829, %v8970
        %v9074 = vadd.f32 %v8830, %v8973
        %v9075 = vadd.f32 %v8831, %v8975
        %v9076 = vadd.f32 %v8832, %v8978
        %v9077 = vadd.f32 %v8833, %v8980
        %v9078 = vadd.f32 %v8834, %v8983
        %v9079 = vadd.f32 %v8835, %v8985
        %v9080 = vadd.f32 %v8836, %v8988
        %v9081 = vadd.f32 %v8837, %v8990
        %v9082 = vadd.f32 %v8838, %v8993
        %v9083 = vadd.f32 %v8839, %v8995
        %v9084 = vadd.f32 %v8840, %v8998
        %v9085 = vadd.f32 %v8841, %v9000
        %v9086 = vadd.f32 %v8842, %v9003
        %v9087 = vadd.f32 %v8843, %v9005
        %v9088 = vadd.f32 %v8844, %v9008
        %v9089 = vadd.f32 %v8845, %v9010
        %v9090 = vadd.f32 %v8846, %v9013
        %v9091 = vadd.f32 %v8847, %v9015
        %v9092 = vadd.f32 %v8848, %v9018
        %v9093 = vadd.f32 %v8849, %v9020
        %v9094 = vadd.f32 %v8850, %v9023
        %v9095 = vadd.f32 %v8851, %v9025
        %v9096 = vadd.f32 %v8852, %v9028
        %v9097 = vadd.f32 %v8853, %v9030
        %v9098 = vadd.f32 %v8854, %v9033
        %v9099 = vadd.f32 %v8855, %v9035
        %v9100 = vlaneseq
        %v9101 = vshrl.u32 %v9100, 7
        %v9102 = vsub.s32 5, %v9101
        %v9103 = vrot.slane %v322, %v9102
        %v9104 = vmul.f32 %v268, %v9103
        %v9105 = vmul.f32 %v269, %v9103
        %v9106 = vmul.f32 %v270, %v9103
        %v9107 = vmul.f32 %v271, %v9103
        %v9108 = vmul.f32 %v272, %v9103
        %v9109 = vmul.f32 %v273, %v9103
        %v9110 = vmul.f32 %v274, %v9103
        %v9111 = vmul.f32 %v275, %v9103
        %v9112 = vmul.f32 %v276, %v9103
        %v9113 = vmul.f32 %v277, %v9103
        %v9114 = vmul.f32 %v278, %v9103
        %v9115 = vmul.f32 %v279, %v9103
        %v9116 = vmul.f32 %v280, %v9103
        %v9117 = vmul.f32 %v281, %v9103
        %v9118 = vmul.f32 %v282, %v9103
        %v9119 = vmul.f32 %v283, %v9103
        %v9120 = vmul.f32 %v284, %v9103
        %v9121 = vmul.f32 %v285, %v9103
        %v9122 = vmul.f32 %v286, %v9103
        %v9123 = vmul.f32 %v287, %v9103
        %v9124 = vmul.f32 %v288, %v9103
        %v9125 = vmul.f32 %v289, %v9103
        %v9126 = vmul.f32 %v290, %v9103
        %v9127 = vmul.f32 %v291, %v9103
        %v9128 = vmul.f32 %v292, %v9103
        %v9129 = vmul.f32 %v293, %v9103
        %v9130 = vmul.f32 %v294, %v9103
        %v9131 = vmul.f32 %v295, %v9103
        %v9132 = vmul.f32 %v296, %v9103
        %v9133 = vmul.f32 %v297, %v9103
        %v9134 = vmul.f32 %v298, %v9103
        %v9135 = vmul.f32 %v299, %v9103
        %v9136 = vmul.f32 %v300, %v9103
        %v9137 = vmul.f32 %v301, %v9103
        %v9138 = vmul.f32 %v302, %v9103
        %v9139 = vmul.f32 %v303, %v9103
        %v9140 = vmul.f32 %v304, %v9103
        %v9141 = vmul.f32 %v305, %v9103
        %v9142 = vmul.f32 %v306, %v9103
        %v9143 = vmul.f32 %v307, %v9103
        %v9144 = vmul.f32 %v308, %v9103
        %v9145 = vmul.f32 %v309, %v9103
        %v9146 = vmul.f32 %v310, %v9103
        %v9147 = vmul.f32 %v311, %v9103
        %v9148 = vmul.f32 %v312, %v9103
        %v9149 = vmul.f32 %v313, %v9103
        %v9150 = vmul.f32 %v314, %v9103
        %v9151 = vmul.f32 %v315, %v9103
        %v9200 = vrot.slane %v9104, 5
        %v9201 = vrot.slane %v9105, 5
        %v9202 = vsel %vm7735, %v9200, %v9201
        %v9203 = vrot.slane %v9106, 5
        %v9204 = vsel %vm7735, %v9201, %v9203
        %v9205 = vrot.slane %v9107, 5
        %v9206 = vrot.slane %v9108, 5
        %v9207 = vsel %vm7735, %v9205, %v9206
        %v9208 = vrot.slane %v9109, 5
        %v9209 = vsel %vm7735, %v9206, %v9208
        %v9210 = vrot.slane %v9110, 5
        %v9211 = vrot.slane %v9111, 5
        %v9212 = vsel %vm7735, %v9210, %v9211
        %v9213 = vrot.slane %v9112, 5
        %v9214 = vsel %vm7735, %v9211, %v9213
        %v9215 = vrot.slane %v9113, 5
        %v9216 = vrot.slane %v9114, 5
        %v9217 = vsel %vm7735, %v9215, %v9216
        %v9218 = vrot.slane %v9115, 5
        %v9219 = vsel %vm7735, %v9216, %v9218
        %v9220 = vrot.slane %v9116, 5
        %v9221 = vrot.slane %v9117, 5
        %v9222 = vsel %vm7735, %v9220, %v9221
        %v9223 = vrot.slane %v9118, 5
        %v9224 = vsel %vm7735, %v9221, %v9223
        %v9225 = vrot.slane %v9119, 5
        %v9226 = vrot.slane %v9120, 5
        %v9227 = vsel %vm7735, %v9225, %v9226
        %v9228 = vrot.slane %v9121, 5
        %v9229 = vsel %vm7735, %v9226, %v9228
        %v9230 = vrot.slane %v9122, 5
        %v9231 = vrot.slane %v9123, 5
        %v9232 = vsel %vm7735, %v9230, %v9231
        %v9233 = vrot.slane %v9124, 5
        %v9234 = vsel %vm7735, %v9231, %v9233
        %v9235 = vrot.slane %v9125, 5
        %v9236 = vrot.slane %v9126, 5
        %v9237 = vsel %vm7735, %v9235, %v9236
        %v9238 = vrot.slane %v9127, 5
        %v9239 = vsel %vm7735, %v9236, %v9238
        %v9240 = vrot.slane %v9128, 5
        %v9241 = vrot.slane %v9129, 5
        %v9242 = vsel %vm7735, %v9240, %v9241
        %v9243 = vrot.slane %v9130, 5
        %v9244 = vsel %vm7735, %v9241, %v9243
        %v9245 = vrot.slane %v9131, 5
        %v9246 = vrot.slane %v9132, 5
        %v9247 = vsel %vm7735, %v9245, %v9246
        %v9248 = vrot.slane %v9133, 5
        %v9249 = vsel %vm7735, %v9246, %v9248
        %v9250 = vrot.slane %v9134, 5
        %v9251 = vrot.slane %v9135, 5
        %v9252 = vsel %vm7735, %v9250, %v9251
        %v9253 = vrot.slane %v9136, 5
        %v9254 = vsel %vm7735, %v9251, %v9253
        %v9255 = vrot.slane %v9137, 5
        %v9256 = vrot.slane %v9138, 5
        %v9257 = vsel %vm7735, %v9255, %v9256
        %v9258 = vrot.slane %v9139, 5
        %v9259 = vsel %vm7735, %v9256, %v9258
        %v9260 = vrot.slane %v9140, 5
        %v9261 = vrot.slane %v9141, 5
        %v9262 = vsel %vm7735, %v9260, %v9261
        %v9263 = vrot.slane %v9142, 5
        %v9264 = vsel %vm7735, %v9261, %v9263
        %v9265 = vrot.slane %v9143, 5
        %v9266 = vrot.slane %v9144, 5
        %v9267 = vsel %vm7735, %v9265, %v9266
        %v9268 = vrot.slane %v9145, 5
        %v9269 = vsel %vm7735, %v9266, %v9268
        %v9270 = vrot.slane %v9146, 5
        %v9271 = vrot.slane %v9147, 5
        %v9272 = vsel %vm7735, %v9270, %v9271
        %v9273 = vrot.slane %v9148, 5
        %v9274 = vsel %vm7735, %v9271, %v9273
        %v9275 = vrot.slane %v9149, 5
        %v9276 = vrot.slane %v9150, 5
        %v9277 = vsel %vm7735, %v9275, %v9276
        %v9278 = vrot.slane %v9151, 5
        %v9279 = vsel %vm7735, %v9276, %v9278
        %v9312 = vadd.f32 %v9068, %v9202
        %v9313 = vadd.f32 %v9069, %v9204
        %v9314 = vadd.f32 %v9070, %v9207
        %v9315 = vadd.f32 %v9071, %v9209
        %v9316 = vadd.f32 %v9072, %v9212
        %v9317 = vadd.f32 %v9073, %v9214
        %v9318 = vadd.f32 %v9074, %v9217
        %v9319 = vadd.f32 %v9075, %v9219
        %v9320 = vadd.f32 %v9076, %v9222
        %v9321 = vadd.f32 %v9077, %v9224
        %v9322 = vadd.f32 %v9078, %v9227
        %v9323 = vadd.f32 %v9079, %v9229
        %v9324 = vadd.f32 %v9080, %v9232
        %v9325 = vadd.f32 %v9081, %v9234
        %v9326 = vadd.f32 %v9082, %v9237
        %v9327 = vadd.f32 %v9083, %v9239
        %v9328 = vadd.f32 %v9084, %v9242
        %v9329 = vadd.f32 %v9085, %v9244
        %v9330 = vadd.f32 %v9086, %v9247
        %v9331 = vadd.f32 %v9087, %v9249
        %v9332 = vadd.f32 %v9088, %v9252
        %v9333 = vadd.f32 %v9089, %v9254
        %v9334 = vadd.f32 %v9090, %v9257
        %v9335 = vadd.f32 %v9091, %v9259
        %v9336 = vadd.f32 %v9092, %v9262
        %v9337 = vadd.f32 %v9093, %v9264
        %v9338 = vadd.f32 %v9094, %v9267
        %v9339 = vadd.f32 %v9095, %v9269
        %v9340 = vadd.f32 %v9096, %v9272
        %v9341 = vadd.f32 %v9097, %v9274
        %v9342 = vadd.f32 %v9098, %v9277
        %v9343 = vadd.f32 %v9099, %v9279
        %v9344 = vlaneseq
        %v9345 = vshrl.u32 %v9344, 7
        %v9346 = vsub.s32 6, %v9345
        %v9347 = vrot.slane %v316, %v9346
        %v9348 = vmul.f32 %v250, %v9347
        %v9349 = vmul.f32 %v251, %v9347
        %v9350 = vmul.f32 %v252, %v9347
        %v9351 = vmul.f32 %v253, %v9347
        %v9352 = vmul.f32 %v254, %v9347
        %v9353 = vmul.f32 %v255, %v9347
        %v9354 = vmul.f32 %v256, %v9347
        %v9355 = vmul.f32 %v257, %v9347
        %v9356 = vmul.f32 %v258, %v9347
        %v9357 = vmul.f32 %v259, %v9347
        %v9358 = vmul.f32 %v260, %v9347
        %v9359 = vmul.f32 %v261, %v9347
        %v9360 = vmul.f32 %v262, %v9347
        %v9361 = vmul.f32 %v263, %v9347
        %v9362 = vmul.f32 %v264, %v9347
        %v9363 = vmul.f32 %v265, %v9347
        %v9364 = vmul.f32 %v266, %v9347
        %v9365 = vmul.f32 %v267, %v9347
        %v9366 = vmul.f32 %v268, %v9347
        %v9367 = vmul.f32 %v269, %v9347
        %v9368 = vmul.f32 %v270, %v9347
        %v9369 = vmul.f32 %v271, %v9347
        %v9370 = vmul.f32 %v272, %v9347
        %v9371 = vmul.f32 %v273, %v9347
        %v9372 = vmul.f32 %v274, %v9347
        %v9373 = vmul.f32 %v275, %v9347
        %v9374 = vmul.f32 %v276, %v9347
        %v9375 = vmul.f32 %v277, %v9347
        %v9376 = vmul.f32 %v278, %v9347
        %v9377 = vmul.f32 %v279, %v9347
        %v9378 = vmul.f32 %v280, %v9347
        %v9379 = vmul.f32 %v281, %v9347
        %v9380 = vmul.f32 %v282, %v9347
        %v9381 = vmul.f32 %v283, %v9347
        %v9382 = vmul.f32 %v284, %v9347
        %v9383 = vmul.f32 %v285, %v9347
        %v9384 = vmul.f32 %v286, %v9347
        %v9385 = vmul.f32 %v287, %v9347
        %v9386 = vmul.f32 %v288, %v9347
        %v9387 = vmul.f32 %v289, %v9347
        %v9388 = vmul.f32 %v290, %v9347
        %v9389 = vmul.f32 %v291, %v9347
        %v9390 = vmul.f32 %v292, %v9347
        %v9391 = vmul.f32 %v293, %v9347
        %v9392 = vmul.f32 %v294, %v9347
        %v9393 = vmul.f32 %v295, %v9347
        %v9394 = vmul.f32 %v296, %v9347
        %v9395 = vmul.f32 %v297, %v9347
        %vm9444 = vcmask 1041408
        %v9445 = vrot.slane %v9348, 6
        %v9446 = vrot.slane %v9349, 6
        %v9447 = vsel %vm9444, %v9445, %v9446
        %v9448 = vrot.slane %v9350, 6
        %v9449 = vsel %vm9444, %v9446, %v9448
        %v9450 = vrot.slane %v9351, 6
        %v9451 = vrot.slane %v9352, 6
        %v9452 = vsel %vm9444, %v9450, %v9451
        %v9453 = vrot.slane %v9353, 6
        %v9454 = vsel %vm9444, %v9451, %v9453
        %v9455 = vrot.slane %v9354, 6
        %v9456 = vrot.slane %v9355, 6
        %v9457 = vsel %vm9444, %v9455, %v9456
        %v9458 = vrot.slane %v9356, 6
        %v9459 = vsel %vm9444, %v9456, %v9458
        %v9460 = vrot.slane %v9357, 6
        %v9461 = vrot.slane %v9358, 6
        %v9462 = vsel %vm9444, %v9460, %v9461
        %v9463 = vrot.slane %v9359, 6
        %v9464 = vsel %vm9444, %v9461, %v9463
        %v9465 = vrot.slane %v9360, 6
        %v9466 = vrot.slane %v9361, 6
        %v9467 = vsel %vm9444, %v9465, %v9466
        %v9468 = vrot.slane %v9362, 6
        %v9469 = vsel %vm9444, %v9466, %v9468
        %v9470 = vrot.slane %v9363, 6
        %v9471 = vrot.slane %v9364, 6
        %v9472 = vsel %vm9444, %v9470, %v9471
        %v9473 = vrot.slane %v9365, 6
        %v9474 = vsel %vm9444, %v9471, %v9473
        %v9475 = vrot.slane %v9366, 6
        %v9476 = vrot.slane %v9367, 6
        %v9477 = vsel %vm9444, %v9475, %v9476
        %v9478 = vrot.slane %v9368, 6
        %v9479 = vsel %vm9444, %v9476, %v9478
        %v9480 = vrot.slane %v9369, 6
        %v9481 = vrot.slane %v9370, 6
        %v9482 = vsel %vm9444, %v9480, %v9481
        %v9483 = vrot.slane %v9371, 6
        %v9484 = vsel %vm9444, %v9481, %v9483
        %v9485 = vrot.slane %v9372, 6
        %v9486 = vrot.slane %v9373, 6
        %v9487 = vsel %vm9444, %v9485, %v9486
        %v9488 = vrot.slane %v9374, 6
        %v9489 = vsel %vm9444, %v9486, %v9488
        %v9490 = vrot.slane %v9375, 6
        %v9491 = vrot.slane %v9376, 6
        %v9492 = vsel %vm9444, %v9490, %v9491
        %v9493 = vrot.slane %v9377, 6
        %v9494 = vsel %vm9444, %v9491, %v9493
        %v9495 = vrot.slane %v9378, 6
        %v9496 = vrot.slane %v9379, 6
        %v9497 = vsel %vm9444, %v9495, %v9496
        %v9498 = vrot.slane %v9380, 6
        %v9499 = vsel %vm9444, %v9496, %v9498
        %v9500 = vrot.slane %v9381, 6
        %v9501 = vrot.slane %v9382, 6
        %v9502 = vsel %vm9444, %v9500, %v9501
        %v9503 = vrot.slane %v9383, 6
        %v9504 = vsel %vm9444, %v9501, %v9503
        %v9505 = vrot.slane %v9384, 6
        %v9506 = vrot.slane %v9385, 6
        %v9507 = vsel %vm9444, %v9505, %v9506
        %v9508 = vrot.slane %v9386, 6
        %v9509 = vsel %vm9444, %v9506, %v9508
        %v9510 = vrot.slane %v9387, 6
        %v9511 = vrot.slane %v9388, 6
        %v9512 = vsel %vm9444, %v9510, %v9511
        %v9513 = vrot.slane %v9389, 6
        %v9514 = vsel %vm9444, %v9511, %v9513
        %v9515 = vrot.slane %v9390, 6
        %v9516 = vrot.slane %v9391, 6
        %v9517 = vsel %vm9444, %v9515, %v9516
        %v9518 = vrot.slane %v9392, 6
        %v9519 = vsel %vm9444, %v9516, %v9518
        %v9520 = vrot.slane %v9393, 6
        %v9521 = vrot.slane %v9394, 6
        %v9522 = vsel %vm9444, %v9520, %v9521
        %v9523 = vrot.slane %v9395, 6
        %v9524 = vsel %vm9444, %v9521, %v9523
        %v9557 = vadd.f32 %v9312, %v9447
        %v9558 = vadd.f32 %v9313, %v9449
        %v9559 = vadd.f32 %v9314, %v9452
        %v9560 = vadd.f32 %v9315, %v9454
        %v9561 = vadd.f32 %v9316, %v9457
        %v9562 = vadd.f32 %v9317, %v9459
        %v9563 = vadd.f32 %v9318, %v9462
        %v9564 = vadd.f32 %v9319, %v9464
        %v9565 = vadd.f32 %v9320, %v9467
        %v9566 = vadd.f32 %v9321, %v9469
        %v9567 = vadd.f32 %v9322, %v9472
        %v9568 = vadd.f32 %v9323, %v9474
        %v9569 = vadd.f32 %v9324, %v9477
        %v9570 = vadd.f32 %v9325, %v9479
        %v9571 = vadd.f32 %v9326, %v9482
        %v9572 = vadd.f32 %v9327, %v9484
        %v9573 = vadd.f32 %v9328, %v9487
        %v9574 = vadd.f32 %v9329, %v9489
        %v9575 = vadd.f32 %v9330, %v9492
        %v9576 = vadd.f32 %v9331, %v9494
        %v9577 = vadd.f32 %v9332, %v9497
        %v9578 = vadd.f32 %v9333, %v9499
        %v9579 = vadd.f32 %v9334, %v9502
        %v9580 = vadd.f32 %v9335, %v9504
        %v9581 = vadd.f32 %v9336, %v9507
        %v9582 = vadd.f32 %v9337, %v9509
        %v9583 = vadd.f32 %v9338, %v9512
        %v9584 = vadd.f32 %v9339, %v9514
        %v9585 = vadd.f32 %v9340, %v9517
        %v9586 = vadd.f32 %v9341, %v9519
        %v9587 = vadd.f32 %v9342, %v9522
        %v9588 = vadd.f32 %v9343, %v9524
        %v9589 = vlaneseq
        %v9590 = vshrl.u32 %v9589, 7
        %v9591 = vsub.s32 6, %v9590
        %v9592 = vrot.slane %v317, %v9591
        %v9593 = vmul.f32 %v253, %v9592
        %v9594 = vmul.f32 %v254, %v9592
        %v9595 = vmul.f32 %v255, %v9592
        %v9596 = vmul.f32 %v256, %v9592
        %v9597 = vmul.f32 %v257, %v9592
        %v9598 = vmul.f32 %v258, %v9592
        %v9599 = vmul.f32 %v259, %v9592
        %v9600 = vmul.f32 %v260, %v9592
        %v9601 = vmul.f32 %v261, %v9592
        %v9602 = vmul.f32 %v262, %v9592
        %v9603 = vmul.f32 %v263, %v9592
        %v9604 = vmul.f32 %v264, %v9592
        %v9605 = vmul.f32 %v265, %v9592
        %v9606 = vmul.f32 %v266, %v9592
        %v9607 = vmul.f32 %v267, %v9592
        %v9608 = vmul.f32 %v268, %v9592
        %v9609 = vmul.f32 %v269, %v9592
        %v9610 = vmul.f32 %v270, %v9592
        %v9611 = vmul.f32 %v271, %v9592
        %v9612 = vmul.f32 %v272, %v9592
        %v9613 = vmul.f32 %v273, %v9592
        %v9614 = vmul.f32 %v274, %v9592
        %v9615 = vmul.f32 %v275, %v9592
        %v9616 = vmul.f32 %v276, %v9592
        %v9617 = vmul.f32 %v277, %v9592
        %v9618 = vmul.f32 %v278, %v9592
        %v9619 = vmul.f32 %v279, %v9592
        %v9620 = vmul.f32 %v280, %v9592
        %v9621 = vmul.f32 %v281, %v9592
        %v9622 = vmul.f32 %v282, %v9592
        %v9623 = vmul.f32 %v283, %v9592
        %v9624 = vmul.f32 %v284, %v9592
        %v9625 = vmul.f32 %v285, %v9592
        %v9626 = vmul.f32 %v286, %v9592
        %v9627 = vmul.f32 %v287, %v9592
        %v9628 = vmul.f32 %v288, %v9592
        %v9629 = vmul.f32 %v289, %v9592
        %v9630 = vmul.f32 %v290, %v9592
        %v9631 = vmul.f32 %v291, %v9592
        %v9632 = vmul.f32 %v292, %v9592
        %v9633 = vmul.f32 %v293, %v9592
        %v9634 = vmul.f32 %v294, %v9592
        %v9635 = vmul.f32 %v295, %v9592
        %v9636 = vmul.f32 %v296, %v9592
        %v9637 = vmul.f32 %v297, %v9592
        %v9638 = vmul.f32 %v298, %v9592
        %v9639 = vmul.f32 %v299, %v9592
        %v9640 = vmul.f32 %v300, %v9592
        %v9689 = vrot.slane %v9593, 6
        %v9690 = vrot.slane %v9594, 6
        %v9691 = vsel %vm9444, %v9689, %v9690
        %v9692 = vrot.slane %v9595, 6
        %v9693 = vsel %vm9444, %v9690, %v9692
        %v9694 = vrot.slane %v9596, 6
        %v9695 = vrot.slane %v9597, 6
        %v9696 = vsel %vm9444, %v9694, %v9695
        %v9697 = vrot.slane %v9598, 6
        %v9698 = vsel %vm9444, %v9695, %v9697
        %v9699 = vrot.slane %v9599, 6
        %v9700 = vrot.slane %v9600, 6
        %v9701 = vsel %vm9444, %v9699, %v9700
        %v9702 = vrot.slane %v9601, 6
        %v9703 = vsel %vm9444, %v9700, %v9702
        %v9704 = vrot.slane %v9602, 6
        %v9705 = vrot.slane %v9603, 6
        %v9706 = vsel %vm9444, %v9704, %v9705
        %v9707 = vrot.slane %v9604, 6
        %v9708 = vsel %vm9444, %v9705, %v9707
        %v9709 = vrot.slane %v9605, 6
        %v9710 = vrot.slane %v9606, 6
        %v9711 = vsel %vm9444, %v9709, %v9710
        %v9712 = vrot.slane %v9607, 6
        %v9713 = vsel %vm9444, %v9710, %v9712
        %v9714 = vrot.slane %v9608, 6
        %v9715 = vrot.slane %v9609, 6
        %v9716 = vsel %vm9444, %v9714, %v9715
        %v9717 = vrot.slane %v9610, 6
        %v9718 = vsel %vm9444, %v9715, %v9717
        %v9719 = vrot.slane %v9611, 6
        %v9720 = vrot.slane %v9612, 6
        %v9721 = vsel %vm9444, %v9719, %v9720
        %v9722 = vrot.slane %v9613, 6
        %v9723 = vsel %vm9444, %v9720, %v9722
        %v9724 = vrot.slane %v9614, 6
        %v9725 = vrot.slane %v9615, 6
        %v9726 = vsel %vm9444, %v9724, %v9725
        %v9727 = vrot.slane %v9616, 6
        %v9728 = vsel %vm9444, %v9725, %v9727
        %v9729 = vrot.slane %v9617, 6
        %v9730 = vrot.slane %v9618, 6
        %v9731 = vsel %vm9444, %v9729, %v9730
        %v9732 = vrot.slane %v9619, 6
        %v9733 = vsel %vm9444, %v9730, %v9732
        %v9734 = vrot.slane %v9620, 6
        %v9735 = vrot.slane %v9621, 6
        %v9736 = vsel %vm9444, %v9734, %v9735
        %v9737 = vrot.slane %v9622, 6
        %v9738 = vsel %vm9444, %v9735, %v9737
        %v9739 = vrot.slane %v9623, 6
        %v9740 = vrot.slane %v9624, 6
        %v9741 = vsel %vm9444, %v9739, %v9740
        %v9742 = vrot.slane %v9625, 6
        %v9743 = vsel %vm9444, %v9740, %v9742
        %v9744 = vrot.slane %v9626, 6
        %v9745 = vrot.slane %v9627, 6
        %v9746 = vsel %vm9444, %v9744, %v9745
        %v9747 = vrot.slane %v9628, 6
        %v9748 = vsel %vm9444, %v9745, %v9747
        %v9749 = vrot.slane %v9629, 6
        %v9750 = vrot.slane %v9630, 6
        %v9751 = vsel %vm9444, %v9749, %v9750
        %v9752 = vrot.slane %v9631, 6
        %v9753 = vsel %vm9444, %v9750, %v9752
        %v9754 = vrot.slane %v9632, 6
        %v9755 = vrot.slane %v9633, 6
        %v9756 = vsel %vm9444, %v9754, %v9755
        %v9757 = vrot.slane %v9634, 6
        %v9758 = vsel %vm9444, %v9755, %v9757
        %v9759 = vrot.slane %v9635, 6
        %v9760 = vrot.slane %v9636, 6
        %v9761 = vsel %vm9444, %v9759, %v9760
        %v9762 = vrot.slane %v9637, 6
        %v9763 = vsel %vm9444, %v9760, %v9762
        %v9764 = vrot.slane %v9638, 6
        %v9765 = vrot.slane %v9639, 6
        %v9766 = vsel %vm9444, %v9764, %v9765
        %v9767 = vrot.slane %v9640, 6
        %v9768 = vsel %vm9444, %v9765, %v9767
        %v9801 = vadd.f32 %v9557, %v9691
        %v9802 = vadd.f32 %v9558, %v9693
        %v9803 = vadd.f32 %v9559, %v9696
        %v9804 = vadd.f32 %v9560, %v9698
        %v9805 = vadd.f32 %v9561, %v9701
        %v9806 = vadd.f32 %v9562, %v9703
        %v9807 = vadd.f32 %v9563, %v9706
        %v9808 = vadd.f32 %v9564, %v9708
        %v9809 = vadd.f32 %v9565, %v9711
        %v9810 = vadd.f32 %v9566, %v9713
        %v9811 = vadd.f32 %v9567, %v9716
        %v9812 = vadd.f32 %v9568, %v9718
        %v9813 = vadd.f32 %v9569, %v9721
        %v9814 = vadd.f32 %v9570, %v9723
        %v9815 = vadd.f32 %v9571, %v9726
        %v9816 = vadd.f32 %v9572, %v9728
        %v9817 = vadd.f32 %v9573, %v9731
        %v9818 = vadd.f32 %v9574, %v9733
        %v9819 = vadd.f32 %v9575, %v9736
        %v9820 = vadd.f32 %v9576, %v9738
        %v9821 = vadd.f32 %v9577, %v9741
        %v9822 = vadd.f32 %v9578, %v9743
        %v9823 = vadd.f32 %v9579, %v9746
        %v9824 = vadd.f32 %v9580, %v9748
        %v9825 = vadd.f32 %v9581, %v9751
        %v9826 = vadd.f32 %v9582, %v9753
        %v9827 = vadd.f32 %v9583, %v9756
        %v9828 = vadd.f32 %v9584, %v9758
        %v9829 = vadd.f32 %v9585, %v9761
        %v9830 = vadd.f32 %v9586, %v9763
        %v9831 = vadd.f32 %v9587, %v9766
        %v9832 = vadd.f32 %v9588, %v9768
        %v9833 = vlaneseq
        %v9834 = vshrl.u32 %v9833, 7
        %v9835 = vsub.s32 6, %v9834
        %v9836 = vrot.slane %v318, %v9835
        %v9837 = vmul.f32 %v256, %v9836
        %v9838 = vmul.f32 %v257, %v9836
        %v9839 = vmul.f32 %v258, %v9836
        %v9840 = vmul.f32 %v259, %v9836
        %v9841 = vmul.f32 %v260, %v9836
        %v9842 = vmul.f32 %v261, %v9836
        %v9843 = vmul.f32 %v262, %v9836
        %v9844 = vmul.f32 %v263, %v9836
        %v9845 = vmul.f32 %v264, %v9836
        %v9846 = vmul.f32 %v265, %v9836
        %v9847 = vmul.f32 %v266, %v9836
        %v9848 = vmul.f32 %v267, %v9836
        %v9849 = vmul.f32 %v268, %v9836
        %v9850 = vmul.f32 %v269, %v9836
        %v9851 = vmul.f32 %v270, %v9836
        %v9852 = vmul.f32 %v271, %v9836
        %v9853 = vmul.f32 %v272, %v9836
        %v9854 = vmul.f32 %v273, %v9836
        %v9855 = vmul.f32 %v274, %v9836
        %v9856 = vmul.f32 %v275, %v9836
        %v9857 = vmul.f32 %v276, %v9836
        %v9858 = vmul.f32 %v277, %v9836
        %v9859 = vmul.f32 %v278, %v9836
        %v9860 = vmul.f32 %v279, %v9836
        %v9861 = vmul.f32 %v280, %v9836
        %v9862 = vmul.f32 %v281, %v9836
        %v9863 = vmul.f32 %v282, %v9836
        %v9864 = vmul.f32 %v283, %v9836
        %v9865 = vmul.f32 %v284, %v9836
        %v9866 = vmul.f32 %v285, %v9836
        %v9867 = vmul.f32 %v286, %v9836
        %v9868 = vmul.f32 %v287, %v9836
        %v9869 = vmul.f32 %v288, %v9836
        %v9870 = vmul.f32 %v289, %v9836
        %v9871 = vmul.f32 %v290, %v9836
        %v9872 = vmul.f32 %v291, %v9836
        %v9873 = vmul.f32 %v292, %v9836
        %v9874 = vmul.f32 %v293, %v9836
        %v9875 = vmul.f32 %v294, %v9836
        %v9876 = vmul.f32 %v295, %v9836
        %v9877 = vmul.f32 %v296, %v9836
        %v9878 = vmul.f32 %v297, %v9836
        %v9879 = vmul.f32 %v298, %v9836
        %v9880 = vmul.f32 %v299, %v9836
        %v9881 = vmul.f32 %v300, %v9836
        %v9882 = vmul.f32 %v301, %v9836
        %v9883 = vmul.f32 %v302, %v9836
        %v9884 = vmul.f32 %v303, %v9836
        %v9933 = vrot.slane %v9837, 6
        %v9934 = vrot.slane %v9838, 6
        %v9935 = vsel %vm9444, %v9933, %v9934
        %v9936 = vrot.slane %v9839, 6
        %v9937 = vsel %vm9444, %v9934, %v9936
        %v9938 = vrot.slane %v9840, 6
        %v9939 = vrot.slane %v9841, 6
        %v9940 = vsel %vm9444, %v9938, %v9939
        %v9941 = vrot.slane %v9842, 6
        %v9942 = vsel %vm9444, %v9939, %v9941
        %v9943 = vrot.slane %v9843, 6
        %v9944 = vrot.slane %v9844, 6
        %v9945 = vsel %vm9444, %v9943, %v9944
        %v9946 = vrot.slane %v9845, 6
        %v9947 = vsel %vm9444, %v9944, %v9946
        %v9948 = vrot.slane %v9846, 6
        %v9949 = vrot.slane %v9847, 6
        %v9950 = vsel %vm9444, %v9948, %v9949
        %v9951 = vrot.slane %v9848, 6
        %v9952 = vsel %vm9444, %v9949, %v9951
        %v9953 = vrot.slane %v9849, 6
        %v9954 = vrot.slane %v9850, 6
        %v9955 = vsel %vm9444, %v9953, %v9954
        %v9956 = vrot.slane %v9851, 6
        %v9957 = vsel %vm9444, %v9954, %v9956
        %v9958 = vrot.slane %v9852, 6
        %v9959 = vrot.slane %v9853, 6
        %v9960 = vsel %vm9444, %v9958, %v9959
        %v9961 = vrot.slane %v9854, 6
        %v9962 = vsel %vm9444, %v9959, %v9961
        %v9963 = vrot.slane %v9855, 6
        %v9964 = vrot.slane %v9856, 6
        %v9965 = vsel %vm9444, %v9963, %v9964
        %v9966 = vrot.slane %v9857, 6
        %v9967 = vsel %vm9444, %v9964, %v9966
        %v9968 = vrot.slane %v9858, 6
        %v9969 = vrot.slane %v9859, 6
        %v9970 = vsel %vm9444, %v9968, %v9969
        %v9971 = vrot.slane %v9860, 6
        %v9972 = vsel %vm9444, %v9969, %v9971
        %v9973 = vrot.slane %v9861, 6
        %v9974 = vrot.slane %v9862, 6
        %v9975 = vsel %vm9444, %v9973, %v9974
        %v9976 = vrot.slane %v9863, 6
        %v9977 = vsel %vm9444, %v9974, %v9976
        %v9978 = vrot.slane %v9864, 6
        %v9979 = vrot.slane %v9865, 6
        %v9980 = vsel %vm9444, %v9978, %v9979
        %v9981 = vrot.slane %v9866, 6
        %v9982 = vsel %vm9444, %v9979, %v9981
        %v9983 = vrot.slane %v9867, 6
        %v9984 = vrot.slane %v9868, 6
        %v9985 = vsel %vm9444, %v9983, %v9984
        %v9986 = vrot.slane %v9869, 6
        %v9987 = vsel %vm9444, %v9984, %v9986
        %v9988 = vrot.slane %v9870, 6
        %v9989 = vrot.slane %v9871, 6
        %v9990 = vsel %vm9444, %v9988, %v9989
        %v9991 = vrot.slane %v9872, 6
        %v9992 = vsel %vm9444, %v9989, %v9991
        %v9993 = vrot.slane %v9873, 6
        %v9994 = vrot.slane %v9874, 6
        %v9995 = vsel %vm9444, %v9993, %v9994
        %v9996 = vrot.slane %v9875, 6
        %v9997 = vsel %vm9444, %v9994, %v9996
        %v9998 = vrot.slane %v9876, 6
        %v9999 = vrot.slane %v9877, 6
        %v10000 = vsel %vm9444, %v9998, %v9999
        %v10001 = vrot.slane %v9878, 6
        %v10002 = vsel %vm9444, %v9999, %v10001
        %v10003 = vrot.slane %v9879, 6
        %v10004 = vrot.slane %v9880, 6
        %v10005 = vsel %vm9444, %v10003, %v10004
        %v10006 = vrot.slane %v9881, 6
        %v10007 = vsel %vm9444, %v10004, %v10006
        %v10008 = vrot.slane %v9882, 6
        %v10009 = vrot.slane %v9883, 6
        %v10010 = vsel %vm9444, %v10008, %v10009
        %v10011 = vrot.slane %v9884, 6
        %v10012 = vsel %vm9444, %v10009, %v10011
        %v10045 = vadd.f32 %v9801, %v9935
        %v10046 = vadd.f32 %v9802, %v9937
        %v10047 = vadd.f32 %v9803, %v9940
        %v10048 = vadd.f32 %v9804, %v9942
        %v10049 = vadd.f32 %v9805, %v9945
        %v10050 = vadd.f32 %v9806, %v9947
        %v10051 = vadd.f32 %v9807, %v9950
        %v10052 = vadd.f32 %v9808, %v9952
        %v10053 = vadd.f32 %v9809, %v9955
        %v10054 = vadd.f32 %v9810, %v9957
        %v10055 = vadd.f32 %v9811, %v9960
        %v10056 = vadd.f32 %v9812, %v9962
        %v10057 = vadd.f32 %v9813, %v9965
        %v10058 = vadd.f32 %v9814, %v9967
        %v10059 = vadd.f32 %v9815, %v9970
        %v10060 = vadd.f32 %v9816, %v9972
        %v10061 = vadd.f32 %v9817, %v9975
        %v10062 = vadd.f32 %v9818, %v9977
        %v10063 = vadd.f32 %v9819, %v9980
        %v10064 = vadd.f32 %v9820, %v9982
        %v10065 = vadd.f32 %v9821, %v9985
        %v10066 = vadd.f32 %v9822, %v9987
        %v10067 = vadd.f32 %v9823, %v9990
        %v10068 = vadd.f32 %v9824, %v9992
        %v10069 = vadd.f32 %v9825, %v9995
        %v10070 = vadd.f32 %v9826, %v9997
        %v10071 = vadd.f32 %v9827, %v10000
        %v10072 = vadd.f32 %v9828, %v10002
        %v10073 = vadd.f32 %v9829, %v10005
        %v10074 = vadd.f32 %v9830, %v10007
        %v10075 = vadd.f32 %v9831, %v10010
        %v10076 = vadd.f32 %v9832, %v10012
        %v10077 = vlaneseq
        %v10078 = vshrl.u32 %v10077, 7
        %v10079 = vsub.s32 6, %v10078
        %v10080 = vrot.slane %v319, %v10079
        %v10081 = vmul.f32 %v259, %v10080
        %v10082 = vmul.f32 %v260, %v10080
        %v10083 = vmul.f32 %v261, %v10080
        %v10084 = vmul.f32 %v262, %v10080
        %v10085 = vmul.f32 %v263, %v10080
        %v10086 = vmul.f32 %v264, %v10080
        %v10087 = vmul.f32 %v265, %v10080
        %v10088 = vmul.f32 %v266, %v10080
        %v10089 = vmul.f32 %v267, %v10080
        %v10090 = vmul.f32 %v268, %v10080
        %v10091 = vmul.f32 %v269, %v10080
        %v10092 = vmul.f32 %v270, %v10080
        %v10093 = vmul.f32 %v271, %v10080
        %v10094 = vmul.f32 %v272, %v10080
        %v10095 = vmul.f32 %v273, %v10080
        %v10096 = vmul.f32 %v274, %v10080
        %v10097 = vmul.f32 %v275, %v10080
        %v10098 = vmul.f32 %v276, %v10080
        %v10099 = vmul.f32 %v277, %v10080
        %v10100 = vmul.f32 %v278, %v10080
        %v10101 = vmul.f32 %v279, %v10080
        %v10102 = vmul.f32 %v280, %v10080
        %v10103 = vmul.f32 %v281, %v10080
        %v10104 = vmul.f32 %v282, %v10080
        %v10105 = vmul.f32 %v283, %v10080
        %v10106 = vmul.f32 %v284, %v10080
        %v10107 = vmul.f32 %v285, %v10080
        %v10108 = vmul.f32 %v286, %v10080
        %v10109 = vmul.f32 %v287, %v10080
        %v10110 = vmul.f32 %v288, %v10080
        %v10111 = vmul.f32 %v289, %v10080
        %v10112 = vmul.f32 %v290, %v10080
        %v10113 = vmul.f32 %v291, %v10080
        %v10114 = vmul.f32 %v292, %v10080
        %v10115 = vmul.f32 %v293, %v10080
        %v10116 = vmul.f32 %v294, %v10080
        %v10117 = vmul.f32 %v295, %v10080
        %v10118 = vmul.f32 %v296, %v10080
        %v10119 = vmul.f32 %v297, %v10080
        %v10120 = vmul.f32 %v298, %v10080
        %v10121 = vmul.f32 %v299, %v10080
        %v10122 = vmul.f32 %v300, %v10080
        %v10123 = vmul.f32 %v301, %v10080
        %v10124 = vmul.f32 %v302, %v10080
        %v10125 = vmul.f32 %v303, %v10080
        %v10126 = vmul.f32 %v304, %v10080
        %v10127 = vmul.f32 %v305, %v10080
        %v10128 = vmul.f32 %v306, %v10080
        %v10177 = vrot.slane %v10081, 6
        %v10178 = vrot.slane %v10082, 6
        %v10179 = vsel %vm9444, %v10177, %v10178
        %v10180 = vrot.slane %v10083, 6
        %v10181 = vsel %vm9444, %v10178, %v10180
        %v10182 = vrot.slane %v10084, 6
        %v10183 = vrot.slane %v10085, 6
        %v10184 = vsel %vm9444, %v10182, %v10183
        %v10185 = vrot.slane %v10086, 6
        %v10186 = vsel %vm9444, %v10183, %v10185
        %v10187 = vrot.slane %v10087, 6
        %v10188 = vrot.slane %v10088, 6
        %v10189 = vsel %vm9444, %v10187, %v10188
        %v10190 = vrot.slane %v10089, 6
        %v10191 = vsel %vm9444, %v10188, %v10190
        %v10192 = vrot.slane %v10090, 6
        %v10193 = vrot.slane %v10091, 6
        %v10194 = vsel %vm9444, %v10192, %v10193
        %v10195 = vrot.slane %v10092, 6
        %v10196 = vsel %vm9444, %v10193, %v10195
        %v10197 = vrot.slane %v10093, 6
        %v10198 = vrot.slane %v10094, 6
        %v10199 = vsel %vm9444, %v10197, %v10198
        %v10200 = vrot.slane %v10095, 6
        %v10201 = vsel %vm9444, %v10198, %v10200
        %v10202 = vrot.slane %v10096, 6
        %v10203 = vrot.slane %v10097, 6
        %v10204 = vsel %vm9444, %v10202, %v10203
        %v10205 = vrot.slane %v10098, 6
        %v10206 = vsel %vm9444, %v10203, %v10205
        %v10207 = vrot.slane %v10099, 6
        %v10208 = vrot.slane %v10100, 6
        %v10209 = vsel %vm9444, %v10207, %v10208
        %v10210 = vrot.slane %v10101, 6
        %v10211 = vsel %vm9444, %v10208, %v10210
        %v10212 = vrot.slane %v10102, 6
        %v10213 = vrot.slane %v10103, 6
        %v10214 = vsel %vm9444, %v10212, %v10213
        %v10215 = vrot.slane %v10104, 6
        %v10216 = vsel %vm9444, %v10213, %v10215
        %v10217 = vrot.slane %v10105, 6
        %v10218 = vrot.slane %v10106, 6
        %v10219 = vsel %vm9444, %v10217, %v10218
        %v10220 = vrot.slane %v10107, 6
        %v10221 = vsel %vm9444, %v10218, %v10220
        %v10222 = vrot.slane %v10108, 6
        %v10223 = vrot.slane %v10109, 6
        %v10224 = vsel %vm9444, %v10222, %v10223
        %v10225 = vrot.slane %v10110, 6
        %v10226 = vsel %vm9444, %v10223, %v10225
        %v10227 = vrot.slane %v10111, 6
        %v10228 = vrot.slane %v10112, 6
        %v10229 = vsel %vm9444, %v10227, %v10228
        %v10230 = vrot.slane %v10113, 6
        %v10231 = vsel %vm9444, %v10228, %v10230
        %v10232 = vrot.slane %v10114, 6
        %v10233 = vrot.slane %v10115, 6
        %v10234 = vsel %vm9444, %v10232, %v10233
        %v10235 = vrot.slane %v10116, 6
        %v10236 = vsel %vm9444, %v10233, %v10235
        %v10237 = vrot.slane %v10117, 6
        %v10238 = vrot.slane %v10118, 6
        %v10239 = vsel %vm9444, %v10237, %v10238
        %v10240 = vrot.slane %v10119, 6
        %v10241 = vsel %vm9444, %v10238, %v10240
        %v10242 = vrot.slane %v10120, 6
        %v10243 = vrot.slane %v10121, 6
        %v10244 = vsel %vm9444, %v10242, %v10243
        %v10245 = vrot.slane %v10122, 6
        %v10246 = vsel %vm9444, %v10243, %v10245
        %v10247 = vrot.slane %v10123, 6
        %v10248 = vrot.slane %v10124, 6
        %v10249 = vsel %vm9444, %v10247, %v10248
        %v10250 = vrot.slane %v10125, 6
        %v10251 = vsel %vm9444, %v10248, %v10250
        %v10252 = vrot.slane %v10126, 6
        %v10253 = vrot.slane %v10127, 6
        %v10254 = vsel %vm9444, %v10252, %v10253
        %v10255 = vrot.slane %v10128, 6
        %v10256 = vsel %vm9444, %v10253, %v10255
        %v10289 = vadd.f32 %v10045, %v10179
        %v10290 = vadd.f32 %v10046, %v10181
        %v10291 = vadd.f32 %v10047, %v10184
        %v10292 = vadd.f32 %v10048, %v10186
        %v10293 = vadd.f32 %v10049, %v10189
        %v10294 = vadd.f32 %v10050, %v10191
        %v10295 = vadd.f32 %v10051, %v10194
        %v10296 = vadd.f32 %v10052, %v10196
        %v10297 = vadd.f32 %v10053, %v10199
        %v10298 = vadd.f32 %v10054, %v10201
        %v10299 = vadd.f32 %v10055, %v10204
        %v10300 = vadd.f32 %v10056, %v10206
        %v10301 = vadd.f32 %v10057, %v10209
        %v10302 = vadd.f32 %v10058, %v10211
        %v10303 = vadd.f32 %v10059, %v10214
        %v10304 = vadd.f32 %v10060, %v10216
        %v10305 = vadd.f32 %v10061, %v10219
        %v10306 = vadd.f32 %v10062, %v10221
        %v10307 = vadd.f32 %v10063, %v10224
        %v10308 = vadd.f32 %v10064, %v10226
        %v10309 = vadd.f32 %v10065, %v10229
        %v10310 = vadd.f32 %v10066, %v10231
        %v10311 = vadd.f32 %v10067, %v10234
        %v10312 = vadd.f32 %v10068, %v10236
        %v10313 = vadd.f32 %v10069, %v10239
        %v10314 = vadd.f32 %v10070, %v10241
        %v10315 = vadd.f32 %v10071, %v10244
        %v10316 = vadd.f32 %v10072, %v10246
        %v10317 = vadd.f32 %v10073, %v10249
        %v10318 = vadd.f32 %v10074, %v10251
        %v10319 = vadd.f32 %v10075, %v10254
        %v10320 = vadd.f32 %v10076, %v10256
        %v10321 = vlaneseq
        %v10322 = vshrl.u32 %v10321, 7
        %v10323 = vsub.s32 6, %v10322
        %v10324 = vrot.slane %v320, %v10323
        %v10325 = vmul.f32 %v262, %v10324
        %v10326 = vmul.f32 %v263, %v10324
        %v10327 = vmul.f32 %v264, %v10324
        %v10328 = vmul.f32 %v265, %v10324
        %v10329 = vmul.f32 %v266, %v10324
        %v10330 = vmul.f32 %v267, %v10324
        %v10331 = vmul.f32 %v268, %v10324
        %v10332 = vmul.f32 %v269, %v10324
        %v10333 = vmul.f32 %v270, %v10324
        %v10334 = vmul.f32 %v271, %v10324
        %v10335 = vmul.f32 %v272, %v10324
        %v10336 = vmul.f32 %v273, %v10324
        %v10337 = vmul.f32 %v274, %v10324
        %v10338 = vmul.f32 %v275, %v10324
        %v10339 = vmul.f32 %v276, %v10324
        %v10340 = vmul.f32 %v277, %v10324
        %v10341 = vmul.f32 %v278, %v10324
        %v10342 = vmul.f32 %v279, %v10324
        %v10343 = vmul.f32 %v280, %v10324
        %v10344 = vmul.f32 %v281, %v10324
        %v10345 = vmul.f32 %v282, %v10324
        %v10346 = vmul.f32 %v283, %v10324
        %v10347 = vmul.f32 %v284, %v10324
        %v10348 = vmul.f32 %v285, %v10324
        %v10349 = vmul.f32 %v286, %v10324
        %v10350 = vmul.f32 %v287, %v10324
        %v10351 = vmul.f32 %v288, %v10324
        %v10352 = vmul.f32 %v289, %v10324
        %v10353 = vmul.f32 %v290, %v10324
        %v10354 = vmul.f32 %v291, %v10324
        %v10355 = vmul.f32 %v292, %v10324
        %v10356 = vmul.f32 %v293, %v10324
        %v10357 = vmul.f32 %v294, %v10324
        %v10358 = vmul.f32 %v295, %v10324
        %v10359 = vmul.f32 %v296, %v10324
        %v10360 = vmul.f32 %v297, %v10324
        %v10361 = vmul.f32 %v298, %v10324
        %v10362 = vmul.f32 %v299, %v10324
        %v10363 = vmul.f32 %v300, %v10324
        %v10364 = vmul.f32 %v301, %v10324
        %v10365 = vmul.f32 %v302, %v10324
        %v10366 = vmul.f32 %v303, %v10324
        %v10367 = vmul.f32 %v304, %v10324
        %v10368 = vmul.f32 %v305, %v10324
        %v10369 = vmul.f32 %v306, %v10324
        %v10370 = vmul.f32 %v307, %v10324
        %v10371 = vmul.f32 %v308, %v10324
        %v10372 = vmul.f32 %v309, %v10324
        %v10421 = vrot.slane %v10325, 6
        %v10422 = vrot.slane %v10326, 6
        %v10423 = vsel %vm9444, %v10421, %v10422
        %v10424 = vrot.slane %v10327, 6
        %v10425 = vsel %vm9444, %v10422, %v10424
        %v10426 = vrot.slane %v10328, 6
        %v10427 = vrot.slane %v10329, 6
        %v10428 = vsel %vm9444, %v10426, %v10427
        %v10429 = vrot.slane %v10330, 6
        %v10430 = vsel %vm9444, %v10427, %v10429
        %v10431 = vrot.slane %v10331, 6
        %v10432 = vrot.slane %v10332, 6
        %v10433 = vsel %vm9444, %v10431, %v10432
        %v10434 = vrot.slane %v10333, 6
        %v10435 = vsel %vm9444, %v10432, %v10434
        %v10436 = vrot.slane %v10334, 6
        %v10437 = vrot.slane %v10335, 6
        %v10438 = vsel %vm9444, %v10436, %v10437
        %v10439 = vrot.slane %v10336, 6
        %v10440 = vsel %vm9444, %v10437, %v10439
        %v10441 = vrot.slane %v10337, 6
        %v10442 = vrot.slane %v10338, 6
        %v10443 = vsel %vm9444, %v10441, %v10442
        %v10444 = vrot.slane %v10339, 6
        %v10445 = vsel %vm9444, %v10442, %v10444
        %v10446 = vrot.slane %v10340, 6
        %v10447 = vrot.slane %v10341, 6
        %v10448 = vsel %vm9444, %v10446, %v10447
        %v10449 = vrot.slane %v10342, 6
        %v10450 = vsel %vm9444, %v10447, %v10449
        %v10451 = vrot.slane %v10343, 6
        %v10452 = vrot.slane %v10344, 6
        %v10453 = vsel %vm9444, %v10451, %v10452
        %v10454 = vrot.slane %v10345, 6
        %v10455 = vsel %vm9444, %v10452, %v10454
        %v10456 = vrot.slane %v10346, 6
        %v10457 = vrot.slane %v10347, 6
        %v10458 = vsel %vm9444, %v10456, %v10457
        %v10459 = vrot.slane %v10348, 6
        %v10460 = vsel %vm9444, %v10457, %v10459
        %v10461 = vrot.slane %v10349, 6
        %v10462 = vrot.slane %v10350, 6
        %v10463 = vsel %vm9444, %v10461, %v10462
        %v10464 = vrot.slane %v10351, 6
        %v10465 = vsel %vm9444, %v10462, %v10464
        %v10466 = vrot.slane %v10352, 6
        %v10467 = vrot.slane %v10353, 6
        %v10468 = vsel %vm9444, %v10466, %v10467
        %v10469 = vrot.slane %v10354, 6
        %v10470 = vsel %vm9444, %v10467, %v10469
        %v10471 = vrot.slane %v10355, 6
        %v10472 = vrot.slane %v10356, 6
        %v10473 = vsel %vm9444, %v10471, %v10472
        %v10474 = vrot.slane %v10357, 6
        %v10475 = vsel %vm9444, %v10472, %v10474
        %v10476 = vrot.slane %v10358, 6
        %v10477 = vrot.slane %v10359, 6
        %v10478 = vsel %vm9444, %v10476, %v10477
        %v10479 = vrot.slane %v10360, 6
        %v10480 = vsel %vm9444, %v10477, %v10479
        %v10481 = vrot.slane %v10361, 6
        %v10482 = vrot.slane %v10362, 6
        %v10483 = vsel %vm9444, %v10481, %v10482
        %v10484 = vrot.slane %v10363, 6
        %v10485 = vsel %vm9444, %v10482, %v10484
        %v10486 = vrot.slane %v10364, 6
        %v10487 = vrot.slane %v10365, 6
        %v10488 = vsel %vm9444, %v10486, %v10487
        %v10489 = vrot.slane %v10366, 6
        %v10490 = vsel %vm9444, %v10487, %v10489
        %v10491 = vrot.slane %v10367, 6
        %v10492 = vrot.slane %v10368, 6
        %v10493 = vsel %vm9444, %v10491, %v10492
        %v10494 = vrot.slane %v10369, 6
        %v10495 = vsel %vm9444, %v10492, %v10494
        %v10496 = vrot.slane %v10370, 6
        %v10497 = vrot.slane %v10371, 6
        %v10498 = vsel %vm9444, %v10496, %v10497
        %v10499 = vrot.slane %v10372, 6
        %v10500 = vsel %vm9444, %v10497, %v10499
        %v10533 = vadd.f32 %v10289, %v10423
        %v10534 = vadd.f32 %v10290, %v10425
        %v10535 = vadd.f32 %v10291, %v10428
        %v10536 = vadd.f32 %v10292, %v10430
        %v10537 = vadd.f32 %v10293, %v10433
        %v10538 = vadd.f32 %v10294, %v10435
        %v10539 = vadd.f32 %v10295, %v10438
        %v10540 = vadd.f32 %v10296, %v10440
        %v10541 = vadd.f32 %v10297, %v10443
        %v10542 = vadd.f32 %v10298, %v10445
        %v10543 = vadd.f32 %v10299, %v10448
        %v10544 = vadd.f32 %v10300, %v10450
        %v10545 = vadd.f32 %v10301, %v10453
        %v10546 = vadd.f32 %v10302, %v10455
        %v10547 = vadd.f32 %v10303, %v10458
        %v10548 = vadd.f32 %v10304, %v10460
        %v10549 = vadd.f32 %v10305, %v10463
        %v10550 = vadd.f32 %v10306, %v10465
        %v10551 = vadd.f32 %v10307, %v10468
        %v10552 = vadd.f32 %v10308, %v10470
        %v10553 = vadd.f32 %v10309, %v10473
        %v10554 = vadd.f32 %v10310, %v10475
        %v10555 = vadd.f32 %v10311, %v10478
        %v10556 = vadd.f32 %v10312, %v10480
        %v10557 = vadd.f32 %v10313, %v10483
        %v10558 = vadd.f32 %v10314, %v10485
        %v10559 = vadd.f32 %v10315, %v10488
        %v10560 = vadd.f32 %v10316, %v10490
        %v10561 = vadd.f32 %v10317, %v10493
        %v10562 = vadd.f32 %v10318, %v10495
        %v10563 = vadd.f32 %v10319, %v10498
        %v10564 = vadd.f32 %v10320, %v10500
        %v10565 = vlaneseq
        %v10566 = vshrl.u32 %v10565, 7
        %v10567 = vsub.s32 6, %v10566
        %v10568 = vrot.slane %v321, %v10567
        %v10569 = vmul.f32 %v265, %v10568
        %v10570 = vmul.f32 %v266, %v10568
        %v10571 = vmul.f32 %v267, %v10568
        %v10572 = vmul.f32 %v268, %v10568
        %v10573 = vmul.f32 %v269, %v10568
        %v10574 = vmul.f32 %v270, %v10568
        %v10575 = vmul.f32 %v271, %v10568
        %v10576 = vmul.f32 %v272, %v10568
        %v10577 = vmul.f32 %v273, %v10568
        %v10578 = vmul.f32 %v274, %v10568
        %v10579 = vmul.f32 %v275, %v10568
        %v10580 = vmul.f32 %v276, %v10568
        %v10581 = vmul.f32 %v277, %v10568
        %v10582 = vmul.f32 %v278, %v10568
        %v10583 = vmul.f32 %v279, %v10568
        %v10584 = vmul.f32 %v280, %v10568
        %v10585 = vmul.f32 %v281, %v10568
        %v10586 = vmul.f32 %v282, %v10568
        %v10587 = vmul.f32 %v283, %v10568
        %v10588 = vmul.f32 %v284, %v10568
        %v10589 = vmul.f32 %v285, %v10568
        %v10590 = vmul.f32 %v286, %v10568
        %v10591 = vmul.f32 %v287, %v10568
        %v10592 = vmul.f32 %v288, %v10568
        %v10593 = vmul.f32 %v289, %v10568
        %v10594 = vmul.f32 %v290, %v10568
        %v10595 = vmul.f32 %v291, %v10568
        %v10596 = vmul.f32 %v292, %v10568
        %v10597 = vmul.f32 %v293, %v10568
        %v10598 = vmul.f32 %v294, %v10568
        %v10599 = vmul.f32 %v295, %v10568
        %v10600 = vmul.f32 %v296, %v10568
        %v10601 = vmul.f32 %v297, %v10568
        %v10602 = vmul.f32 %v298, %v10568
        %v10603 = vmul.f32 %v299, %v10568
        %v10604 = vmul.f32 %v300, %v10568
        %v10605 = vmul.f32 %v301, %v10568
        %v10606 = vmul.f32 %v302, %v10568
        %v10607 = vmul.f32 %v303, %v10568
        %v10608 = vmul.f32 %v304, %v10568
        %v10609 = vmul.f32 %v305, %v10568
        %v10610 = vmul.f32 %v306, %v10568
        %v10611 = vmul.f32 %v307, %v10568
        %v10612 = vmul.f32 %v308, %v10568
        %v10613 = vmul.f32 %v309, %v10568
        %v10614 = vmul.f32 %v310, %v10568
        %v10615 = vmul.f32 %v311, %v10568
        %v10616 = vmul.f32 %v312, %v10568
        %v10665 = vrot.slane %v10569, 6
        %v10666 = vrot.slane %v10570, 6
        %v10667 = vsel %vm9444, %v10665, %v10666
        %v10668 = vrot.slane %v10571, 6
        %v10669 = vsel %vm9444, %v10666, %v10668
        %v10670 = vrot.slane %v10572, 6
        %v10671 = vrot.slane %v10573, 6
        %v10672 = vsel %vm9444, %v10670, %v10671
        %v10673 = vrot.slane %v10574, 6
        %v10674 = vsel %vm9444, %v10671, %v10673
        %v10675 = vrot.slane %v10575, 6
        %v10676 = vrot.slane %v10576, 6
        %v10677 = vsel %vm9444, %v10675, %v10676
        %v10678 = vrot.slane %v10577, 6
        %v10679 = vsel %vm9444, %v10676, %v10678
        %v10680 = vrot.slane %v10578, 6
        %v10681 = vrot.slane %v10579, 6
        %v10682 = vsel %vm9444, %v10680, %v10681
        %v10683 = vrot.slane %v10580, 6
        %v10684 = vsel %vm9444, %v10681, %v10683
        %v10685 = vrot.slane %v10581, 6
        %v10686 = vrot.slane %v10582, 6
        %v10687 = vsel %vm9444, %v10685, %v10686
        %v10688 = vrot.slane %v10583, 6
        %v10689 = vsel %vm9444, %v10686, %v10688
        %v10690 = vrot.slane %v10584, 6
        %v10691 = vrot.slane %v10585, 6
        %v10692 = vsel %vm9444, %v10690, %v10691
        %v10693 = vrot.slane %v10586, 6
        %v10694 = vsel %vm9444, %v10691, %v10693
        %v10695 = vrot.slane %v10587, 6
        %v10696 = vrot.slane %v10588, 6
        %v10697 = vsel %vm9444, %v10695, %v10696
        %v10698 = vrot.slane %v10589, 6
        %v10699 = vsel %vm9444, %v10696, %v10698
        %v10700 = vrot.slane %v10590, 6
        %v10701 = vrot.slane %v10591, 6
        %v10702 = vsel %vm9444, %v10700, %v10701
        %v10703 = vrot.slane %v10592, 6
        %v10704 = vsel %vm9444, %v10701, %v10703
        %v10705 = vrot.slane %v10593, 6
        %v10706 = vrot.slane %v10594, 6
        %v10707 = vsel %vm9444, %v10705, %v10706
        %v10708 = vrot.slane %v10595, 6
        %v10709 = vsel %vm9444, %v10706, %v10708
        %v10710 = vrot.slane %v10596, 6
        %v10711 = vrot.slane %v10597, 6
        %v10712 = vsel %vm9444, %v10710, %v10711
        %v10713 = vrot.slane %v10598, 6
        %v10714 = vsel %vm9444, %v10711, %v10713
        %v10715 = vrot.slane %v10599, 6
        %v10716 = vrot.slane %v10600, 6
        %v10717 = vsel %vm9444, %v10715, %v10716
        %v10718 = vrot.slane %v10601, 6
        %v10719 = vsel %vm9444, %v10716, %v10718
        %v10720 = vrot.slane %v10602, 6
        %v10721 = vrot.slane %v10603, 6
        %v10722 = vsel %vm9444, %v10720, %v10721
        %v10723 = vrot.slane %v10604, 6
        %v10724 = vsel %vm9444, %v10721, %v10723
        %v10725 = vrot.slane %v10605, 6
        %v10726 = vrot.slane %v10606, 6
        %v10727 = vsel %vm9444, %v10725, %v10726
        %v10728 = vrot.slane %v10607, 6
        %v10729 = vsel %vm9444, %v10726, %v10728
        %v10730 = vrot.slane %v10608, 6
        %v10731 = vrot.slane %v10609, 6
        %v10732 = vsel %vm9444, %v10730, %v10731
        %v10733 = vrot.slane %v10610, 6
        %v10734 = vsel %vm9444, %v10731, %v10733
        %v10735 = vrot.slane %v10611, 6
        %v10736 = vrot.slane %v10612, 6
        %v10737 = vsel %vm9444, %v10735, %v10736
        %v10738 = vrot.slane %v10613, 6
        %v10739 = vsel %vm9444, %v10736, %v10738
        %v10740 = vrot.slane %v10614, 6
        %v10741 = vrot.slane %v10615, 6
        %v10742 = vsel %vm9444, %v10740, %v10741
        %v10743 = vrot.slane %v10616, 6
        %v10744 = vsel %vm9444, %v10741, %v10743
        %v10777 = vadd.f32 %v10533, %v10667
        %v10778 = vadd.f32 %v10534, %v10669
        %v10779 = vadd.f32 %v10535, %v10672
        %v10780 = vadd.f32 %v10536, %v10674
        %v10781 = vadd.f32 %v10537, %v10677
        %v10782 = vadd.f32 %v10538, %v10679
        %v10783 = vadd.f32 %v10539, %v10682
        %v10784 = vadd.f32 %v10540, %v10684
        %v10785 = vadd.f32 %v10541, %v10687
        %v10786 = vadd.f32 %v10542, %v10689
        %v10787 = vadd.f32 %v10543, %v10692
        %v10788 = vadd.f32 %v10544, %v10694
        %v10789 = vadd.f32 %v10545, %v10697
        %v10790 = vadd.f32 %v10546, %v10699
        %v10791 = vadd.f32 %v10547, %v10702
        %v10792 = vadd.f32 %v10548, %v10704
        %v10793 = vadd.f32 %v10549, %v10707
        %v10794 = vadd.f32 %v10550, %v10709
        %v10795 = vadd.f32 %v10551, %v10712
        %v10796 = vadd.f32 %v10552, %v10714
        %v10797 = vadd.f32 %v10553, %v10717
        %v10798 = vadd.f32 %v10554, %v10719
        %v10799 = vadd.f32 %v10555, %v10722
        %v10800 = vadd.f32 %v10556, %v10724
        %v10801 = vadd.f32 %v10557, %v10727
        %v10802 = vadd.f32 %v10558, %v10729
        %v10803 = vadd.f32 %v10559, %v10732
        %v10804 = vadd.f32 %v10560, %v10734
        %v10805 = vadd.f32 %v10561, %v10737
        %v10806 = vadd.f32 %v10562, %v10739
        %v10807 = vadd.f32 %v10563, %v10742
        %v10808 = vadd.f32 %v10564, %v10744
        %v10809 = vlaneseq
        %v10810 = vshrl.u32 %v10809, 7
        %v10811 = vsub.s32 6, %v10810
        %v10812 = vrot.slane %v322, %v10811
        %v10813 = vmul.f32 %v268, %v10812
        %v10814 = vmul.f32 %v269, %v10812
        %v10815 = vmul.f32 %v270, %v10812
        %v10816 = vmul.f32 %v271, %v10812
        %v10817 = vmul.f32 %v272, %v10812
        %v10818 = vmul.f32 %v273, %v10812
        %v10819 = vmul.f32 %v274, %v10812
        %v10820 = vmul.f32 %v275, %v10812
        %v10821 = vmul.f32 %v276, %v10812
        %v10822 = vmul.f32 %v277, %v10812
        %v10823 = vmul.f32 %v278, %v10812
        %v10824 = vmul.f32 %v279, %v10812
        %v10825 = vmul.f32 %v280, %v10812
        %v10826 = vmul.f32 %v281, %v10812
        %v10827 = vmul.f32 %v282, %v10812
        %v10828 = vmul.f32 %v283, %v10812
        %v10829 = vmul.f32 %v284, %v10812
        %v10830 = vmul.f32 %v285, %v10812
        %v10831 = vmul.f32 %v286, %v10812
        %v10832 = vmul.f32 %v287, %v10812
        %v10833 = vmul.f32 %v288, %v10812
        %v10834 = vmul.f32 %v289, %v10812
        %v10835 = vmul.f32 %v290, %v10812
        %v10836 = vmul.f32 %v291, %v10812
        %v10837 = vmul.f32 %v292, %v10812
        %v10838 = vmul.f32 %v293, %v10812
        %v10839 = vmul.f32 %v294, %v10812
        %v10840 = vmul.f32 %v295, %v10812
        %v10841 = vmul.f32 %v296, %v10812
        %v10842 = vmul.f32 %v297, %v10812
        %v10843 = vmul.f32 %v298, %v10812
        %v10844 = vmul.f32 %v299, %v10812
        %v10845 = vmul.f32 %v300, %v10812
        %v10846 = vmul.f32 %v301, %v10812
        %v10847 = vmul.f32 %v302, %v10812
        %v10848 = vmul.f32 %v303, %v10812
        %v10849 = vmul.f32 %v304, %v10812
        %v10850 = vmul.f32 %v305, %v10812
        %v10851 = vmul.f32 %v306, %v10812
        %v10852 = vmul.f32 %v307, %v10812
        %v10853 = vmul.f32 %v308, %v10812
        %v10854 = vmul.f32 %v309, %v10812
        %v10855 = vmul.f32 %v310, %v10812
        %v10856 = vmul.f32 %v311, %v10812
        %v10857 = vmul.f32 %v312, %v10812
        %v10858 = vmul.f32 %v313, %v10812
        %v10859 = vmul.f32 %v314, %v10812
        %v10860 = vmul.f32 %v315, %v10812
        %v10909 = vrot.slane %v10813, 6
        %v10910 = vrot.slane %v10814, 6
        %v10911 = vsel %vm9444, %v10909, %v10910
        %v10912 = vrot.slane %v10815, 6
        %v10913 = vsel %vm9444, %v10910, %v10912
        %v10914 = vrot.slane %v10816, 6
        %v10915 = vrot.slane %v10817, 6
        %v10916 = vsel %vm9444, %v10914, %v10915
        %v10917 = vrot.slane %v10818, 6
        %v10918 = vsel %vm9444, %v10915, %v10917
        %v10919 = vrot.slane %v10819, 6
        %v10920 = vrot.slane %v10820, 6
        %v10921 = vsel %vm9444, %v10919, %v10920
        %v10922 = vrot.slane %v10821, 6
        %v10923 = vsel %vm9444, %v10920, %v10922
        %v10924 = vrot.slane %v10822, 6
        %v10925 = vrot.slane %v10823, 6
        %v10926 = vsel %vm9444, %v10924, %v10925
        %v10927 = vrot.slane %v10824, 6
        %v10928 = vsel %vm9444, %v10925, %v10927
        %v10929 = vrot.slane %v10825, 6
        %v10930 = vrot.slane %v10826, 6
        %v10931 = vsel %vm9444, %v10929, %v10930
        %v10932 = vrot.slane %v10827, 6
        %v10933 = vsel %vm9444, %v10930, %v10932
        %v10934 = vrot.slane %v10828, 6
        %v10935 = vrot.slane %v10829, 6
        %v10936 = vsel %vm9444, %v10934, %v10935
        %v10937 = vrot.slane %v10830, 6
        %v10938 = vsel %vm9444, %v10935, %v10937
        %v10939 = vrot.slane %v10831, 6
        %v10940 = vrot.slane %v10832, 6
        %v10941 = vsel %vm9444, %v10939, %v10940
        %v10942 = vrot.slane %v10833, 6
        %v10943 = vsel %vm9444, %v10940, %v10942
        %v10944 = vrot.slane %v10834, 6
        %v10945 = vrot.slane %v10835, 6
        %v10946 = vsel %vm9444, %v10944, %v10945
        %v10947 = vrot.slane %v10836, 6
        %v10948 = vsel %vm9444, %v10945, %v10947
        %v10949 = vrot.slane %v10837, 6
        %v10950 = vrot.slane %v10838, 6
        %v10951 = vsel %vm9444, %v10949, %v10950
        %v10952 = vrot.slane %v10839, 6
        %v10953 = vsel %vm9444, %v10950, %v10952
        %v10954 = vrot.slane %v10840, 6
        %v10955 = vrot.slane %v10841, 6
        %v10956 = vsel %vm9444, %v10954, %v10955
        %v10957 = vrot.slane %v10842, 6
        %v10958 = vsel %vm9444, %v10955, %v10957
        %v10959 = vrot.slane %v10843, 6
        %v10960 = vrot.slane %v10844, 6
        %v10961 = vsel %vm9444, %v10959, %v10960
        %v10962 = vrot.slane %v10845, 6
        %v10963 = vsel %vm9444, %v10960, %v10962
        %v10964 = vrot.slane %v10846, 6
        %v10965 = vrot.slane %v10847, 6
        %v10966 = vsel %vm9444, %v10964, %v10965
        %v10967 = vrot.slane %v10848, 6
        %v10968 = vsel %vm9444, %v10965, %v10967
        %v10969 = vrot.slane %v10849, 6
        %v10970 = vrot.slane %v10850, 6
        %v10971 = vsel %vm9444, %v10969, %v10970
        %v10972 = vrot.slane %v10851, 6
        %v10973 = vsel %vm9444, %v10970, %v10972
        %v10974 = vrot.slane %v10852, 6
        %v10975 = vrot.slane %v10853, 6
        %v10976 = vsel %vm9444, %v10974, %v10975
        %v10977 = vrot.slane %v10854, 6
        %v10978 = vsel %vm9444, %v10975, %v10977
        %v10979 = vrot.slane %v10855, 6
        %v10980 = vrot.slane %v10856, 6
        %v10981 = vsel %vm9444, %v10979, %v10980
        %v10982 = vrot.slane %v10857, 6
        %v10983 = vsel %vm9444, %v10980, %v10982
        %v10984 = vrot.slane %v10858, 6
        %v10985 = vrot.slane %v10859, 6
        %v10986 = vsel %vm9444, %v10984, %v10985
        %v10987 = vrot.slane %v10860, 6
        %v10988 = vsel %vm9444, %v10985, %v10987
        %v11021 = vadd.f32 %v10777, %v10911
        %v11022 = vadd.f32 %v10778, %v10913
        %v11023 = vadd.f32 %v10779, %v10916
        %v11024 = vadd.f32 %v10780, %v10918
        %v11025 = vadd.f32 %v10781, %v10921
        %v11026 = vadd.f32 %v10782, %v10923
        %v11027 = vadd.f32 %v10783, %v10926
        %v11028 = vadd.f32 %v10784, %v10928
        %v11029 = vadd.f32 %v10785, %v10931
        %v11030 = vadd.f32 %v10786, %v10933
        %v11031 = vadd.f32 %v10787, %v10936
        %v11032 = vadd.f32 %v10788, %v10938
        %v11033 = vadd.f32 %v10789, %v10941
        %v11034 = vadd.f32 %v10790, %v10943
        %v11035 = vadd.f32 %v10791, %v10946
        %v11036 = vadd.f32 %v10792, %v10948
        %v11037 = vadd.f32 %v10793, %v10951
        %v11038 = vadd.f32 %v10794, %v10953
        %v11039 = vadd.f32 %v10795, %v10956
        %v11040 = vadd.f32 %v10796, %v10958
        %v11041 = vadd.f32 %v10797, %v10961
        %v11042 = vadd.f32 %v10798, %v10963
        %v11043 = vadd.f32 %v10799, %v10966
        %v11044 = vadd.f32 %v10800, %v10968
        %v11045 = vadd.f32 %v10801, %v10971
        %v11046 = vadd.f32 %v10802, %v10973
        %v11047 = vadd.f32 %v10803, %v10976
        %v11048 = vadd.f32 %v10804, %v10978
        %v11049 = vadd.f32 %v10805, %v10981
        %v11050 = vadd.f32 %v10806, %v10983
        %v11051 = vadd.f32 %v10807, %v10986
        %v11052 = vadd.f32 %v10808, %v10988
        %v11053 = vld [vmem:[%s2] sm:$0x1]
        %v11055 = vlaneseq
        %v11056 = vshrl.u32 %v11055, 7
        %v11057 = vsub.s32 0, %v11056
        %v11058 = vrot.slane %v11053, %v11057
        %v11060 = vadd.f32 %v11021, %v11058
        %v11061 = vadd.f32 %v11022, %v11058
        %v11062 = vadd.f32 %v11023, %v11058
        %v11063 = vadd.f32 %v11024, %v11058
        %v11064 = vadd.f32 %v11025, %v11058
        %v11065 = vadd.f32 %v11026, %v11058
        %v11066 = vadd.f32 %v11027, %v11058
        %v11067 = vadd.f32 %v11028, %v11058
        %v11068 = vadd.f32 %v11029, %v11058
        %v11069 = vadd.f32 %v11030, %v11058
        %v11070 = vadd.f32 %v11031, %v11058
        %v11071 = vadd.f32 %v11032, %v11058
        %v11072 = vadd.f32 %v11033, %v11058
        %v11073 = vadd.f32 %v11034, %v11058
        %v11074 = vadd.f32 %v11035, %v11058
        %v11075 = vadd.f32 %v11036, %v11058
        %v11076 = vadd.f32 %v11037, %v11058
        %v11077 = vadd.f32 %v11038, %v11058
        %v11078 = vadd.f32 %v11039, %v11058
        %v11079 = vadd.f32 %v11040, %v11058
        %v11080 = vadd.f32 %v11041, %v11058
        %v11081 = vadd.f32 %v11042, %v11058
        %v11082 = vadd.f32 %v11043, %v11058
        %v11083 = vadd.f32 %v11044, %v11058
        %v11084 = vadd.f32 %v11045, %v11058
        %v11085 = vadd.f32 %v11046, %v11058
        %v11086 = vadd.f32 %v11047, %v11058
        %v11087 = vadd.f32 %v11048, %v11058
        %v11088 = vadd.f32 %v11049, %v11058
        %v11089 = vadd.f32 %v11050, %v11058
        %v11090 = vadd.f32 %v11051, %v11058
        %v11091 = vadd.f32 %v11052, %v11058
        %v11092 = vmax.f32 %v11060, 0.0
        %v11093 = vmax.f32 %v11061, 0.0
        %v11094 = vmax.f32 %v11062, 0.0
        %v11095 = vmax.f32 %v11063, 0.0
        %v11096 = vmax.f32 %v11064, 0.0
        %v11097 = vmax.f32 %v11065, 0.0
        %v11098 = vmax.f32 %v11066, 0.0
        %v11099 = vmax.f32 %v11067, 0.0
        %v11100 = vmax.f32 %v11068, 0.0
        %v11101 = vmax.f32 %v11069, 0.0
        %v11102 = vmax.f32 %v11070, 0.0
        %v11103 = vmax.f32 %v11071, 0.0
        %v11104 = vmax.f32 %v11072, 0.0
        %v11105 = vmax.f32 %v11073, 0.0
        %v11106 = vmax.f32 %v11074, 0.0
        %v11107 = vmax.f32 %v11075, 0.0
        %v11108 = vmax.f32 %v11076, 0.0
        %v11109 = vmax.f32 %v11077, 0.0
        %v11110 = vmax.f32 %v11078, 0.0
        %v11111 = vmax.f32 %v11079, 0.0
        %v11112 = vmax.f32 %v11080, 0.0
        %v11113 = vmax.f32 %v11081, 0.0
        %v11114 = vmax.f32 %v11082, 0.0
        %v11115 = vmax.f32 %v11083, 0.0
        %v11116 = vmax.f32 %v11084, 0.0
        %v11117 = vmax.f32 %v11085, 0.0
        %v11118 = vmax.f32 %v11086, 0.0
        %v11119 = vmax.f32 %v11087, 0.0
        %v11120 = vmax.f32 %v11088, 0.0
        %v11121 = vmax.f32 %v11089, 0.0
        %v11122 = vmax.f32 %v11090, 0.0
        %v11123 = vmax.f32 %v11091, 0.0
        %v11124 = vld [vmem:[%s3] sm:$0xff]
        %v11125 = vld [vmem:[%s3 + $0x8] sm:$0xff]
        %v11126 = vld [vmem:[%s3 + $0x10] sm:$0xff]
        %v11127 = vld [vmem:[%s3 + $0x18] sm:$0xff]
        %v11128 = vld [vmem:[%s4] sm:$0x1]
        %v11130 = vlaneseq
        %v11131 = vshrl.u32 %v11130, 7
        %v11132 = vsub.s32 0, %v11131
        %v11133 = vrot.slane %v11128, %v11132
        %vm11135 = vcmask 261120
        %v11137 = vsel %vm11135, %v11092, 0
        %v11140 = vsel %vm11135, %v11093, 0
        %v11143 = vsel %vm11135, %v11094, 0
        %v11146 = vsel %vm11135, %v11095, 0
        %v11149 = vsel %vm11135, %v11096, 0
        %v11152 = vsel %vm11135, %v11097, 0
        %v11155 = vsel %vm11135, %v11098, 0
        %v11158 = vsel %vm11135, %v11099, 0
        %v11161 = vsel %vm11135, %v11100, 0
        %v11164 = vsel %vm11135, %v11101, 0
        %v11167 = vsel %vm11135, %v11102, 0
        %v11170 = vsel %vm11135, %v11103, 0
        %v11173 = vsel %vm11135, %v11104, 0
        %v11176 = vsel %vm11135, %v11105, 0
        %v11179 = vsel %vm11135, %v11106, 0
        %v11182 = vsel %vm11135, %v11107, 0
        %v11185 = vsel %vm11135, %v11108, 0
        %v11188 = vsel %vm11135, %v11109, 0
        %v11191 = vsel %vm11135, %v11110, 0
        %v11194 = vsel %vm11135, %v11111, 0
        %v11197 = vsel %vm11135, %v11112, 0
        %v11200 = vsel %vm11135, %v11113, 0
        %v11203 = vsel %vm11135, %v11114, 0
        %v11206 = vsel %vm11135, %v11115, 0
        %v11209 = vsel %vm11135, %v11116, 0
        %v11212 = vsel %vm11135, %v11117, 0
        %v11215 = vsel %vm11135, %v11118, 0
        %v11218 = vsel %vm11135, %v11119, 0
        %v11221 = vsel %vm11135, %v11120, 0
        %v11224 = vsel %vm11135, %v11121, 0
        %v11227 = vsel %vm11135, %v11122, 0
        %v11230 = vsel %vm11135, %v11123, 0
        %11232 = vmatprep.subr.mxu0 0.0
        %11233 = vmatpush1.msra.mxu0 %v11124
        %11234 = vmatprep.subr.mxu0 0.0
        %11235 = vmatpush1.msra.mxu0 %v11125
        %11236 = vmatprep.subr.mxu0 0.0
        %11237 = vmatpush1.msra.mxu0 %v11126
        %11238 = vmatprep.subr.mxu0 0.0
        %11239 = vmatpush1.msra.mxu0 %v11127
        %11240 = vmatprep.subr.mxu0 0.0
        %11241 = vmatpush1.msra.mxu0 0.0
        %11242 = vmatprep.subr.mxu0 0.0
        %11243 = vmatpush1.msra.mxu0 0.0
        %11244 = vmatprep.subr.mxu0 0.0
        %11245 = vmatpush1.msra.mxu0 0.0
        %11246 = vmatprep.subr.mxu0 0.0
        %11247 = vmatpush1.msra.mxu0 0.0
        %11248 = vmatprep.subr.mxu0 0.0
        %11249 = vmatpush1.msra.mxu0 0.0
        %11250 = vmatprep.subr.mxu0 0.0
        %11251 = vmatpush1.msra.mxu0 0.0
        %11252 = vmatprep.subr.mxu0 0.0
        %11253 = vmatpush1.msra.mxu0 0.0
        %11254 = vmatprep.subr.mxu0 0.0
        %11255 = vmatpush1.msra.mxu0 0.0
        %11256 = vmatprep.subr.mxu0 0.0
        %11257 = vmatpush1.msra.mxu0 0.0
        %11258 = vmatprep.subr.mxu0 0.0
        %11259 = vmatpush1.msra.mxu0 0.0
        %11260 = vmatprep.subr.mxu0 0.0
        %11261 = vmatpush1.msra.mxu0 0.0
        %11262 = vmatprep.subr.mxu0 0.0
        %11263 = vmatpush1.msra.mxu0 0.0
        %11264 = vmatprep.subr.mxu0 0.0
        %11265 = vmatpush1.msra.mxu0 0.0
        %11266 = vmatprep.subr.mxu0 0.0
        %11267 = vmatpush1.msra.mxu0 0.0
        %11268 = vmatprep.subr.mxu0 0.0
        %11269 = vmatpush1.msra.mxu0 0.0
        %11270 = vmatprep.subr.mxu0 0.0
        %11271 = vmatpush1.msra.mxu0 0.0
        %11272 = vmatprep.subr.mxu0 0.0
        %11273 = vmatpush1.msra.mxu0 0.0
        %11274 = vmatprep.subr.mxu0 0.0
        %11275 = vmatpush1.msra.mxu0 0.0
        %11276 = vmatprep.subr.mxu0 0.0
        %11277 = vmatpush1.msra.mxu0 0.0
        %11278 = vmatprep.subr.mxu0 0.0
        %11279 = vmatpush1.msra.mxu0 0.0
        %11280 = vmatprep.subr.mxu0 0.0
        %11281 = vmatpush1.msra.mxu0 0.0
        %11282 = vmatprep.subr.mxu0 0.0
        %11283 = vmatpush1.msra.mxu0 0.0
        %11284 = vmatprep.subr.mxu0 0.0
        %11285 = vmatpush1.msra.mxu0 0.0
        %11286 = vmatprep.subr.mxu0 0.0
        %11287 = vmatpush1.msra.mxu0 0.0
        %11288 = vmatprep.subr.mxu0 0.0
        %11289 = vmatpush1.msra.mxu0 0.0
        %11290 = vmatprep.subr.mxu0 0.0
        %11291 = vmatpush1.msra.mxu0 0.0
        %11292 = vmatprep.subr.mxu0 0.0
        %11293 = vmatpush1.msra.mxu0 0.0
        %11294 = vmatprep.subr.mxu0 0.0
        %11295 = vmatpush1.msra.mxu0 0.0
        %11296 = vmatprep.mubr.f32.mxu0 0.0
        %11297 = vmatmul.mubr.f32.gmra.mrb[0].mxu0 %v11137
        %v11298 = vpop.f32.mrb[0].mxu0
        %v11299 = vadd.f32 %v11133, %v11298
        %v11300 = vpop.f32.mrb[0].mxu0
        %11301 = vmatprep.mubr.f32.mxu0 0.0
        %11302 = vmatmul.mubr.f32.gmra.mrb[0].mxu0 %v11140
        %v11303 = vpop.f32.mrb[0].mxu0
        %v11304 = vadd.f32 %v11133, %v11303
        %v11305 = vpop.f32.mrb[0].mxu0
        %11306 = vmatprep.mubr.f32.mxu0 0.0
        %11307 = vmatmul.mubr.f32.gmra.mrb[0].mxu0 %v11143
        %v11308 = vpop.f32.mrb[0].mxu0
        %v11309 = vadd.f32 %v11133, %v11308
        %v11310 = vpop.f32.mrb[0].mxu0
        %11311 = vmatprep.mubr.f32.mxu0 0.0
        %11312 = vmatmul.mubr.f32.gmra.mrb[0].mxu0 %v11146
        %v11313 = vpop.f32.mrb[0].mxu0
        %v11314 = vadd.f32 %v11133, %v11313
        %v11315 = vpop.f32.mrb[0].mxu0
        %11316 = vmatprep.mubr.f32.mxu0 0.0
        %11317 = vmatmul.mubr.f32.gmra.mrb[0].mxu0 %v11149
        %v11318 = vpop.f32.mrb[0].mxu0
        %v11319 = vadd.f32 %v11133, %v11318
        %v11320 = vpop.f32.mrb[0].mxu0
        %11321 = vmatprep.mubr.f32.mxu0 0.0
        %11322 = vmatmul.mubr.f32.gmra.mrb[0].mxu0 %v11152
        %v11323 = vpop.f32.mrb[0].mxu0
        %v11324 = vadd.f32 %v11133, %v11323
        %v11325 = vpop.f32.mrb[0].mxu0
        %11326 = vmatprep.mubr.f32.mxu0 0.0
        %11327 = vmatmul.mubr.f32.gmra.mrb[0].mxu0 %v11155
        %v11328 = vpop.f32.mrb[0].mxu0
        %v11329 = vadd.f32 %v11133, %v11328
        %v11330 = vpop.f32.mrb[0].mxu0
        %11331 = vmatprep.mubr.f32.mxu0 0.0
        %11332 = vmatmul.mubr.f32.gmra.mrb[0].mxu0 %v11158
        %v11333 = vpop.f32.mrb[0].mxu0
        %v11334 = vadd.f32 %v11133, %v11333
        %v11335 = vpop.f32.mrb[0].mxu0
        %11336 = vmatprep.mubr.f32.mxu0 0.0
        %11337 = vmatmul.mubr.f32.gmra.mrb[0].mxu0 %v11161
        %v11338 = vpop.f32.mrb[0].mxu0
        %v11339 = vadd.f32 %v11133, %v11338
        %v11340 = vpop.f32.mrb[0].mxu0
        %11341 = vmatprep.mubr.f32.mxu0 0.0
        %11342 = vmatmul.mubr.f32.gmra.mrb[0].mxu0 %v11164
        %v11343 = vpop.f32.mrb[0].mxu0
        %v11344 = vadd.f32 %v11133, %v11343
        %v11345 = vpop.f32.mrb[0].mxu0
        %11346 = vmatprep.mubr.f32.mxu0 0.0
        %11347 = vmatmul.mubr.f32.gmra.mrb[0].mxu0 %v11167
        %v11348 = vpop.f32.mrb[0].mxu0
        %v11349 = vadd.f32 %v11133, %v11348
        %v11350 = vpop.f32.mrb[0].mxu0
        %11351 = vmatprep.mubr.f32.mxu0 0.0
        %11352 = vmatmul.mubr.f32.gmra.mrb[0].mxu0 %v11170
        %v11353 = vpop.f32.mrb[0].mxu0
        %v11354 = vadd.f32 %v11133, %v11353
        %v11355 = vpop.f32.mrb[0].mxu0
        %11356 = vmatprep.mubr.f32.mxu0 0.0
        %11357 = vmatmul.mubr.f32.gmra.mrb[0].mxu0 %v11173
        %v11358 = vpop.f32.mrb[0].mxu0
        %v11359 = vadd.f32 %v11133, %v11358
        %v11360 = vpop.f32.mrb[0].mxu0
        %11361 = vmatprep.mubr.f32.mxu0 0.0
        %11362 = vmatmul.mubr.f32.gmra.mrb[0].mxu0 %v11176
        %v11363 = vpop.f32.mrb[0].mxu0
        %v11364 = vadd.f32 %v11133, %v11363
        %v11365 = vpop.f32.mrb[0].mxu0
        %11366 = vmatprep.mubr.f32.mxu0 0.0
        %11367 = vmatmul.mubr.f32.gmra.mrb[0].mxu0 %v11179
        %v11368 = vpop.f32.mrb[0].mxu0
        %v11369 = vadd.f32 %v11133, %v11368
        %v11370 = vpop.f32.mrb[0].mxu0
        %11371 = vmatprep.mubr.f32.mxu0 0.0
        %11372 = vmatmul.mubr.f32.gmra.mrb[0].mxu0 %v11182
        %v11373 = vpop.f32.mrb[0].mxu0
        %v11374 = vadd.f32 %v11133, %v11373
        %v11375 = vpop.f32.mrb[0].mxu0
        %11376 = vmatprep.mubr.f32.mxu0 0.0
        %11377 = vmatmul.mubr.f32.gmra.mrb[0].mxu0 %v11185
        %v11378 = vpop.f32.mrb[0].mxu0
        %v11379 = vadd.f32 %v11133, %v11378
        %v11380 = vpop.f32.mrb[0].mxu0
        %11381 = vmatprep.mubr.f32.mxu0 0.0
        %11382 = vmatmul.mubr.f32.gmra.mrb[0].mxu0 %v11188
        %v11383 = vpop.f32.mrb[0].mxu0
        %v11384 = vadd.f32 %v11133, %v11383
        %v11385 = vpop.f32.mrb[0].mxu0
        %11386 = vmatprep.mubr.f32.mxu0 0.0
        %11387 = vmatmul.mubr.f32.gmra.mrb[0].mxu0 %v11191
        %v11388 = vpop.f32.mrb[0].mxu0
        %v11389 = vadd.f32 %v11133, %v11388
        %v11390 = vpop.f32.mrb[0].mxu0
        %11391 = vmatprep.mubr.f32.mxu0 0.0
        %11392 = vmatmul.mubr.f32.gmra.mrb[0].mxu0 %v11194
        %v11393 = vpop.f32.mrb[0].mxu0
        %v11394 = vadd.f32 %v11133, %v11393
        %v11395 = vpop.f32.mrb[0].mxu0
        %11396 = vmatprep.mubr.f32.mxu0 0.0
        %11397 = vmatmul.mubr.f32.gmra.mrb[0].mxu0 %v11197
        %v11398 = vpop.f32.mrb[0].mxu0
        %v11399 = vadd.f32 %v11133, %v11398
        %v11400 = vpop.f32.mrb[0].mxu0
        %11401 = vmatprep.mubr.f32.mxu0 0.0
        %11402 = vmatmul.mubr.f32.gmra.mrb[0].mxu0 %v11200
        %v11403 = vpop.f32.mrb[0].mxu0
        %v11404 = vadd.f32 %v11133, %v11403
        %v11405 = vpop.f32.mrb[0].mxu0
        %11406 = vmatprep.mubr.f32.mxu0 0.0
        %11407 = vmatmul.mubr.f32.gmra.mrb[0].mxu0 %v11203
        %v11408 = vpop.f32.mrb[0].mxu0
        %v11409 = vadd.f32 %v11133, %v11408
        %v11410 = vpop.f32.mrb[0].mxu0
        %11411 = vmatprep.mubr.f32.mxu0 0.0
        %11412 = vmatmul.mubr.f32.gmra.mrb[0].mxu0 %v11206
        %v11413 = vpop.f32.mrb[0].mxu0
        %v11414 = vadd.f32 %v11133, %v11413
        %v11415 = vpop.f32.mrb[0].mxu0
        %11416 = vmatprep.mubr.f32.mxu0 0.0
        %11417 = vmatmul.mubr.f32.gmra.mrb[0].mxu0 %v11209
        %v11418 = vpop.f32.mrb[0].mxu0
        %v11419 = vadd.f32 %v11133, %v11418
        %v11420 = vpop.f32.mrb[0].mxu0
        %11421 = vmatprep.mubr.f32.mxu0 0.0
        %11422 = vmatmul.mubr.f32.gmra.mrb[0].mxu0 %v11212
        %v11423 = vpop.f32.mrb[0].mxu0
        %v11424 = vadd.f32 %v11133, %v11423
        %v11425 = vpop.f32.mrb[0].mxu0
        %11426 = vmatprep.mubr.f32.mxu0 0.0
        %11427 = vmatmul.mubr.f32.gmra.mrb[0].mxu0 %v11215
        %v11428 = vpop.f32.mrb[0].mxu0
        %v11429 = vadd.f32 %v11133, %v11428
        %v11430 = vpop.f32.mrb[0].mxu0
        %11431 = vmatprep.mubr.f32.mxu0 0.0
        %11432 = vmatmul.mubr.f32.gmra.mrb[0].mxu0 %v11218
        %v11433 = vpop.f32.mrb[0].mxu0
        %v11434 = vadd.f32 %v11133, %v11433
        %v11435 = vpop.f32.mrb[0].mxu0
        %11436 = vmatprep.mubr.f32.mxu0 0.0
        %11437 = vmatmul.mubr.f32.gmra.mrb[0].mxu0 %v11221
        %v11438 = vpop.f32.mrb[0].mxu0
        %v11439 = vadd.f32 %v11133, %v11438
        %v11440 = vpop.f32.mrb[0].mxu0
        %11441 = vmatprep.mubr.f32.mxu0 0.0
        %11442 = vmatmul.mubr.f32.gmra.mrb[0].mxu0 %v11224
        %v11443 = vpop.f32.mrb[0].mxu0
        %v11444 = vadd.f32 %v11133, %v11443
        %v11445 = vpop.f32.mrb[0].mxu0
        %11446 = vmatprep.mubr.f32.mxu0 0.0
        %11447 = vmatmul.mubr.f32.gmra.mrb[0].mxu0 %v11227
        %v11448 = vpop.f32.mrb[0].mxu0
        %v11449 = vadd.f32 %v11133, %v11448
        %v11450 = vpop.f32.mrb[0].mxu0
        %11451 = vmatprep.mubr.f32.mxu0 0.0
        %11452 = vmatmul.mubr.f32.gmra.mrb[0].mxu0 %v11230
        %v11453 = vpop.f32.mrb[0].mxu0
        %v11454 = vadd.f32 %v11133, %v11453
        %v11455 = vpop.f32.mrb[0].mxu0
        %11456 = vdwg.mxu0
        %v11457 = vmax.f32 %v11299, 0.0
        %v11458 = vmax.f32 %v11304, 0.0
        %v11459 = vmax.f32 %v11309, 0.0
        %v11460 = vmax.f32 %v11314, 0.0
        %v11461 = vmax.f32 %v11319, 0.0
        %v11462 = vmax.f32 %v11324, 0.0
        %v11463 = vmax.f32 %v11329, 0.0
        %v11464 = vmax.f32 %v11334, 0.0
        %v11465 = vmax.f32 %v11339, 0.0
        %v11466 = vmax.f32 %v11344, 0.0
        %v11467 = vmax.f32 %v11349, 0.0
        %v11468 = vmax.f32 %v11354, 0.0
        %v11469 = vmax.f32 %v11359, 0.0
        %v11470 = vmax.f32 %v11364, 0.0
        %v11471 = vmax.f32 %v11369, 0.0
        %v11472 = vmax.f32 %v11374, 0.0
        %v11473 = vmax.f32 %v11379, 0.0
        %v11474 = vmax.f32 %v11384, 0.0
        %v11475 = vmax.f32 %v11389, 0.0
        %v11476 = vmax.f32 %v11394, 0.0
        %v11477 = vmax.f32 %v11399, 0.0
        %v11478 = vmax.f32 %v11404, 0.0
        %v11479 = vmax.f32 %v11409, 0.0
        %v11480 = vmax.f32 %v11414, 0.0
        %v11481 = vmax.f32 %v11419, 0.0
        %v11482 = vmax.f32 %v11424, 0.0
        %v11483 = vmax.f32 %v11429, 0.0
        %v11484 = vmax.f32 %v11434, 0.0
        %v11485 = vmax.f32 %v11439, 0.0
        %v11486 = vmax.f32 %v11444, 0.0
        %v11487 = vmax.f32 %v11449, 0.0
        %v11488 = vmax.f32 %v11454, 0.0
        %v11489 = vld [vmem:[%s5] sm:$0xff]
        %v11491 = vsel %vm11135, %v11489, 0
        %v11494 = vsel %vm11135, %v11457, 0
        %v11497 = vsel %vm11135, %v11458, 0
        %v11500 = vsel %vm11135, %v11459, 0
        %v11503 = vsel %vm11135, %v11460, 0
        %v11506 = vsel %vm11135, %v11461, 0
        %v11509 = vsel %vm11135, %v11462, 0
        %v11512 = vsel %vm11135, %v11463, 0
        %v11515 = vsel %vm11135, %v11464, 0
        %v11518 = vsel %vm11135, %v11465, 0
        %v11521 = vsel %vm11135, %v11466, 0
        %v11524 = vsel %vm11135, %v11467, 0
        %v11527 = vsel %vm11135, %v11468, 0
        %v11530 = vsel %vm11135, %v11469, 0
        %v11533 = vsel %vm11135, %v11470, 0
        %v11536 = vsel %vm11135, %v11471, 0
        %v11539 = vsel %vm11135, %v11472, 0
        %v11542 = vsel %vm11135, %v11473, 0
        %v11545 = vsel %vm11135, %v11474, 0
        %v11548 = vsel %vm11135, %v11475, 0
        %v11551 = vsel %vm11135, %v11476, 0
        %v11554 = vsel %vm11135, %v11477, 0
        %v11557 = vsel %vm11135, %v11478, 0
        %v11560 = vsel %vm11135, %v11479, 0
        %v11563 = vsel %vm11135, %v11480, 0
        %v11566 = vsel %vm11135, %v11481, 0
        %v11569 = vsel %vm11135, %v11482, 0
        %v11572 = vsel %vm11135, %v11483, 0
        %v11575 = vsel %vm11135, %v11484, 0
        %v11578 = vsel %vm11135, %v11485, 0
        %v11581 = vsel %vm11135, %v11486, 0
        %v11584 = vsel %vm11135, %v11487, 0
        %v11587 = vsel %vm11135, %v11488, 0
        %11589 = vmatprep.subr.mxu0 0.0
        %11590 = vmatpush1.xpose.msra.mxu0 %v11494
        %11591 = vmatprep.subr.mxu0 0.0
        %11592 = vmatpush1.xpose.msra.mxu0 %v11497
        %11593 = vmatprep.subr.mxu0 0.0
        %11594 = vmatpush1.xpose.msra.mxu0 %v11500
        %11595 = vmatprep.subr.mxu0 0.0
        %11596 = vmatpush1.xpose.msra.mxu0 %v11503
        %11597 = vmatprep.subr.mxu0 0.0
        %11598 = vmatpush1.xpose.msra.mxu0 %v11506
        %11599 = vmatprep.subr.mxu0 0.0
        %11600 = vmatpush1.xpose.msra.mxu0 %v11509
        %11601 = vmatprep.subr.mxu0 0.0
        %11602 = vmatpush1.xpose.msra.mxu0 %v11512
        %11603 = vmatprep.subr.mxu0 0.0
        %11604 = vmatpush1.xpose.msra.mxu0 %v11515
        %11605 = vmatprep.subr.mxu0 0.0
        %11606 = vmatpush1.xpose.msra.mxu0 %v11518
        %11607 = vmatprep.subr.mxu0 0.0
        %11608 = vmatpush1.xpose.msra.mxu0 %v11521
        %11609 = vmatprep.subr.mxu0 0.0
        %11610 = vmatpush1.xpose.msra.mxu0 %v11524
        %11611 = vmatprep.subr.mxu0 0.0
        %11612 = vmatpush1.xpose.msra.mxu0 %v11527
        %11613 = vmatprep.subr.mxu0 0.0
        %11614 = vmatpush1.xpose.msra.mxu0 %v11530
        %11615 = vmatprep.subr.mxu0 0.0
        %11616 = vmatpush1.xpose.msra.mxu0 %v11533
        %11617 = vmatprep.subr.mxu0 0.0
        %11618 = vmatpush1.xpose.msra.mxu0 %v11536
        %11619 = vmatprep.subr.mxu0 0.0
        %11620 = vmatpush1.xpose.msra.mxu0 %v11539
        %11621 = vmatprep.subr.mxu0 0.0
        %11622 = vmatpush1.xpose.msra.mxu0 %v11542
        %11623 = vmatprep.subr.mxu0 0.0
        %11624 = vmatpush1.xpose.msra.mxu0 %v11545
        %11625 = vmatprep.subr.mxu0 0.0
        %11626 = vmatpush1.xpose.msra.mxu0 %v11548
        %11627 = vmatprep.subr.mxu0 0.0
        %11628 = vmatpush1.xpose.msra.mxu0 %v11551
        %11629 = vmatprep.subr.mxu0 0.0
        %11630 = vmatpush1.xpose.msra.mxu0 %v11554
        %11631 = vmatprep.subr.mxu0 0.0
        %11632 = vmatpush1.xpose.msra.mxu0 %v11557
        %11633 = vmatprep.subr.mxu0 0.0
        %11634 = vmatpush1.xpose.msra.mxu0 %v11560
        %11635 = vmatprep.subr.mxu0 0.0
        %11636 = vmatpush1.xpose.msra.mxu0 %v11563
        %11637 = vmatprep.subr.mxu0 0.0
        %11638 = vmatpush1.xpose.msra.mxu0 %v11566
        %11639 = vmatprep.subr.mxu0 0.0
        %11640 = vmatpush1.xpose.msra.mxu0 %v11569
        %11641 = vmatprep.subr.mxu0 0.0
        %11642 = vmatpush1.xpose.msra.mxu0 %v11572
        %11643 = vmatprep.subr.mxu0 0.0
        %11644 = vmatpush1.xpose.msra.mxu0 %v11575
        %11645 = vmatprep.subr.mxu0 0.0
        %11646 = vmatpush1.xpose.msra.mxu0 %v11578
        %11647 = vmatprep.subr.mxu0 0.0
        %11648 = vmatpush1.xpose.msra.mxu0 %v11581
        %11649 = vmatprep.subr.mxu0 0.0
        %11650 = vmatpush1.xpose.msra.mxu0 %v11584
        %11651 = vmatprep.subr.mxu0 0.0
        %11652 = vmatpush1.xpose.msra.mxu0 %v11587
        %11653 = vmatprep.mubr.f32.mxu0 0.0
        %11654 = vmatmul.mubr.f32.gmra.mrb[0].mxu0 %v11491
        %v11655 = vpop.f32.mrb[0].mxu0
        %v11656 = vadd.f32 0.0, %v11655
        %v11657 = vpop.f32.mrb[0].mxu0
        %v11658 = vadd.f32 0.0, %v11657
        %11659 = vdwg.mxu0
        %11660 = vst [vmem:[%s244] sm:$0xff] %v11656
        %11661 = vst [vmem:[%s244 + $0x8] sm:$0xff] %v11658
        %s11662 = sand.u32 %s159, 1
        %s11663 = scalar_lea.sflag [#allocation3], %s11662
        %s11664 = sand.u32 %s159, 1
        %s11665 = smul.addr %s11664, 16
        %s11666 = scalar_lea.vmem [#allocation2], %s11665
        // Predicated region
        $region45: #{tpu_custom_call.1} parent=43 // pred_check
          %p11667 = pneg %p169
        $region46: #{tpu_custom_call.1} parent=43 // pred_check_branch
          %11669 = sbr.rel (%p11667) target = $region48
        $region47: #{tpu_custom_call.1} parent=43 // pred_region
          %s11671 = ssub.s32 256, 256
          %11672 = vsyncadd %s11663, %s11671
          %s11673 = smul.addr %s20, 2
          %s11674 = smul.addr %s11673, 128
          %s11675 = scalar_lea.hbm %s6, %s11674
          %s11677 = sshll.u32 %s11666, 4
          %s11678 = int_to_ptr.vmem [resolvable:$true] %s11677
          %11680 = dma.vmem_to_hbm [thread:$0]  %s11678, 256, %s11675, %s11663
        $region48: #{tpu_custom_call.1} parent=43 // pred_fallthru
          _
      $region44: #{tpu_custom_call.1} parent=5 // pred_fallthru
        _
      %p11681 = scmp.le.s32.totalorder 2, %s15
      // Predicated region
      $region49: #{tpu_custom_call.1} parent=5 // pred_check
        %p11682 = pneg %p11681
      $region50: #{tpu_custom_call.1} parent=5 // pred_check_branch
        %11684 = sbr.rel (%p11682) target = $region52
      $region51: #{tpu_custom_call.1} parent=5 // pred_region
        %s11685 = ssub.s32 %s15, 2
        // Predicated region
        $region53: #{tpu_custom_call.1} parent=51 // pred_check
          %p11686 = pneg %p175
        $region54: #{tpu_custom_call.1} parent=51 // pred_check_branch
          %11688 = sbr.rel (%p11686) target = $region56
        $region55: #{tpu_custom_call.1} parent=51 // pred_region
          %s11689 = sand.u32 %s160, 1
          %s11690 = scalar_lea.sflag [#allocation3], %s11689
          %s11691 = sand.u32 %s160, 1
          %s11692 = smul.addr %s11691, 16
          %s11693 = scalar_lea.vmem [#allocation2], %s11692
          %11694 = dma.done %s11690, 256
        $region56: #{tpu_custom_call.1} parent=51 // pred_fallthru
          _
      $region52: #{tpu_custom_call.1} parent=5 // pred_fallthru
        _
    $region6: #{tpu_custom_call.1} parent=1 // loop_footer
      %s19 = sadd.s32 1, %s15
    $region7: #{tpu_custom_call.1} parent=1 // loop_footer_branch
      %14 = sbr.rel target = $region3
    $region8: #{tpu_custom_call.1} parent=1 // loop_exit
      _
    %11695 = vsyncpa [#allocation3], 1
    %s11696 = scalar_lea.sflag [#allocation3], 1
    %11697 = vsyncpa %s11696, 1

</llo_original>
